<compile_context>
chip_gen: v6e
topology: v6e:2x2x1
jax: 0.10.0
libtpu: 0.0.40
codegen_flags: <defaults>
</compile_context>

<pallas_src>
import functools
import math

import jax
import jax.numpy as jnp
from jax.experimental import pallas as pl
from jax.experimental.pallas import tpu as pltpu

EPS = 1e-5   # nn.LayerNorm default eps
LANE = 128   # TPU lane width


def _layernorm(x, gamma, beta):
    mu = jnp.mean(x, axis=-1, keepdims=True)
    var = jnp.mean((x - mu) ** 2, axis=-1, keepdims=True)  # biased, like nn.LayerNorm
    return (x - mu) * jax.lax.rsqrt(var + EPS) * gamma + beta


def _gelu_exact(x):
    # nn.GELU default = exact erf formulation
    return 0.5 * x * (1.0 + jax.lax.erf(x * (1.0 / math.sqrt(2.0))))


# ----------------------------------------------------------------------------
# Fused whole-model kernel (Bt batch elements per grid step)
# ----------------------------------------------------------------------------
def fused_model_kernel(
    x_ref,      # (M, Din)       f32   M = Bt*S rows handled this grid step
    temb_ref,   # (M, D)         f32   time embedding, pre-broadcast over seq
    w_in_ref,   # (Din, D)       bf16
    b_in_ref,   # (1, D)         f32
    wq_ref,     # (L*H, D, hd)   bf16  per-head Q projection
    wk_ref,     # (L*H, D, hd)   bf16
    wv_ref,     # (L*H, D, hd)   bf16
    wo_ref,     # (L*H, hd, D)   bf16  per-head slice of attn out_proj
    bqkv_ref,   # (L*H, 3, hd)   f32   rows = [bq, bk, bv]
    w1_ref,     # (L, D, 4D)     bf16
    b1_ref,     # (L, 1, 4D)     f32
    w2_ref,     # (L, 4D, D)     bf16
    vecs_ref,   # (L, 6, D)      f32   rows = [bo, g1, be1, b2, g2, be2]
    w_out_ref,  # (D, Dout_pad)  bf16
    b_out_ref,  # (1, Dout_pad)  f32
    o_ref,      # (M, Dout_pad)  f32
    h_ref,      # (M, D)         f32 VMEM scratch: activations between layers
    *, num_heads, num_layers, block_batch, seq_len,
):
    M = x_ref.shape[0]
    D = w_in_ref.shape[1]
    hd = D // num_heads
    scale = 1.0 / math.sqrt(hd)
    bf16 = jnp.bfloat16

    # input_proj(x) + t_emb : one (M, Din) @ (Din, D) matmul for all Bt*S rows.
    h_ref[...] = (
        jnp.dot(x_ref[...].astype(bf16), w_in_ref[...],
                preferred_element_type=jnp.float32)
        + b_in_ref[...] + temb_ref[...]
    )

    for l in range(num_layers):      # static unroll: L is small, weights stay in VMEM
        h = h_ref[...]               # (M, D) f32
        hb = h.astype(bf16)
        vec = vecs_ref[l]            # (6, D) full-lane-width rows
        bo, g1, be1, b2, g2, be2 = (vec[r:r + 1, :] for r in range(6))

        # --- multi-head self attention (batch_first nn.MultiheadAttention) ---
        # Head selection happens in the weight layout (leading-dim index, free);
        # scores / context are batched over the Bt batch elements in one einsum.
        attn = jnp.zeros((M, D), jnp.float32)
        for hh in range(num_heads):
            w_idx = l * num_heads + hh
            bqv = bqkv_ref[w_idx]                                   # (3, hd)
            q = jnp.dot(hb, wq_ref[w_idx], preferred_element_type=jnp.float32) + bqv[0:1]
            k = jnp.dot(hb, wk_ref[w_idx], preferred_element_type=jnp.float32) + bqv[1:2]
            v = jnp.dot(hb, wv_ref[w_idx], preferred_element_type=jnp.float32) + bqv[2:3]
            q3 = q.reshape(block_batch, seq_len, hd).astype(bf16)
            k3 = k.reshape(block_batch, seq_len, hd).astype(bf16)
            v3 = v.reshape(block_batch, seq_len, hd).astype(bf16)
            s = jnp.einsum("bqd,bkd->bqk", q3, k3,
                           preferred_element_type=jnp.float32) * scale
            s = s - jnp.max(s, axis=-1, keepdims=True)
            p = jnp.exp(s)
            # approx reciprocal runs on the EUP slot; keep exact division if a
            # tight PyTorch-parity test is required.
            p = p * pl.reciprocal(jnp.sum(p, axis=-1, keepdims=True), approx=True)
            ctx = jnp.einsum("bqk,bkd->bqd", p.astype(bf16), v3,
                             preferred_element_type=jnp.float32)     # (Bt, S, hd)
            attn = attn + jnp.dot(ctx.reshape(M, hd).astype(bf16), wo_ref[w_idx],
                                  preferred_element_type=jnp.float32)
        attn = attn + bo

        # dropout -> identity (eval semantics)
        h = _layernorm(h + attn, g1, be1)

        # --- feed forward -----------------------------------------------------
        h1 = _gelu_exact(
            jnp.dot(h.astype(bf16), w1_ref[l], preferred_element_type=jnp.float32)
            + b1_ref[l])
        ff = jnp.dot(h1.astype(bf16), w2_ref[l], preferred_element_type=jnp.float32) + b2
        h = _layernorm(h + ff, g2, be2)
        h_ref[...] = h

    # output projection into a lane-dense (128-multiple) slab (unmasked stores).
    o_ref[...] = (
        jnp.dot(h_ref[...].astype(bf16), w_out_ref[...],
                preferred_element_type=jnp.float32)
        + b_out_ref[...]
    )


# ----------------------------------------------------------------------------
# Wrapper (single pallas_call)
# ----------------------------------------------------------------------------
def _pick_block_batch(batch, seq, target_rows=256):
    """Largest divisor Bt of `batch` with Bt*seq <= target_rows, keeping the
    block row count 8-aligned unless the block covers the whole batch."""
    best = 1
    for cand in range(1, batch + 1):
        if batch % cand:
            continue
        if cand * seq > max(target_rows, seq):
            break
        if cand == batch or (cand * seq) % 8 == 0:
            best = cand
    return best


def transformer_diffusion_forward(params, x, t, *, num_heads=4):
    B, S, Din = x.shape
    D = params["w_in"].shape[1]
    L = params["w1"].shape[0]
    Dout = params["w_out"].shape[1]
    H = num_heads
    assert D % H == 0

    Bt = _pick_block_batch(B, S)
    M_blk = Bt * S
    Dout_pad = max(LANE, ((Dout + LANE - 1) // LANE) * LANE)

    # tiny glue in plain JAX (fused by jit around the single pallas_call)
    t_emb = sinusoidal_pos_emb(t, D) @ params["w_time"] + params["b_time"]   # (B, D)
    temb2 = jnp.broadcast_to(t_emb[:, None, :], (B, S, D)).reshape(B * S, D)
    temb2 = temb2.astype(jnp.float32)
    x2 = x.reshape(B * S, Din).astype(jnp.float32)

    # lane-dense output projection (pad to 128 lanes); wrapper slices back to Dout
    w_out_p = jnp.zeros((D, Dout_pad), jnp.bfloat16).at[:, :Dout].set(params["w_out"])
    b_out_p = jnp.zeros((1, Dout_pad), jnp.float32).at[:, :Dout].set(params["b_out"])

    kernel = functools.partial(fused_model_kernel, num_heads=H, num_layers=L,
                               block_batch=Bt, seq_len=S)

    def row_spec(cols):
        return pl.BlockSpec((M_blk, cols), lambda i: (i, 0))

    def const_spec(arr):
        nd = arr.ndim
        return pl.BlockSpec(arr.shape, lambda i, nd=nd: (0,) * nd)

    args = (
        x2, temb2,
        params["w_in"], params["b_in"],
        params["wq"], params["wk"], params["wv"], params["wo"], params["bqkv"],
        params["w1"], params["b1"], params["w2"], params["vecs"],
        w_out_p, b_out_p,
    )
    in_specs = [row_spec(Din), row_spec(D)] + [const_spec(a) for a in args[2:]]

    # advisory cost estimate so XLA schedules neighbouring ops sensibly
    flops = 2 * B * S * D * (Din + Dout_pad) + L * (24 * B * S * D * D + 4 * B * S * S * D)
    transc = B * L * S * (H * S + 4 * D)
    weight_bytes = sum(int(a.size) * a.dtype.itemsize for a in args[2:])
    act_bytes = 4 * B * S * (Din + D + Dout_pad)
    cost = pl.CostEstimate(flops=int(flops), transcendentals=int(transc),
                           bytes_accessed=int(weight_bytes + act_bytes))

    out = pl.pallas_call(
        kernel,
        out_shape=jax.ShapeDtypeStruct((B * S, Dout_pad), jnp.float32),
        grid=(B // Bt,),
        in_specs=in_specs,
        out_specs=row_spec(Dout_pad),
        scratch_shapes=[pltpu.VMEM((M_blk, D), jnp.float32)],
        compiler_params=pltpu.CompilerParams(
            dimension_semantics=("parallel",),   # batch-group axis is independent
            vmem_limit_bytes=32 * 1024 * 1024,   # v5e default scoped limit is only 16 MiB
        ),
        cost_estimate=cost,
    )(*args)

    return out[:, :Dout].reshape(B, S, Dout)


# ----------------------------------------------------------------------------
# Model params + time embedding
# ----------------------------------------------------------------------------
def sinusoidal_pos_emb(t, dim):
    half = dim // 2
    emb = math.log(10000.0) / max(half - 1, 1)
    freqs = jnp.exp(jnp.arange(half, dtype=jnp.float32) * -emb)
    ang = t.astype(jnp.float32)[:, None] * freqs[None, :]
    return jnp.concatenate([jnp.sin(ang), jnp.cos(ang)], axis=-1)


def init_params(key, input_dim, model_dim, num_layers, num_heads=4):
    D, H, L = model_dim, num_heads, num_layers
    hd = D // H
    bf16 = jnp.bfloat16

    def nrm(k, shape, scale=0.02):
        return scale * jax.random.normal(k, shape, jnp.float32)

    keys = jax.random.split(key, 7)
    p = {}
    p["w_in"] = nrm(keys[0], (input_dim, D)).astype(bf16)
    p["b_in"] = nrm(keys[1], (1, D), 0.01)
    p["w_time"] = nrm(keys[2], (D, D))
    p["b_time"] = nrm(keys[3], (D,), 0.01)
    p["w_out"] = nrm(keys[4], (D, input_dim)).astype(bf16)
    p["b_out"] = nrm(keys[5], (1, input_dim), 0.01)

    kq, kk, kv, ko, kb, k1, k2, kvec, kb1 = jax.random.split(keys[6], 9)
    # Per-head Q/K/V/O projection weights stored (L*H, ...) so the kernel indexes
    # heads through the leading dim (free) instead of lane-slicing activations.
    # PyTorch checkpoint mapping per layer l, head h:
    #   wq[l*H+h] = in_proj_weight[0:D].T[:, h*hd:(h+1)*hd]        (k, v analogous)
    #   wo[l*H+h] = out_proj.weight.T[h*hd:(h+1)*hd, :]
    #   bqkv[l*H+h] = stack(in_proj_bias[{0,D,2D}+h*hd : +hd])
    p["wq"] = nrm(kq, (L * H, D, hd)).astype(bf16)
    p["wk"] = nrm(kk, (L * H, D, hd)).astype(bf16)
    p["wv"] = nrm(kv, (L * H, D, hd)).astype(bf16)
    p["wo"] = nrm(ko, (L * H, hd, D)).astype(bf16)
    p["bqkv"] = nrm(kb, (L * H, 3, hd), 0.01)

    p["w1"] = nrm(k1, (L, D, 4 * D)).astype(bf16)
    p["w2"] = nrm(k2, (L, 4 * D, D)).astype(bf16)
    p["b1"] = 0.01 * jax.random.normal(kb1, (L, 1, 4 * D), jnp.float32)
    # rows = [bo, g1, be1, b2, g2, be2]; LayerNorm weights (g1, g2) start at 1.
    vecs = 0.01 * jax.random.normal(kvec, (L, 6, D), jnp.float32)
    p["vecs"] = vecs.at[:, 1, :].set(1.0).at[:, 4, :].set(1.0)
    return p


# TODO(synk): diffusion buffers (betas/alphas) and the sample()/loss_fn()
# stochastic host-side loops are not part of forward(); not implemented as kernels.

if __name__ == "__main__":
    B, S, INPUT_DIM, MODEL_DIM, HEADS, LAYERS, TIMESTEPS = 2, 8, 8, 32, 4, 4, 100

    key = jax.random.PRNGKey(0)
    kp, kx, kt = jax.random.split(key, 3)
    params = init_params(kp, INPUT_DIM, MODEL_DIM, LAYERS, HEADS)

    x = jax.random.normal(kx, (B, S, INPUT_DIM), jnp.float32)
    t = jax.random.randint(kt, (B,), 0, TIMESTEPS)

    fwd = jax.jit(functools.partial(transformer_diffusion_forward, num_heads=HEADS))
    out = jax.block_until_ready(fwd(params, x, t))

    assert out.shape == (B, S, INPUT_DIM), out.shape
    assert bool(jnp.all(jnp.isfinite(out)))
    print("KERNEL_OK")
</pallas_src>

<mosaic_0001>
module attributes {stable_mosaic.version = 11 : i64} {
  func.func @fused_model_kernel(%arg0: i32, %arg1: memref<16x8xf32, #tpu.memory_space<vmem>>, %arg2: memref<16x32xf32, #tpu.memory_space<vmem>>, %arg3: memref<8x32xbf16, #tpu.memory_space<vmem>>, %arg4: memref<1x32xf32, #tpu.memory_space<vmem>>, %arg5: memref<16x32x8xbf16, #tpu.memory_space<vmem>>, %arg6: memref<16x32x8xbf16, #tpu.memory_space<vmem>>, %arg7: memref<16x32x8xbf16, #tpu.memory_space<vmem>>, %arg8: memref<16x8x32xbf16, #tpu.memory_space<vmem>>, %arg9: memref<16x3x8xf32, #tpu.memory_space<vmem>>, %arg10: memref<4x32x128xbf16, #tpu.memory_space<vmem>>, %arg11: memref<4x1x128xf32, #tpu.memory_space<vmem>>, %arg12: memref<4x128x32xbf16, #tpu.memory_space<vmem>>, %arg13: memref<4x6x32xf32, #tpu.memory_space<vmem>>, %arg14: memref<32x128xbf16, #tpu.memory_space<vmem>>, %arg15: memref<1x128xf32, #tpu.memory_space<vmem>>, %arg16: memref<16x128xf32, #tpu.memory_space<vmem>>, %arg17: memref<16x32xf32, #tpu.memory_space<vmem>>) attributes {dimension_semantics = [#tpu.dimension_semantics<parallel>], iteration_bounds = array<i64: 1>, scalar_prefetch = 0 : i64, scratch_operands = 1 : i64, tpu.core_type = #tpu.core_type<tc>, window_params = [{transform_indices = @transform_0, window_bounds = array<i64: 16, 8>}, {transform_indices = @transform_1, window_bounds = array<i64: 16, 32>}, {pipeline_mode = #tpu.pipeline_mode<synchronous>, transform_indices = @transform_2, window_bounds = array<i64: 8, 32>}, {pipeline_mode = #tpu.pipeline_mode<synchronous>, transform_indices = @transform_3, window_bounds = array<i64: 1, 32>}, {pipeline_mode = #tpu.pipeline_mode<synchronous>, transform_indices = @transform_4, window_bounds = array<i64: 16, 32, 8>}, {pipeline_mode = #tpu.pipeline_mode<synchronous>, transform_indices = @transform_5, window_bounds = array<i64: 16, 32, 8>}, {pipeline_mode = #tpu.pipeline_mode<synchronous>, transform_indices = @transform_6, window_bounds = array<i64: 16, 32, 8>}, {pipeline_mode = #tpu.pipeline_mode<synchronous>, transform_indices = @transform_7, window_bounds = array<i64: 16, 8, 32>}, {pipeline_mode = #tpu.pipeline_mode<synchronous>, transform_indices = @transform_8, window_bounds = array<i64: 16, 3, 8>}, {pipeline_mode = #tpu.pipeline_mode<synchronous>, transform_indices = @transform_9, window_bounds = array<i64: 4, 32, 128>}, {pipeline_mode = #tpu.pipeline_mode<synchronous>, transform_indices = @transform_10, window_bounds = array<i64: 4, 1, 128>}, {pipeline_mode = #tpu.pipeline_mode<synchronous>, transform_indices = @transform_11, window_bounds = array<i64: 4, 128, 32>}, {pipeline_mode = #tpu.pipeline_mode<synchronous>, transform_indices = @transform_12, window_bounds = array<i64: 4, 6, 32>}, {pipeline_mode = #tpu.pipeline_mode<synchronous>, transform_indices = @transform_13, window_bounds = array<i64: 32, 128>}, {pipeline_mode = #tpu.pipeline_mode<synchronous>, transform_indices = @transform_14, window_bounds = array<i64: 1, 128>}, {transform_indices = @transform_15, window_bounds = array<i64: 16, 128>}]} {
    %c0 = arith.constant 0 : index
    %c0_0 = arith.constant 0 : index
    %0 = vector.load %arg1[%c0, %c0_0] : memref<16x8xf32, #tpu.memory_space<vmem>>, vector<16x8xf32>
    %1 = arith.truncf %0 : vector<16x8xf32> to vector<16x8xbf16>
    %c0_1 = arith.constant 0 : index
    %c0_2 = arith.constant 0 : index
    %2 = vector.load %arg3[%c0_1, %c0_2] : memref<8x32xbf16, #tpu.memory_space<vmem>>, vector<8x32xbf16>
    %cst = arith.constant dense<0.000000e+00> : vector<16x32xf32>
    %3 = tpu.matmul %1, %2, %cst {dimension_numbers = #tpu.dot_dimension_numbers<[1], [0], [0], [1], [0, 0, 1, 1], [], []>} : vector<16x8xbf16>, vector<8x32xbf16>, vector<16x32xf32> -> vector<16x32xf32>
    %c0_3 = arith.constant 0 : index
    %c0_4 = arith.constant 0 : index
    %4 = vector.load %arg4[%c0_3, %c0_4] : memref<1x32xf32, #tpu.memory_space<vmem>>, vector<1x32xf32>
    %5 = vector.broadcast %4 : vector<1x32xf32> to vector<16x32xf32>
    %6 = arith.addf %3, %5 : vector<16x32xf32>
    %c0_5 = arith.constant 0 : index
    %c0_6 = arith.constant 0 : index
    %7 = vector.load %arg2[%c0_5, %c0_6] : memref<16x32xf32, #tpu.memory_space<vmem>>, vector<16x32xf32>
    %8 = arith.addf %6, %7 : vector<16x32xf32>
    %c0_7 = arith.constant 0 : index
    %c0_8 = arith.constant 0 : index
    %9 = vector.load %arg17[%c0_7, %c0_8] : memref<16x32xf32, #tpu.memory_space<vmem>>, vector<16x32xf32>
    tpu.vector_store %arg17[%c0_7, %c0_8], %8 {strides = array<i32>} : memref<16x32xf32, #tpu.memory_space<vmem>>, vector<16x32xf32>,
    %c0_9 = arith.constant 0 : index
    %c0_10 = arith.constant 0 : index
    %10 = vector.load %arg17[%c0_9, %c0_10] : memref<16x32xf32, #tpu.memory_space<vmem>>, vector<16x32xf32>
    %11 = arith.truncf %10 : vector<16x32xf32> to vector<16x32xbf16>
    %c0_11 = arith.constant 0 : index
    %c0_12 = arith.constant 0 : index
    %c0_13 = arith.constant 0 : index
    %12 = vector.load %arg13[%c0_11, %c0_12, %c0_13] : memref<4x6x32xf32, #tpu.memory_space<vmem>>, vector<1x6x32xf32>
    %13 = vector.shape_cast %12 : vector<1x6x32xf32> to vector<6x32xf32>
    %14 = vector.extract_strided_slice %13 {offsets = [0, 0], sizes = [1, 32], strides = [1, 1]} : vector<6x32xf32> to vector<1x32xf32>
    %15 = vector.extract_strided_slice %13 {offsets = [1, 0], sizes = [1, 32], strides = [1, 1]} : vector<6x32xf32> to vector<1x32xf32>
    %16 = vector.extract_strided_slice %13 {offsets = [2, 0], sizes = [1, 32], strides = [1, 1]} : vector<6x32xf32> to vector<1x32xf32>
    %17 = vector.extract_strided_slice %13 {offsets = [3, 0], sizes = [1, 32], strides = [1, 1]} : vector<6x32xf32> to vector<1x32xf32>
    %18 = vector.extract_strided_slice %13 {offsets = [4, 0], sizes = [1, 32], strides = [1, 1]} : vector<6x32xf32> to vector<1x32xf32>
    %19 = vector.extract_strided_slice %13 {offsets = [5, 0], sizes = [1, 32], strides = [1, 1]} : vector<6x32xf32> to vector<1x32xf32>
    %cst_14 = arith.constant 0.000000e+00 : f32
    %20 = vector.broadcast %cst_14 : f32 to vector<16x32xf32>
    %c0_15 = arith.constant 0 : index
    %c0_16 = arith.constant 0 : index
    %c0_17 = arith.constant 0 : index
    %21 = vector.load %arg9[%c0_15, %c0_16, %c0_17] : memref<16x3x8xf32, #tpu.memory_space<vmem>>, vector<1x3x8xf32>
    %22 = vector.shape_cast %21 : vector<1x3x8xf32> to vector<3x8xf32>
    %c0_18 = arith.constant 0 : index
    %c0_19 = arith.constant 0 : index
    %c0_20 = arith.constant 0 : index
    %23 = vector.load %arg5[%c0_18, %c0_19, %c0_20] : memref<16x32x8xbf16, #tpu.memory_space<vmem>>, vector<1x32x8xbf16>
    %24 = vector.shape_cast %23 : vector<1x32x8xbf16> to vector<32x8xbf16>
    %cst_21 = arith.constant dense<0.000000e+00> : vector<16x8xf32>
    %25 = tpu.matmul %11, %24, %cst_21 {dimension_numbers = #tpu.dot_dimension_numbers<[1], [0], [0], [1], [0, 0, 1, 1], [], []>} : vector<16x32xbf16>, vector<32x8xbf16>, vector<16x8xf32> -> vector<16x8xf32>
    %26 = vector.extract_strided_slice %22 {offsets = [0, 0], sizes = [1, 8], strides = [1, 1]} : vector<3x8xf32> to vector<1x8xf32>
    %27 = vector.broadcast %26 : vector<1x8xf32> to vector<16x8xf32>
    %28 = arith.addf %25, %27 : vector<16x8xf32>
    %c0_22 = arith.constant 0 : index
    %c0_23 = arith.constant 0 : index
    %c0_24 = arith.constant 0 : index
    %29 = vector.load %arg6[%c0_22, %c0_23, %c0_24] : memref<16x32x8xbf16, #tpu.memory_space<vmem>>, vector<1x32x8xbf16>
    %30 = vector.shape_cast %29 : vector<1x32x8xbf16> to vector<32x8xbf16>
    %cst_25 = arith.constant dense<0.000000e+00> : vector<16x8xf32>
    %31 = tpu.matmul %11, %30, %cst_25 {dimension_numbers = #tpu.dot_dimension_numbers<[1], [0], [0], [1], [0, 0, 1, 1], [], []>} : vector<16x32xbf16>, vector<32x8xbf16>, vector<16x8xf32> -> vector<16x8xf32>
    %32 = vector.extract_strided_slice %22 {offsets = [1, 0], sizes = [1, 8], strides = [1, 1]} : vector<3x8xf32> to vector<1x8xf32>
    %33 = vector.broadcast %32 : vector<1x8xf32> to vector<16x8xf32>
    %34 = arith.addf %31, %33 : vector<16x8xf32>
    %c0_26 = arith.constant 0 : index
    %c0_27 = arith.constant 0 : index
    %c0_28 = arith.constant 0 : index
    %35 = vector.load %arg7[%c0_26, %c0_27, %c0_28] : memref<16x32x8xbf16, #tpu.memory_space<vmem>>, vector<1x32x8xbf16>
    %36 = vector.shape_cast %35 : vector<1x32x8xbf16> to vector<32x8xbf16>
    %cst_29 = arith.constant dense<0.000000e+00> : vector<16x8xf32>
    %37 = tpu.matmul %11, %36, %cst_29 {dimension_numbers = #tpu.dot_dimension_numbers<[1], [0], [0], [1], [0, 0, 1, 1], [], []>} : vector<16x32xbf16>, vector<32x8xbf16>, vector<16x8xf32> -> vector<16x8xf32>
    %38 = vector.extract_strided_slice %22 {offsets = [2, 0], sizes = [1, 8], strides = [1, 1]} : vector<3x8xf32> to vector<1x8xf32>
    %39 = vector.broadcast %38 : vector<1x8xf32> to vector<16x8xf32>
    %40 = arith.addf %37, %39 : vector<16x8xf32>
    %41 = vector.shape_cast %28 : vector<16x8xf32> to vector<2x8x8xf32>
    %42 = arith.truncf %41 : vector<2x8x8xf32> to vector<2x8x8xbf16>
    %43 = vector.shape_cast %34 : vector<16x8xf32> to vector<2x8x8xf32>
    %44 = arith.truncf %43 : vector<2x8x8xf32> to vector<2x8x8xbf16>
    %45 = vector.shape_cast %40 : vector<16x8xf32> to vector<2x8x8xf32>
    %46 = arith.truncf %45 : vector<2x8x8xf32> to vector<2x8x8xbf16>
    "tpu.trace_start"() <{level = 10 : i32, message = "bqd,bkd->bqk"}> : () -> ()
    %cst_30 = arith.constant dense<0.000000e+00> : vector<2x8x8xf32>
    %47 = tpu.matmul %42, %44, %cst_30 {dimension_numbers = #tpu.dot_dimension_numbers<[2], [2], [1], [1], [0, 0, 0, 1, 1, 1], [0], [0]>} : vector<2x8x8xbf16>, vector<2x8x8xbf16>, vector<2x8x8xf32> -> vector<2x8x8xf32>
    "tpu.trace_stop"() : () -> ()
    %cst_31 = arith.constant 0.353553385 : f32
    %48 = vector.broadcast %cst_31 : f32 to vector<2x8x8xf32>
    %49 = arith.mulf %47, %48 : vector<2x8x8xf32>
    %cst_32 = arith.constant dense<0xFF800000> : vector<2x8xf32>
    %50 = vector.multi_reduction <maximumf>, %49, %cst_32 [2] : vector<2x8x8xf32> to vector<2x8xf32>
    %51 = vector.shape_cast %50 : vector<2x8xf32> to vector<2x8x1xf32>
    %52 = vector.broadcast %51 : vector<2x8x1xf32> to vector<2x8x8xf32>
    %53 = arith.subf %49, %52 : vector<2x8x8xf32>
    %54 = math.exp %53 : vector<2x8x8xf32>
    %cst_33 = arith.constant dense<0.000000e+00> : vector<2x8xf32>
    %55 = vector.multi_reduction <add>, %54, %cst_33 [2] : vector<2x8x8xf32> to vector<2x8xf32>
    %56 = vector.shape_cast %55 : vector<2x8xf32> to vector<2x8x1xf32>
    %57 = tpu.reciprocal %56 {approx = true} : vector<2x8x1xf32> -> vector<2x8x1xf32>
    %58 = vector.broadcast %57 : vector<2x8x1xf32> to vector<2x8x8xf32>
    %59 = arith.mulf %54, %58 : vector<2x8x8xf32>
    %60 = arith.truncf %59 : vector<2x8x8xf32> to vector<2x8x8xbf16>
    "tpu.trace_start"() <{level = 10 : i32, message = "bqk,bkd->bqd"}> : () -> ()
    %cst_34 = arith.constant dense<0.000000e+00> : vector<2x8x8xf32>
    %61 = tpu.matmul %60, %46, %cst_34 {dimension_numbers = #tpu.dot_dimension_numbers<[2], [1], [1], [2], [0, 0, 0, 1, 1, 2], [0], [0]>} : vector<2x8x8xbf16>, vector<2x8x8xbf16>, vector<2x8x8xf32> -> vector<2x8x8xf32>
    "tpu.trace_stop"() : () -> ()
    %62 = vector.shape_cast %61 : vector<2x8x8xf32> to vector<16x8xf32>
    %63 = arith.truncf %62 : vector<16x8xf32> to vector<16x8xbf16>
    %c0_35 = arith.constant 0 : index
    %c0_36 = arith.constant 0 : index
    %c0_37 = arith.constant 0 : index
    %64 = vector.load %arg8[%c0_35, %c0_36, %c0_37] : memref<16x8x32xbf16, #tpu.memory_space<vmem>>, vector<1x8x32xbf16>
    %65 = vector.shape_cast %64 : vector<1x8x32xbf16> to vector<8x32xbf16>
    %cst_38 = arith.constant dense<0.000000e+00> : vector<16x32xf32>
    %66 = tpu.matmul %63, %65, %cst_38 {dimension_numbers = #tpu.dot_dimension_numbers<[1], [0], [0], [1], [0, 0, 1, 1], [], []>} : vector<16x8xbf16>, vector<8x32xbf16>, vector<16x32xf32> -> vector<16x32xf32>
    %67 = arith.addf %20, %66 : vector<16x32xf32>
    %c1 = arith.constant 1 : index
    %c0_39 = arith.constant 0 : index
    %c0_40 = arith.constant 0 : index
    %68 = vector.load %arg9[%c1, %c0_39, %c0_40] : memref<16x3x8xf32, #tpu.memory_space<vmem>>, vector<1x3x8xf32>
    %69 = vector.shape_cast %68 : vector<1x3x8xf32> to vector<3x8xf32>
    %c1_41 = arith.constant 1 : index
    %c0_42 = arith.constant 0 : index
    %c0_43 = arith.constant 0 : index
    %70 = vector.load %arg5[%c1_41, %c0_42, %c0_43] : memref<16x32x8xbf16, #tpu.memory_space<vmem>>, vector<1x32x8xbf16>
    %71 = vector.shape_cast %70 : vector<1x32x8xbf16> to vector<32x8xbf16>
    %cst_44 = arith.constant dense<0.000000e+00> : vector<16x8xf32>
    %72 = tpu.matmul %11, %71, %cst_44 {dimension_numbers = #tpu.dot_dimension_numbers<[1], [0], [0], [1], [0, 0, 1, 1], [], []>} : vector<16x32xbf16>, vector<32x8xbf16>, vector<16x8xf32> -> vector<16x8xf32>
    %73 = vector.extract_strided_slice %69 {offsets = [0, 0], sizes = [1, 8], strides = [1, 1]} : vector<3x8xf32> to vector<1x8xf32>
    %74 = vector.broadcast %73 : vector<1x8xf32> to vector<16x8xf32>
    %75 = arith.addf %72, %74 : vector<16x8xf32>
    %c1_45 = arith.constant 1 : index
    %c0_46 = arith.constant 0 : index
    %c0_47 = arith.constant 0 : index
    %76 = vector.load %arg6[%c1_45, %c0_46, %c0_47] : memref<16x32x8xbf16, #tpu.memory_space<vmem>>, vector<1x32x8xbf16>
    %77 = vector.shape_cast %76 : vector<1x32x8xbf16> to vector<32x8xbf16>
    %cst_48 = arith.constant dense<0.000000e+00> : vector<16x8xf32>
    %78 = tpu.matmul %11, %77, %cst_48 {dimension_numbers = #tpu.dot_dimension_numbers<[1], [0], [0], [1], [0, 0, 1, 1], [], []>} : vector<16x32xbf16>, vector<32x8xbf16>, vector<16x8xf32> -> vector<16x8xf32>
    %79 = vector.extract_strided_slice %69 {offsets = [1, 0], sizes = [1, 8], strides = [1, 1]} : vector<3x8xf32> to vector<1x8xf32>
    %80 = vector.broadcast %79 : vector<1x8xf32> to vector<16x8xf32>
    %81 = arith.addf %78, %80 : vector<16x8xf32>
    %c1_49 = arith.constant 1 : index
    %c0_50 = arith.constant 0 : index
    %c0_51 = arith.constant 0 : index
    %82 = vector.load %arg7[%c1_49, %c0_50, %c0_51] : memref<16x32x8xbf16, #tpu.memory_space<vmem>>, vector<1x32x8xbf16>
    %83 = vector.shape_cast %82 : vector<1x32x8xbf16> to vector<32x8xbf16>
    %cst_52 = arith.constant dense<0.000000e+00> : vector<16x8xf32>
    %84 = tpu.matmul %11, %83, %cst_52 {dimension_numbers = #tpu.dot_dimension_numbers<[1], [0], [0], [1], [0, 0, 1, 1], [], []>} : vector<16x32xbf16>, vector<32x8xbf16>, vector<16x8xf32> -> vector<16x8xf32>
    %85 = vector.extract_strided_slice %69 {offsets = [2, 0], sizes = [1, 8], strides = [1, 1]} : vector<3x8xf32> to vector<1x8xf32>
    %86 = vector.broadcast %85 : vector<1x8xf32> to vector<16x8xf32>
    %87 = arith.addf %84, %86 : vector<16x8xf32>
    %88 = vector.shape_cast %75 : vector<16x8xf32> to vector<2x8x8xf32>
    %89 = arith.truncf %88 : vector<2x8x8xf32> to vector<2x8x8xbf16>
    %90 = vector.shape_cast %81 : vector<16x8xf32> to vector<2x8x8xf32>
    %91 = arith.truncf %90 : vector<2x8x8xf32> to vector<2x8x8xbf16>
    %92 = vector.shape_cast %87 : vector<16x8xf32> to vector<2x8x8xf32>
    %93 = arith.truncf %92 : vector<2x8x8xf32> to vector<2x8x8xbf16>
    "tpu.trace_start"() <{level = 10 : i32, message = "bqd,bkd->bqk"}> : () -> ()
    %cst_53 = arith.constant dense<0.000000e+00> : vector<2x8x8xf32>
    %94 = tpu.matmul %89, %91, %cst_53 {dimension_numbers = #tpu.dot_dimension_numbers<[2], [2], [1], [1], [0, 0, 0, 1, 1, 1], [0], [0]>} : vector<2x8x8xbf16>, vector<2x8x8xbf16>, vector<2x8x8xf32> -> vector<2x8x8xf32>
    "tpu.trace_stop"() : () -> ()
    %cst_54 = arith.constant 0.353553385 : f32
    %95 = vector.broadcast %cst_54 : f32 to vector<2x8x8xf32>
    %96 = arith.mulf %94, %95 : vector<2x8x8xf32>
    %cst_55 = arith.constant dense<0xFF800000> : vector<2x8xf32>
    %97 = vector.multi_reduction <maximumf>, %96, %cst_55 [2] : vector<2x8x8xf32> to vector<2x8xf32>
    %98 = vector.shape_cast %97 : vector<2x8xf32> to vector<2x8x1xf32>
    %99 = vector.broadcast %98 : vector<2x8x1xf32> to vector<2x8x8xf32>
    %100 = arith.subf %96, %99 : vector<2x8x8xf32>
    %101 = math.exp %100 : vector<2x8x8xf32>
    %cst_56 = arith.constant dense<0.000000e+00> : vector<2x8xf32>
    %102 = vector.multi_reduction <add>, %101, %cst_56 [2] : vector<2x8x8xf32> to vector<2x8xf32>
    %103 = vector.shape_cast %102 : vector<2x8xf32> to vector<2x8x1xf32>
    %104 = tpu.reciprocal %103 {approx = true} : vector<2x8x1xf32> -> vector<2x8x1xf32>
    %105 = vector.broadcast %104 : vector<2x8x1xf32> to vector<2x8x8xf32>
    %106 = arith.mulf %101, %105 : vector<2x8x8xf32>
    %107 = arith.truncf %106 : vector<2x8x8xf32> to vector<2x8x8xbf16>
    "tpu.trace_start"() <{level = 10 : i32, message = "bqk,bkd->bqd"}> : () -> ()
    %cst_57 = arith.constant dense<0.000000e+00> : vector<2x8x8xf32>
    %108 = tpu.matmul %107, %93, %cst_57 {dimension_numbers = #tpu.dot_dimension_numbers<[2], [1], [1], [2], [0, 0, 0, 1, 1, 2], [0], [0]>} : vector<2x8x8xbf16>, vector<2x8x8xbf16>, vector<2x8x8xf32> -> vector<2x8x8xf32>
    "tpu.trace_stop"() : () -> ()
    %109 = vector.shape_cast %108 : vector<2x8x8xf32> to vector<16x8xf32>
    %110 = arith.truncf %109 : vector<16x8xf32> to vector<16x8xbf16>
    %c1_58 = arith.constant 1 : index
    %c0_59 = arith.constant 0 : index
    %c0_60 = arith.constant 0 : index
    %111 = vector.load %arg8[%c1_58, %c0_59, %c0_60] : memref<16x8x32xbf16, #tpu.memory_space<vmem>>, vector<1x8x32xbf16>
    %112 = vector.shape_cast %111 : vector<1x8x32xbf16> to vector<8x32xbf16>
    %cst_61 = arith.constant dense<0.000000e+00> : vector<16x32xf32>
    %113 = tpu.matmul %110, %112, %cst_61 {dimension_numbers = #tpu.dot_dimension_numbers<[1], [0], [0], [1], [0, 0, 1, 1], [], []>} : vector<16x8xbf16>, vector<8x32xbf16>, vector<16x32xf32> -> vector<16x32xf32>
    %114 = arith.addf %67, %113 : vector<16x32xf32>
    %c2 = arith.constant 2 : index
    %c0_62 = arith.constant 0 : index
    %c0_63 = arith.constant 0 : index
    %115 = vector.load %arg9[%c2, %c0_62, %c0_63] : memref<16x3x8xf32, #tpu.memory_space<vmem>>, vector<1x3x8xf32>
    %116 = vector.shape_cast %115 : vector<1x3x8xf32> to vector<3x8xf32>
    %c2_64 = arith.constant 2 : index
    %c0_65 = arith.constant 0 : index
    %c0_66 = arith.constant 0 : index
    %117 = vector.load %arg5[%c2_64, %c0_65, %c0_66] : memref<16x32x8xbf16, #tpu.memory_space<vmem>>, vector<1x32x8xbf16>
    %118 = vector.shape_cast %117 : vector<1x32x8xbf16> to vector<32x8xbf16>
    %cst_67 = arith.constant dense<0.000000e+00> : vector<16x8xf32>
    %119 = tpu.matmul %11, %118, %cst_67 {dimension_numbers = #tpu.dot_dimension_numbers<[1], [0], [0], [1], [0, 0, 1, 1], [], []>} : vector<16x32xbf16>, vector<32x8xbf16>, vector<16x8xf32> -> vector<16x8xf32>
    %120 = vector.extract_strided_slice %116 {offsets = [0, 0], sizes = [1, 8], strides = [1, 1]} : vector<3x8xf32> to vector<1x8xf32>
    %121 = vector.broadcast %120 : vector<1x8xf32> to vector<16x8xf32>
    %122 = arith.addf %119, %121 : vector<16x8xf32>
    %c2_68 = arith.constant 2 : index
    %c0_69 = arith.constant 0 : index
    %c0_70 = arith.constant 0 : index
    %123 = vector.load %arg6[%c2_68, %c0_69, %c0_70] : memref<16x32x8xbf16, #tpu.memory_space<vmem>>, vector<1x32x8xbf16>
    %124 = vector.shape_cast %123 : vector<1x32x8xbf16> to vector<32x8xbf16>
    %cst_71 = arith.constant dense<0.000000e+00> : vector<16x8xf32>
    %125 = tpu.matmul %11, %124, %cst_71 {dimension_numbers = #tpu.dot_dimension_numbers<[1], [0], [0], [1], [0, 0, 1, 1], [], []>} : vector<16x32xbf16>, vector<32x8xbf16>, vector<16x8xf32> -> vector<16x8xf32>
    %126 = vector.extract_strided_slice %116 {offsets = [1, 0], sizes = [1, 8], strides = [1, 1]} : vector<3x8xf32> to vector<1x8xf32>
    %127 = vector.broadcast %126 : vector<1x8xf32> to vector<16x8xf32>
    %128 = arith.addf %125, %127 : vector<16x8xf32>
    %c2_72 = arith.constant 2 : index
    %c0_73 = arith.constant 0 : index
    %c0_74 = arith.constant 0 : index
    %129 = vector.load %arg7[%c2_72, %c0_73, %c0_74] : memref<16x32x8xbf16, #tpu.memory_space<vmem>>, vector<1x32x8xbf16>
    %130 = vector.shape_cast %129 : vector<1x32x8xbf16> to vector<32x8xbf16>
    %cst_75 = arith.constant dense<0.000000e+00> : vector<16x8xf32>
    %131 = tpu.matmul %11, %130, %cst_75 {dimension_numbers = #tpu.dot_dimension_numbers<[1], [0], [0], [1], [0, 0, 1, 1], [], []>} : vector<16x32xbf16>, vector<32x8xbf16>, vector<16x8xf32> -> vector<16x8xf32>
    %132 = vector.extract_strided_slice %116 {offsets = [2, 0], sizes = [1, 8], strides = [1, 1]} : vector<3x8xf32> to vector<1x8xf32>
    %133 = vector.broadcast %132 : vector<1x8xf32> to vector<16x8xf32>
    %134 = arith.addf %131, %133 : vector<16x8xf32>
    %135 = vector.shape_cast %122 : vector<16x8xf32> to vector<2x8x8xf32>
    %136 = arith.truncf %135 : vector<2x8x8xf32> to vector<2x8x8xbf16>
    %137 = vector.shape_cast %128 : vector<16x8xf32> to vector<2x8x8xf32>
    %138 = arith.truncf %137 : vector<2x8x8xf32> to vector<2x8x8xbf16>
    %139 = vector.shape_cast %134 : vector<16x8xf32> to vector<2x8x8xf32>
    %140 = arith.truncf %139 : vector<2x8x8xf32> to vector<2x8x8xbf16>
    "tpu.trace_start"() <{level = 10 : i32, message = "bqd,bkd->bqk"}> : () -> ()
    %cst_76 = arith.constant dense<0.000000e+00> : vector<2x8x8xf32>
    %141 = tpu.matmul %136, %138, %cst_76 {dimension_numbers = #tpu.dot_dimension_numbers<[2], [2], [1], [1], [0, 0, 0, 1, 1, 1], [0], [0]>} : vector<2x8x8xbf16>, vector<2x8x8xbf16>, vector<2x8x8xf32> -> vector<2x8x8xf32>
    "tpu.trace_stop"() : () -> ()
    %cst_77 = arith.constant 0.353553385 : f32
    %142 = vector.broadcast %cst_77 : f32 to vector<2x8x8xf32>
    %143 = arith.mulf %141, %142 : vector<2x8x8xf32>
    %cst_78 = arith.constant dense<0xFF800000> : vector<2x8xf32>
    %144 = vector.multi_reduction <maximumf>, %143, %cst_78 [2] : vector<2x8x8xf32> to vector<2x8xf32>
    %145 = vector.shape_cast %144 : vector<2x8xf32> to vector<2x8x1xf32>
    %146 = vector.broadcast %145 : vector<2x8x1xf32> to vector<2x8x8xf32>
    %147 = arith.subf %143, %146 : vector<2x8x8xf32>
    %148 = math.exp %147 : vector<2x8x8xf32>
    %cst_79 = arith.constant dense<0.000000e+00> : vector<2x8xf32>
    %149 = vector.multi_reduction <add>, %148, %cst_79 [2] : vector<2x8x8xf32> to vector<2x8xf32>
    %150 = vector.shape_cast %149 : vector<2x8xf32> to vector<2x8x1xf32>
    %151 = tpu.reciprocal %150 {approx = true} : vector<2x8x1xf32> -> vector<2x8x1xf32>
    %152 = vector.broadcast %151 : vector<2x8x1xf32> to vector<2x8x8xf32>
    %153 = arith.mulf %148, %152 : vector<2x8x8xf32>
    %154 = arith.truncf %153 : vector<2x8x8xf32> to vector<2x8x8xbf16>
    "tpu.trace_start"() <{level = 10 : i32, message = "bqk,bkd->bqd"}> : () -> ()
    %cst_80 = arith.constant dense<0.000000e+00> : vector<2x8x8xf32>
    %155 = tpu.matmul %154, %140, %cst_80 {dimension_numbers = #tpu.dot_dimension_numbers<[2], [1], [1], [2], [0, 0, 0, 1, 1, 2], [0], [0]>} : vector<2x8x8xbf16>, vector<2x8x8xbf16>, vector<2x8x8xf32> -> vector<2x8x8xf32>
    "tpu.trace_stop"() : () -> ()
    %156 = vector.shape_cast %155 : vector<2x8x8xf32> to vector<16x8xf32>
    %157 = arith.truncf %156 : vector<16x8xf32> to vector<16x8xbf16>
    %c2_81 = arith.constant 2 : index
    %c0_82 = arith.constant 0 : index
    %c0_83 = arith.constant 0 : index
    %158 = vector.load %arg8[%c2_81, %c0_82, %c0_83] : memref<16x8x32xbf16, #tpu.memory_space<vmem>>, vector<1x8x32xbf16>
    %159 = vector.shape_cast %158 : vector<1x8x32xbf16> to vector<8x32xbf16>
    %cst_84 = arith.constant dense<0.000000e+00> : vector<16x32xf32>
    %160 = tpu.matmul %157, %159, %cst_84 {dimension_numbers = #tpu.dot_dimension_numbers<[1], [0], [0], [1], [0, 0, 1, 1], [], []>} : vector<16x8xbf16>, vector<8x32xbf16>, vector<16x32xf32> -> vector<16x32xf32>
    %161 = arith.addf %114, %160 : vector<16x32xf32>
    %c3 = arith.constant 3 : index
    %c0_85 = arith.constant 0 : index
    %c0_86 = arith.constant 0 : index
    %162 = vector.load %arg9[%c3, %c0_85, %c0_86] : memref<16x3x8xf32, #tpu.memory_space<vmem>>, vector<1x3x8xf32>
    %163 = vector.shape_cast %162 : vector<1x3x8xf32> to vector<3x8xf32>
    %c3_87 = arith.constant 3 : index
    %c0_88 = arith.constant 0 : index
    %c0_89 = arith.constant 0 : index
    %164 = vector.load %arg5[%c3_87, %c0_88, %c0_89] : memref<16x32x8xbf16, #tpu.memory_space<vmem>>, vector<1x32x8xbf16>
    %165 = vector.shape_cast %164 : vector<1x32x8xbf16> to vector<32x8xbf16>
    %cst_90 = arith.constant dense<0.000000e+00> : vector<16x8xf32>
    %166 = tpu.matmul %11, %165, %cst_90 {dimension_numbers = #tpu.dot_dimension_numbers<[1], [0], [0], [1], [0, 0, 1, 1], [], []>} : vector<16x32xbf16>, vector<32x8xbf16>, vector<16x8xf32> -> vector<16x8xf32>
    %167 = vector.extract_strided_slice %163 {offsets = [0, 0], sizes = [1, 8], strides = [1, 1]} : vector<3x8xf32> to vector<1x8xf32>
    %168 = vector.broadcast %167 : vector<1x8xf32> to vector<16x8xf32>
    %169 = arith.addf %166, %168 : vector<16x8xf32>
    %c3_91 = arith.constant 3 : index
    %c0_92 = arith.constant 0 : index
    %c0_93 = arith.constant 0 : index
    %170 = vector.load %arg6[%c3_91, %c0_92, %c0_93] : memref<16x32x8xbf16, #tpu.memory_space<vmem>>, vector<1x32x8xbf16>
    %171 = vector.shape_cast %170 : vector<1x32x8xbf16> to vector<32x8xbf16>
    %cst_94 = arith.constant dense<0.000000e+00> : vector<16x8xf32>
    %172 = tpu.matmul %11, %171, %cst_94 {dimension_numbers = #tpu.dot_dimension_numbers<[1], [0], [0], [1], [0, 0, 1, 1], [], []>} : vector<16x32xbf16>, vector<32x8xbf16>, vector<16x8xf32> -> vector<16x8xf32>
    %173 = vector.extract_strided_slice %163 {offsets = [1, 0], sizes = [1, 8], strides = [1, 1]} : vector<3x8xf32> to vector<1x8xf32>
    %174 = vector.broadcast %173 : vector<1x8xf32> to vector<16x8xf32>
    %175 = arith.addf %172, %174 : vector<16x8xf32>
    %c3_95 = arith.constant 3 : index
    %c0_96 = arith.constant 0 : index
    %c0_97 = arith.constant 0 : index
    %176 = vector.load %arg7[%c3_95, %c0_96, %c0_97] : memref<16x32x8xbf16, #tpu.memory_space<vmem>>, vector<1x32x8xbf16>
    %177 = vector.shape_cast %176 : vector<1x32x8xbf16> to vector<32x8xbf16>
    %cst_98 = arith.constant dense<0.000000e+00> : vector<16x8xf32>
    %178 = tpu.matmul %11, %177, %cst_98 {dimension_numbers = #tpu.dot_dimension_numbers<[1], [0], [0], [1], [0, 0, 1, 1], [], []>} : vector<16x32xbf16>, vector<32x8xbf16>, vector<16x8xf32> -> vector<16x8xf32>
    %179 = vector.extract_strided_slice %163 {offsets = [2, 0], sizes = [1, 8], strides = [1, 1]} : vector<3x8xf32> to vector<1x8xf32>
    %180 = vector.broadcast %179 : vector<1x8xf32> to vector<16x8xf32>
    %181 = arith.addf %178, %180 : vector<16x8xf32>
    %182 = vector.shape_cast %169 : vector<16x8xf32> to vector<2x8x8xf32>
    %183 = arith.truncf %182 : vector<2x8x8xf32> to vector<2x8x8xbf16>
    %184 = vector.shape_cast %175 : vector<16x8xf32> to vector<2x8x8xf32>
    %185 = arith.truncf %184 : vector<2x8x8xf32> to vector<2x8x8xbf16>
    %186 = vector.shape_cast %181 : vector<16x8xf32> to vector<2x8x8xf32>
    %187 = arith.truncf %186 : vector<2x8x8xf32> to vector<2x8x8xbf16>
    "tpu.trace_start"() <{level = 10 : i32, message = "bqd,bkd->bqk"}> : () -> ()
    %cst_99 = arith.constant dense<0.000000e+00> : vector<2x8x8xf32>
    %188 = tpu.matmul %183, %185, %cst_99 {dimension_numbers = #tpu.dot_dimension_numbers<[2], [2], [1], [1], [0, 0, 0, 1, 1, 1], [0], [0]>} : vector<2x8x8xbf16>, vector<2x8x8xbf16>, vector<2x8x8xf32> -> vector<2x8x8xf32>
    "tpu.trace_stop"() : () -> ()
    %cst_100 = arith.constant 0.353553385 : f32
    %189 = vector.broadcast %cst_100 : f32 to vector<2x8x8xf32>
    %190 = arith.mulf %188, %189 : vector<2x8x8xf32>
    %cst_101 = arith.constant dense<0xFF800000> : vector<2x8xf32>
    %191 = vector.multi_reduction <maximumf>, %190, %cst_101 [2] : vector<2x8x8xf32> to vector<2x8xf32>
    %192 = vector.shape_cast %191 : vector<2x8xf32> to vector<2x8x1xf32>
    %193 = vector.broadcast %192 : vector<2x8x1xf32> to vector<2x8x8xf32>
    %194 = arith.subf %190, %193 : vector<2x8x8xf32>
    %195 = math.exp %194 : vector<2x8x8xf32>
    %cst_102 = arith.constant dense<0.000000e+00> : vector<2x8xf32>
    %196 = vector.multi_reduction <add>, %195, %cst_102 [2] : vector<2x8x8xf32> to vector<2x8xf32>
    %197 = vector.shape_cast %196 : vector<2x8xf32> to vector<2x8x1xf32>
    %198 = tpu.reciprocal %197 {approx = true} : vector<2x8x1xf32> -> vector<2x8x1xf32>
    %199 = vector.broadcast %198 : vector<2x8x1xf32> to vector<2x8x8xf32>
    %200 = arith.mulf %195, %199 : vector<2x8x8xf32>
    %201 = arith.truncf %200 : vector<2x8x8xf32> to vector<2x8x8xbf16>
    "tpu.trace_start"() <{level = 10 : i32, message = "bqk,bkd->bqd"}> : () -> ()
    %cst_103 = arith.constant dense<0.000000e+00> : vector<2x8x8xf32>
    %202 = tpu.matmul %201, %187, %cst_103 {dimension_numbers = #tpu.dot_dimension_numbers<[2], [1], [1], [2], [0, 0, 0, 1, 1, 2], [0], [0]>} : vector<2x8x8xbf16>, vector<2x8x8xbf16>, vector<2x8x8xf32> -> vector<2x8x8xf32>
    "tpu.trace_stop"() : () -> ()
    %203 = vector.shape_cast %202 : vector<2x8x8xf32> to vector<16x8xf32>
    %204 = arith.truncf %203 : vector<16x8xf32> to vector<16x8xbf16>
    %c3_104 = arith.constant 3 : index
    %c0_105 = arith.constant 0 : index
    %c0_106 = arith.constant 0 : index
    %205 = vector.load %arg8[%c3_104, %c0_105, %c0_106] : memref<16x8x32xbf16, #tpu.memory_space<vmem>>, vector<1x8x32xbf16>
    %206 = vector.shape_cast %205 : vector<1x8x32xbf16> to vector<8x32xbf16>
    %cst_107 = arith.constant dense<0.000000e+00> : vector<16x32xf32>
    %207 = tpu.matmul %204, %206, %cst_107 {dimension_numbers = #tpu.dot_dimension_numbers<[1], [0], [0], [1], [0, 0, 1, 1], [], []>} : vector<16x8xbf16>, vector<8x32xbf16>, vector<16x32xf32> -> vector<16x32xf32>
    %208 = arith.addf %161, %207 : vector<16x32xf32>
    %209 = vector.broadcast %14 : vector<1x32xf32> to vector<16x32xf32>
    %210 = arith.addf %208, %209 : vector<16x32xf32>
    %211 = arith.addf %10, %210 : vector<16x32xf32>
    %cst_108 = arith.constant dense<0.000000e+00> : vector<16xf32>
    %212 = vector.multi_reduction <add>, %211, %cst_108 [1] : vector<16x32xf32> to vector<16xf32>
    %213 = vector.shape_cast %212 : vector<16xf32> to vector<16x1xf32>
    %cst_109 = arith.constant 3.200000e+01 : f32
    %214 = vector.broadcast %cst_109 : f32 to vector<16x1xf32>
    %215 = arith.divf %213, %214 : vector<16x1xf32>
    %216 = vector.broadcast %215 : vector<16x1xf32> to vector<16x32xf32>
    %217 = arith.subf %211, %216 : vector<16x32xf32>
    %218 = arith.mulf %217, %217 : vector<16x32xf32>
    %cst_110 = arith.constant dense<0.000000e+00> : vector<16xf32>
    %219 = vector.multi_reduction <add>, %218, %cst_110 [1] : vector<16x32xf32> to vector<16xf32>
    %220 = vector.shape_cast %219 : vector<16xf32> to vector<16x1xf32>
    %cst_111 = arith.constant 3.200000e+01 : f32
    %221 = vector.broadcast %cst_111 : f32 to vector<16x1xf32>
    %222 = arith.divf %220, %221 : vector<16x1xf32>
    %223 = vector.broadcast %215 : vector<16x1xf32> to vector<16x32xf32>
    %224 = arith.subf %211, %223 : vector<16x32xf32>
    %cst_112 = arith.constant 9.99999974E-6 : f32
    %225 = vector.broadcast %cst_112 : f32 to vector<16x1xf32>
    %226 = arith.addf %222, %225 : vector<16x1xf32>
    %227 = math.rsqrt %226 : vector<16x1xf32>
    %228 = vector.broadcast %227 : vector<16x1xf32> to vector<16x32xf32>
    %229 = arith.mulf %224, %228 : vector<16x32xf32>
    %230 = vector.broadcast %15 : vector<1x32xf32> to vector<16x32xf32>
    %231 = arith.mulf %229, %230 : vector<16x32xf32>
    %232 = vector.broadcast %16 : vector<1x32xf32> to vector<16x32xf32>
    %233 = arith.addf %231, %232 : vector<16x32xf32>
    %234 = arith.truncf %233 : vector<16x32xf32> to vector<16x32xbf16>
    %c0_113 = arith.constant 0 : index
    %c0_114 = arith.constant 0 : index
    %c0_115 = arith.constant 0 : index
    %235 = vector.load %arg10[%c0_113, %c0_114, %c0_115] : memref<4x32x128xbf16, #tpu.memory_space<vmem>>, vector<1x32x128xbf16>
    %236 = vector.shape_cast %235 : vector<1x32x128xbf16> to vector<32x128xbf16>
    %cst_116 = arith.constant dense<0.000000e+00> : vector<16x128xf32>
    %237 = tpu.matmul %234, %236, %cst_116 {dimension_numbers = #tpu.dot_dimension_numbers<[1], [0], [0], [1], [0, 0, 1, 1], [], []>} : vector<16x32xbf16>, vector<32x128xbf16>, vector<16x128xf32> -> vector<16x128xf32>
    %c0_117 = arith.constant 0 : index
    %c0_118 = arith.constant 0 : index
    %c0_119 = arith.constant 0 : index
    %238 = vector.load %arg11[%c0_117, %c0_118, %c0_119] : memref<4x1x128xf32, #tpu.memory_space<vmem>>, vector<1x1x128xf32>
    %239 = vector.shape_cast %238 : vector<1x1x128xf32> to vector<1x128xf32>
    %240 = vector.broadcast %239 : vector<1x128xf32> to vector<16x128xf32>
    %241 = arith.addf %237, %240 : vector<16x128xf32>
    %cst_120 = arith.constant 5.000000e-01 : f32
    %242 = vector.broadcast %cst_120 : f32 to vector<16x128xf32>
    %243 = arith.mulf %242, %241 : vector<16x128xf32>
    %cst_121 = arith.constant 0.707106769 : f32
    %244 = vector.broadcast %cst_121 : f32 to vector<16x128xf32>
    %245 = arith.mulf %241, %244 : vector<16x128xf32>
    %246 = math.erf %245 : vector<16x128xf32>
    %cst_122 = arith.constant 1.000000e+00 : f32
    %247 = vector.broadcast %cst_122 : f32 to vector<16x128xf32>
    %248 = arith.addf %247, %246 : vector<16x128xf32>
    %249 = arith.mulf %243, %248 : vector<16x128xf32>
    %250 = arith.truncf %249 : vector<16x128xf32> to vector<16x128xbf16>
    %c0_123 = arith.constant 0 : index
    %c0_124 = arith.constant 0 : index
    %c0_125 = arith.constant 0 : index
    %251 = vector.load %arg12[%c0_123, %c0_124, %c0_125] : memref<4x128x32xbf16, #tpu.memory_space<vmem>>, vector<1x128x32xbf16>
    %252 = vector.shape_cast %251 : vector<1x128x32xbf16> to vector<128x32xbf16>
    %cst_126 = arith.constant dense<0.000000e+00> : vector<16x32xf32>
    %253 = tpu.matmul %250, %252, %cst_126 {dimension_numbers = #tpu.dot_dimension_numbers<[1], [0], [0], [1], [0, 0, 1, 1], [], []>} : vector<16x128xbf16>, vector<128x32xbf16>, vector<16x32xf32> -> vector<16x32xf32>
    %254 = vector.broadcast %17 : vector<1x32xf32> to vector<16x32xf32>
    %255 = arith.addf %253, %254 : vector<16x32xf32>
    %256 = arith.addf %233, %255 : vector<16x32xf32>
    %cst_127 = arith.constant dense<0.000000e+00> : vector<16xf32>
    %257 = vector.multi_reduction <add>, %256, %cst_127 [1] : vector<16x32xf32> to vector<16xf32>
    %258 = vector.shape_cast %257 : vector<16xf32> to vector<16x1xf32>
    %cst_128 = arith.constant 3.200000e+01 : f32
    %259 = vector.broadcast %cst_128 : f32 to vector<16x1xf32>
    %260 = arith.divf %258, %259 : vector<16x1xf32>
    %261 = vector.broadcast %260 : vector<16x1xf32> to vector<16x32xf32>
    %262 = arith.subf %256, %261 : vector<16x32xf32>
    %263 = arith.mulf %262, %262 : vector<16x32xf32>
    %cst_129 = arith.constant dense<0.000000e+00> : vector<16xf32>
    %264 = vector.multi_reduction <add>, %263, %cst_129 [1] : vector<16x32xf32> to vector<16xf32>
    %265 = vector.shape_cast %264 : vector<16xf32> to vector<16x1xf32>
    %cst_130 = arith.constant 3.200000e+01 : f32
    %266 = vector.broadcast %cst_130 : f32 to vector<16x1xf32>
    %267 = arith.divf %265, %266 : vector<16x1xf32>
    %268 = vector.broadcast %260 : vector<16x1xf32> to vector<16x32xf32>
    %269 = arith.subf %256, %268 : vector<16x32xf32>
    %cst_131 = arith.constant 9.99999974E-6 : f32
    %270 = vector.broadcast %cst_131 : f32 to vector<16x1xf32>
    %271 = arith.addf %267, %270 : vector<16x1xf32>
    %272 = math.rsqrt %271 : vector<16x1xf32>
    %273 = vector.broadcast %272 : vector<16x1xf32> to vector<16x32xf32>
    %274 = arith.mulf %269, %273 : vector<16x32xf32>
    %275 = vector.broadcast %18 : vector<1x32xf32> to vector<16x32xf32>
    %276 = arith.mulf %274, %275 : vector<16x32xf32>
    %277 = vector.broadcast %19 : vector<1x32xf32> to vector<16x32xf32>
    %278 = arith.addf %276, %277 : vector<16x32xf32>
    %c0_132 = arith.constant 0 : index
    %c0_133 = arith.constant 0 : index
    %279 = vector.load %arg17[%c0_132, %c0_133] : memref<16x32xf32, #tpu.memory_space<vmem>>, vector<16x32xf32>
    tpu.vector_store %arg17[%c0_132, %c0_133], %278 {strides = array<i32>} : memref<16x32xf32, #tpu.memory_space<vmem>>, vector<16x32xf32>,
    %c0_134 = arith.constant 0 : index
    %c0_135 = arith.constant 0 : index
    %280 = vector.load %arg17[%c0_134, %c0_135] : memref<16x32xf32, #tpu.memory_space<vmem>>, vector<16x32xf32>
    %281 = arith.truncf %280 : vector<16x32xf32> to vector<16x32xbf16>
    %c1_136 = arith.constant 1 : index
    %c0_137 = arith.constant 0 : index
    %c0_138 = arith.constant 0 : index
    %282 = vector.load %arg13[%c1_136, %c0_137, %c0_138] : memref<4x6x32xf32, #tpu.memory_space<vmem>>, vector<1x6x32xf32>
    %283 = vector.shape_cast %282 : vector<1x6x32xf32> to vector<6x32xf32>
    %284 = vector.extract_strided_slice %283 {offsets = [0, 0], sizes = [1, 32], strides = [1, 1]} : vector<6x32xf32> to vector<1x32xf32>
    %285 = vector.extract_strided_slice %283 {offsets = [1, 0], sizes = [1, 32], strides = [1, 1]} : vector<6x32xf32> to vector<1x32xf32>
    %286 = vector.extract_strided_slice %283 {offsets = [2, 0], sizes = [1, 32], strides = [1, 1]} : vector<6x32xf32> to vector<1x32xf32>
    %287 = vector.extract_strided_slice %283 {offsets = [3, 0], sizes = [1, 32], strides = [1, 1]} : vector<6x32xf32> to vector<1x32xf32>
    %288 = vector.extract_strided_slice %283 {offsets = [4, 0], sizes = [1, 32], strides = [1, 1]} : vector<6x32xf32> to vector<1x32xf32>
    %289 = vector.extract_strided_slice %283 {offsets = [5, 0], sizes = [1, 32], strides = [1, 1]} : vector<6x32xf32> to vector<1x32xf32>
    %cst_139 = arith.constant 0.000000e+00 : f32
    %290 = vector.broadcast %cst_139 : f32 to vector<16x32xf32>
    %c4 = arith.constant 4 : index
    %c0_140 = arith.constant 0 : index
    %c0_141 = arith.constant 0 : index
    %291 = vector.load %arg9[%c4, %c0_140, %c0_141] : memref<16x3x8xf32, #tpu.memory_space<vmem>>, vector<1x3x8xf32>
    %292 = vector.shape_cast %291 : vector<1x3x8xf32> to vector<3x8xf32>
    %c4_142 = arith.constant 4 : index
    %c0_143 = arith.constant 0 : index
    %c0_144 = arith.constant 0 : index
    %293 = vector.load %arg5[%c4_142, %c0_143, %c0_144] : memref<16x32x8xbf16, #tpu.memory_space<vmem>>, vector<1x32x8xbf16>
    %294 = vector.shape_cast %293 : vector<1x32x8xbf16> to vector<32x8xbf16>
    %cst_145 = arith.constant dense<0.000000e+00> : vector<16x8xf32>
    %295 = tpu.matmul %281, %294, %cst_145 {dimension_numbers = #tpu.dot_dimension_numbers<[1], [0], [0], [1], [0, 0, 1, 1], [], []>} : vector<16x32xbf16>, vector<32x8xbf16>, vector<16x8xf32> -> vector<16x8xf32>
    %296 = vector.extract_strided_slice %292 {offsets = [0, 0], sizes = [1, 8], strides = [1, 1]} : vector<3x8xf32> to vector<1x8xf32>
    %297 = vector.broadcast %296 : vector<1x8xf32> to vector<16x8xf32>
    %298 = arith.addf %295, %297 : vector<16x8xf32>
    %c4_146 = arith.constant 4 : index
    %c0_147 = arith.constant 0 : index
    %c0_148 = arith.constant 0 : index
    %299 = vector.load %arg6[%c4_146, %c0_147, %c0_148] : memref<16x32x8xbf16, #tpu.memory_space<vmem>>, vector<1x32x8xbf16>
    %300 = vector.shape_cast %299 : vector<1x32x8xbf16> to vector<32x8xbf16>
    %cst_149 = arith.constant dense<0.000000e+00> : vector<16x8xf32>
    %301 = tpu.matmul %281, %300, %cst_149 {dimension_numbers = #tpu.dot_dimension_numbers<[1], [0], [0], [1], [0, 0, 1, 1], [], []>} : vector<16x32xbf16>, vector<32x8xbf16>, vector<16x8xf32> -> vector<16x8xf32>
    %302 = vector.extract_strided_slice %292 {offsets = [1, 0], sizes = [1, 8], strides = [1, 1]} : vector<3x8xf32> to vector<1x8xf32>
    %303 = vector.broadcast %302 : vector<1x8xf32> to vector<16x8xf32>
    %304 = arith.addf %301, %303 : vector<16x8xf32>
    %c4_150 = arith.constant 4 : index
    %c0_151 = arith.constant 0 : index
    %c0_152 = arith.constant 0 : index
    %305 = vector.load %arg7[%c4_150, %c0_151, %c0_152] : memref<16x32x8xbf16, #tpu.memory_space<vmem>>, vector<1x32x8xbf16>
    %306 = vector.shape_cast %305 : vector<1x32x8xbf16> to vector<32x8xbf16>
    %cst_153 = arith.constant dense<0.000000e+00> : vector<16x8xf32>
    %307 = tpu.matmul %281, %306, %cst_153 {dimension_numbers = #tpu.dot_dimension_numbers<[1], [0], [0], [1], [0, 0, 1, 1], [], []>} : vector<16x32xbf16>, vector<32x8xbf16>, vector<16x8xf32> -> vector<16x8xf32>
    %308 = vector.extract_strided_slice %292 {offsets = [2, 0], sizes = [1, 8], strides = [1, 1]} : vector<3x8xf32> to vector<1x8xf32>
    %309 = vector.broadcast %308 : vector<1x8xf32> to vector<16x8xf32>
    %310 = arith.addf %307, %309 : vector<16x8xf32>
    %311 = vector.shape_cast %298 : vector<16x8xf32> to vector<2x8x8xf32>
    %312 = arith.truncf %311 : vector<2x8x8xf32> to vector<2x8x8xbf16>
    %313 = vector.shape_cast %304 : vector<16x8xf32> to vector<2x8x8xf32>
    %314 = arith.truncf %313 : vector<2x8x8xf32> to vector<2x8x8xbf16>
    %315 = vector.shape_cast %310 : vector<16x8xf32> to vector<2x8x8xf32>
    %316 = arith.truncf %315 : vector<2x8x8xf32> to vector<2x8x8xbf16>
    "tpu.trace_start"() <{level = 10 : i32, message = "bqd,bkd->bqk"}> : () -> ()
    %cst_154 = arith.constant dense<0.000000e+00> : vector<2x8x8xf32>
    %317 = tpu.matmul %312, %314, %cst_154 {dimension_numbers = #tpu.dot_dimension_numbers<[2], [2], [1], [1], [0, 0, 0, 1, 1, 1], [0], [0]>} : vector<2x8x8xbf16>, vector<2x8x8xbf16>, vector<2x8x8xf32> -> vector<2x8x8xf32>
    "tpu.trace_stop"() : () -> ()
    %cst_155 = arith.constant 0.353553385 : f32
    %318 = vector.broadcast %cst_155 : f32 to vector<2x8x8xf32>
    %319 = arith.mulf %317, %318 : vector<2x8x8xf32>
    %cst_156 = arith.constant dense<0xFF800000> : vector<2x8xf32>
    %320 = vector.multi_reduction <maximumf>, %319, %cst_156 [2] : vector<2x8x8xf32> to vector<2x8xf32>
    %321 = vector.shape_cast %320 : vector<2x8xf32> to vector<2x8x1xf32>
    %322 = vector.broadcast %321 : vector<2x8x1xf32> to vector<2x8x8xf32>
    %323 = arith.subf %319, %322 : vector<2x8x8xf32>
    %324 = math.exp %323 : vector<2x8x8xf32>
    %cst_157 = arith.constant dense<0.000000e+00> : vector<2x8xf32>
    %325 = vector.multi_reduction <add>, %324, %cst_157 [2] : vector<2x8x8xf32> to vector<2x8xf32>
    %326 = vector.shape_cast %325 : vector<2x8xf32> to vector<2x8x1xf32>
    %327 = tpu.reciprocal %326 {approx = true} : vector<2x8x1xf32> -> vector<2x8x1xf32>
    %328 = vector.broadcast %327 : vector<2x8x1xf32> to vector<2x8x8xf32>
    %329 = arith.mulf %324, %328 : vector<2x8x8xf32>
    %330 = arith.truncf %329 : vector<2x8x8xf32> to vector<2x8x8xbf16>
    "tpu.trace_start"() <{level = 10 : i32, message = "bqk,bkd->bqd"}> : () -> ()
    %cst_158 = arith.constant dense<0.000000e+00> : vector<2x8x8xf32>
    %331 = tpu.matmul %330, %316, %cst_158 {dimension_numbers = #tpu.dot_dimension_numbers<[2], [1], [1], [2], [0, 0, 0, 1, 1, 2], [0], [0]>} : vector<2x8x8xbf16>, vector<2x8x8xbf16>, vector<2x8x8xf32> -> vector<2x8x8xf32>
    "tpu.trace_stop"() : () -> ()
    %332 = vector.shape_cast %331 : vector<2x8x8xf32> to vector<16x8xf32>
    %333 = arith.truncf %332 : vector<16x8xf32> to vector<16x8xbf16>
    %c4_159 = arith.constant 4 : index
    %c0_160 = arith.constant 0 : index
    %c0_161 = arith.constant 0 : index
    %334 = vector.load %arg8[%c4_159, %c0_160, %c0_161] : memref<16x8x32xbf16, #tpu.memory_space<vmem>>, vector<1x8x32xbf16>
    %335 = vector.shape_cast %334 : vector<1x8x32xbf16> to vector<8x32xbf16>
    %cst_162 = arith.constant dense<0.000000e+00> : vector<16x32xf32>
    %336 = tpu.matmul %333, %335, %cst_162 {dimension_numbers = #tpu.dot_dimension_numbers<[1], [0], [0], [1], [0, 0, 1, 1], [], []>} : vector<16x8xbf16>, vector<8x32xbf16>, vector<16x32xf32> -> vector<16x32xf32>
    %337 = arith.addf %290, %336 : vector<16x32xf32>
    %c5 = arith.constant 5 : index
    %c0_163 = arith.constant 0 : index
    %c0_164 = arith.constant 0 : index
    %338 = vector.load %arg9[%c5, %c0_163, %c0_164] : memref<16x3x8xf32, #tpu.memory_space<vmem>>, vector<1x3x8xf32>
    %339 = vector.shape_cast %338 : vector<1x3x8xf32> to vector<3x8xf32>
    %c5_165 = arith.constant 5 : index
    %c0_166 = arith.constant 0 : index
    %c0_167 = arith.constant 0 : index
    %340 = vector.load %arg5[%c5_165, %c0_166, %c0_167] : memref<16x32x8xbf16, #tpu.memory_space<vmem>>, vector<1x32x8xbf16>
    %341 = vector.shape_cast %340 : vector<1x32x8xbf16> to vector<32x8xbf16>
    %cst_168 = arith.constant dense<0.000000e+00> : vector<16x8xf32>
    %342 = tpu.matmul %281, %341, %cst_168 {dimension_numbers = #tpu.dot_dimension_numbers<[1], [0], [0], [1], [0, 0, 1, 1], [], []>} : vector<16x32xbf16>, vector<32x8xbf16>, vector<16x8xf32> -> vector<16x8xf32>
    %343 = vector.extract_strided_slice %339 {offsets = [0, 0], sizes = [1, 8], strides = [1, 1]} : vector<3x8xf32> to vector<1x8xf32>
    %344 = vector.broadcast %343 : vector<1x8xf32> to vector<16x8xf32>
    %345 = arith.addf %342, %344 : vector<16x8xf32>
    %c5_169 = arith.constant 5 : index
    %c0_170 = arith.constant 0 : index
    %c0_171 = arith.constant 0 : index
    %346 = vector.load %arg6[%c5_169, %c0_170, %c0_171] : memref<16x32x8xbf16, #tpu.memory_space<vmem>>, vector<1x32x8xbf16>
    %347 = vector.shape_cast %346 : vector<1x32x8xbf16> to vector<32x8xbf16>
    %cst_172 = arith.constant dense<0.000000e+00> : vector<16x8xf32>
    %348 = tpu.matmul %281, %347, %cst_172 {dimension_numbers = #tpu.dot_dimension_numbers<[1], [0], [0], [1], [0, 0, 1, 1], [], []>} : vector<16x32xbf16>, vector<32x8xbf16>, vector<16x8xf32> -> vector<16x8xf32>
    %349 = vector.extract_strided_slice %339 {offsets = [1, 0], sizes = [1, 8], strides = [1, 1]} : vector<3x8xf32> to vector<1x8xf32>
    %350 = vector.broadcast %349 : vector<1x8xf32> to vector<16x8xf32>
    %351 = arith.addf %348, %350 : vector<16x8xf32>
    %c5_173 = arith.constant 5 : index
    %c0_174 = arith.constant 0 : index
    %c0_175 = arith.constant 0 : index
    %352 = vector.load %arg7[%c5_173, %c0_174, %c0_175] : memref<16x32x8xbf16, #tpu.memory_space<vmem>>, vector<1x32x8xbf16>
    %353 = vector.shape_cast %352 : vector<1x32x8xbf16> to vector<32x8xbf16>
    %cst_176 = arith.constant dense<0.000000e+00> : vector<16x8xf32>
    %354 = tpu.matmul %281, %353, %cst_176 {dimension_numbers = #tpu.dot_dimension_numbers<[1], [0], [0], [1], [0, 0, 1, 1], [], []>} : vector<16x32xbf16>, vector<32x8xbf16>, vector<16x8xf32> -> vector<16x8xf32>
    %355 = vector.extract_strided_slice %339 {offsets = [2, 0], sizes = [1, 8], strides = [1, 1]} : vector<3x8xf32> to vector<1x8xf32>
    %356 = vector.broadcast %355 : vector<1x8xf32> to vector<16x8xf32>
    %357 = arith.addf %354, %356 : vector<16x8xf32>
    %358 = vector.shape_cast %345 : vector<16x8xf32> to vector<2x8x8xf32>
    %359 = arith.truncf %358 : vector<2x8x8xf32> to vector<2x8x8xbf16>
    %360 = vector.shape_cast %351 : vector<16x8xf32> to vector<2x8x8xf32>
    %361 = arith.truncf %360 : vector<2x8x8xf32> to vector<2x8x8xbf16>
    %362 = vector.shape_cast %357 : vector<16x8xf32> to vector<2x8x8xf32>
    %363 = arith.truncf %362 : vector<2x8x8xf32> to vector<2x8x8xbf16>
    "tpu.trace_start"() <{level = 10 : i32, message = "bqd,bkd->bqk"}> : () -> ()
    %cst_177 = arith.constant dense<0.000000e+00> : vector<2x8x8xf32>
    %364 = tpu.matmul %359, %361, %cst_177 {dimension_numbers = #tpu.dot_dimension_numbers<[2], [2], [1], [1], [0, 0, 0, 1, 1, 1], [0], [0]>} : vector<2x8x8xbf16>, vector<2x8x8xbf16>, vector<2x8x8xf32> -> vector<2x8x8xf32>
    "tpu.trace_stop"() : () -> ()
    %cst_178 = arith.constant 0.353553385 : f32
    %365 = vector.broadcast %cst_178 : f32 to vector<2x8x8xf32>
    %366 = arith.mulf %364, %365 : vector<2x8x8xf32>
    %cst_179 = arith.constant dense<0xFF800000> : vector<2x8xf32>
    %367 = vector.multi_reduction <maximumf>, %366, %cst_179 [2] : vector<2x8x8xf32> to vector<2x8xf32>
    %368 = vector.shape_cast %367 : vector<2x8xf32> to vector<2x8x1xf32>
    %369 = vector.broadcast %368 : vector<2x8x1xf32> to vector<2x8x8xf32>
    %370 = arith.subf %366, %369 : vector<2x8x8xf32>
    %371 = math.exp %370 : vector<2x8x8xf32>
    %cst_180 = arith.constant dense<0.000000e+00> : vector<2x8xf32>
    %372 = vector.multi_reduction <add>, %371, %cst_180 [2] : vector<2x8x8xf32> to vector<2x8xf32>
    %373 = vector.shape_cast %372 : vector<2x8xf32> to vector<2x8x1xf32>
    %374 = tpu.reciprocal %373 {approx = true} : vector<2x8x1xf32> -> vector<2x8x1xf32>
    %375 = vector.broadcast %374 : vector<2x8x1xf32> to vector<2x8x8xf32>
    %376 = arith.mulf %371, %375 : vector<2x8x8xf32>
    %377 = arith.truncf %376 : vector<2x8x8xf32> to vector<2x8x8xbf16>
    "tpu.trace_start"() <{level = 10 : i32, message = "bqk,bkd->bqd"}> : () -> ()
    %cst_181 = arith.constant dense<0.000000e+00> : vector<2x8x8xf32>
    %378 = tpu.matmul %377, %363, %cst_181 {dimension_numbers = #tpu.dot_dimension_numbers<[2], [1], [1], [2], [0, 0, 0, 1, 1, 2], [0], [0]>} : vector<2x8x8xbf16>, vector<2x8x8xbf16>, vector<2x8x8xf32> -> vector<2x8x8xf32>
    "tpu.trace_stop"() : () -> ()
    %379 = vector.shape_cast %378 : vector<2x8x8xf32> to vector<16x8xf32>
    %380 = arith.truncf %379 : vector<16x8xf32> to vector<16x8xbf16>
    %c5_182 = arith.constant 5 : index
    %c0_183 = arith.constant 0 : index
    %c0_184 = arith.constant 0 : index
    %381 = vector.load %arg8[%c5_182, %c0_183, %c0_184] : memref<16x8x32xbf16, #tpu.memory_space<vmem>>, vector<1x8x32xbf16>
    %382 = vector.shape_cast %381 : vector<1x8x32xbf16> to vector<8x32xbf16>
    %cst_185 = arith.constant dense<0.000000e+00> : vector<16x32xf32>
    %383 = tpu.matmul %380, %382, %cst_185 {dimension_numbers = #tpu.dot_dimension_numbers<[1], [0], [0], [1], [0, 0, 1, 1], [], []>} : vector<16x8xbf16>, vector<8x32xbf16>, vector<16x32xf32> -> vector<16x32xf32>
    %384 = arith.addf %337, %383 : vector<16x32xf32>
    %c6 = arith.constant 6 : index
    %c0_186 = arith.constant 0 : index
    %c0_187 = arith.constant 0 : index
    %385 = vector.load %arg9[%c6, %c0_186, %c0_187] : memref<16x3x8xf32, #tpu.memory_space<vmem>>, vector<1x3x8xf32>
    %386 = vector.shape_cast %385 : vector<1x3x8xf32> to vector<3x8xf32>
    %c6_188 = arith.constant 6 : index
    %c0_189 = arith.constant 0 : index
    %c0_190 = arith.constant 0 : index
    %387 = vector.load %arg5[%c6_188, %c0_189, %c0_190] : memref<16x32x8xbf16, #tpu.memory_space<vmem>>, vector<1x32x8xbf16>
    %388 = vector.shape_cast %387 : vector<1x32x8xbf16> to vector<32x8xbf16>
    %cst_191 = arith.constant dense<0.000000e+00> : vector<16x8xf32>
    %389 = tpu.matmul %281, %388, %cst_191 {dimension_numbers = #tpu.dot_dimension_numbers<[1], [0], [0], [1], [0, 0, 1, 1], [], []>} : vector<16x32xbf16>, vector<32x8xbf16>, vector<16x8xf32> -> vector<16x8xf32>
    %390 = vector.extract_strided_slice %386 {offsets = [0, 0], sizes = [1, 8], strides = [1, 1]} : vector<3x8xf32> to vector<1x8xf32>
    %391 = vector.broadcast %390 : vector<1x8xf32> to vector<16x8xf32>
    %392 = arith.addf %389, %391 : vector<16x8xf32>
    %c6_192 = arith.constant 6 : index
    %c0_193 = arith.constant 0 : index
    %c0_194 = arith.constant 0 : index
    %393 = vector.load %arg6[%c6_192, %c0_193, %c0_194] : memref<16x32x8xbf16, #tpu.memory_space<vmem>>, vector<1x32x8xbf16>
    %394 = vector.shape_cast %393 : vector<1x32x8xbf16> to vector<32x8xbf16>
    %cst_195 = arith.constant dense<0.000000e+00> : vector<16x8xf32>
    %395 = tpu.matmul %281, %394, %cst_195 {dimension_numbers = #tpu.dot_dimension_numbers<[1], [0], [0], [1], [0, 0, 1, 1], [], []>} : vector<16x32xbf16>, vector<32x8xbf16>, vector<16x8xf32> -> vector<16x8xf32>
    %396 = vector.extract_strided_slice %386 {offsets = [1, 0], sizes = [1, 8], strides = [1, 1]} : vector<3x8xf32> to vector<1x8xf32>
    %397 = vector.broadcast %396 : vector<1x8xf32> to vector<16x8xf32>
    %398 = arith.addf %395, %397 : vector<16x8xf32>
    %c6_196 = arith.constant 6 : index
    %c0_197 = arith.constant 0 : index
    %c0_198 = arith.constant 0 : index
    %399 = vector.load %arg7[%c6_196, %c0_197, %c0_198] : memref<16x32x8xbf16, #tpu.memory_space<vmem>>, vector<1x32x8xbf16>
    %400 = vector.shape_cast %399 : vector<1x32x8xbf16> to vector<32x8xbf16>
    %cst_199 = arith.constant dense<0.000000e+00> : vector<16x8xf32>
    %401 = tpu.matmul %281, %400, %cst_199 {dimension_numbers = #tpu.dot_dimension_numbers<[1], [0], [0], [1], [0, 0, 1, 1], [], []>} : vector<16x32xbf16>, vector<32x8xbf16>, vector<16x8xf32> -> vector<16x8xf32>
    %402 = vector.extract_strided_slice %386 {offsets = [2, 0], sizes = [1, 8], strides = [1, 1]} : vector<3x8xf32> to vector<1x8xf32>
    %403 = vector.broadcast %402 : vector<1x8xf32> to vector<16x8xf32>
    %404 = arith.addf %401, %403 : vector<16x8xf32>
    %405 = vector.shape_cast %392 : vector<16x8xf32> to vector<2x8x8xf32>
    %406 = arith.truncf %405 : vector<2x8x8xf32> to vector<2x8x8xbf16>
    %407 = vector.shape_cast %398 : vector<16x8xf32> to vector<2x8x8xf32>
    %408 = arith.truncf %407 : vector<2x8x8xf32> to vector<2x8x8xbf16>
    %409 = vector.shape_cast %404 : vector<16x8xf32> to vector<2x8x8xf32>
    %410 = arith.truncf %409 : vector<2x8x8xf32> to vector<2x8x8xbf16>
    "tpu.trace_start"() <{level = 10 : i32, message = "bqd,bkd->bqk"}> : () -> ()
    %cst_200 = arith.constant dense<0.000000e+00> : vector<2x8x8xf32>
    %411 = tpu.matmul %406, %408, %cst_200 {dimension_numbers = #tpu.dot_dimension_numbers<[2], [2], [1], [1], [0, 0, 0, 1, 1, 1], [0], [0]>} : vector<2x8x8xbf16>, vector<2x8x8xbf16>, vector<2x8x8xf32> -> vector<2x8x8xf32>
    "tpu.trace_stop"() : () -> ()
    %cst_201 = arith.constant 0.353553385 : f32
    %412 = vector.broadcast %cst_201 : f32 to vector<2x8x8xf32>
    %413 = arith.mulf %411, %412 : vector<2x8x8xf32>
    %cst_202 = arith.constant dense<0xFF800000> : vector<2x8xf32>
    %414 = vector.multi_reduction <maximumf>, %413, %cst_202 [2] : vector<2x8x8xf32> to vector<2x8xf32>
    %415 = vector.shape_cast %414 : vector<2x8xf32> to vector<2x8x1xf32>
    %416 = vector.broadcast %415 : vector<2x8x1xf32> to vector<2x8x8xf32>
    %417 = arith.subf %413, %416 : vector<2x8x8xf32>
    %418 = math.exp %417 : vector<2x8x8xf32>
    %cst_203 = arith.constant dense<0.000000e+00> : vector<2x8xf32>
    %419 = vector.multi_reduction <add>, %418, %cst_203 [2] : vector<2x8x8xf32> to vector<2x8xf32>
    %420 = vector.shape_cast %419 : vector<2x8xf32> to vector<2x8x1xf32>
    %421 = tpu.reciprocal %420 {approx = true} : vector<2x8x1xf32> -> vector<2x8x1xf32>
    %422 = vector.broadcast %421 : vector<2x8x1xf32> to vector<2x8x8xf32>
    %423 = arith.mulf %418, %422 : vector<2x8x8xf32>
    %424 = arith.truncf %423 : vector<2x8x8xf32> to vector<2x8x8xbf16>
    "tpu.trace_start"() <{level = 10 : i32, message = "bqk,bkd->bqd"}> : () -> ()
    %cst_204 = arith.constant dense<0.000000e+00> : vector<2x8x8xf32>
    %425 = tpu.matmul %424, %410, %cst_204 {dimension_numbers = #tpu.dot_dimension_numbers<[2], [1], [1], [2], [0, 0, 0, 1, 1, 2], [0], [0]>} : vector<2x8x8xbf16>, vector<2x8x8xbf16>, vector<2x8x8xf32> -> vector<2x8x8xf32>
    "tpu.trace_stop"() : () -> ()
    %426 = vector.shape_cast %425 : vector<2x8x8xf32> to vector<16x8xf32>
    %427 = arith.truncf %426 : vector<16x8xf32> to vector<16x8xbf16>
    %c6_205 = arith.constant 6 : index
    %c0_206 = arith.constant 0 : index
    %c0_207 = arith.constant 0 : index
    %428 = vector.load %arg8[%c6_205, %c0_206, %c0_207] : memref<16x8x32xbf16, #tpu.memory_space<vmem>>, vector<1x8x32xbf16>
    %429 = vector.shape_cast %428 : vector<1x8x32xbf16> to vector<8x32xbf16>
    %cst_208 = arith.constant dense<0.000000e+00> : vector<16x32xf32>
    %430 = tpu.matmul %427, %429, %cst_208 {dimension_numbers = #tpu.dot_dimension_numbers<[1], [0], [0], [1], [0, 0, 1, 1], [], []>} : vector<16x8xbf16>, vector<8x32xbf16>, vector<16x32xf32> -> vector<16x32xf32>
    %431 = arith.addf %384, %430 : vector<16x32xf32>
    %c7 = arith.constant 7 : index
    %c0_209 = arith.constant 0 : index
    %c0_210 = arith.constant 0 : index
    %432 = vector.load %arg9[%c7, %c0_209, %c0_210] : memref<16x3x8xf32, #tpu.memory_space<vmem>>, vector<1x3x8xf32>
    %433 = vector.shape_cast %432 : vector<1x3x8xf32> to vector<3x8xf32>
    %c7_211 = arith.constant 7 : index
    %c0_212 = arith.constant 0 : index
    %c0_213 = arith.constant 0 : index
    %434 = vector.load %arg5[%c7_211, %c0_212, %c0_213] : memref<16x32x8xbf16, #tpu.memory_space<vmem>>, vector<1x32x8xbf16>
    %435 = vector.shape_cast %434 : vector<1x32x8xbf16> to vector<32x8xbf16>
    %cst_214 = arith.constant dense<0.000000e+00> : vector<16x8xf32>
    %436 = tpu.matmul %281, %435, %cst_214 {dimension_numbers = #tpu.dot_dimension_numbers<[1], [0], [0], [1], [0, 0, 1, 1], [], []>} : vector<16x32xbf16>, vector<32x8xbf16>, vector<16x8xf32> -> vector<16x8xf32>
    %437 = vector.extract_strided_slice %433 {offsets = [0, 0], sizes = [1, 8], strides = [1, 1]} : vector<3x8xf32> to vector<1x8xf32>
    %438 = vector.broadcast %437 : vector<1x8xf32> to vector<16x8xf32>
    %439 = arith.addf %436, %438 : vector<16x8xf32>
    %c7_215 = arith.constant 7 : index
    %c0_216 = arith.constant 0 : index
    %c0_217 = arith.constant 0 : index
    %440 = vector.load %arg6[%c7_215, %c0_216, %c0_217] : memref<16x32x8xbf16, #tpu.memory_space<vmem>>, vector<1x32x8xbf16>
    %441 = vector.shape_cast %440 : vector<1x32x8xbf16> to vector<32x8xbf16>
    %cst_218 = arith.constant dense<0.000000e+00> : vector<16x8xf32>
    %442 = tpu.matmul %281, %441, %cst_218 {dimension_numbers = #tpu.dot_dimension_numbers<[1], [0], [0], [1], [0, 0, 1, 1], [], []>} : vector<16x32xbf16>, vector<32x8xbf16>, vector<16x8xf32> -> vector<16x8xf32>
    %443 = vector.extract_strided_slice %433 {offsets = [1, 0], sizes = [1, 8], strides = [1, 1]} : vector<3x8xf32> to vector<1x8xf32>
    %444 = vector.broadcast %443 : vector<1x8xf32> to vector<16x8xf32>
    %445 = arith.addf %442, %444 : vector<16x8xf32>
    %c7_219 = arith.constant 7 : index
    %c0_220 = arith.constant 0 : index
    %c0_221 = arith.constant 0 : index
    %446 = vector.load %arg7[%c7_219, %c0_220, %c0_221] : memref<16x32x8xbf16, #tpu.memory_space<vmem>>, vector<1x32x8xbf16>
    %447 = vector.shape_cast %446 : vector<1x32x8xbf16> to vector<32x8xbf16>
    %cst_222 = arith.constant dense<0.000000e+00> : vector<16x8xf32>
    %448 = tpu.matmul %281, %447, %cst_222 {dimension_numbers = #tpu.dot_dimension_numbers<[1], [0], [0], [1], [0, 0, 1, 1], [], []>} : vector<16x32xbf16>, vector<32x8xbf16>, vector<16x8xf32> -> vector<16x8xf32>
    %449 = vector.extract_strided_slice %433 {offsets = [2, 0], sizes = [1, 8], strides = [1, 1]} : vector<3x8xf32> to vector<1x8xf32>
    %450 = vector.broadcast %449 : vector<1x8xf32> to vector<16x8xf32>
    %451 = arith.addf %448, %450 : vector<16x8xf32>
    %452 = vector.shape_cast %439 : vector<16x8xf32> to vector<2x8x8xf32>
    %453 = arith.truncf %452 : vector<2x8x8xf32> to vector<2x8x8xbf16>
    %454 = vector.shape_cast %445 : vector<16x8xf32> to vector<2x8x8xf32>
    %455 = arith.truncf %454 : vector<2x8x8xf32> to vector<2x8x8xbf16>
    %456 = vector.shape_cast %451 : vector<16x8xf32> to vector<2x8x8xf32>
    %457 = arith.truncf %456 : vector<2x8x8xf32> to vector<2x8x8xbf16>
    "tpu.trace_start"() <{level = 10 : i32, message = "bqd,bkd->bqk"}> : () -> ()
    %cst_223 = arith.constant dense<0.000000e+00> : vector<2x8x8xf32>
    %458 = tpu.matmul %453, %455, %cst_223 {dimension_numbers = #tpu.dot_dimension_numbers<[2], [2], [1], [1], [0, 0, 0, 1, 1, 1], [0], [0]>} : vector<2x8x8xbf16>, vector<2x8x8xbf16>, vector<2x8x8xf32> -> vector<2x8x8xf32>
    "tpu.trace_stop"() : () -> ()
    %cst_224 = arith.constant 0.353553385 : f32
    %459 = vector.broadcast %cst_224 : f32 to vector<2x8x8xf32>
    %460 = arith.mulf %458, %459 : vector<2x8x8xf32>
    %cst_225 = arith.constant dense<0xFF800000> : vector<2x8xf32>
    %461 = vector.multi_reduction <maximumf>, %460, %cst_225 [2] : vector<2x8x8xf32> to vector<2x8xf32>
    %462 = vector.shape_cast %461 : vector<2x8xf32> to vector<2x8x1xf32>
    %463 = vector.broadcast %462 : vector<2x8x1xf32> to vector<2x8x8xf32>
    %464 = arith.subf %460, %463 : vector<2x8x8xf32>
    %465 = math.exp %464 : vector<2x8x8xf32>
    %cst_226 = arith.constant dense<0.000000e+00> : vector<2x8xf32>
    %466 = vector.multi_reduction <add>, %465, %cst_226 [2] : vector<2x8x8xf32> to vector<2x8xf32>
    %467 = vector.shape_cast %466 : vector<2x8xf32> to vector<2x8x1xf32>
    %468 = tpu.reciprocal %467 {approx = true} : vector<2x8x1xf32> -> vector<2x8x1xf32>
    %469 = vector.broadcast %468 : vector<2x8x1xf32> to vector<2x8x8xf32>
    %470 = arith.mulf %465, %469 : vector<2x8x8xf32>
    %471 = arith.truncf %470 : vector<2x8x8xf32> to vector<2x8x8xbf16>
    "tpu.trace_start"() <{level = 10 : i32, message = "bqk,bkd->bqd"}> : () -> ()
    %cst_227 = arith.constant dense<0.000000e+00> : vector<2x8x8xf32>
    %472 = tpu.matmul %471, %457, %cst_227 {dimension_numbers = #tpu.dot_dimension_numbers<[2], [1], [1], [2], [0, 0, 0, 1, 1, 2], [0], [0]>} : vector<2x8x8xbf16>, vector<2x8x8xbf16>, vector<2x8x8xf32> -> vector<2x8x8xf32>
    "tpu.trace_stop"() : () -> ()
    %473 = vector.shape_cast %472 : vector<2x8x8xf32> to vector<16x8xf32>
    %474 = arith.truncf %473 : vector<16x8xf32> to vector<16x8xbf16>
    %c7_228 = arith.constant 7 : index
    %c0_229 = arith.constant 0 : index
    %c0_230 = arith.constant 0 : index
    %475 = vector.load %arg8[%c7_228, %c0_229, %c0_230] : memref<16x8x32xbf16, #tpu.memory_space<vmem>>, vector<1x8x32xbf16>
    %476 = vector.shape_cast %475 : vector<1x8x32xbf16> to vector<8x32xbf16>
    %cst_231 = arith.constant dense<0.000000e+00> : vector<16x32xf32>
    %477 = tpu.matmul %474, %476, %cst_231 {dimension_numbers = #tpu.dot_dimension_numbers<[1], [0], [0], [1], [0, 0, 1, 1], [], []>} : vector<16x8xbf16>, vector<8x32xbf16>, vector<16x32xf32> -> vector<16x32xf32>
    %478 = arith.addf %431, %477 : vector<16x32xf32>
    %479 = vector.broadcast %284 : vector<1x32xf32> to vector<16x32xf32>
    %480 = arith.addf %478, %479 : vector<16x32xf32>
    %481 = arith.addf %280, %480 : vector<16x32xf32>
    %cst_232 = arith.constant dense<0.000000e+00> : vector<16xf32>
    %482 = vector.multi_reduction <add>, %481, %cst_232 [1] : vector<16x32xf32> to vector<16xf32>
    %483 = vector.shape_cast %482 : vector<16xf32> to vector<16x1xf32>
    %cst_233 = arith.constant 3.200000e+01 : f32
    %484 = vector.broadcast %cst_233 : f32 to vector<16x1xf32>
    %485 = arith.divf %483, %484 : vector<16x1xf32>
    %486 = vector.broadcast %485 : vector<16x1xf32> to vector<16x32xf32>
    %487 = arith.subf %481, %486 : vector<16x32xf32>
    %488 = arith.mulf %487, %487 : vector<16x32xf32>
    %cst_234 = arith.constant dense<0.000000e+00> : vector<16xf32>
    %489 = vector.multi_reduction <add>, %488, %cst_234 [1] : vector<16x32xf32> to vector<16xf32>
    %490 = vector.shape_cast %489 : vector<16xf32> to vector<16x1xf32>
    %cst_235 = arith.constant 3.200000e+01 : f32
    %491 = vector.broadcast %cst_235 : f32 to vector<16x1xf32>
    %492 = arith.divf %490, %491 : vector<16x1xf32>
    %493 = vector.broadcast %485 : vector<16x1xf32> to vector<16x32xf32>
    %494 = arith.subf %481, %493 : vector<16x32xf32>
    %cst_236 = arith.constant 9.99999974E-6 : f32
    %495 = vector.broadcast %cst_236 : f32 to vector<16x1xf32>
    %496 = arith.addf %492, %495 : vector<16x1xf32>
    %497 = math.rsqrt %496 : vector<16x1xf32>
    %498 = vector.broadcast %497 : vector<16x1xf32> to vector<16x32xf32>
    %499 = arith.mulf %494, %498 : vector<16x32xf32>
    %500 = vector.broadcast %285 : vector<1x32xf32> to vector<16x32xf32>
    %501 = arith.mulf %499, %500 : vector<16x32xf32>
    %502 = vector.broadcast %286 : vector<1x32xf32> to vector<16x32xf32>
    %503 = arith.addf %501, %502 : vector<16x32xf32>
    %504 = arith.truncf %503 : vector<16x32xf32> to vector<16x32xbf16>
    %c1_237 = arith.constant 1 : index
    %c0_238 = arith.constant 0 : index
    %c0_239 = arith.constant 0 : index
    %505 = vector.load %arg10[%c1_237, %c0_238, %c0_239] : memref<4x32x128xbf16, #tpu.memory_space<vmem>>, vector<1x32x128xbf16>
    %506 = vector.shape_cast %505 : vector<1x32x128xbf16> to vector<32x128xbf16>
    %cst_240 = arith.constant dense<0.000000e+00> : vector<16x128xf32>
    %507 = tpu.matmul %504, %506, %cst_240 {dimension_numbers = #tpu.dot_dimension_numbers<[1], [0], [0], [1], [0, 0, 1, 1], [], []>} : vector<16x32xbf16>, vector<32x128xbf16>, vector<16x128xf32> -> vector<16x128xf32>
    %c1_241 = arith.constant 1 : index
    %c0_242 = arith.constant 0 : index
    %c0_243 = arith.constant 0 : index
    %508 = vector.load %arg11[%c1_241, %c0_242, %c0_243] : memref<4x1x128xf32, #tpu.memory_space<vmem>>, vector<1x1x128xf32>
    %509 = vector.shape_cast %508 : vector<1x1x128xf32> to vector<1x128xf32>
    %510 = vector.broadcast %509 : vector<1x128xf32> to vector<16x128xf32>
    %511 = arith.addf %507, %510 : vector<16x128xf32>
    %cst_244 = arith.constant 5.000000e-01 : f32
    %512 = vector.broadcast %cst_244 : f32 to vector<16x128xf32>
    %513 = arith.mulf %512, %511 : vector<16x128xf32>
    %cst_245 = arith.constant 0.707106769 : f32
    %514 = vector.broadcast %cst_245 : f32 to vector<16x128xf32>
    %515 = arith.mulf %511, %514 : vector<16x128xf32>
    %516 = math.erf %515 : vector<16x128xf32>
    %cst_246 = arith.constant 1.000000e+00 : f32
    %517 = vector.broadcast %cst_246 : f32 to vector<16x128xf32>
    %518 = arith.addf %517, %516 : vector<16x128xf32>
    %519 = arith.mulf %513, %518 : vector<16x128xf32>
    %520 = arith.truncf %519 : vector<16x128xf32> to vector<16x128xbf16>
    %c1_247 = arith.constant 1 : index
    %c0_248 = arith.constant 0 : index
    %c0_249 = arith.constant 0 : index
    %521 = vector.load %arg12[%c1_247, %c0_248, %c0_249] : memref<4x128x32xbf16, #tpu.memory_space<vmem>>, vector<1x128x32xbf16>
    %522 = vector.shape_cast %521 : vector<1x128x32xbf16> to vector<128x32xbf16>
    %cst_250 = arith.constant dense<0.000000e+00> : vector<16x32xf32>
    %523 = tpu.matmul %520, %522, %cst_250 {dimension_numbers = #tpu.dot_dimension_numbers<[1], [0], [0], [1], [0, 0, 1, 1], [], []>} : vector<16x128xbf16>, vector<128x32xbf16>, vector<16x32xf32> -> vector<16x32xf32>
    %524 = vector.broadcast %287 : vector<1x32xf32> to vector<16x32xf32>
    %525 = arith.addf %523, %524 : vector<16x32xf32>
    %526 = arith.addf %503, %525 : vector<16x32xf32>
    %cst_251 = arith.constant dense<0.000000e+00> : vector<16xf32>
    %527 = vector.multi_reduction <add>, %526, %cst_251 [1] : vector<16x32xf32> to vector<16xf32>
    %528 = vector.shape_cast %527 : vector<16xf32> to vector<16x1xf32>
    %cst_252 = arith.constant 3.200000e+01 : f32
    %529 = vector.broadcast %cst_252 : f32 to vector<16x1xf32>
    %530 = arith.divf %528, %529 : vector<16x1xf32>
    %531 = vector.broadcast %530 : vector<16x1xf32> to vector<16x32xf32>
    %532 = arith.subf %526, %531 : vector<16x32xf32>
    %533 = arith.mulf %532, %532 : vector<16x32xf32>
    %cst_253 = arith.constant dense<0.000000e+00> : vector<16xf32>
    %534 = vector.multi_reduction <add>, %533, %cst_253 [1] : vector<16x32xf32> to vector<16xf32>
    %535 = vector.shape_cast %534 : vector<16xf32> to vector<16x1xf32>
    %cst_254 = arith.constant 3.200000e+01 : f32
    %536 = vector.broadcast %cst_254 : f32 to vector<16x1xf32>
    %537 = arith.divf %535, %536 : vector<16x1xf32>
    %538 = vector.broadcast %530 : vector<16x1xf32> to vector<16x32xf32>
    %539 = arith.subf %526, %538 : vector<16x32xf32>
    %cst_255 = arith.constant 9.99999974E-6 : f32
    %540 = vector.broadcast %cst_255 : f32 to vector<16x1xf32>
    %541 = arith.addf %537, %540 : vector<16x1xf32>
    %542 = math.rsqrt %541 : vector<16x1xf32>
    %543 = vector.broadcast %542 : vector<16x1xf32> to vector<16x32xf32>
    %544 = arith.mulf %539, %543 : vector<16x32xf32>
    %545 = vector.broadcast %288 : vector<1x32xf32> to vector<16x32xf32>
    %546 = arith.mulf %544, %545 : vector<16x32xf32>
    %547 = vector.broadcast %289 : vector<1x32xf32> to vector<16x32xf32>
    %548 = arith.addf %546, %547 : vector<16x32xf32>
    %c0_256 = arith.constant 0 : index
    %c0_257 = arith.constant 0 : index
    %549 = vector.load %arg17[%c0_256, %c0_257] : memref<16x32xf32, #tpu.memory_space<vmem>>, vector<16x32xf32>
    tpu.vector_store %arg17[%c0_256, %c0_257], %548 {strides = array<i32>} : memref<16x32xf32, #tpu.memory_space<vmem>>, vector<16x32xf32>,
    %c0_258 = arith.constant 0 : index
    %c0_259 = arith.constant 0 : index
    %550 = vector.load %arg17[%c0_258, %c0_259] : memref<16x32xf32, #tpu.memory_space<vmem>>, vector<16x32xf32>
    %551 = arith.truncf %550 : vector<16x32xf32> to vector<16x32xbf16>
    %c2_260 = arith.constant 2 : index
    %c0_261 = arith.constant 0 : index
    %c0_262 = arith.constant 0 : index
    %552 = vector.load %arg13[%c2_260, %c0_261, %c0_262] : memref<4x6x32xf32, #tpu.memory_space<vmem>>, vector<1x6x32xf32>
    %553 = vector.shape_cast %552 : vector<1x6x32xf32> to vector<6x32xf32>
    %554 = vector.extract_strided_slice %553 {offsets = [0, 0], sizes = [1, 32], strides = [1, 1]} : vector<6x32xf32> to vector<1x32xf32>
    %555 = vector.extract_strided_slice %553 {offsets = [1, 0], sizes = [1, 32], strides = [1, 1]} : vector<6x32xf32> to vector<1x32xf32>
    %556 = vector.extract_strided_slice %553 {offsets = [2, 0], sizes = [1, 32], strides = [1, 1]} : vector<6x32xf32> to vector<1x32xf32>
    %557 = vector.extract_strided_slice %553 {offsets = [3, 0], sizes = [1, 32], strides = [1, 1]} : vector<6x32xf32> to vector<1x32xf32>
    %558 = vector.extract_strided_slice %553 {offsets = [4, 0], sizes = [1, 32], strides = [1, 1]} : vector<6x32xf32> to vector<1x32xf32>
    %559 = vector.extract_strided_slice %553 {offsets = [5, 0], sizes = [1, 32], strides = [1, 1]} : vector<6x32xf32> to vector<1x32xf32>
    %cst_263 = arith.constant 0.000000e+00 : f32
    %560 = vector.broadcast %cst_263 : f32 to vector<16x32xf32>
    %c8 = arith.constant 8 : index
    %c0_264 = arith.constant 0 : index
    %c0_265 = arith.constant 0 : index
    %561 = vector.load %arg9[%c8, %c0_264, %c0_265] : memref<16x3x8xf32, #tpu.memory_space<vmem>>, vector<1x3x8xf32>
    %562 = vector.shape_cast %561 : vector<1x3x8xf32> to vector<3x8xf32>
    %c8_266 = arith.constant 8 : index
    %c0_267 = arith.constant 0 : index
    %c0_268 = arith.constant 0 : index
    %563 = vector.load %arg5[%c8_266, %c0_267, %c0_268] : memref<16x32x8xbf16, #tpu.memory_space<vmem>>, vector<1x32x8xbf16>
    %564 = vector.shape_cast %563 : vector<1x32x8xbf16> to vector<32x8xbf16>
    %cst_269 = arith.constant dense<0.000000e+00> : vector<16x8xf32>
    %565 = tpu.matmul %551, %564, %cst_269 {dimension_numbers = #tpu.dot_dimension_numbers<[1], [0], [0], [1], [0, 0, 1, 1], [], []>} : vector<16x32xbf16>, vector<32x8xbf16>, vector<16x8xf32> -> vector<16x8xf32>
    %566 = vector.extract_strided_slice %562 {offsets = [0, 0], sizes = [1, 8], strides = [1, 1]} : vector<3x8xf32> to vector<1x8xf32>
    %567 = vector.broadcast %566 : vector<1x8xf32> to vector<16x8xf32>
    %568 = arith.addf %565, %567 : vector<16x8xf32>
    %c8_270 = arith.constant 8 : index
    %c0_271 = arith.constant 0 : index
    %c0_272 = arith.constant 0 : index
    %569 = vector.load %arg6[%c8_270, %c0_271, %c0_272] : memref<16x32x8xbf16, #tpu.memory_space<vmem>>, vector<1x32x8xbf16>
    %570 = vector.shape_cast %569 : vector<1x32x8xbf16> to vector<32x8xbf16>
    %cst_273 = arith.constant dense<0.000000e+00> : vector<16x8xf32>
    %571 = tpu.matmul %551, %570, %cst_273 {dimension_numbers = #tpu.dot_dimension_numbers<[1], [0], [0], [1], [0, 0, 1, 1], [], []>} : vector<16x32xbf16>, vector<32x8xbf16>, vector<16x8xf32> -> vector<16x8xf32>
    %572 = vector.extract_strided_slice %562 {offsets = [1, 0], sizes = [1, 8], strides = [1, 1]} : vector<3x8xf32> to vector<1x8xf32>
    %573 = vector.broadcast %572 : vector<1x8xf32> to vector<16x8xf32>
    %574 = arith.addf %571, %573 : vector<16x8xf32>
    %c8_274 = arith.constant 8 : index
    %c0_275 = arith.constant 0 : index
    %c0_276 = arith.constant 0 : index
    %575 = vector.load %arg7[%c8_274, %c0_275, %c0_276] : memref<16x32x8xbf16, #tpu.memory_space<vmem>>, vector<1x32x8xbf16>
    %576 = vector.shape_cast %575 : vector<1x32x8xbf16> to vector<32x8xbf16>
    %cst_277 = arith.constant dense<0.000000e+00> : vector<16x8xf32>
    %577 = tpu.matmul %551, %576, %cst_277 {dimension_numbers = #tpu.dot_dimension_numbers<[1], [0], [0], [1], [0, 0, 1, 1], [], []>} : vector<16x32xbf16>, vector<32x8xbf16>, vector<16x8xf32> -> vector<16x8xf32>
    %578 = vector.extract_strided_slice %562 {offsets = [2, 0], sizes = [1, 8], strides = [1, 1]} : vector<3x8xf32> to vector<1x8xf32>
    %579 = vector.broadcast %578 : vector<1x8xf32> to vector<16x8xf32>
    %580 = arith.addf %577, %579 : vector<16x8xf32>
    %581 = vector.shape_cast %568 : vector<16x8xf32> to vector<2x8x8xf32>
    %582 = arith.truncf %581 : vector<2x8x8xf32> to vector<2x8x8xbf16>
    %583 = vector.shape_cast %574 : vector<16x8xf32> to vector<2x8x8xf32>
    %584 = arith.truncf %583 : vector<2x8x8xf32> to vector<2x8x8xbf16>
    %585 = vector.shape_cast %580 : vector<16x8xf32> to vector<2x8x8xf32>
    %586 = arith.truncf %585 : vector<2x8x8xf32> to vector<2x8x8xbf16>
    "tpu.trace_start"() <{level = 10 : i32, message = "bqd,bkd->bqk"}> : () -> ()
    %cst_278 = arith.constant dense<0.000000e+00> : vector<2x8x8xf32>
    %587 = tpu.matmul %582, %584, %cst_278 {dimension_numbers = #tpu.dot_dimension_numbers<[2], [2], [1], [1], [0, 0, 0, 1, 1, 1], [0], [0]>} : vector<2x8x8xbf16>, vector<2x8x8xbf16>, vector<2x8x8xf32> -> vector<2x8x8xf32>
    "tpu.trace_stop"() : () -> ()
    %cst_279 = arith.constant 0.353553385 : f32
    %588 = vector.broadcast %cst_279 : f32 to vector<2x8x8xf32>
    %589 = arith.mulf %587, %588 : vector<2x8x8xf32>
    %cst_280 = arith.constant dense<0xFF800000> : vector<2x8xf32>
    %590 = vector.multi_reduction <maximumf>, %589, %cst_280 [2] : vector<2x8x8xf32> to vector<2x8xf32>
    %591 = vector.shape_cast %590 : vector<2x8xf32> to vector<2x8x1xf32>
    %592 = vector.broadcast %591 : vector<2x8x1xf32> to vector<2x8x8xf32>
    %593 = arith.subf %589, %592 : vector<2x8x8xf32>
    %594 = math.exp %593 : vector<2x8x8xf32>
    %cst_281 = arith.constant dense<0.000000e+00> : vector<2x8xf32>
    %595 = vector.multi_reduction <add>, %594, %cst_281 [2] : vector<2x8x8xf32> to vector<2x8xf32>
    %596 = vector.shape_cast %595 : vector<2x8xf32> to vector<2x8x1xf32>
    %597 = tpu.reciprocal %596 {approx = true} : vector<2x8x1xf32> -> vector<2x8x1xf32>
    %598 = vector.broadcast %597 : vector<2x8x1xf32> to vector<2x8x8xf32>
    %599 = arith.mulf %594, %598 : vector<2x8x8xf32>
    %600 = arith.truncf %599 : vector<2x8x8xf32> to vector<2x8x8xbf16>
    "tpu.trace_start"() <{level = 10 : i32, message = "bqk,bkd->bqd"}> : () -> ()
    %cst_282 = arith.constant dense<0.000000e+00> : vector<2x8x8xf32>
    %601 = tpu.matmul %600, %586, %cst_282 {dimension_numbers = #tpu.dot_dimension_numbers<[2], [1], [1], [2], [0, 0, 0, 1, 1, 2], [0], [0]>} : vector<2x8x8xbf16>, vector<2x8x8xbf16>, vector<2x8x8xf32> -> vector<2x8x8xf32>
    "tpu.trace_stop"() : () -> ()
    %602 = vector.shape_cast %601 : vector<2x8x8xf32> to vector<16x8xf32>
    %603 = arith.truncf %602 : vector<16x8xf32> to vector<16x8xbf16>
    %c8_283 = arith.constant 8 : index
    %c0_284 = arith.constant 0 : index
    %c0_285 = arith.constant 0 : index
    %604 = vector.load %arg8[%c8_283, %c0_284, %c0_285] : memref<16x8x32xbf16, #tpu.memory_space<vmem>>, vector<1x8x32xbf16>
    %605 = vector.shape_cast %604 : vector<1x8x32xbf16> to vector<8x32xbf16>
    %cst_286 = arith.constant dense<0.000000e+00> : vector<16x32xf32>
    %606 = tpu.matmul %603, %605, %cst_286 {dimension_numbers = #tpu.dot_dimension_numbers<[1], [0], [0], [1], [0, 0, 1, 1], [], []>} : vector<16x8xbf16>, vector<8x32xbf16>, vector<16x32xf32> -> vector<16x32xf32>
    %607 = arith.addf %560, %606 : vector<16x32xf32>
    %c9 = arith.constant 9 : index
    %c0_287 = arith.constant 0 : index
    %c0_288 = arith.constant 0 : index
    %608 = vector.load %arg9[%c9, %c0_287, %c0_288] : memref<16x3x8xf32, #tpu.memory_space<vmem>>, vector<1x3x8xf32>
    %609 = vector.shape_cast %608 : vector<1x3x8xf32> to vector<3x8xf32>
    %c9_289 = arith.constant 9 : index
    %c0_290 = arith.constant 0 : index
    %c0_291 = arith.constant 0 : index
    %610 = vector.load %arg5[%c9_289, %c0_290, %c0_291] : memref<16x32x8xbf16, #tpu.memory_space<vmem>>, vector<1x32x8xbf16>
    %611 = vector.shape_cast %610 : vector<1x32x8xbf16> to vector<32x8xbf16>
    %cst_292 = arith.constant dense<0.000000e+00> : vector<16x8xf32>
    %612 = tpu.matmul %551, %611, %cst_292 {dimension_numbers = #tpu.dot_dimension_numbers<[1], [0], [0], [1], [0, 0, 1, 1], [], []>} : vector<16x32xbf16>, vector<32x8xbf16>, vector<16x8xf32> -> vector<16x8xf32>
    %613 = vector.extract_strided_slice %609 {offsets = [0, 0], sizes = [1, 8], strides = [1, 1]} : vector<3x8xf32> to vector<1x8xf32>
    %614 = vector.broadcast %613 : vector<1x8xf32> to vector<16x8xf32>
    %615 = arith.addf %612, %614 : vector<16x8xf32>
    %c9_293 = arith.constant 9 : index
    %c0_294 = arith.constant 0 : index
    %c0_295 = arith.constant 0 : index
    %616 = vector.load %arg6[%c9_293, %c0_294, %c0_295] : memref<16x32x8xbf16, #tpu.memory_space<vmem>>, vector<1x32x8xbf16>
    %617 = vector.shape_cast %616 : vector<1x32x8xbf16> to vector<32x8xbf16>
    %cst_296 = arith.constant dense<0.000000e+00> : vector<16x8xf32>
    %618 = tpu.matmul %551, %617, %cst_296 {dimension_numbers = #tpu.dot_dimension_numbers<[1], [0], [0], [1], [0, 0, 1, 1], [], []>} : vector<16x32xbf16>, vector<32x8xbf16>, vector<16x8xf32> -> vector<16x8xf32>
    %619 = vector.extract_strided_slice %609 {offsets = [1, 0], sizes = [1, 8], strides = [1, 1]} : vector<3x8xf32> to vector<1x8xf32>
    %620 = vector.broadcast %619 : vector<1x8xf32> to vector<16x8xf32>
    %621 = arith.addf %618, %620 : vector<16x8xf32>
    %c9_297 = arith.constant 9 : index
    %c0_298 = arith.constant 0 : index
    %c0_299 = arith.constant 0 : index
    %622 = vector.load %arg7[%c9_297, %c0_298, %c0_299] : memref<16x32x8xbf16, #tpu.memory_space<vmem>>, vector<1x32x8xbf16>
    %623 = vector.shape_cast %622 : vector<1x32x8xbf16> to vector<32x8xbf16>
    %cst_300 = arith.constant dense<0.000000e+00> : vector<16x8xf32>
    %624 = tpu.matmul %551, %623, %cst_300 {dimension_numbers = #tpu.dot_dimension_numbers<[1], [0], [0], [1], [0, 0, 1, 1], [], []>} : vector<16x32xbf16>, vector<32x8xbf16>, vector<16x8xf32> -> vector<16x8xf32>
    %625 = vector.extract_strided_slice %609 {offsets = [2, 0], sizes = [1, 8], strides = [1, 1]} : vector<3x8xf32> to vector<1x8xf32>
    %626 = vector.broadcast %625 : vector<1x8xf32> to vector<16x8xf32>
    %627 = arith.addf %624, %626 : vector<16x8xf32>
    %628 = vector.shape_cast %615 : vector<16x8xf32> to vector<2x8x8xf32>
    %629 = arith.truncf %628 : vector<2x8x8xf32> to vector<2x8x8xbf16>
    %630 = vector.shape_cast %621 : vector<16x8xf32> to vector<2x8x8xf32>
    %631 = arith.truncf %630 : vector<2x8x8xf32> to vector<2x8x8xbf16>
    %632 = vector.shape_cast %627 : vector<16x8xf32> to vector<2x8x8xf32>
    %633 = arith.truncf %632 : vector<2x8x8xf32> to vector<2x8x8xbf16>
    "tpu.trace_start"() <{level = 10 : i32, message = "bqd,bkd->bqk"}> : () -> ()
    %cst_301 = arith.constant dense<0.000000e+00> : vector<2x8x8xf32>
    %634 = tpu.matmul %629, %631, %cst_301 {dimension_numbers = #tpu.dot_dimension_numbers<[2], [2], [1], [1], [0, 0, 0, 1, 1, 1], [0], [0]>} : vector<2x8x8xbf16>, vector<2x8x8xbf16>, vector<2x8x8xf32> -> vector<2x8x8xf32>
    "tpu.trace_stop"() : () -> ()
    %cst_302 = arith.constant 0.353553385 : f32
    %635 = vector.broadcast %cst_302 : f32 to vector<2x8x8xf32>
    %636 = arith.mulf %634, %635 : vector<2x8x8xf32>
    %cst_303 = arith.constant dense<0xFF800000> : vector<2x8xf32>
    %637 = vector.multi_reduction <maximumf>, %636, %cst_303 [2] : vector<2x8x8xf32> to vector<2x8xf32>
    %638 = vector.shape_cast %637 : vector<2x8xf32> to vector<2x8x1xf32>
    %639 = vector.broadcast %638 : vector<2x8x1xf32> to vector<2x8x8xf32>
    %640 = arith.subf %636, %639 : vector<2x8x8xf32>
    %641 = math.exp %640 : vector<2x8x8xf32>
    %cst_304 = arith.constant dense<0.000000e+00> : vector<2x8xf32>
    %642 = vector.multi_reduction <add>, %641, %cst_304 [2] : vector<2x8x8xf32> to vector<2x8xf32>
    %643 = vector.shape_cast %642 : vector<2x8xf32> to vector<2x8x1xf32>
    %644 = tpu.reciprocal %643 {approx = true} : vector<2x8x1xf32> -> vector<2x8x1xf32>
    %645 = vector.broadcast %644 : vector<2x8x1xf32> to vector<2x8x8xf32>
    %646 = arith.mulf %641, %645 : vector<2x8x8xf32>
    %647 = arith.truncf %646 : vector<2x8x8xf32> to vector<2x8x8xbf16>
    "tpu.trace_start"() <{level = 10 : i32, message = "bqk,bkd->bqd"}> : () -> ()
    %cst_305 = arith.constant dense<0.000000e+00> : vector<2x8x8xf32>
    %648 = tpu.matmul %647, %633, %cst_305 {dimension_numbers = #tpu.dot_dimension_numbers<[2], [1], [1], [2], [0, 0, 0, 1, 1, 2], [0], [0]>} : vector<2x8x8xbf16>, vector<2x8x8xbf16>, vector<2x8x8xf32> -> vector<2x8x8xf32>
    "tpu.trace_stop"() : () -> ()
    %649 = vector.shape_cast %648 : vector<2x8x8xf32> to vector<16x8xf32>
    %650 = arith.truncf %649 : vector<16x8xf32> to vector<16x8xbf16>
    %c9_306 = arith.constant 9 : index
    %c0_307 = arith.constant 0 : index
    %c0_308 = arith.constant 0 : index
    %651 = vector.load %arg8[%c9_306, %c0_307, %c0_308] : memref<16x8x32xbf16, #tpu.memory_space<vmem>>, vector<1x8x32xbf16>
    %652 = vector.shape_cast %651 : vector<1x8x32xbf16> to vector<8x32xbf16>
    %cst_309 = arith.constant dense<0.000000e+00> : vector<16x32xf32>
    %653 = tpu.matmul %650, %652, %cst_309 {dimension_numbers = #tpu.dot_dimension_numbers<[1], [0], [0], [1], [0, 0, 1, 1], [], []>} : vector<16x8xbf16>, vector<8x32xbf16>, vector<16x32xf32> -> vector<16x32xf32>
    %654 = arith.addf %607, %653 : vector<16x32xf32>
    %c10 = arith.constant 10 : index
    %c0_310 = arith.constant 0 : index
    %c0_311 = arith.constant 0 : index
    %655 = vector.load %arg9[%c10, %c0_310, %c0_311] : memref<16x3x8xf32, #tpu.memory_space<vmem>>, vector<1x3x8xf32>
    %656 = vector.shape_cast %655 : vector<1x3x8xf32> to vector<3x8xf32>
    %c10_312 = arith.constant 10 : index
    %c0_313 = arith.constant 0 : index
    %c0_314 = arith.constant 0 : index
    %657 = vector.load %arg5[%c10_312, %c0_313, %c0_314] : memref<16x32x8xbf16, #tpu.memory_space<vmem>>, vector<1x32x8xbf16>
    %658 = vector.shape_cast %657 : vector<1x32x8xbf16> to vector<32x8xbf16>
    %cst_315 = arith.constant dense<0.000000e+00> : vector<16x8xf32>
    %659 = tpu.matmul %551, %658, %cst_315 {dimension_numbers = #tpu.dot_dimension_numbers<[1], [0], [0], [1], [0, 0, 1, 1], [], []>} : vector<16x32xbf16>, vector<32x8xbf16>, vector<16x8xf32> -> vector<16x8xf32>
    %660 = vector.extract_strided_slice %656 {offsets = [0, 0], sizes = [1, 8], strides = [1, 1]} : vector<3x8xf32> to vector<1x8xf32>
    %661 = vector.broadcast %660 : vector<1x8xf32> to vector<16x8xf32>
    %662 = arith.addf %659, %661 : vector<16x8xf32>
    %c10_316 = arith.constant 10 : index
    %c0_317 = arith.constant 0 : index
    %c0_318 = arith.constant 0 : index
    %663 = vector.load %arg6[%c10_316, %c0_317, %c0_318] : memref<16x32x8xbf16, #tpu.memory_space<vmem>>, vector<1x32x8xbf16>
    %664 = vector.shape_cast %663 : vector<1x32x8xbf16> to vector<32x8xbf16>
    %cst_319 = arith.constant dense<0.000000e+00> : vector<16x8xf32>
    %665 = tpu.matmul %551, %664, %cst_319 {dimension_numbers = #tpu.dot_dimension_numbers<[1], [0], [0], [1], [0, 0, 1, 1], [], []>} : vector<16x32xbf16>, vector<32x8xbf16>, vector<16x8xf32> -> vector<16x8xf32>
    %666 = vector.extract_strided_slice %656 {offsets = [1, 0], sizes = [1, 8], strides = [1, 1]} : vector<3x8xf32> to vector<1x8xf32>
    %667 = vector.broadcast %666 : vector<1x8xf32> to vector<16x8xf32>
    %668 = arith.addf %665, %667 : vector<16x8xf32>
    %c10_320 = arith.constant 10 : index
    %c0_321 = arith.constant 0 : index
    %c0_322 = arith.constant 0 : index
    %669 = vector.load %arg7[%c10_320, %c0_321, %c0_322] : memref<16x32x8xbf16, #tpu.memory_space<vmem>>, vector<1x32x8xbf16>
    %670 = vector.shape_cast %669 : vector<1x32x8xbf16> to vector<32x8xbf16>
    %cst_323 = arith.constant dense<0.000000e+00> : vector<16x8xf32>
    %671 = tpu.matmul %551, %670, %cst_323 {dimension_numbers = #tpu.dot_dimension_numbers<[1], [0], [0], [1], [0, 0, 1, 1], [], []>} : vector<16x32xbf16>, vector<32x8xbf16>, vector<16x8xf32> -> vector<16x8xf32>
    %672 = vector.extract_strided_slice %656 {offsets = [2, 0], sizes = [1, 8], strides = [1, 1]} : vector<3x8xf32> to vector<1x8xf32>
    %673 = vector.broadcast %672 : vector<1x8xf32> to vector<16x8xf32>
    %674 = arith.addf %671, %673 : vector<16x8xf32>
    %675 = vector.shape_cast %662 : vector<16x8xf32> to vector<2x8x8xf32>
    %676 = arith.truncf %675 : vector<2x8x8xf32> to vector<2x8x8xbf16>
    %677 = vector.shape_cast %668 : vector<16x8xf32> to vector<2x8x8xf32>
    %678 = arith.truncf %677 : vector<2x8x8xf32> to vector<2x8x8xbf16>
    %679 = vector.shape_cast %674 : vector<16x8xf32> to vector<2x8x8xf32>
    %680 = arith.truncf %679 : vector<2x8x8xf32> to vector<2x8x8xbf16>
    "tpu.trace_start"() <{level = 10 : i32, message = "bqd,bkd->bqk"}> : () -> ()
    %cst_324 = arith.constant dense<0.000000e+00> : vector<2x8x8xf32>
    %681 = tpu.matmul %676, %678, %cst_324 {dimension_numbers = #tpu.dot_dimension_numbers<[2], [2], [1], [1], [0, 0, 0, 1, 1, 1], [0], [0]>} : vector<2x8x8xbf16>, vector<2x8x8xbf16>, vector<2x8x8xf32> -> vector<2x8x8xf32>
    "tpu.trace_stop"() : () -> ()
    %cst_325 = arith.constant 0.353553385 : f32
    %682 = vector.broadcast %cst_325 : f32 to vector<2x8x8xf32>
    %683 = arith.mulf %681, %682 : vector<2x8x8xf32>
    %cst_326 = arith.constant dense<0xFF800000> : vector<2x8xf32>
    %684 = vector.multi_reduction <maximumf>, %683, %cst_326 [2] : vector<2x8x8xf32> to vector<2x8xf32>
    %685 = vector.shape_cast %684 : vector<2x8xf32> to vector<2x8x1xf32>
    %686 = vector.broadcast %685 : vector<2x8x1xf32> to vector<2x8x8xf32>
    %687 = arith.subf %683, %686 : vector<2x8x8xf32>
    %688 = math.exp %687 : vector<2x8x8xf32>
    %cst_327 = arith.constant dense<0.000000e+00> : vector<2x8xf32>
    %689 = vector.multi_reduction <add>, %688, %cst_327 [2] : vector<2x8x8xf32> to vector<2x8xf32>
    %690 = vector.shape_cast %689 : vector<2x8xf32> to vector<2x8x1xf32>
    %691 = tpu.reciprocal %690 {approx = true} : vector<2x8x1xf32> -> vector<2x8x1xf32>
    %692 = vector.broadcast %691 : vector<2x8x1xf32> to vector<2x8x8xf32>
    %693 = arith.mulf %688, %692 : vector<2x8x8xf32>
    %694 = arith.truncf %693 : vector<2x8x8xf32> to vector<2x8x8xbf16>
    "tpu.trace_start"() <{level = 10 : i32, message = "bqk,bkd->bqd"}> : () -> ()
    %cst_328 = arith.constant dense<0.000000e+00> : vector<2x8x8xf32>
    %695 = tpu.matmul %694, %680, %cst_328 {dimension_numbers = #tpu.dot_dimension_numbers<[2], [1], [1], [2], [0, 0, 0, 1, 1, 2], [0], [0]>} : vector<2x8x8xbf16>, vector<2x8x8xbf16>, vector<2x8x8xf32> -> vector<2x8x8xf32>
    "tpu.trace_stop"() : () -> ()
    %696 = vector.shape_cast %695 : vector<2x8x8xf32> to vector<16x8xf32>
    %697 = arith.truncf %696 : vector<16x8xf32> to vector<16x8xbf16>
    %c10_329 = arith.constant 10 : index
    %c0_330 = arith.constant 0 : index
    %c0_331 = arith.constant 0 : index
    %698 = vector.load %arg8[%c10_329, %c0_330, %c0_331] : memref<16x8x32xbf16, #tpu.memory_space<vmem>>, vector<1x8x32xbf16>
    %699 = vector.shape_cast %698 : vector<1x8x32xbf16> to vector<8x32xbf16>
    %cst_332 = arith.constant dense<0.000000e+00> : vector<16x32xf32>
    %700 = tpu.matmul %697, %699, %cst_332 {dimension_numbers = #tpu.dot_dimension_numbers<[1], [0], [0], [1], [0, 0, 1, 1], [], []>} : vector<16x8xbf16>, vector<8x32xbf16>, vector<16x32xf32> -> vector<16x32xf32>
    %701 = arith.addf %654, %700 : vector<16x32xf32>
    %c11 = arith.constant 11 : index
    %c0_333 = arith.constant 0 : index
    %c0_334 = arith.constant 0 : index
    %702 = vector.load %arg9[%c11, %c0_333, %c0_334] : memref<16x3x8xf32, #tpu.memory_space<vmem>>, vector<1x3x8xf32>
    %703 = vector.shape_cast %702 : vector<1x3x8xf32> to vector<3x8xf32>
    %c11_335 = arith.constant 11 : index
    %c0_336 = arith.constant 0 : index
    %c0_337 = arith.constant 0 : index
    %704 = vector.load %arg5[%c11_335, %c0_336, %c0_337] : memref<16x32x8xbf16, #tpu.memory_space<vmem>>, vector<1x32x8xbf16>
    %705 = vector.shape_cast %704 : vector<1x32x8xbf16> to vector<32x8xbf16>
    %cst_338 = arith.constant dense<0.000000e+00> : vector<16x8xf32>
    %706 = tpu.matmul %551, %705, %cst_338 {dimension_numbers = #tpu.dot_dimension_numbers<[1], [0], [0], [1], [0, 0, 1, 1], [], []>} : vector<16x32xbf16>, vector<32x8xbf16>, vector<16x8xf32> -> vector<16x8xf32>
    %707 = vector.extract_strided_slice %703 {offsets = [0, 0], sizes = [1, 8], strides = [1, 1]} : vector<3x8xf32> to vector<1x8xf32>
    %708 = vector.broadcast %707 : vector<1x8xf32> to vector<16x8xf32>
    %709 = arith.addf %706, %708 : vector<16x8xf32>
    %c11_339 = arith.constant 11 : index
    %c0_340 = arith.constant 0 : index
    %c0_341 = arith.constant 0 : index
    %710 = vector.load %arg6[%c11_339, %c0_340, %c0_341] : memref<16x32x8xbf16, #tpu.memory_space<vmem>>, vector<1x32x8xbf16>
    %711 = vector.shape_cast %710 : vector<1x32x8xbf16> to vector<32x8xbf16>
    %cst_342 = arith.constant dense<0.000000e+00> : vector<16x8xf32>
    %712 = tpu.matmul %551, %711, %cst_342 {dimension_numbers = #tpu.dot_dimension_numbers<[1], [0], [0], [1], [0, 0, 1, 1], [], []>} : vector<16x32xbf16>, vector<32x8xbf16>, vector<16x8xf32> -> vector<16x8xf32>
    %713 = vector.extract_strided_slice %703 {offsets = [1, 0], sizes = [1, 8], strides = [1, 1]} : vector<3x8xf32> to vector<1x8xf32>
    %714 = vector.broadcast %713 : vector<1x8xf32> to vector<16x8xf32>
    %715 = arith.addf %712, %714 : vector<16x8xf32>
    %c11_343 = arith.constant 11 : index
    %c0_344 = arith.constant 0 : index
    %c0_345 = arith.constant 0 : index
    %716 = vector.load %arg7[%c11_343, %c0_344, %c0_345] : memref<16x32x8xbf16, #tpu.memory_space<vmem>>, vector<1x32x8xbf16>
    %717 = vector.shape_cast %716 : vector<1x32x8xbf16> to vector<32x8xbf16>
    %cst_346 = arith.constant dense<0.000000e+00> : vector<16x8xf32>
    %718 = tpu.matmul %551, %717, %cst_346 {dimension_numbers = #tpu.dot_dimension_numbers<[1], [0], [0], [1], [0, 0, 1, 1], [], []>} : vector<16x32xbf16>, vector<32x8xbf16>, vector<16x8xf32> -> vector<16x8xf32>
    %719 = vector.extract_strided_slice %703 {offsets = [2, 0], sizes = [1, 8], strides = [1, 1]} : vector<3x8xf32> to vector<1x8xf32>
    %720 = vector.broadcast %719 : vector<1x8xf32> to vector<16x8xf32>
    %721 = arith.addf %718, %720 : vector<16x8xf32>
    %722 = vector.shape_cast %709 : vector<16x8xf32> to vector<2x8x8xf32>
    %723 = arith.truncf %722 : vector<2x8x8xf32> to vector<2x8x8xbf16>
    %724 = vector.shape_cast %715 : vector<16x8xf32> to vector<2x8x8xf32>
    %725 = arith.truncf %724 : vector<2x8x8xf32> to vector<2x8x8xbf16>
    %726 = vector.shape_cast %721 : vector<16x8xf32> to vector<2x8x8xf32>
    %727 = arith.truncf %726 : vector<2x8x8xf32> to vector<2x8x8xbf16>
    "tpu.trace_start"() <{level = 10 : i32, message = "bqd,bkd->bqk"}> : () -> ()
    %cst_347 = arith.constant dense<0.000000e+00> : vector<2x8x8xf32>
    %728 = tpu.matmul %723, %725, %cst_347 {dimension_numbers = #tpu.dot_dimension_numbers<[2], [2], [1], [1], [0, 0, 0, 1, 1, 1], [0], [0]>} : vector<2x8x8xbf16>, vector<2x8x8xbf16>, vector<2x8x8xf32> -> vector<2x8x8xf32>
    "tpu.trace_stop"() : () -> ()
    %cst_348 = arith.constant 0.353553385 : f32
    %729 = vector.broadcast %cst_348 : f32 to vector<2x8x8xf32>
    %730 = arith.mulf %728, %729 : vector<2x8x8xf32>
    %cst_349 = arith.constant dense<0xFF800000> : vector<2x8xf32>
    %731 = vector.multi_reduction <maximumf>, %730, %cst_349 [2] : vector<2x8x8xf32> to vector<2x8xf32>
    %732 = vector.shape_cast %731 : vector<2x8xf32> to vector<2x8x1xf32>
    %733 = vector.broadcast %732 : vector<2x8x1xf32> to vector<2x8x8xf32>
    %734 = arith.subf %730, %733 : vector<2x8x8xf32>
    %735 = math.exp %734 : vector<2x8x8xf32>
    %cst_350 = arith.constant dense<0.000000e+00> : vector<2x8xf32>
    %736 = vector.multi_reduction <add>, %735, %cst_350 [2] : vector<2x8x8xf32> to vector<2x8xf32>
    %737 = vector.shape_cast %736 : vector<2x8xf32> to vector<2x8x1xf32>
    %738 = tpu.reciprocal %737 {approx = true} : vector<2x8x1xf32> -> vector<2x8x1xf32>
    %739 = vector.broadcast %738 : vector<2x8x1xf32> to vector<2x8x8xf32>
    %740 = arith.mulf %735, %739 : vector<2x8x8xf32>
    %741 = arith.truncf %740 : vector<2x8x8xf32> to vector<2x8x8xbf16>
    "tpu.trace_start"() <{level = 10 : i32, message = "bqk,bkd->bqd"}> : () -> ()
    %cst_351 = arith.constant dense<0.000000e+00> : vector<2x8x8xf32>
    %742 = tpu.matmul %741, %727, %cst_351 {dimension_numbers = #tpu.dot_dimension_numbers<[2], [1], [1], [2], [0, 0, 0, 1, 1, 2], [0], [0]>} : vector<2x8x8xbf16>, vector<2x8x8xbf16>, vector<2x8x8xf32> -> vector<2x8x8xf32>
    "tpu.trace_stop"() : () -> ()
    %743 = vector.shape_cast %742 : vector<2x8x8xf32> to vector<16x8xf32>
    %744 = arith.truncf %743 : vector<16x8xf32> to vector<16x8xbf16>
    %c11_352 = arith.constant 11 : index
    %c0_353 = arith.constant 0 : index
    %c0_354 = arith.constant 0 : index
    %745 = vector.load %arg8[%c11_352, %c0_353, %c0_354] : memref<16x8x32xbf16, #tpu.memory_space<vmem>>, vector<1x8x32xbf16>
    %746 = vector.shape_cast %745 : vector<1x8x32xbf16> to vector<8x32xbf16>
    %cst_355 = arith.constant dense<0.000000e+00> : vector<16x32xf32>
    %747 = tpu.matmul %744, %746, %cst_355 {dimension_numbers = #tpu.dot_dimension_numbers<[1], [0], [0], [1], [0, 0, 1, 1], [], []>} : vector<16x8xbf16>, vector<8x32xbf16>, vector<16x32xf32> -> vector<16x32xf32>
    %748 = arith.addf %701, %747 : vector<16x32xf32>
    %749 = vector.broadcast %554 : vector<1x32xf32> to vector<16x32xf32>
    %750 = arith.addf %748, %749 : vector<16x32xf32>
    %751 = arith.addf %550, %750 : vector<16x32xf32>
    %cst_356 = arith.constant dense<0.000000e+00> : vector<16xf32>
    %752 = vector.multi_reduction <add>, %751, %cst_356 [1] : vector<16x32xf32> to vector<16xf32>
    %753 = vector.shape_cast %752 : vector<16xf32> to vector<16x1xf32>
    %cst_357 = arith.constant 3.200000e+01 : f32
    %754 = vector.broadcast %cst_357 : f32 to vector<16x1xf32>
    %755 = arith.divf %753, %754 : vector<16x1xf32>
    %756 = vector.broadcast %755 : vector<16x1xf32> to vector<16x32xf32>
    %757 = arith.subf %751, %756 : vector<16x32xf32>
    %758 = arith.mulf %757, %757 : vector<16x32xf32>
    %cst_358 = arith.constant dense<0.000000e+00> : vector<16xf32>
    %759 = vector.multi_reduction <add>, %758, %cst_358 [1] : vector<16x32xf32> to vector<16xf32>
    %760 = vector.shape_cast %759 : vector<16xf32> to vector<16x1xf32>
    %cst_359 = arith.constant 3.200000e+01 : f32
    %761 = vector.broadcast %cst_359 : f32 to vector<16x1xf32>
    %762 = arith.divf %760, %761 : vector<16x1xf32>
    %763 = vector.broadcast %755 : vector<16x1xf32> to vector<16x32xf32>
    %764 = arith.subf %751, %763 : vector<16x32xf32>
    %cst_360 = arith.constant 9.99999974E-6 : f32
    %765 = vector.broadcast %cst_360 : f32 to vector<16x1xf32>
    %766 = arith.addf %762, %765 : vector<16x1xf32>
    %767 = math.rsqrt %766 : vector<16x1xf32>
    %768 = vector.broadcast %767 : vector<16x1xf32> to vector<16x32xf32>
    %769 = arith.mulf %764, %768 : vector<16x32xf32>
    %770 = vector.broadcast %555 : vector<1x32xf32> to vector<16x32xf32>
    %771 = arith.mulf %769, %770 : vector<16x32xf32>
    %772 = vector.broadcast %556 : vector<1x32xf32> to vector<16x32xf32>
    %773 = arith.addf %771, %772 : vector<16x32xf32>
    %774 = arith.truncf %773 : vector<16x32xf32> to vector<16x32xbf16>
    %c2_361 = arith.constant 2 : index
    %c0_362 = arith.constant 0 : index
    %c0_363 = arith.constant 0 : index
    %775 = vector.load %arg10[%c2_361, %c0_362, %c0_363] : memref<4x32x128xbf16, #tpu.memory_space<vmem>>, vector<1x32x128xbf16>
    %776 = vector.shape_cast %775 : vector<1x32x128xbf16> to vector<32x128xbf16>
    %cst_364 = arith.constant dense<0.000000e+00> : vector<16x128xf32>
    %777 = tpu.matmul %774, %776, %cst_364 {dimension_numbers = #tpu.dot_dimension_numbers<[1], [0], [0], [1], [0, 0, 1, 1], [], []>} : vector<16x32xbf16>, vector<32x128xbf16>, vector<16x128xf32> -> vector<16x128xf32>
    %c2_365 = arith.constant 2 : index
    %c0_366 = arith.constant 0 : index
    %c0_367 = arith.constant 0 : index
    %778 = vector.load %arg11[%c2_365, %c0_366, %c0_367] : memref<4x1x128xf32, #tpu.memory_space<vmem>>, vector<1x1x128xf32>
    %779 = vector.shape_cast %778 : vector<1x1x128xf32> to vector<1x128xf32>
    %780 = vector.broadcast %779 : vector<1x128xf32> to vector<16x128xf32>
    %781 = arith.addf %777, %780 : vector<16x128xf32>
    %cst_368 = arith.constant 5.000000e-01 : f32
    %782 = vector.broadcast %cst_368 : f32 to vector<16x128xf32>
    %783 = arith.mulf %782, %781 : vector<16x128xf32>
    %cst_369 = arith.constant 0.707106769 : f32
    %784 = vector.broadcast %cst_369 : f32 to vector<16x128xf32>
    %785 = arith.mulf %781, %784 : vector<16x128xf32>
    %786 = math.erf %785 : vector<16x128xf32>
    %cst_370 = arith.constant 1.000000e+00 : f32
    %787 = vector.broadcast %cst_370 : f32 to vector<16x128xf32>
    %788 = arith.addf %787, %786 : vector<16x128xf32>
    %789 = arith.mulf %783, %788 : vector<16x128xf32>
    %790 = arith.truncf %789 : vector<16x128xf32> to vector<16x128xbf16>
    %c2_371 = arith.constant 2 : index
    %c0_372 = arith.constant 0 : index
    %c0_373 = arith.constant 0 : index
    %791 = vector.load %arg12[%c2_371, %c0_372, %c0_373] : memref<4x128x32xbf16, #tpu.memory_space<vmem>>, vector<1x128x32xbf16>
    %792 = vector.shape_cast %791 : vector<1x128x32xbf16> to vector<128x32xbf16>
    %cst_374 = arith.constant dense<0.000000e+00> : vector<16x32xf32>
    %793 = tpu.matmul %790, %792, %cst_374 {dimension_numbers = #tpu.dot_dimension_numbers<[1], [0], [0], [1], [0, 0, 1, 1], [], []>} : vector<16x128xbf16>, vector<128x32xbf16>, vector<16x32xf32> -> vector<16x32xf32>
    %794 = vector.broadcast %557 : vector<1x32xf32> to vector<16x32xf32>
    %795 = arith.addf %793, %794 : vector<16x32xf32>
    %796 = arith.addf %773, %795 : vector<16x32xf32>
    %cst_375 = arith.constant dense<0.000000e+00> : vector<16xf32>
    %797 = vector.multi_reduction <add>, %796, %cst_375 [1] : vector<16x32xf32> to vector<16xf32>
    %798 = vector.shape_cast %797 : vector<16xf32> to vector<16x1xf32>
    %cst_376 = arith.constant 3.200000e+01 : f32
    %799 = vector.broadcast %cst_376 : f32 to vector<16x1xf32>
    %800 = arith.divf %798, %799 : vector<16x1xf32>
    %801 = vector.broadcast %800 : vector<16x1xf32> to vector<16x32xf32>
    %802 = arith.subf %796, %801 : vector<16x32xf32>
    %803 = arith.mulf %802, %802 : vector<16x32xf32>
    %cst_377 = arith.constant dense<0.000000e+00> : vector<16xf32>
    %804 = vector.multi_reduction <add>, %803, %cst_377 [1] : vector<16x32xf32> to vector<16xf32>
    %805 = vector.shape_cast %804 : vector<16xf32> to vector<16x1xf32>
    %cst_378 = arith.constant 3.200000e+01 : f32
    %806 = vector.broadcast %cst_378 : f32 to vector<16x1xf32>
    %807 = arith.divf %805, %806 : vector<16x1xf32>
    %808 = vector.broadcast %800 : vector<16x1xf32> to vector<16x32xf32>
    %809 = arith.subf %796, %808 : vector<16x32xf32>
    %cst_379 = arith.constant 9.99999974E-6 : f32
    %810 = vector.broadcast %cst_379 : f32 to vector<16x1xf32>
    %811 = arith.addf %807, %810 : vector<16x1xf32>
    %812 = math.rsqrt %811 : vector<16x1xf32>
    %813 = vector.broadcast %812 : vector<16x1xf32> to vector<16x32xf32>
    %814 = arith.mulf %809, %813 : vector<16x32xf32>
    %815 = vector.broadcast %558 : vector<1x32xf32> to vector<16x32xf32>
    %816 = arith.mulf %814, %815 : vector<16x32xf32>
    %817 = vector.broadcast %559 : vector<1x32xf32> to vector<16x32xf32>
    %818 = arith.addf %816, %817 : vector<16x32xf32>
    %c0_380 = arith.constant 0 : index
    %c0_381 = arith.constant 0 : index
    %819 = vector.load %arg17[%c0_380, %c0_381] : memref<16x32xf32, #tpu.memory_space<vmem>>, vector<16x32xf32>
    tpu.vector_store %arg17[%c0_380, %c0_381], %818 {strides = array<i32>} : memref<16x32xf32, #tpu.memory_space<vmem>>, vector<16x32xf32>,
    %c0_382 = arith.constant 0 : index
    %c0_383 = arith.constant 0 : index
    %820 = vector.load %arg17[%c0_382, %c0_383] : memref<16x32xf32, #tpu.memory_space<vmem>>, vector<16x32xf32>
    %821 = arith.truncf %820 : vector<16x32xf32> to vector<16x32xbf16>
    %c3_384 = arith.constant 3 : index
    %c0_385 = arith.constant 0 : index
    %c0_386 = arith.constant 0 : index
    %822 = vector.load %arg13[%c3_384, %c0_385, %c0_386] : memref<4x6x32xf32, #tpu.memory_space<vmem>>, vector<1x6x32xf32>
    %823 = vector.shape_cast %822 : vector<1x6x32xf32> to vector<6x32xf32>
    %824 = vector.extract_strided_slice %823 {offsets = [0, 0], sizes = [1, 32], strides = [1, 1]} : vector<6x32xf32> to vector<1x32xf32>
    %825 = vector.extract_strided_slice %823 {offsets = [1, 0], sizes = [1, 32], strides = [1, 1]} : vector<6x32xf32> to vector<1x32xf32>
    %826 = vector.extract_strided_slice %823 {offsets = [2, 0], sizes = [1, 32], strides = [1, 1]} : vector<6x32xf32> to vector<1x32xf32>
    %827 = vector.extract_strided_slice %823 {offsets = [3, 0], sizes = [1, 32], strides = [1, 1]} : vector<6x32xf32> to vector<1x32xf32>
    %828 = vector.extract_strided_slice %823 {offsets = [4, 0], sizes = [1, 32], strides = [1, 1]} : vector<6x32xf32> to vector<1x32xf32>
    %829 = vector.extract_strided_slice %823 {offsets = [5, 0], sizes = [1, 32], strides = [1, 1]} : vector<6x32xf32> to vector<1x32xf32>
    %cst_387 = arith.constant 0.000000e+00 : f32
    %830 = vector.broadcast %cst_387 : f32 to vector<16x32xf32>
    %c12 = arith.constant 12 : index
    %c0_388 = arith.constant 0 : index
    %c0_389 = arith.constant 0 : index
    %831 = vector.load %arg9[%c12, %c0_388, %c0_389] : memref<16x3x8xf32, #tpu.memory_space<vmem>>, vector<1x3x8xf32>
    %832 = vector.shape_cast %831 : vector<1x3x8xf32> to vector<3x8xf32>
    %c12_390 = arith.constant 12 : index
    %c0_391 = arith.constant 0 : index
    %c0_392 = arith.constant 0 : index
    %833 = vector.load %arg5[%c12_390, %c0_391, %c0_392] : memref<16x32x8xbf16, #tpu.memory_space<vmem>>, vector<1x32x8xbf16>
    %834 = vector.shape_cast %833 : vector<1x32x8xbf16> to vector<32x8xbf16>
    %cst_393 = arith.constant dense<0.000000e+00> : vector<16x8xf32>
    %835 = tpu.matmul %821, %834, %cst_393 {dimension_numbers = #tpu.dot_dimension_numbers<[1], [0], [0], [1], [0, 0, 1, 1], [], []>} : vector<16x32xbf16>, vector<32x8xbf16>, vector<16x8xf32> -> vector<16x8xf32>
    %836 = vector.extract_strided_slice %832 {offsets = [0, 0], sizes = [1, 8], strides = [1, 1]} : vector<3x8xf32> to vector<1x8xf32>
    %837 = vector.broadcast %836 : vector<1x8xf32> to vector<16x8xf32>
    %838 = arith.addf %835, %837 : vector<16x8xf32>
    %c12_394 = arith.constant 12 : index
    %c0_395 = arith.constant 0 : index
    %c0_396 = arith.constant 0 : index
    %839 = vector.load %arg6[%c12_394, %c0_395, %c0_396] : memref<16x32x8xbf16, #tpu.memory_space<vmem>>, vector<1x32x8xbf16>
    %840 = vector.shape_cast %839 : vector<1x32x8xbf16> to vector<32x8xbf16>
    %cst_397 = arith.constant dense<0.000000e+00> : vector<16x8xf32>
    %841 = tpu.matmul %821, %840, %cst_397 {dimension_numbers = #tpu.dot_dimension_numbers<[1], [0], [0], [1], [0, 0, 1, 1], [], []>} : vector<16x32xbf16>, vector<32x8xbf16>, vector<16x8xf32> -> vector<16x8xf32>
    %842 = vector.extract_strided_slice %832 {offsets = [1, 0], sizes = [1, 8], strides = [1, 1]} : vector<3x8xf32> to vector<1x8xf32>
    %843 = vector.broadcast %842 : vector<1x8xf32> to vector<16x8xf32>
    %844 = arith.addf %841, %843 : vector<16x8xf32>
    %c12_398 = arith.constant 12 : index
    %c0_399 = arith.constant 0 : index
    %c0_400 = arith.constant 0 : index
    %845 = vector.load %arg7[%c12_398, %c0_399, %c0_400] : memref<16x32x8xbf16, #tpu.memory_space<vmem>>, vector<1x32x8xbf16>
    %846 = vector.shape_cast %845 : vector<1x32x8xbf16> to vector<32x8xbf16>
    %cst_401 = arith.constant dense<0.000000e+00> : vector<16x8xf32>
    %847 = tpu.matmul %821, %846, %cst_401 {dimension_numbers = #tpu.dot_dimension_numbers<[1], [0], [0], [1], [0, 0, 1, 1], [], []>} : vector<16x32xbf16>, vector<32x8xbf16>, vector<16x8xf32> -> vector<16x8xf32>
    %848 = vector.extract_strided_slice %832 {offsets = [2, 0], sizes = [1, 8], strides = [1, 1]} : vector<3x8xf32> to vector<1x8xf32>
    %849 = vector.broadcast %848 : vector<1x8xf32> to vector<16x8xf32>
    %850 = arith.addf %847, %849 : vector<16x8xf32>
    %851 = vector.shape_cast %838 : vector<16x8xf32> to vector<2x8x8xf32>
    %852 = arith.truncf %851 : vector<2x8x8xf32> to vector<2x8x8xbf16>
    %853 = vector.shape_cast %844 : vector<16x8xf32> to vector<2x8x8xf32>
    %854 = arith.truncf %853 : vector<2x8x8xf32> to vector<2x8x8xbf16>
    %855 = vector.shape_cast %850 : vector<16x8xf32> to vector<2x8x8xf32>
    %856 = arith.truncf %855 : vector<2x8x8xf32> to vector<2x8x8xbf16>
    "tpu.trace_start"() <{level = 10 : i32, message = "bqd,bkd->bqk"}> : () -> ()
    %cst_402 = arith.constant dense<0.000000e+00> : vector<2x8x8xf32>
    %857 = tpu.matmul %852, %854, %cst_402 {dimension_numbers = #tpu.dot_dimension_numbers<[2], [2], [1], [1], [0, 0, 0, 1, 1, 1], [0], [0]>} : vector<2x8x8xbf16>, vector<2x8x8xbf16>, vector<2x8x8xf32> -> vector<2x8x8xf32>
    "tpu.trace_stop"() : () -> ()
    %cst_403 = arith.constant 0.353553385 : f32
    %858 = vector.broadcast %cst_403 : f32 to vector<2x8x8xf32>
    %859 = arith.mulf %857, %858 : vector<2x8x8xf32>
    %cst_404 = arith.constant dense<0xFF800000> : vector<2x8xf32>
    %860 = vector.multi_reduction <maximumf>, %859, %cst_404 [2] : vector<2x8x8xf32> to vector<2x8xf32>
    %861 = vector.shape_cast %860 : vector<2x8xf32> to vector<2x8x1xf32>
    %862 = vector.broadcast %861 : vector<2x8x1xf32> to vector<2x8x8xf32>
    %863 = arith.subf %859, %862 : vector<2x8x8xf32>
    %864 = math.exp %863 : vector<2x8x8xf32>
    %cst_405 = arith.constant dense<0.000000e+00> : vector<2x8xf32>
    %865 = vector.multi_reduction <add>, %864, %cst_405 [2] : vector<2x8x8xf32> to vector<2x8xf32>
    %866 = vector.shape_cast %865 : vector<2x8xf32> to vector<2x8x1xf32>
    %867 = tpu.reciprocal %866 {approx = true} : vector<2x8x1xf32> -> vector<2x8x1xf32>
    %868 = vector.broadcast %867 : vector<2x8x1xf32> to vector<2x8x8xf32>
    %869 = arith.mulf %864, %868 : vector<2x8x8xf32>
    %870 = arith.truncf %869 : vector<2x8x8xf32> to vector<2x8x8xbf16>
    "tpu.trace_start"() <{level = 10 : i32, message = "bqk,bkd->bqd"}> : () -> ()
    %cst_406 = arith.constant dense<0.000000e+00> : vector<2x8x8xf32>
    %871 = tpu.matmul %870, %856, %cst_406 {dimension_numbers = #tpu.dot_dimension_numbers<[2], [1], [1], [2], [0, 0, 0, 1, 1, 2], [0], [0]>} : vector<2x8x8xbf16>, vector<2x8x8xbf16>, vector<2x8x8xf32> -> vector<2x8x8xf32>
    "tpu.trace_stop"() : () -> ()
    %872 = vector.shape_cast %871 : vector<2x8x8xf32> to vector<16x8xf32>
    %873 = arith.truncf %872 : vector<16x8xf32> to vector<16x8xbf16>
    %c12_407 = arith.constant 12 : index
    %c0_408 = arith.constant 0 : index
    %c0_409 = arith.constant 0 : index
    %874 = vector.load %arg8[%c12_407, %c0_408, %c0_409] : memref<16x8x32xbf16, #tpu.memory_space<vmem>>, vector<1x8x32xbf16>
    %875 = vector.shape_cast %874 : vector<1x8x32xbf16> to vector<8x32xbf16>
    %cst_410 = arith.constant dense<0.000000e+00> : vector<16x32xf32>
    %876 = tpu.matmul %873, %875, %cst_410 {dimension_numbers = #tpu.dot_dimension_numbers<[1], [0], [0], [1], [0, 0, 1, 1], [], []>} : vector<16x8xbf16>, vector<8x32xbf16>, vector<16x32xf32> -> vector<16x32xf32>
    %877 = arith.addf %830, %876 : vector<16x32xf32>
    %c13 = arith.constant 13 : index
    %c0_411 = arith.constant 0 : index
    %c0_412 = arith.constant 0 : index
    %878 = vector.load %arg9[%c13, %c0_411, %c0_412] : memref<16x3x8xf32, #tpu.memory_space<vmem>>, vector<1x3x8xf32>
    %879 = vector.shape_cast %878 : vector<1x3x8xf32> to vector<3x8xf32>
    %c13_413 = arith.constant 13 : index
    %c0_414 = arith.constant 0 : index
    %c0_415 = arith.constant 0 : index
    %880 = vector.load %arg5[%c13_413, %c0_414, %c0_415] : memref<16x32x8xbf16, #tpu.memory_space<vmem>>, vector<1x32x8xbf16>
    %881 = vector.shape_cast %880 : vector<1x32x8xbf16> to vector<32x8xbf16>
    %cst_416 = arith.constant dense<0.000000e+00> : vector<16x8xf32>
    %882 = tpu.matmul %821, %881, %cst_416 {dimension_numbers = #tpu.dot_dimension_numbers<[1], [0], [0], [1], [0, 0, 1, 1], [], []>} : vector<16x32xbf16>, vector<32x8xbf16>, vector<16x8xf32> -> vector<16x8xf32>
    %883 = vector.extract_strided_slice %879 {offsets = [0, 0], sizes = [1, 8], strides = [1, 1]} : vector<3x8xf32> to vector<1x8xf32>
    %884 = vector.broadcast %883 : vector<1x8xf32> to vector<16x8xf32>
    %885 = arith.addf %882, %884 : vector<16x8xf32>
    %c13_417 = arith.constant 13 : index
    %c0_418 = arith.constant 0 : index
    %c0_419 = arith.constant 0 : index
    %886 = vector.load %arg6[%c13_417, %c0_418, %c0_419] : memref<16x32x8xbf16, #tpu.memory_space<vmem>>, vector<1x32x8xbf16>
    %887 = vector.shape_cast %886 : vector<1x32x8xbf16> to vector<32x8xbf16>
    %cst_420 = arith.constant dense<0.000000e+00> : vector<16x8xf32>
    %888 = tpu.matmul %821, %887, %cst_420 {dimension_numbers = #tpu.dot_dimension_numbers<[1], [0], [0], [1], [0, 0, 1, 1], [], []>} : vector<16x32xbf16>, vector<32x8xbf16>, vector<16x8xf32> -> vector<16x8xf32>
    %889 = vector.extract_strided_slice %879 {offsets = [1, 0], sizes = [1, 8], strides = [1, 1]} : vector<3x8xf32> to vector<1x8xf32>
    %890 = vector.broadcast %889 : vector<1x8xf32> to vector<16x8xf32>
    %891 = arith.addf %888, %890 : vector<16x8xf32>
    %c13_421 = arith.constant 13 : index
    %c0_422 = arith.constant 0 : index
    %c0_423 = arith.constant 0 : index
    %892 = vector.load %arg7[%c13_421, %c0_422, %c0_423] : memref<16x32x8xbf16, #tpu.memory_space<vmem>>, vector<1x32x8xbf16>
    %893 = vector.shape_cast %892 : vector<1x32x8xbf16> to vector<32x8xbf16>
    %cst_424 = arith.constant dense<0.000000e+00> : vector<16x8xf32>
    %894 = tpu.matmul %821, %893, %cst_424 {dimension_numbers = #tpu.dot_dimension_numbers<[1], [0], [0], [1], [0, 0, 1, 1], [], []>} : vector<16x32xbf16>, vector<32x8xbf16>, vector<16x8xf32> -> vector<16x8xf32>
    %895 = vector.extract_strided_slice %879 {offsets = [2, 0], sizes = [1, 8], strides = [1, 1]} : vector<3x8xf32> to vector<1x8xf32>
    %896 = vector.broadcast %895 : vector<1x8xf32> to vector<16x8xf32>
    %897 = arith.addf %894, %896 : vector<16x8xf32>
    %898 = vector.shape_cast %885 : vector<16x8xf32> to vector<2x8x8xf32>
    %899 = arith.truncf %898 : vector<2x8x8xf32> to vector<2x8x8xbf16>
    %900 = vector.shape_cast %891 : vector<16x8xf32> to vector<2x8x8xf32>
    %901 = arith.truncf %900 : vector<2x8x8xf32> to vector<2x8x8xbf16>
    %902 = vector.shape_cast %897 : vector<16x8xf32> to vector<2x8x8xf32>
    %903 = arith.truncf %902 : vector<2x8x8xf32> to vector<2x8x8xbf16>
    "tpu.trace_start"() <{level = 10 : i32, message = "bqd,bkd->bqk"}> : () -> ()
    %cst_425 = arith.constant dense<0.000000e+00> : vector<2x8x8xf32>
    %904 = tpu.matmul %899, %901, %cst_425 {dimension_numbers = #tpu.dot_dimension_numbers<[2], [2], [1], [1], [0, 0, 0, 1, 1, 1], [0], [0]>} : vector<2x8x8xbf16>, vector<2x8x8xbf16>, vector<2x8x8xf32> -> vector<2x8x8xf32>
    "tpu.trace_stop"() : () -> ()
    %cst_426 = arith.constant 0.353553385 : f32
    %905 = vector.broadcast %cst_426 : f32 to vector<2x8x8xf32>
    %906 = arith.mulf %904, %905 : vector<2x8x8xf32>
    %cst_427 = arith.constant dense<0xFF800000> : vector<2x8xf32>
    %907 = vector.multi_reduction <maximumf>, %906, %cst_427 [2] : vector<2x8x8xf32> to vector<2x8xf32>
    %908 = vector.shape_cast %907 : vector<2x8xf32> to vector<2x8x1xf32>
    %909 = vector.broadcast %908 : vector<2x8x1xf32> to vector<2x8x8xf32>
    %910 = arith.subf %906, %909 : vector<2x8x8xf32>
    %911 = math.exp %910 : vector<2x8x8xf32>
    %cst_428 = arith.constant dense<0.000000e+00> : vector<2x8xf32>
    %912 = vector.multi_reduction <add>, %911, %cst_428 [2] : vector<2x8x8xf32> to vector<2x8xf32>
    %913 = vector.shape_cast %912 : vector<2x8xf32> to vector<2x8x1xf32>
    %914 = tpu.reciprocal %913 {approx = true} : vector<2x8x1xf32> -> vector<2x8x1xf32>
    %915 = vector.broadcast %914 : vector<2x8x1xf32> to vector<2x8x8xf32>
    %916 = arith.mulf %911, %915 : vector<2x8x8xf32>
    %917 = arith.truncf %916 : vector<2x8x8xf32> to vector<2x8x8xbf16>
    "tpu.trace_start"() <{level = 10 : i32, message = "bqk,bkd->bqd"}> : () -> ()
    %cst_429 = arith.constant dense<0.000000e+00> : vector<2x8x8xf32>
    %918 = tpu.matmul %917, %903, %cst_429 {dimension_numbers = #tpu.dot_dimension_numbers<[2], [1], [1], [2], [0, 0, 0, 1, 1, 2], [0], [0]>} : vector<2x8x8xbf16>, vector<2x8x8xbf16>, vector<2x8x8xf32> -> vector<2x8x8xf32>
    "tpu.trace_stop"() : () -> ()
    %919 = vector.shape_cast %918 : vector<2x8x8xf32> to vector<16x8xf32>
    %920 = arith.truncf %919 : vector<16x8xf32> to vector<16x8xbf16>
    %c13_430 = arith.constant 13 : index
    %c0_431 = arith.constant 0 : index
    %c0_432 = arith.constant 0 : index
    %921 = vector.load %arg8[%c13_430, %c0_431, %c0_432] : memref<16x8x32xbf16, #tpu.memory_space<vmem>>, vector<1x8x32xbf16>
    %922 = vector.shape_cast %921 : vector<1x8x32xbf16> to vector<8x32xbf16>
    %cst_433 = arith.constant dense<0.000000e+00> : vector<16x32xf32>
    %923 = tpu.matmul %920, %922, %cst_433 {dimension_numbers = #tpu.dot_dimension_numbers<[1], [0], [0], [1], [0, 0, 1, 1], [], []>} : vector<16x8xbf16>, vector<8x32xbf16>, vector<16x32xf32> -> vector<16x32xf32>
    %924 = arith.addf %877, %923 : vector<16x32xf32>
    %c14 = arith.constant 14 : index
    %c0_434 = arith.constant 0 : index
    %c0_435 = arith.constant 0 : index
    %925 = vector.load %arg9[%c14, %c0_434, %c0_435] : memref<16x3x8xf32, #tpu.memory_space<vmem>>, vector<1x3x8xf32>
    %926 = vector.shape_cast %925 : vector<1x3x8xf32> to vector<3x8xf32>
    %c14_436 = arith.constant 14 : index
    %c0_437 = arith.constant 0 : index
    %c0_438 = arith.constant 0 : index
    %927 = vector.load %arg5[%c14_436, %c0_437, %c0_438] : memref<16x32x8xbf16, #tpu.memory_space<vmem>>, vector<1x32x8xbf16>
    %928 = vector.shape_cast %927 : vector<1x32x8xbf16> to vector<32x8xbf16>
    %cst_439 = arith.constant dense<0.000000e+00> : vector<16x8xf32>
    %929 = tpu.matmul %821, %928, %cst_439 {dimension_numbers = #tpu.dot_dimension_numbers<[1], [0], [0], [1], [0, 0, 1, 1], [], []>} : vector<16x32xbf16>, vector<32x8xbf16>, vector<16x8xf32> -> vector<16x8xf32>
    %930 = vector.extract_strided_slice %926 {offsets = [0, 0], sizes = [1, 8], strides = [1, 1]} : vector<3x8xf32> to vector<1x8xf32>
    %931 = vector.broadcast %930 : vector<1x8xf32> to vector<16x8xf32>
    %932 = arith.addf %929, %931 : vector<16x8xf32>
    %c14_440 = arith.constant 14 : index
    %c0_441 = arith.constant 0 : index
    %c0_442 = arith.constant 0 : index
    %933 = vector.load %arg6[%c14_440, %c0_441, %c0_442] : memref<16x32x8xbf16, #tpu.memory_space<vmem>>, vector<1x32x8xbf16>
    %934 = vector.shape_cast %933 : vector<1x32x8xbf16> to vector<32x8xbf16>
    %cst_443 = arith.constant dense<0.000000e+00> : vector<16x8xf32>
    %935 = tpu.matmul %821, %934, %cst_443 {dimension_numbers = #tpu.dot_dimension_numbers<[1], [0], [0], [1], [0, 0, 1, 1], [], []>} : vector<16x32xbf16>, vector<32x8xbf16>, vector<16x8xf32> -> vector<16x8xf32>
    %936 = vector.extract_strided_slice %926 {offsets = [1, 0], sizes = [1, 8], strides = [1, 1]} : vector<3x8xf32> to vector<1x8xf32>
    %937 = vector.broadcast %936 : vector<1x8xf32> to vector<16x8xf32>
    %938 = arith.addf %935, %937 : vector<16x8xf32>
    %c14_444 = arith.constant 14 : index
    %c0_445 = arith.constant 0 : index
    %c0_446 = arith.constant 0 : index
    %939 = vector.load %arg7[%c14_444, %c0_445, %c0_446] : memref<16x32x8xbf16, #tpu.memory_space<vmem>>, vector<1x32x8xbf16>
    %940 = vector.shape_cast %939 : vector<1x32x8xbf16> to vector<32x8xbf16>
    %cst_447 = arith.constant dense<0.000000e+00> : vector<16x8xf32>
    %941 = tpu.matmul %821, %940, %cst_447 {dimension_numbers = #tpu.dot_dimension_numbers<[1], [0], [0], [1], [0, 0, 1, 1], [], []>} : vector<16x32xbf16>, vector<32x8xbf16>, vector<16x8xf32> -> vector<16x8xf32>
    %942 = vector.extract_strided_slice %926 {offsets = [2, 0], sizes = [1, 8], strides = [1, 1]} : vector<3x8xf32> to vector<1x8xf32>
    %943 = vector.broadcast %942 : vector<1x8xf32> to vector<16x8xf32>
    %944 = arith.addf %941, %943 : vector<16x8xf32>
    %945 = vector.shape_cast %932 : vector<16x8xf32> to vector<2x8x8xf32>
    %946 = arith.truncf %945 : vector<2x8x8xf32> to vector<2x8x8xbf16>
    %947 = vector.shape_cast %938 : vector<16x8xf32> to vector<2x8x8xf32>
    %948 = arith.truncf %947 : vector<2x8x8xf32> to vector<2x8x8xbf16>
    %949 = vector.shape_cast %944 : vector<16x8xf32> to vector<2x8x8xf32>
    %950 = arith.truncf %949 : vector<2x8x8xf32> to vector<2x8x8xbf16>
    "tpu.trace_start"() <{level = 10 : i32, message = "bqd,bkd->bqk"}> : () -> ()
    %cst_448 = arith.constant dense<0.000000e+00> : vector<2x8x8xf32>
    %951 = tpu.matmul %946, %948, %cst_448 {dimension_numbers = #tpu.dot_dimension_numbers<[2], [2], [1], [1], [0, 0, 0, 1, 1, 1], [0], [0]>} : vector<2x8x8xbf16>, vector<2x8x8xbf16>, vector<2x8x8xf32> -> vector<2x8x8xf32>
    "tpu.trace_stop"() : () -> ()
    %cst_449 = arith.constant 0.353553385 : f32
    %952 = vector.broadcast %cst_449 : f32 to vector<2x8x8xf32>
    %953 = arith.mulf %951, %952 : vector<2x8x8xf32>
    %cst_450 = arith.constant dense<0xFF800000> : vector<2x8xf32>
    %954 = vector.multi_reduction <maximumf>, %953, %cst_450 [2] : vector<2x8x8xf32> to vector<2x8xf32>
    %955 = vector.shape_cast %954 : vector<2x8xf32> to vector<2x8x1xf32>
    %956 = vector.broadcast %955 : vector<2x8x1xf32> to vector<2x8x8xf32>
    %957 = arith.subf %953, %956 : vector<2x8x8xf32>
    %958 = math.exp %957 : vector<2x8x8xf32>
    %cst_451 = arith.constant dense<0.000000e+00> : vector<2x8xf32>
    %959 = vector.multi_reduction <add>, %958, %cst_451 [2] : vector<2x8x8xf32> to vector<2x8xf32>
    %960 = vector.shape_cast %959 : vector<2x8xf32> to vector<2x8x1xf32>
    %961 = tpu.reciprocal %960 {approx = true} : vector<2x8x1xf32> -> vector<2x8x1xf32>
    %962 = vector.broadcast %961 : vector<2x8x1xf32> to vector<2x8x8xf32>
    %963 = arith.mulf %958, %962 : vector<2x8x8xf32>
    %964 = arith.truncf %963 : vector<2x8x8xf32> to vector<2x8x8xbf16>
    "tpu.trace_start"() <{level = 10 : i32, message = "bqk,bkd->bqd"}> : () -> ()
    %cst_452 = arith.constant dense<0.000000e+00> : vector<2x8x8xf32>
    %965 = tpu.matmul %964, %950, %cst_452 {dimension_numbers = #tpu.dot_dimension_numbers<[2], [1], [1], [2], [0, 0, 0, 1, 1, 2], [0], [0]>} : vector<2x8x8xbf16>, vector<2x8x8xbf16>, vector<2x8x8xf32> -> vector<2x8x8xf32>
    "tpu.trace_stop"() : () -> ()
    %966 = vector.shape_cast %965 : vector<2x8x8xf32> to vector<16x8xf32>
    %967 = arith.truncf %966 : vector<16x8xf32> to vector<16x8xbf16>
    %c14_453 = arith.constant 14 : index
    %c0_454 = arith.constant 0 : index
    %c0_455 = arith.constant 0 : index
    %968 = vector.load %arg8[%c14_453, %c0_454, %c0_455] : memref<16x8x32xbf16, #tpu.memory_space<vmem>>, vector<1x8x32xbf16>
    %969 = vector.shape_cast %968 : vector<1x8x32xbf16> to vector<8x32xbf16>
    %cst_456 = arith.constant dense<0.000000e+00> : vector<16x32xf32>
    %970 = tpu.matmul %967, %969, %cst_456 {dimension_numbers = #tpu.dot_dimension_numbers<[1], [0], [0], [1], [0, 0, 1, 1], [], []>} : vector<16x8xbf16>, vector<8x32xbf16>, vector<16x32xf32> -> vector<16x32xf32>
    %971 = arith.addf %924, %970 : vector<16x32xf32>
    %c15 = arith.constant 15 : index
    %c0_457 = arith.constant 0 : index
    %c0_458 = arith.constant 0 : index
    %972 = vector.load %arg9[%c15, %c0_457, %c0_458] : memref<16x3x8xf32, #tpu.memory_space<vmem>>, vector<1x3x8xf32>
    %973 = vector.shape_cast %972 : vector<1x3x8xf32> to vector<3x8xf32>
    %c15_459 = arith.constant 15 : index
    %c0_460 = arith.constant 0 : index
    %c0_461 = arith.constant 0 : index
    %974 = vector.load %arg5[%c15_459, %c0_460, %c0_461] : memref<16x32x8xbf16, #tpu.memory_space<vmem>>, vector<1x32x8xbf16>
    %975 = vector.shape_cast %974 : vector<1x32x8xbf16> to vector<32x8xbf16>
    %cst_462 = arith.constant dense<0.000000e+00> : vector<16x8xf32>
    %976 = tpu.matmul %821, %975, %cst_462 {dimension_numbers = #tpu.dot_dimension_numbers<[1], [0], [0], [1], [0, 0, 1, 1], [], []>} : vector<16x32xbf16>, vector<32x8xbf16>, vector<16x8xf32> -> vector<16x8xf32>
    %977 = vector.extract_strided_slice %973 {offsets = [0, 0], sizes = [1, 8], strides = [1, 1]} : vector<3x8xf32> to vector<1x8xf32>
    %978 = vector.broadcast %977 : vector<1x8xf32> to vector<16x8xf32>
    %979 = arith.addf %976, %978 : vector<16x8xf32>
    %c15_463 = arith.constant 15 : index
    %c0_464 = arith.constant 0 : index
    %c0_465 = arith.constant 0 : index
    %980 = vector.load %arg6[%c15_463, %c0_464, %c0_465] : memref<16x32x8xbf16, #tpu.memory_space<vmem>>, vector<1x32x8xbf16>
    %981 = vector.shape_cast %980 : vector<1x32x8xbf16> to vector<32x8xbf16>
    %cst_466 = arith.constant dense<0.000000e+00> : vector<16x8xf32>
    %982 = tpu.matmul %821, %981, %cst_466 {dimension_numbers = #tpu.dot_dimension_numbers<[1], [0], [0], [1], [0, 0, 1, 1], [], []>} : vector<16x32xbf16>, vector<32x8xbf16>, vector<16x8xf32> -> vector<16x8xf32>
    %983 = vector.extract_strided_slice %973 {offsets = [1, 0], sizes = [1, 8], strides = [1, 1]} : vector<3x8xf32> to vector<1x8xf32>
    %984 = vector.broadcast %983 : vector<1x8xf32> to vector<16x8xf32>
    %985 = arith.addf %982, %984 : vector<16x8xf32>
    %c15_467 = arith.constant 15 : index
    %c0_468 = arith.constant 0 : index
    %c0_469 = arith.constant 0 : index
    %986 = vector.load %arg7[%c15_467, %c0_468, %c0_469] : memref<16x32x8xbf16, #tpu.memory_space<vmem>>, vector<1x32x8xbf16>
    %987 = vector.shape_cast %986 : vector<1x32x8xbf16> to vector<32x8xbf16>
    %cst_470 = arith.constant dense<0.000000e+00> : vector<16x8xf32>
    %988 = tpu.matmul %821, %987, %cst_470 {dimension_numbers = #tpu.dot_dimension_numbers<[1], [0], [0], [1], [0, 0, 1, 1], [], []>} : vector<16x32xbf16>, vector<32x8xbf16>, vector<16x8xf32> -> vector<16x8xf32>
    %989 = vector.extract_strided_slice %973 {offsets = [2, 0], sizes = [1, 8], strides = [1, 1]} : vector<3x8xf32> to vector<1x8xf32>
    %990 = vector.broadcast %989 : vector<1x8xf32> to vector<16x8xf32>
    %991 = arith.addf %988, %990 : vector<16x8xf32>
    %992 = vector.shape_cast %979 : vector<16x8xf32> to vector<2x8x8xf32>
    %993 = arith.truncf %992 : vector<2x8x8xf32> to vector<2x8x8xbf16>
    %994 = vector.shape_cast %985 : vector<16x8xf32> to vector<2x8x8xf32>
    %995 = arith.truncf %994 : vector<2x8x8xf32> to vector<2x8x8xbf16>
    %996 = vector.shape_cast %991 : vector<16x8xf32> to vector<2x8x8xf32>
    %997 = arith.truncf %996 : vector<2x8x8xf32> to vector<2x8x8xbf16>
    "tpu.trace_start"() <{level = 10 : i32, message = "bqd,bkd->bqk"}> : () -> ()
    %cst_471 = arith.constant dense<0.000000e+00> : vector<2x8x8xf32>
    %998 = tpu.matmul %993, %995, %cst_471 {dimension_numbers = #tpu.dot_dimension_numbers<[2], [2], [1], [1], [0, 0, 0, 1, 1, 1], [0], [0]>} : vector<2x8x8xbf16>, vector<2x8x8xbf16>, vector<2x8x8xf32> -> vector<2x8x8xf32>
    "tpu.trace_stop"() : () -> ()
    %cst_472 = arith.constant 0.353553385 : f32
    %999 = vector.broadcast %cst_472 : f32 to vector<2x8x8xf32>
    %1000 = arith.mulf %998, %999 : vector<2x8x8xf32>
    %cst_473 = arith.constant dense<0xFF800000> : vector<2x8xf32>
    %1001 = vector.multi_reduction <maximumf>, %1000, %cst_473 [2] : vector<2x8x8xf32> to vector<2x8xf32>
    %1002 = vector.shape_cast %1001 : vector<2x8xf32> to vector<2x8x1xf32>
    %1003 = vector.broadcast %1002 : vector<2x8x1xf32> to vector<2x8x8xf32>
    %1004 = arith.subf %1000, %1003 : vector<2x8x8xf32>
    %1005 = math.exp %1004 : vector<2x8x8xf32>
    %cst_474 = arith.constant dense<0.000000e+00> : vector<2x8xf32>
    %1006 = vector.multi_reduction <add>, %1005, %cst_474 [2] : vector<2x8x8xf32> to vector<2x8xf32>
    %1007 = vector.shape_cast %1006 : vector<2x8xf32> to vector<2x8x1xf32>
    %1008 = tpu.reciprocal %1007 {approx = true} : vector<2x8x1xf32> -> vector<2x8x1xf32>
    %1009 = vector.broadcast %1008 : vector<2x8x1xf32> to vector<2x8x8xf32>
    %1010 = arith.mulf %1005, %1009 : vector<2x8x8xf32>
    %1011 = arith.truncf %1010 : vector<2x8x8xf32> to vector<2x8x8xbf16>
    "tpu.trace_start"() <{level = 10 : i32, message = "bqk,bkd->bqd"}> : () -> ()
    %cst_475 = arith.constant dense<0.000000e+00> : vector<2x8x8xf32>
    %1012 = tpu.matmul %1011, %997, %cst_475 {dimension_numbers = #tpu.dot_dimension_numbers<[2], [1], [1], [2], [0, 0, 0, 1, 1, 2], [0], [0]>} : vector<2x8x8xbf16>, vector<2x8x8xbf16>, vector<2x8x8xf32> -> vector<2x8x8xf32>
    "tpu.trace_stop"() : () -> ()
    %1013 = vector.shape_cast %1012 : vector<2x8x8xf32> to vector<16x8xf32>
    %1014 = arith.truncf %1013 : vector<16x8xf32> to vector<16x8xbf16>
    %c15_476 = arith.constant 15 : index
    %c0_477 = arith.constant 0 : index
    %c0_478 = arith.constant 0 : index
    %1015 = vector.load %arg8[%c15_476, %c0_477, %c0_478] : memref<16x8x32xbf16, #tpu.memory_space<vmem>>, vector<1x8x32xbf16>
    %1016 = vector.shape_cast %1015 : vector<1x8x32xbf16> to vector<8x32xbf16>
    %cst_479 = arith.constant dense<0.000000e+00> : vector<16x32xf32>
    %1017 = tpu.matmul %1014, %1016, %cst_479 {dimension_numbers = #tpu.dot_dimension_numbers<[1], [0], [0], [1], [0, 0, 1, 1], [], []>} : vector<16x8xbf16>, vector<8x32xbf16>, vector<16x32xf32> -> vector<16x32xf32>
    %1018 = arith.addf %971, %1017 : vector<16x32xf32>
    %1019 = vector.broadcast %824 : vector<1x32xf32> to vector<16x32xf32>
    %1020 = arith.addf %1018, %1019 : vector<16x32xf32>
    %1021 = arith.addf %820, %1020 : vector<16x32xf32>
    %cst_480 = arith.constant dense<0.000000e+00> : vector<16xf32>
    %1022 = vector.multi_reduction <add>, %1021, %cst_480 [1] : vector<16x32xf32> to vector<16xf32>
    %1023 = vector.shape_cast %1022 : vector<16xf32> to vector<16x1xf32>
    %cst_481 = arith.constant 3.200000e+01 : f32
    %1024 = vector.broadcast %cst_481 : f32 to vector<16x1xf32>
    %1025 = arith.divf %1023, %1024 : vector<16x1xf32>
    %1026 = vector.broadcast %1025 : vector<16x1xf32> to vector<16x32xf32>
    %1027 = arith.subf %1021, %1026 : vector<16x32xf32>
    %1028 = arith.mulf %1027, %1027 : vector<16x32xf32>
    %cst_482 = arith.constant dense<0.000000e+00> : vector<16xf32>
    %1029 = vector.multi_reduction <add>, %1028, %cst_482 [1] : vector<16x32xf32> to vector<16xf32>
    %1030 = vector.shape_cast %1029 : vector<16xf32> to vector<16x1xf32>
    %cst_483 = arith.constant 3.200000e+01 : f32
    %1031 = vector.broadcast %cst_483 : f32 to vector<16x1xf32>
    %1032 = arith.divf %1030, %1031 : vector<16x1xf32>
    %1033 = vector.broadcast %1025 : vector<16x1xf32> to vector<16x32xf32>
    %1034 = arith.subf %1021, %1033 : vector<16x32xf32>
    %cst_484 = arith.constant 9.99999974E-6 : f32
    %1035 = vector.broadcast %cst_484 : f32 to vector<16x1xf32>
    %1036 = arith.addf %1032, %1035 : vector<16x1xf32>
    %1037 = math.rsqrt %1036 : vector<16x1xf32>
    %1038 = vector.broadcast %1037 : vector<16x1xf32> to vector<16x32xf32>
    %1039 = arith.mulf %1034, %1038 : vector<16x32xf32>
    %1040 = vector.broadcast %825 : vector<1x32xf32> to vector<16x32xf32>
    %1041 = arith.mulf %1039, %1040 : vector<16x32xf32>
    %1042 = vector.broadcast %826 : vector<1x32xf32> to vector<16x32xf32>
    %1043 = arith.addf %1041, %1042 : vector<16x32xf32>
    %1044 = arith.truncf %1043 : vector<16x32xf32> to vector<16x32xbf16>
    %c3_485 = arith.constant 3 : index
    %c0_486 = arith.constant 0 : index
    %c0_487 = arith.constant 0 : index
    %1045 = vector.load %arg10[%c3_485, %c0_486, %c0_487] : memref<4x32x128xbf16, #tpu.memory_space<vmem>>, vector<1x32x128xbf16>
    %1046 = vector.shape_cast %1045 : vector<1x32x128xbf16> to vector<32x128xbf16>
    %cst_488 = arith.constant dense<0.000000e+00> : vector<16x128xf32>
    %1047 = tpu.matmul %1044, %1046, %cst_488 {dimension_numbers = #tpu.dot_dimension_numbers<[1], [0], [0], [1], [0, 0, 1, 1], [], []>} : vector<16x32xbf16>, vector<32x128xbf16>, vector<16x128xf32> -> vector<16x128xf32>
    %c3_489 = arith.constant 3 : index
    %c0_490 = arith.constant 0 : index
    %c0_491 = arith.constant 0 : index
    %1048 = vector.load %arg11[%c3_489, %c0_490, %c0_491] : memref<4x1x128xf32, #tpu.memory_space<vmem>>, vector<1x1x128xf32>
    %1049 = vector.shape_cast %1048 : vector<1x1x128xf32> to vector<1x128xf32>
    %1050 = vector.broadcast %1049 : vector<1x128xf32> to vector<16x128xf32>
    %1051 = arith.addf %1047, %1050 : vector<16x128xf32>
    %cst_492 = arith.constant 5.000000e-01 : f32
    %1052 = vector.broadcast %cst_492 : f32 to vector<16x128xf32>
    %1053 = arith.mulf %1052, %1051 : vector<16x128xf32>
    %cst_493 = arith.constant 0.707106769 : f32
    %1054 = vector.broadcast %cst_493 : f32 to vector<16x128xf32>
    %1055 = arith.mulf %1051, %1054 : vector<16x128xf32>
    %1056 = math.erf %1055 : vector<16x128xf32>
    %cst_494 = arith.constant 1.000000e+00 : f32
    %1057 = vector.broadcast %cst_494 : f32 to vector<16x128xf32>
    %1058 = arith.addf %1057, %1056 : vector<16x128xf32>
    %1059 = arith.mulf %1053, %1058 : vector<16x128xf32>
    %1060 = arith.truncf %1059 : vector<16x128xf32> to vector<16x128xbf16>
    %c3_495 = arith.constant 3 : index
    %c0_496 = arith.constant 0 : index
    %c0_497 = arith.constant 0 : index
    %1061 = vector.load %arg12[%c3_495, %c0_496, %c0_497] : memref<4x128x32xbf16, #tpu.memory_space<vmem>>, vector<1x128x32xbf16>
    %1062 = vector.shape_cast %1061 : vector<1x128x32xbf16> to vector<128x32xbf16>
    %cst_498 = arith.constant dense<0.000000e+00> : vector<16x32xf32>
    %1063 = tpu.matmul %1060, %1062, %cst_498 {dimension_numbers = #tpu.dot_dimension_numbers<[1], [0], [0], [1], [0, 0, 1, 1], [], []>} : vector<16x128xbf16>, vector<128x32xbf16>, vector<16x32xf32> -> vector<16x32xf32>
    %1064 = vector.broadcast %827 : vector<1x32xf32> to vector<16x32xf32>
    %1065 = arith.addf %1063, %1064 : vector<16x32xf32>
    %1066 = arith.addf %1043, %1065 : vector<16x32xf32>
    %cst_499 = arith.constant dense<0.000000e+00> : vector<16xf32>
    %1067 = vector.multi_reduction <add>, %1066, %cst_499 [1] : vector<16x32xf32> to vector<16xf32>
    %1068 = vector.shape_cast %1067 : vector<16xf32> to vector<16x1xf32>
    %cst_500 = arith.constant 3.200000e+01 : f32
    %1069 = vector.broadcast %cst_500 : f32 to vector<16x1xf32>
    %1070 = arith.divf %1068, %1069 : vector<16x1xf32>
    %1071 = vector.broadcast %1070 : vector<16x1xf32> to vector<16x32xf32>
    %1072 = arith.subf %1066, %1071 : vector<16x32xf32>
    %1073 = arith.mulf %1072, %1072 : vector<16x32xf32>
    %cst_501 = arith.constant dense<0.000000e+00> : vector<16xf32>
    %1074 = vector.multi_reduction <add>, %1073, %cst_501 [1] : vector<16x32xf32> to vector<16xf32>
    %1075 = vector.shape_cast %1074 : vector<16xf32> to vector<16x1xf32>
    %cst_502 = arith.constant 3.200000e+01 : f32
    %1076 = vector.broadcast %cst_502 : f32 to vector<16x1xf32>
    %1077 = arith.divf %1075, %1076 : vector<16x1xf32>
    %1078 = vector.broadcast %1070 : vector<16x1xf32> to vector<16x32xf32>
    %1079 = arith.subf %1066, %1078 : vector<16x32xf32>
    %cst_503 = arith.constant 9.99999974E-6 : f32
    %1080 = vector.broadcast %cst_503 : f32 to vector<16x1xf32>
    %1081 = arith.addf %1077, %1080 : vector<16x1xf32>
    %1082 = math.rsqrt %1081 : vector<16x1xf32>
    %1083 = vector.broadcast %1082 : vector<16x1xf32> to vector<16x32xf32>
    %1084 = arith.mulf %1079, %1083 : vector<16x32xf32>
    %1085 = vector.broadcast %828 : vector<1x32xf32> to vector<16x32xf32>
    %1086 = arith.mulf %1084, %1085 : vector<16x32xf32>
    %1087 = vector.broadcast %829 : vector<1x32xf32> to vector<16x32xf32>
    %1088 = arith.addf %1086, %1087 : vector<16x32xf32>
    %c0_504 = arith.constant 0 : index
    %c0_505 = arith.constant 0 : index
    %1089 = vector.load %arg17[%c0_504, %c0_505] : memref<16x32xf32, #tpu.memory_space<vmem>>, vector<16x32xf32>
    tpu.vector_store %arg17[%c0_504, %c0_505], %1088 {strides = array<i32>} : memref<16x32xf32, #tpu.memory_space<vmem>>, vector<16x32xf32>,
    %c0_506 = arith.constant 0 : index
    %c0_507 = arith.constant 0 : index
    %1090 = vector.load %arg17[%c0_506, %c0_507] : memref<16x32xf32, #tpu.memory_space<vmem>>, vector<16x32xf32>
    %1091 = arith.truncf %1090 : vector<16x32xf32> to vector<16x32xbf16>
    %c0_508 = arith.constant 0 : index
    %c0_509 = arith.constant 0 : index
    %1092 = vector.load %arg14[%c0_508, %c0_509] : memref<32x128xbf16, #tpu.memory_space<vmem>>, vector<32x128xbf16>
    %cst_510 = arith.constant dense<0.000000e+00> : vector<16x128xf32>
    %1093 = tpu.matmul %1091, %1092, %cst_510 {dimension_numbers = #tpu.dot_dimension_numbers<[1], [0], [0], [1], [0, 0, 1, 1], [], []>} : vector<16x32xbf16>, vector<32x128xbf16>, vector<16x128xf32> -> vector<16x128xf32>
    %c0_511 = arith.constant 0 : index
    %c0_512 = arith.constant 0 : index
    %1094 = vector.load %arg15[%c0_511, %c0_512] : memref<1x128xf32, #tpu.memory_space<vmem>>, vector<1x128xf32>
    %1095 = vector.broadcast %1094 : vector<1x128xf32> to vector<16x128xf32>
    %1096 = arith.addf %1093, %1095 : vector<16x128xf32>
    %c0_513 = arith.constant 0 : index
    %c0_514 = arith.constant 0 : index
    %1097 = vector.load %arg16[%c0_513, %c0_514] : memref<16x128xf32, #tpu.memory_space<vmem>>, vector<16x128xf32>
    tpu.vector_store %arg16[%c0_513, %c0_514], %1096 {strides = array<i32>} : memref<16x128xf32, #tpu.memory_space<vmem>>, vector<16x128xf32>,
    return
  }
  func.func @transform_0(%arg0: i32) -> (i32, i32) {
    %c0_i32 = arith.constant 0 : i32
    %c0_i32_0 = arith.constant 0 : i32
    return %arg0, %c0_i32 : i32, i32
  }
  func.func @transform_1(%arg0: i32) -> (i32, i32) {
    %c0_i32 = arith.constant 0 : i32
    %c0_i32_0 = arith.constant 0 : i32
    return %arg0, %c0_i32 : i32, i32
  }
  func.func @transform_2(%arg0: i32) -> (i32, i32) {
    %c0_i32 = arith.constant 0 : i32
    %c0_i32_0 = arith.constant 0 : i32
    %c0_i32_1 = arith.constant 0 : i32
    return %c0_i32, %c0_i32_0 : i32, i32
  }
  func.func @transform_3(%arg0: i32) -> (i32, i32) {
    %c0_i32 = arith.constant 0 : i32
    %c0_i32_0 = arith.constant 0 : i32
    %c0_i32_1 = arith.constant 0 : i32
    return %c0_i32, %c0_i32_0 : i32, i32
  }
  func.func @transform_4(%arg0: i32) -> (i32, i32, i32) {
    %c0_i32 = arith.constant 0 : i32
    %c0_i32_0 = arith.constant 0 : i32
    %c0_i32_1 = arith.constant 0 : i32
    %c0_i32_2 = arith.constant 0 : i32
    return %c0_i32, %c0_i32_0, %c0_i32_1 : i32, i32, i32
  }
  func.func @transform_5(%arg0: i32) -> (i32, i32, i32) {
    %c0_i32 = arith.constant 0 : i32
    %c0_i32_0 = arith.constant 0 : i32
    %c0_i32_1 = arith.constant 0 : i32
    %c0_i32_2 = arith.constant 0 : i32
    return %c0_i32, %c0_i32_0, %c0_i32_1 : i32, i32, i32
  }
  func.func @transform_6(%arg0: i32) -> (i32, i32, i32) {
    %c0_i32 = arith.constant 0 : i32
    %c0_i32_0 = arith.constant 0 : i32
    %c0_i32_1 = arith.constant 0 : i32
    %c0_i32_2 = arith.constant 0 : i32
    return %c0_i32, %c0_i32_0, %c0_i32_1 : i32, i32, i32
  }
  func.func @transform_7(%arg0: i32) -> (i32, i32, i32) {
    %c0_i32 = arith.constant 0 : i32
    %c0_i32_0 = arith.constant 0 : i32
    %c0_i32_1 = arith.constant 0 : i32
    %c0_i32_2 = arith.constant 0 : i32
    return %c0_i32, %c0_i32_0, %c0_i32_1 : i32, i32, i32
  }
  func.func @transform_8(%arg0: i32) -> (i32, i32, i32) {
    %c0_i32 = arith.constant 0 : i32
    %c0_i32_0 = arith.constant 0 : i32
    %c0_i32_1 = arith.constant 0 : i32
    %c0_i32_2 = arith.constant 0 : i32
    return %c0_i32, %c0_i32_0, %c0_i32_1 : i32, i32, i32
  }
  func.func @transform_9(%arg0: i32) -> (i32, i32, i32) {
    %c0_i32 = arith.constant 0 : i32
    %c0_i32_0 = arith.constant 0 : i32
    %c0_i32_1 = arith.constant 0 : i32
    %c0_i32_2 = arith.constant 0 : i32
    return %c0_i32, %c0_i32_0, %c0_i32_1 : i32, i32, i32
  }
  func.func @transform_10(%arg0: i32) -> (i32, i32, i32) {
    %c0_i32 = arith.constant 0 : i32
    %c0_i32_0 = arith.constant 0 : i32
    %c0_i32_1 = arith.constant 0 : i32
    %c0_i32_2 = arith.constant 0 : i32
    return %c0_i32, %c0_i32_0, %c0_i32_1 : i32, i32, i32
  }
  func.func @transform_11(%arg0: i32) -> (i32, i32, i32) {
    %c0_i32 = arith.constant 0 : i32
    %c0_i32_0 = arith.constant 0 : i32
    %c0_i32_1 = arith.constant 0 : i32
    %c0_i32_2 = arith.constant 0 : i32
    return %c0_i32, %c0_i32_0, %c0_i32_1 : i32, i32, i32
  }
  func.func @transform_12(%arg0: i32) -> (i32, i32, i32) {
    %c0_i32 = arith.constant 0 : i32
    %c0_i32_0 = arith.constant 0 : i32
    %c0_i32_1 = arith.constant 0 : i32
    %c0_i32_2 = arith.constant 0 : i32
    return %c0_i32, %c0_i32_0, %c0_i32_1 : i32, i32, i32
  }
  func.func @transform_13(%arg0: i32) -> (i32, i32) {
    %c0_i32 = arith.constant 0 : i32
    %c0_i32_0 = arith.constant 0 : i32
    %c0_i32_1 = arith.constant 0 : i32
    return %c0_i32, %c0_i32_0 : i32, i32
  }
  func.func @transform_14(%arg0: i32) -> (i32, i32) {
    %c0_i32 = arith.constant 0 : i32
    %c0_i32_0 = arith.constant 0 : i32
    %c0_i32_1 = arith.constant 0 : i32
    return %c0_i32, %c0_i32_0 : i32, i32
  }
  func.func @transform_15(%arg0: i32) -> (i32, i32) {
    %c0_i32 = arith.constant 0 : i32
    %c0_i32_0 = arith.constant 0 : i32
    return %arg0, %c0_i32 : i32, i32
  }
}

</mosaic_0001>

<llo_original>
// kernel: transformer_diffusion_forward.1
$region0: #{transformer_diffusion_forward.1}
  #allocation0 [shape = 'u32[]', space=smem, size = 0x4, offset = 0x4, fixed_abs, tag = 'smem constant byte address 0x4 - core index']
  #allocation1 [shape = 'u32[144,128]{1,0:T(1,128)}', space=vmem, size = 0x12000, scoped, tag = 'internal scratch']
  #allocation2 [shape = 'f32[16,32]{1,0:T(8,128)}', space=vmem, size = 0x2000, scoped, tag = 'scratch operand']
  %s0 = inlined_call_operand.vmem [shape: f32[16,8], index: 0, kind: input, shape index: {}]
  %s1 = inlined_call_operand.vmem [shape: f32[16,32], index: 1, kind: input, shape index: {}]
  %s2 = inlined_call_operand.vmem [shape: bf16[8,32], index: 2, kind: input, shape index: {}]
  %s3 = inlined_call_operand.vmem [shape: f32[1,32], index: 3, kind: input, shape index: {}]
  %s4 = inlined_call_operand.vmem [shape: bf16[16,32,8], index: 4, kind: input, shape index: {}]
  %s5 = inlined_call_operand.vmem [shape: bf16[16,32,8], index: 5, kind: input, shape index: {}]
  %s6 = inlined_call_operand.vmem [shape: bf16[16,32,8], index: 6, kind: input, shape index: {}]
  %s7 = inlined_call_operand.vmem [shape: bf16[16,8,32], index: 7, kind: input, shape index: {}]
  %s8 = inlined_call_operand.vmem [shape: f32[16,3,8], index: 8, kind: input, shape index: {}]
  %s9 = inlined_call_operand.vmem [shape: bf16[4,32,128], index: 9, kind: input, shape index: {}]
  %s10 = inlined_call_operand.vmem [shape: f32[4,1,128], index: 10, kind: input, shape index: {}]
  %s11 = inlined_call_operand.vmem [shape: bf16[4,128,32], index: 11, kind: input, shape index: {}]
  %s12 = inlined_call_operand.vmem [shape: f32[4,6,32], index: 12, kind: input, shape index: {}]
  %s13 = inlined_call_operand.vmem [shape: bf16[32,128], index: 13, kind: input, shape index: {}]
  %s14 = inlined_call_operand.vmem [shape: f32[1,128], index: 14, kind: input, shape index: {}]
  %s15 = inlined_call_operand.vmem [shape: f32[16,128], index: 15, kind: output, shape index: {}]
  %s16 = sld [smem:[#allocation0]]
  $region70: #{transformer_diffusion_forward.1} parent=0
    _
  %s18 = ssub.s32 1, %s16
  %s19 = scalar_select 0, %s18, %s16
  // Predicated region
  $region2: #{transformer_diffusion_forward.1} parent=0 // pred_check
    _
  $region3: #{transformer_diffusion_forward.1} parent=0 // pred_check_branch
    %21 = sbr.rel (0) target = $region5
  $region4: #{transformer_diffusion_forward.1} parent=0 // pred_region
    _
  $region5: #{transformer_diffusion_forward.1} parent=0 // pred_fallthru
    _
  // Predicated region
  $region6: #{transformer_diffusion_forward.1} parent=0 // pred_check
    _
  $region7: #{transformer_diffusion_forward.1} parent=0 // pred_check_branch
    %23 = sbr.rel (0) target = $region9
  $region8: #{transformer_diffusion_forward.1} parent=0 // pred_region
    _
  $region9: #{transformer_diffusion_forward.1} parent=0 // pred_fallthru
    _
  // Predicated region
  $region10: #{transformer_diffusion_forward.1} parent=0 // pred_check
    _
  $region11: #{transformer_diffusion_forward.1} parent=0 // pred_check_branch
    %25 = sbr.rel (0) target = $region13
  $region12: #{transformer_diffusion_forward.1} parent=0 // pred_region
    _
  $region13: #{transformer_diffusion_forward.1} parent=0 // pred_fallthru
    _
  // Predicated region
  $region14: #{transformer_diffusion_forward.1} parent=0 // pred_check
    _
  $region15: #{transformer_diffusion_forward.1} parent=0 // pred_check_branch
    %27 = sbr.rel (0) target = $region17
  $region16: #{transformer_diffusion_forward.1} parent=0 // pred_region
    _
  $region17: #{transformer_diffusion_forward.1} parent=0 // pred_fallthru
    _
  // Predicated region
  $region18: #{transformer_diffusion_forward.1} parent=0 // pred_check
    _
  $region19: #{transformer_diffusion_forward.1} parent=0 // pred_check_branch
    %29 = sbr.rel (0) target = $region21
  $region20: #{transformer_diffusion_forward.1} parent=0 // pred_region
    _
  $region21: #{transformer_diffusion_forward.1} parent=0 // pred_fallthru
    _
  // Predicated region
  $region22: #{transformer_diffusion_forward.1} parent=0 // pred_check
    _
  $region23: #{transformer_diffusion_forward.1} parent=0 // pred_check_branch
    %31 = sbr.rel (0) target = $region25
  $region24: #{transformer_diffusion_forward.1} parent=0 // pred_region
    _
  $region25: #{transformer_diffusion_forward.1} parent=0 // pred_fallthru
    _
  // Predicated region
  $region26: #{transformer_diffusion_forward.1} parent=0 // pred_check
    _
  $region27: #{transformer_diffusion_forward.1} parent=0 // pred_check_branch
    %33 = sbr.rel (0) target = $region29
  $region28: #{transformer_diffusion_forward.1} parent=0 // pred_region
    _
  $region29: #{transformer_diffusion_forward.1} parent=0 // pred_fallthru
    _
  // Predicated region
  $region30: #{transformer_diffusion_forward.1} parent=0 // pred_check
    _
  $region31: #{transformer_diffusion_forward.1} parent=0 // pred_check_branch
    %35 = sbr.rel (0) target = $region33
  $region32: #{transformer_diffusion_forward.1} parent=0 // pred_region
    _
  $region33: #{transformer_diffusion_forward.1} parent=0 // pred_fallthru
    _
  // Predicated region
  $region34: #{transformer_diffusion_forward.1} parent=0 // pred_check
    _
  $region35: #{transformer_diffusion_forward.1} parent=0 // pred_check_branch
    %37 = sbr.rel (0) target = $region37
  $region36: #{transformer_diffusion_forward.1} parent=0 // pred_region
    _
  $region37: #{transformer_diffusion_forward.1} parent=0 // pred_fallthru
    _
  // Predicated region
  $region38: #{transformer_diffusion_forward.1} parent=0 // pred_check
    _
  $region39: #{transformer_diffusion_forward.1} parent=0 // pred_check_branch
    %39 = sbr.rel (0) target = $region41
  $region40: #{transformer_diffusion_forward.1} parent=0 // pred_region
    _
  $region41: #{transformer_diffusion_forward.1} parent=0 // pred_fallthru
    _
  // Predicated region
  $region42: #{transformer_diffusion_forward.1} parent=0 // pred_check
    _
  $region43: #{transformer_diffusion_forward.1} parent=0 // pred_check_branch
    %41 = sbr.rel (0) target = $region45
  $region44: #{transformer_diffusion_forward.1} parent=0 // pred_region
    _
  $region45: #{transformer_diffusion_forward.1} parent=0 // pred_fallthru
    _
  // Predicated region
  $region46: #{transformer_diffusion_forward.1} parent=0 // pred_check
    _
  $region47: #{transformer_diffusion_forward.1} parent=0 // pred_check_branch
    %43 = sbr.rel (0) target = $region49
  $region48: #{transformer_diffusion_forward.1} parent=0 // pred_region
    _
  $region49: #{transformer_diffusion_forward.1} parent=0 // pred_fallthru
    _
  // Predicated region
  $region50: #{transformer_diffusion_forward.1} parent=0 // pred_check
    _
  $region51: #{transformer_diffusion_forward.1} parent=0 // pred_check_branch
    %45 = sbr.rel (0) target = $region53
  $region52: #{transformer_diffusion_forward.1} parent=0 // pred_region
    _
  $region53: #{transformer_diffusion_forward.1} parent=0 // pred_fallthru
    _
  // Predicated region
  $region54: #{transformer_diffusion_forward.1} parent=0 // pred_check
    _
  $region55: #{transformer_diffusion_forward.1} parent=0 // pred_check_branch
    %47 = sbr.rel (0) target = $region57
  $region56: #{transformer_diffusion_forward.1} parent=0 // pred_region
    _
  $region57: #{transformer_diffusion_forward.1} parent=0 // pred_fallthru
    _
  // Predicated region
  $region58: #{transformer_diffusion_forward.1} parent=0 // pred_check
    _
  $region59: #{transformer_diffusion_forward.1} parent=0 // pred_check_branch
    %49 = sbr.rel (0) target = $region61
  $region60: #{transformer_diffusion_forward.1} parent=0 // pred_region
    _
  $region61: #{transformer_diffusion_forward.1} parent=0 // pred_fallthru
    _
  %v51 = vld [vmem:[%s0] sm:$0xff]
  %v52 = vld [vmem:[%s0 + $0x8] sm:$0xff]
  %v53 = vpack.c.bf16 %v52, %v51
  %v54 = vld [vmem:[%s2] sm:$0xf]
  %v55 = vld [vmem:[%s3] sm:$0x1]
  %v57 = vlaneseq
  %v58 = vshrl.u32 %v57, 7
  %v59 = vsub.s32 0, %v58
  %v60 = vrot.slane %v55, %v59
  %vm62 = vcmask 64512
  %v64 = vsel %vm62, %v53, 0
  %vm66 = vcmask 1043456
  %v68 = vsel %vm66, %v54, 0
  %70 = vmatprep.subr.bf16.mxu0 0
  %71 = vmatpush1.bf16.msra.mxu0 0
  %72 = vmatprep.subr.bf16.mxu0 0
  %73 = vmatpush1.bf16.msra.mxu0 0
  %74 = vmatprep.subr.bf16.mxu0 0
  %75 = vmatpush1.bf16.msra.mxu0 0
  %76 = vmatprep.subr.bf16.mxu0 0
  %77 = vmatpush1.bf16.msra.mxu0 0
  %78 = vmatprep.subr.bf16.mxu0 0
  %79 = vmatpush1.bf16.msra.mxu0 0
  %80 = vmatprep.subr.bf16.mxu0 0
  %81 = vmatpush1.bf16.msra.mxu0 0
  %82 = vmatprep.subr.bf16.mxu0 0
  %83 = vmatpush1.bf16.msra.mxu0 0
  %84 = vmatprep.subr.bf16.mxu0 0
  %85 = vmatpush1.bf16.msra.mxu0 %v68
  %86 = vmatprep.subr.bf16.mxu0 0
  %87 = vmatpush2.bf16.msra.mxu0 0
  %88 = vmatprep.subr.bf16.mxu0 0
  %89 = vmatpush2.bf16.msra.mxu0 0
  %90 = vmatprep.subr.bf16.mxu0 0
  %91 = vmatpush2.bf16.msra.mxu0 0
  %92 = vmatprep.subr.bf16.mxu0 0
  %93 = vmatpush2.bf16.msra.mxu0 0
  %94 = vmatprep.subr.bf16.mxu0 0
  %95 = vmatpush2.bf16.msra.mxu0 0
  %96 = vmatprep.subr.bf16.mxu0 0
  %97 = vmatpush2.bf16.msra.mxu0 0
  %98 = vmatprep.subr.bf16.mxu0 0
  %99 = vmatpush2.bf16.msra.mxu0 0
  %100 = vmatprep.subr.bf16.mxu0 0
  %101 = vmatpush2.bf16.msra.mxu0 0
  %102 = vmatprep.mubr.bf16.mxu0 0
  %103 = vmatmul.mubr.bf16.gmra.mxu0 %v64
  %v104 = vpop.f32.mrf.mxu0
  %v105 = vadd.f32 %v60, %v104
  %v106 = vpop.f32.mrf.mxu0
  %v107 = vpop.f32.mrf.mxu0
  %v108 = vadd.f32 %v60, %v107
  %v109 = vpop.f32.mrf.mxu0
  %110 = vdwg.mxu0
  %v111 = vld [vmem:[%s1] sm:$0xff]
  %v112 = vld [vmem:[%s1 + $0x8] sm:$0xff]
  %v113 = vadd.f32 %v105, %v111
  %v114 = vadd.f32 %v108, %v112
  %vm115 = vcmask 261120
  %116 = vst.msk [vmem:[#allocation2] sm:$0xff] %vm115, %v113
  %117 = vst.msk [vmem:[#allocation2 + $0x8] sm:$0xff] %vm115, %v114
  %v118 = vld [vmem:[#allocation2] sm:$0xff]
  %v119 = vld [vmem:[#allocation2 + $0x8] sm:$0xff]
  %v120 = vpack.c.bf16 %v119, %v118
  %v121 = vld [vmem:[%s12] sm:$0x3f]
  %v122 = vld [vmem:[%s8] sm:$0x7]
  %v123 = vld [vmem:[%s4] sm:$0xf]
  %v124 = vld [vmem:[%s4 + $0x4] sm:$0xf]
  %v125 = vld [vmem:[%s4 + $0x8] sm:$0xf]
  %v126 = vld [vmem:[%s4 + $0xc] sm:$0xf]
  %v127 = vlaneseq
  %v128 = vshrl.u32 %v127, 7
  %v129 = vsub.s32 0, %v128
  %v130 = vrot.slane %v122, %v129
  %v135 = vunpack.c.l.b16 %v123
  %v136 = vunpack.c.l.b16 %v124
  %v137 = vunpack.c.l.b16 %v125
  %v138 = vunpack.c.l.b16 %v126
  %v139 = vpack.c.b16 %v136, %v135
  %v140 = vpack.c.b16 %v138, %v137
  %v144 = vsel %vm115, %v120, 0
  %146 = vmatprep.subr.bf16.mxu0 0
  %147 = vmatpush1.bf16.msra.mxu0 0
  %148 = vmatprep.subr.bf16.mxu0 0
  %149 = vmatpush1.bf16.msra.mxu0 0
  %150 = vmatprep.subr.bf16.mxu0 0
  %151 = vmatpush1.bf16.msra.mxu0 0
  %152 = vmatprep.subr.bf16.mxu0 0
  %153 = vmatpush1.bf16.msra.mxu0 0
  %154 = vmatprep.subr.bf16.mxu0 0
  %155 = vmatpush1.bf16.msra.mxu0 0
  %156 = vmatprep.subr.bf16.mxu0 0
  %157 = vmatpush1.bf16.msra.mxu0 0
  %158 = vmatprep.subr.bf16.mxu0 0
  %159 = vmatpush1.bf16.msra.mxu0 %v140
  %160 = vmatprep.subr.bf16.mxu0 0
  %161 = vmatpush1.bf16.msra.mxu0 %v139
  %162 = vmatprep.subr.bf16.mxu0 0
  %163 = vmatpush2.bf16.msra.mxu0 0
  %164 = vmatprep.subr.bf16.mxu0 0
  %165 = vmatpush2.bf16.msra.mxu0 0
  %166 = vmatprep.subr.bf16.mxu0 0
  %167 = vmatpush2.bf16.msra.mxu0 0
  %168 = vmatprep.subr.bf16.mxu0 0
  %169 = vmatpush2.bf16.msra.mxu0 0
  %170 = vmatprep.subr.bf16.mxu0 0
  %171 = vmatpush2.bf16.msra.mxu0 0
  %172 = vmatprep.subr.bf16.mxu0 0
  %173 = vmatpush2.bf16.msra.mxu0 0
  %174 = vmatprep.subr.bf16.mxu0 0
  %175 = vmatpush2.bf16.msra.mxu0 0
  %176 = vmatprep.subr.bf16.mxu0 0
  %177 = vmatpush2.bf16.msra.mxu0 0
  %178 = vmatprep.mubr.bf16.mxu0 0
  %179 = vmatmul.mubr.bf16.gmra.mxu0 %v144
  %v180 = vpop.f32.mrf.mxu0
  %v181 = vadd.f32 %v130, %v180
  %v182 = vpop.f32.mrf.mxu0
  %v183 = vpop.f32.mrf.mxu0
  %v184 = vadd.f32 %v130, %v183
  %v185 = vpop.f32.mrf.mxu0
  %186 = vdwg.mxu0
  %v187 = vld [vmem:[%s5] sm:$0xf]
  %v188 = vld [vmem:[%s5 + $0x4] sm:$0xf]
  %v189 = vld [vmem:[%s5 + $0x8] sm:$0xf]
  %v190 = vld [vmem:[%s5 + $0xc] sm:$0xf]
  %v191 = vlaneseq
  %v192 = vshrl.u32 %v191, 7
  %v193 = vsub.s32 1, %v192
  %v194 = vrot.slane %v122, %v193
  %v199 = vunpack.c.l.b16 %v187
  %v200 = vunpack.c.l.b16 %v188
  %v201 = vunpack.c.l.b16 %v189
  %v202 = vunpack.c.l.b16 %v190
  %v203 = vpack.c.b16 %v200, %v199
  %v204 = vpack.c.b16 %v202, %v201
  %207 = vmatprep.subr.bf16.mxu0 0
  %208 = vmatpush1.bf16.msra.mxu0 0
  %209 = vmatprep.subr.bf16.mxu0 0
  %210 = vmatpush1.bf16.msra.mxu0 0
  %211 = vmatprep.subr.bf16.mxu0 0
  %212 = vmatpush1.bf16.msra.mxu0 0
  %213 = vmatprep.subr.bf16.mxu0 0
  %214 = vmatpush1.bf16.msra.mxu0 0
  %215 = vmatprep.subr.bf16.mxu0 0
  %216 = vmatpush1.bf16.msra.mxu0 0
  %217 = vmatprep.subr.bf16.mxu0 0
  %218 = vmatpush1.bf16.msra.mxu0 0
  %219 = vmatprep.subr.bf16.mxu0 0
  %220 = vmatpush1.bf16.msra.mxu0 %v204
  %221 = vmatprep.subr.bf16.mxu0 0
  %222 = vmatpush1.bf16.msra.mxu0 %v203
  %223 = vmatprep.subr.bf16.mxu0 0
  %224 = vmatpush2.bf16.msra.mxu0 0
  %225 = vmatprep.subr.bf16.mxu0 0
  %226 = vmatpush2.bf16.msra.mxu0 0
  %227 = vmatprep.subr.bf16.mxu0 0
  %228 = vmatpush2.bf16.msra.mxu0 0
  %229 = vmatprep.subr.bf16.mxu0 0
  %230 = vmatpush2.bf16.msra.mxu0 0
  %231 = vmatprep.subr.bf16.mxu0 0
  %232 = vmatpush2.bf16.msra.mxu0 0
  %233 = vmatprep.subr.bf16.mxu0 0
  %234 = vmatpush2.bf16.msra.mxu0 0
  %235 = vmatprep.subr.bf16.mxu0 0
  %236 = vmatpush2.bf16.msra.mxu0 0
  %237 = vmatprep.subr.bf16.mxu0 0
  %238 = vmatpush2.bf16.msra.mxu0 0
  %239 = vmatprep.mubr.bf16.mxu0 0
  %240 = vmatmul.mubr.bf16.gmra.mxu0 %v144
  %v241 = vpop.f32.mrf.mxu0
  %v242 = vadd.f32 %v194, %v241
  %v243 = vpop.f32.mrf.mxu0
  %v244 = vpop.f32.mrf.mxu0
  %v245 = vadd.f32 %v194, %v244
  %v246 = vpop.f32.mrf.mxu0
  %247 = vdwg.mxu0
  %v248 = vld [vmem:[%s6] sm:$0xf]
  %v249 = vld [vmem:[%s6 + $0x4] sm:$0xf]
  %v250 = vld [vmem:[%s6 + $0x8] sm:$0xf]
  %v251 = vld [vmem:[%s6 + $0xc] sm:$0xf]
  %v252 = vlaneseq
  %v253 = vshrl.u32 %v252, 7
  %v254 = vsub.s32 2, %v253
  %v255 = vrot.slane %v122, %v254
  %v260 = vunpack.c.l.b16 %v248
  %v261 = vunpack.c.l.b16 %v249
  %v262 = vunpack.c.l.b16 %v250
  %v263 = vunpack.c.l.b16 %v251
  %v264 = vpack.c.b16 %v261, %v260
  %v265 = vpack.c.b16 %v263, %v262
  %268 = vmatprep.subr.bf16.mxu0 0
  %269 = vmatpush1.bf16.msra.mxu0 0
  %270 = vmatprep.subr.bf16.mxu0 0
  %271 = vmatpush1.bf16.msra.mxu0 0
  %272 = vmatprep.subr.bf16.mxu0 0
  %273 = vmatpush1.bf16.msra.mxu0 0
  %274 = vmatprep.subr.bf16.mxu0 0
  %275 = vmatpush1.bf16.msra.mxu0 0
  %276 = vmatprep.subr.bf16.mxu0 0
  %277 = vmatpush1.bf16.msra.mxu0 0
  %278 = vmatprep.subr.bf16.mxu0 0
  %279 = vmatpush1.bf16.msra.mxu0 0
  %280 = vmatprep.subr.bf16.mxu0 0
  %281 = vmatpush1.bf16.msra.mxu0 %v265
  %282 = vmatprep.subr.bf16.mxu0 0
  %283 = vmatpush1.bf16.msra.mxu0 %v264
  %284 = vmatprep.subr.bf16.mxu0 0
  %285 = vmatpush2.bf16.msra.mxu0 0
  %286 = vmatprep.subr.bf16.mxu0 0
  %287 = vmatpush2.bf16.msra.mxu0 0
  %288 = vmatprep.subr.bf16.mxu0 0
  %289 = vmatpush2.bf16.msra.mxu0 0
  %290 = vmatprep.subr.bf16.mxu0 0
  %291 = vmatpush2.bf16.msra.mxu0 0
  %292 = vmatprep.subr.bf16.mxu0 0
  %293 = vmatpush2.bf16.msra.mxu0 0
  %294 = vmatprep.subr.bf16.mxu0 0
  %295 = vmatpush2.bf16.msra.mxu0 0
  %296 = vmatprep.subr.bf16.mxu0 0
  %297 = vmatpush2.bf16.msra.mxu0 0
  %298 = vmatprep.subr.bf16.mxu0 0
  %299 = vmatpush2.bf16.msra.mxu0 0
  %300 = vmatprep.mubr.bf16.mxu0 0
  %301 = vmatmul.mubr.bf16.gmra.mxu0 %v144
  %v302 = vpop.f32.mrf.mxu0
  %v303 = vadd.f32 %v255, %v302
  %v304 = vpop.f32.mrf.mxu0
  %v305 = vpop.f32.mrf.mxu0
  %v306 = vadd.f32 %v255, %v305
  %v307 = vpop.f32.mrf.mxu0
  %308 = vdwg.mxu0
  %v309 = vpack.c.bf16 %v181, %v181
  %v310 = vpack.c.bf16 %v184, %v184
  %v311 = vpack.c.bf16 %v242, %v242
  %v312 = vpack.c.bf16 %v245, %v245
  %v313 = vpack.c.bf16 %v303, %v303
  %v314 = vpack.c.bf16 %v306, %v306
  %v316 = vsel %vm62, %v309, 0
  %v319 = vsel %vm62, %v311, 0
  %321 = vmatprep.subr.bf16.mxu0 0
  %322 = vmatpush1.bf16.xpose.msra.mxu0 0
  %323 = vmatprep.subr.bf16.mxu0 0
  %324 = vmatpush1.bf16.xpose.msra.mxu0 0
  %325 = vmatprep.subr.bf16.mxu0 0
  %326 = vmatpush1.bf16.xpose.msra.mxu0 0
  %327 = vmatprep.subr.bf16.mxu0 0
  %328 = vmatpush1.bf16.xpose.msra.mxu0 0
  %329 = vmatprep.subr.bf16.mxu0 0
  %330 = vmatpush1.bf16.xpose.msra.mxu0 0
  %331 = vmatprep.subr.bf16.mxu0 0
  %332 = vmatpush1.bf16.xpose.msra.mxu0 0
  %333 = vmatprep.subr.bf16.mxu0 0
  %334 = vmatpush1.bf16.xpose.msra.mxu0 0
  %335 = vmatprep.subr.bf16.mxu0 0
  %336 = vmatpush1.bf16.xpose.msra.mxu0 %v319
  %337 = vmatprep.subr.bf16.mxu0 0
  %338 = vmatpush2.bf16.xpose.msra.mxu0 0
  %339 = vmatprep.subr.bf16.mxu0 0
  %340 = vmatpush2.bf16.xpose.msra.mxu0 0
  %341 = vmatprep.subr.bf16.mxu0 0
  %342 = vmatpush2.bf16.xpose.msra.mxu0 0
  %343 = vmatprep.subr.bf16.mxu0 0
  %344 = vmatpush2.bf16.xpose.msra.mxu0 0
  %345 = vmatprep.subr.bf16.mxu0 0
  %346 = vmatpush2.bf16.xpose.msra.mxu0 0
  %347 = vmatprep.subr.bf16.mxu0 0
  %348 = vmatpush2.bf16.xpose.msra.mxu0 0
  %349 = vmatprep.subr.bf16.mxu0 0
  %350 = vmatpush2.bf16.xpose.msra.mxu0 0
  %351 = vmatprep.subr.bf16.mxu0 0
  %352 = vmatpush2.bf16.xpose.msra.mxu0 0
  %353 = vmatprep.mubr.bf16.mxu0 0
  %354 = vmatmul.mubr.bf16.gmra.mxu0 %v316
  %v355 = vpop.f32.mrf.mxu0
  %v356 = vadd.f32 0.0, %v355
  %v357 = vpop.f32.mrf.mxu0
  %v358 = vpop.f32.mrf.mxu0
  %v359 = vpop.f32.mrf.mxu0
  %360 = vdwg.mxu0
  %v362 = vsel %vm62, %v310, 0
  %v365 = vsel %vm62, %v312, 0
  %367 = vmatprep.subr.bf16.mxu0 0
  %368 = vmatpush1.bf16.xpose.msra.mxu0 0
  %369 = vmatprep.subr.bf16.mxu0 0
  %370 = vmatpush1.bf16.xpose.msra.mxu0 0
  %371 = vmatprep.subr.bf16.mxu0 0
  %372 = vmatpush1.bf16.xpose.msra.mxu0 0
  %373 = vmatprep.subr.bf16.mxu0 0
  %374 = vmatpush1.bf16.xpose.msra.mxu0 0
  %375 = vmatprep.subr.bf16.mxu0 0
  %376 = vmatpush1.bf16.xpose.msra.mxu0 0
  %377 = vmatprep.subr.bf16.mxu0 0
  %378 = vmatpush1.bf16.xpose.msra.mxu0 0
  %379 = vmatprep.subr.bf16.mxu0 0
  %380 = vmatpush1.bf16.xpose.msra.mxu0 0
  %381 = vmatprep.subr.bf16.mxu0 0
  %382 = vmatpush1.bf16.xpose.msra.mxu0 %v365
  %383 = vmatprep.subr.bf16.mxu0 0
  %384 = vmatpush2.bf16.xpose.msra.mxu0 0
  %385 = vmatprep.subr.bf16.mxu0 0
  %386 = vmatpush2.bf16.xpose.msra.mxu0 0
  %387 = vmatprep.subr.bf16.mxu0 0
  %388 = vmatpush2.bf16.xpose.msra.mxu0 0
  %389 = vmatprep.subr.bf16.mxu0 0
  %390 = vmatpush2.bf16.xpose.msra.mxu0 0
  %391 = vmatprep.subr.bf16.mxu0 0
  %392 = vmatpush2.bf16.xpose.msra.mxu0 0
  %393 = vmatprep.subr.bf16.mxu0 0
  %394 = vmatpush2.bf16.xpose.msra.mxu0 0
  %395 = vmatprep.subr.bf16.mxu0 0
  %396 = vmatpush2.bf16.xpose.msra.mxu0 0
  %397 = vmatprep.subr.bf16.mxu0 0
  %398 = vmatpush2.bf16.xpose.msra.mxu0 0
  %399 = vmatprep.mubr.bf16.mxu0 0
  %400 = vmatmul.mubr.bf16.gmra.mxu0 %v362
  %v401 = vpop.f32.mrf.mxu0
  %v402 = vadd.f32 0.0, %v401
  %v403 = vpop.f32.mrf.mxu0
  %v404 = vpop.f32.mrf.mxu0
  %v405 = vpop.f32.mrf.mxu0
  %406 = vdwg.mxu0
  %v407 = vmul.f32 %v356, 0.35355338
  %v408 = vmul.f32 %v402, 0.35355338
  %v409 = vsel %vm62, %v407, -inf
  %410 = vmax.xlane.f32.xlu0 %v409
  %v411 = vpop.xlane.xlu0 %410
  %v412 = vsel %vm62, %v408, -inf
  %413 = vmax.xlane.f32.xlu0 %v412
  %v414 = vpop.xlane.xlu0 %413
  %v415 = vsub.f32 %v407, %v411
  %v416 = vsub.f32 %v408, %v414
  %v417 = vmul.f32 %v415, 1.442695
  %v418 = vpow.pop %v417
  %v419 = vmul.f32 %v416, 1.442695
  %v420 = vpow.pop %v419
  %v421 = vsel %vm62, %v418, 0.0
  %422 = vadd.xlane.f32.xlu0 %v421
  %v423 = vpop.xlane.xlu0 %422
  %v424 = vsel %vm62, %v420, 0.0
  %425 = vadd.xlane.f32.xlu0 %v424
  %v426 = vpop.xlane.xlu0 %425
  %v427 = vrcp.pop %v423
  %v428 = vrcp.pop %v426
  %v429 = vmul.f32 %v418, %v427
  %v430 = vmul.f32 %v420, %v428
  %v431 = vpack.c.bf16 %v429, %v429
  %v432 = vpack.c.bf16 %v430, %v430
  %v434 = vsel %vm62, %v431, 0
  %v437 = vsel %vm66, %v313, 0
  %439 = vmatprep.subr.bf16.mxu0 0
  %440 = vmatpush1.bf16.msra.mxu0 0
  %441 = vmatprep.subr.bf16.mxu0 0
  %442 = vmatpush1.bf16.msra.mxu0 0
  %443 = vmatprep.subr.bf16.mxu0 0
  %444 = vmatpush1.bf16.msra.mxu0 0
  %445 = vmatprep.subr.bf16.mxu0 0
  %446 = vmatpush1.bf16.msra.mxu0 0
  %447 = vmatprep.subr.bf16.mxu0 0
  %448 = vmatpush1.bf16.msra.mxu0 0
  %449 = vmatprep.subr.bf16.mxu0 0
  %450 = vmatpush1.bf16.msra.mxu0 0
  %451 = vmatprep.subr.bf16.mxu0 0
  %452 = vmatpush1.bf16.msra.mxu0 0
  %453 = vmatprep.subr.bf16.mxu0 0
  %454 = vmatpush1.bf16.msra.mxu0 %v437
  %455 = vmatprep.subr.bf16.mxu0 0
  %456 = vmatpush2.bf16.msra.mxu0 0
  %457 = vmatprep.subr.bf16.mxu0 0
  %458 = vmatpush2.bf16.msra.mxu0 0
  %459 = vmatprep.subr.bf16.mxu0 0
  %460 = vmatpush2.bf16.msra.mxu0 0
  %461 = vmatprep.subr.bf16.mxu0 0
  %462 = vmatpush2.bf16.msra.mxu0 0
  %463 = vmatprep.subr.bf16.mxu0 0
  %464 = vmatpush2.bf16.msra.mxu0 0
  %465 = vmatprep.subr.bf16.mxu0 0
  %466 = vmatpush2.bf16.msra.mxu0 0
  %467 = vmatprep.subr.bf16.mxu0 0
  %468 = vmatpush2.bf16.msra.mxu0 0
  %469 = vmatprep.subr.bf16.mxu0 0
  %470 = vmatpush2.bf16.msra.mxu0 0
  %471 = vmatprep.mubr.bf16.mxu0 0
  %472 = vmatmul.mubr.bf16.gmra.mxu0 %v434
  %v473 = vpop.f32.mrf.mxu0
  %v474 = vadd.f32 0.0, %v473
  %v475 = vpop.f32.mrf.mxu0
  %v476 = vpop.f32.mrf.mxu0
  %v477 = vpop.f32.mrf.mxu0
  %478 = vdwg.mxu0
  %v480 = vsel %vm62, %v432, 0
  %v483 = vsel %vm66, %v314, 0
  %485 = vmatprep.subr.bf16.mxu0 0
  %486 = vmatpush1.bf16.msra.mxu0 0
  %487 = vmatprep.subr.bf16.mxu0 0
  %488 = vmatpush1.bf16.msra.mxu0 0
  %489 = vmatprep.subr.bf16.mxu0 0
  %490 = vmatpush1.bf16.msra.mxu0 0
  %491 = vmatprep.subr.bf16.mxu0 0
  %492 = vmatpush1.bf16.msra.mxu0 0
  %493 = vmatprep.subr.bf16.mxu0 0
  %494 = vmatpush1.bf16.msra.mxu0 0
  %495 = vmatprep.subr.bf16.mxu0 0
  %496 = vmatpush1.bf16.msra.mxu0 0
  %497 = vmatprep.subr.bf16.mxu0 0
  %498 = vmatpush1.bf16.msra.mxu0 0
  %499 = vmatprep.subr.bf16.mxu0 0
  %500 = vmatpush1.bf16.msra.mxu0 %v483
  %501 = vmatprep.subr.bf16.mxu0 0
  %502 = vmatpush2.bf16.msra.mxu0 0
  %503 = vmatprep.subr.bf16.mxu0 0
  %504 = vmatpush2.bf16.msra.mxu0 0
  %505 = vmatprep.subr.bf16.mxu0 0
  %506 = vmatpush2.bf16.msra.mxu0 0
  %507 = vmatprep.subr.bf16.mxu0 0
  %508 = vmatpush2.bf16.msra.mxu0 0
  %509 = vmatprep.subr.bf16.mxu0 0
  %510 = vmatpush2.bf16.msra.mxu0 0
  %511 = vmatprep.subr.bf16.mxu0 0
  %512 = vmatpush2.bf16.msra.mxu0 0
  %513 = vmatprep.subr.bf16.mxu0 0
  %514 = vmatpush2.bf16.msra.mxu0 0
  %515 = vmatprep.subr.bf16.mxu0 0
  %516 = vmatpush2.bf16.msra.mxu0 0
  %517 = vmatprep.mubr.bf16.mxu0 0
  %518 = vmatmul.mubr.bf16.gmra.mxu0 %v480
  %v519 = vpop.f32.mrf.mxu0
  %v520 = vadd.f32 0.0, %v519
  %v521 = vpop.f32.mrf.mxu0
  %v522 = vpop.f32.mrf.mxu0
  %v523 = vpop.f32.mrf.mxu0
  %524 = vdwg.mxu0
  %v525 = vpack.c.bf16 %v520, %v474
  %v526 = vld [vmem:[%s7] sm:$0xf]
  %s527 = scalar_lea.vmem %s8, 4
  %v528 = vld [vmem:[%s527] sm:$0x7]
  %s529 = scalar_lea.vmem %s4, 16
  %v530 = vld [vmem:[%s529] sm:$0xf]
  %v531 = vld [vmem:[%s529 + $0x4] sm:$0xf]
  %v532 = vld [vmem:[%s529 + $0x8] sm:$0xf]
  %v533 = vld [vmem:[%s529 + $0xc] sm:$0xf]
  %v534 = vlaneseq
  %v535 = vshrl.u32 %v534, 7
  %v536 = vsub.s32 0, %v535
  %v537 = vrot.slane %v528, %v536
  %v542 = vunpack.c.l.b16 %v530
  %v543 = vunpack.c.l.b16 %v531
  %v544 = vunpack.c.l.b16 %v532
  %v545 = vunpack.c.l.b16 %v533
  %v546 = vpack.c.b16 %v543, %v542
  %v547 = vpack.c.b16 %v545, %v544
  %550 = vmatprep.subr.bf16.mxu0 0
  %551 = vmatpush1.bf16.msra.mxu0 0
  %552 = vmatprep.subr.bf16.mxu0 0
  %553 = vmatpush1.bf16.msra.mxu0 0
  %554 = vmatprep.subr.bf16.mxu0 0
  %555 = vmatpush1.bf16.msra.mxu0 0
  %556 = vmatprep.subr.bf16.mxu0 0
  %557 = vmatpush1.bf16.msra.mxu0 0
  %558 = vmatprep.subr.bf16.mxu0 0
  %559 = vmatpush1.bf16.msra.mxu0 0
  %560 = vmatprep.subr.bf16.mxu0 0
  %561 = vmatpush1.bf16.msra.mxu0 0
  %562 = vmatprep.subr.bf16.mxu0 0
  %563 = vmatpush1.bf16.msra.mxu0 %v547
  %564 = vmatprep.subr.bf16.mxu0 0
  %565 = vmatpush1.bf16.msra.mxu0 %v546
  %566 = vmatprep.subr.bf16.mxu0 0
  %567 = vmatpush2.bf16.msra.mxu0 0
  %568 = vmatprep.subr.bf16.mxu0 0
  %569 = vmatpush2.bf16.msra.mxu0 0
  %570 = vmatprep.subr.bf16.mxu0 0
  %571 = vmatpush2.bf16.msra.mxu0 0
  %572 = vmatprep.subr.bf16.mxu0 0
  %573 = vmatpush2.bf16.msra.mxu0 0
  %574 = vmatprep.subr.bf16.mxu0 0
  %575 = vmatpush2.bf16.msra.mxu0 0
  %576 = vmatprep.subr.bf16.mxu0 0
  %577 = vmatpush2.bf16.msra.mxu0 0
  %578 = vmatprep.subr.bf16.mxu0 0
  %579 = vmatpush2.bf16.msra.mxu0 0
  %580 = vmatprep.subr.bf16.mxu0 0
  %581 = vmatpush2.bf16.msra.mxu0 0
  %582 = vmatprep.mubr.bf16.mxu0 0
  %583 = vmatmul.mubr.bf16.gmra.mxu0 %v144
  %v584 = vpop.f32.mrf.mxu0
  %v585 = vadd.f32 %v537, %v584
  %v586 = vpop.f32.mrf.mxu0
  %v587 = vpop.f32.mrf.mxu0
  %v588 = vadd.f32 %v537, %v587
  %v589 = vpop.f32.mrf.mxu0
  %590 = vdwg.mxu0
  %s591 = scalar_lea.vmem %s5, 16
  %v592 = vld [vmem:[%s591] sm:$0xf]
  %v593 = vld [vmem:[%s591 + $0x4] sm:$0xf]
  %v594 = vld [vmem:[%s591 + $0x8] sm:$0xf]
  %v595 = vld [vmem:[%s591 + $0xc] sm:$0xf]
  %v596 = vlaneseq
  %v597 = vshrl.u32 %v596, 7
  %v598 = vsub.s32 1, %v597
  %v599 = vrot.slane %v528, %v598
  %v604 = vunpack.c.l.b16 %v592
  %v605 = vunpack.c.l.b16 %v593
  %v606 = vunpack.c.l.b16 %v594
  %v607 = vunpack.c.l.b16 %v595
  %v608 = vpack.c.b16 %v605, %v604
  %v609 = vpack.c.b16 %v607, %v606
  %612 = vmatprep.subr.bf16.mxu0 0
  %613 = vmatpush1.bf16.msra.mxu0 0
  %614 = vmatprep.subr.bf16.mxu0 0
  %615 = vmatpush1.bf16.msra.mxu0 0
  %616 = vmatprep.subr.bf16.mxu0 0
  %617 = vmatpush1.bf16.msra.mxu0 0
  %618 = vmatprep.subr.bf16.mxu0 0
  %619 = vmatpush1.bf16.msra.mxu0 0
  %620 = vmatprep.subr.bf16.mxu0 0
  %621 = vmatpush1.bf16.msra.mxu0 0
  %622 = vmatprep.subr.bf16.mxu0 0
  %623 = vmatpush1.bf16.msra.mxu0 0
  %624 = vmatprep.subr.bf16.mxu0 0
  %625 = vmatpush1.bf16.msra.mxu0 %v609
  %626 = vmatprep.subr.bf16.mxu0 0
  %627 = vmatpush1.bf16.msra.mxu0 %v608
  %628 = vmatprep.subr.bf16.mxu0 0
  %629 = vmatpush2.bf16.msra.mxu0 0
  %630 = vmatprep.subr.bf16.mxu0 0
  %631 = vmatpush2.bf16.msra.mxu0 0
  %632 = vmatprep.subr.bf16.mxu0 0
  %633 = vmatpush2.bf16.msra.mxu0 0
  %634 = vmatprep.subr.bf16.mxu0 0
  %635 = vmatpush2.bf16.msra.mxu0 0
  %636 = vmatprep.subr.bf16.mxu0 0
  %637 = vmatpush2.bf16.msra.mxu0 0
  %638 = vmatprep.subr.bf16.mxu0 0
  %639 = vmatpush2.bf16.msra.mxu0 0
  %640 = vmatprep.subr.bf16.mxu0 0
  %641 = vmatpush2.bf16.msra.mxu0 0
  %642 = vmatprep.subr.bf16.mxu0 0
  %643 = vmatpush2.bf16.msra.mxu0 0
  %644 = vmatprep.mubr.bf16.mxu0 0
  %645 = vmatmul.mubr.bf16.gmra.mxu0 %v144
  %v646 = vpop.f32.mrf.mxu0
  %v647 = vadd.f32 %v599, %v646
  %v648 = vpop.f32.mrf.mxu0
  %v649 = vpop.f32.mrf.mxu0
  %v650 = vadd.f32 %v599, %v649
  %v651 = vpop.f32.mrf.mxu0
  %652 = vdwg.mxu0
  %s653 = scalar_lea.vmem %s6, 16
  %v654 = vld [vmem:[%s653] sm:$0xf]
  %v655 = vld [vmem:[%s653 + $0x4] sm:$0xf]
  %v656 = vld [vmem:[%s653 + $0x8] sm:$0xf]
  %v657 = vld [vmem:[%s653 + $0xc] sm:$0xf]
  %v658 = vlaneseq
  %v659 = vshrl.u32 %v658, 7
  %v660 = vsub.s32 2, %v659
  %v661 = vrot.slane %v528, %v660
  %v666 = vunpack.c.l.b16 %v654
  %v667 = vunpack.c.l.b16 %v655
  %v668 = vunpack.c.l.b16 %v656
  %v669 = vunpack.c.l.b16 %v657
  %v670 = vpack.c.b16 %v667, %v666
  %v671 = vpack.c.b16 %v669, %v668
  %674 = vmatprep.subr.bf16.mxu0 0
  %675 = vmatpush1.bf16.msra.mxu0 0
  %676 = vmatprep.subr.bf16.mxu0 0
  %677 = vmatpush1.bf16.msra.mxu0 0
  %678 = vmatprep.subr.bf16.mxu0 0
  %679 = vmatpush1.bf16.msra.mxu0 0
  %680 = vmatprep.subr.bf16.mxu0 0
  %681 = vmatpush1.bf16.msra.mxu0 0
  %682 = vmatprep.subr.bf16.mxu0 0
  %683 = vmatpush1.bf16.msra.mxu0 0
  %684 = vmatprep.subr.bf16.mxu0 0
  %685 = vmatpush1.bf16.msra.mxu0 0
  %686 = vmatprep.subr.bf16.mxu0 0
  %687 = vmatpush1.bf16.msra.mxu0 %v671
  %688 = vmatprep.subr.bf16.mxu0 0
  %689 = vmatpush1.bf16.msra.mxu0 %v670
  %690 = vmatprep.subr.bf16.mxu0 0
  %691 = vmatpush2.bf16.msra.mxu0 0
  %692 = vmatprep.subr.bf16.mxu0 0
  %693 = vmatpush2.bf16.msra.mxu0 0
  %694 = vmatprep.subr.bf16.mxu0 0
  %695 = vmatpush2.bf16.msra.mxu0 0
  %696 = vmatprep.subr.bf16.mxu0 0
  %697 = vmatpush2.bf16.msra.mxu0 0
  %698 = vmatprep.subr.bf16.mxu0 0
  %699 = vmatpush2.bf16.msra.mxu0 0
  %700 = vmatprep.subr.bf16.mxu0 0
  %701 = vmatpush2.bf16.msra.mxu0 0
  %702 = vmatprep.subr.bf16.mxu0 0
  %703 = vmatpush2.bf16.msra.mxu0 0
  %704 = vmatprep.subr.bf16.mxu0 0
  %705 = vmatpush2.bf16.msra.mxu0 0
  %706 = vmatprep.mubr.bf16.mxu0 0
  %707 = vmatmul.mubr.bf16.gmra.mxu0 %v144
  %v708 = vpop.f32.mrf.mxu0
  %v709 = vadd.f32 %v661, %v708
  %v710 = vpop.f32.mrf.mxu0
  %v711 = vpop.f32.mrf.mxu0
  %v712 = vadd.f32 %v661, %v711
  %v713 = vpop.f32.mrf.mxu0
  %714 = vdwg.mxu0
  %v715 = vpack.c.bf16 %v585, %v585
  %v716 = vpack.c.bf16 %v588, %v588
  %v717 = vpack.c.bf16 %v647, %v647
  %v718 = vpack.c.bf16 %v650, %v650
  %v719 = vpack.c.bf16 %v709, %v709
  %v720 = vpack.c.bf16 %v712, %v712
  %v722 = vsel %vm62, %v715, 0
  %v725 = vsel %vm62, %v717, 0
  %727 = vmatprep.subr.bf16.mxu0 0
  %728 = vmatpush1.bf16.xpose.msra.mxu0 0
  %729 = vmatprep.subr.bf16.mxu0 0
  %730 = vmatpush1.bf16.xpose.msra.mxu0 0
  %731 = vmatprep.subr.bf16.mxu0 0
  %732 = vmatpush1.bf16.xpose.msra.mxu0 0
  %733 = vmatprep.subr.bf16.mxu0 0
  %734 = vmatpush1.bf16.xpose.msra.mxu0 0
  %735 = vmatprep.subr.bf16.mxu0 0
  %736 = vmatpush1.bf16.xpose.msra.mxu0 0
  %737 = vmatprep.subr.bf16.mxu0 0
  %738 = vmatpush1.bf16.xpose.msra.mxu0 0
  %739 = vmatprep.subr.bf16.mxu0 0
  %740 = vmatpush1.bf16.xpose.msra.mxu0 0
  %741 = vmatprep.subr.bf16.mxu0 0
  %742 = vmatpush1.bf16.xpose.msra.mxu0 %v725
  %743 = vmatprep.subr.bf16.mxu0 0
  %744 = vmatpush2.bf16.xpose.msra.mxu0 0
  %745 = vmatprep.subr.bf16.mxu0 0
  %746 = vmatpush2.bf16.xpose.msra.mxu0 0
  %747 = vmatprep.subr.bf16.mxu0 0
  %748 = vmatpush2.bf16.xpose.msra.mxu0 0
  %749 = vmatprep.subr.bf16.mxu0 0
  %750 = vmatpush2.bf16.xpose.msra.mxu0 0
  %751 = vmatprep.subr.bf16.mxu0 0
  %752 = vmatpush2.bf16.xpose.msra.mxu0 0
  %753 = vmatprep.subr.bf16.mxu0 0
  %754 = vmatpush2.bf16.xpose.msra.mxu0 0
  %755 = vmatprep.subr.bf16.mxu0 0
  %756 = vmatpush2.bf16.xpose.msra.mxu0 0
  %757 = vmatprep.subr.bf16.mxu0 0
  %758 = vmatpush2.bf16.xpose.msra.mxu0 0
  %759 = vmatprep.mubr.bf16.mxu0 0
  %760 = vmatmul.mubr.bf16.gmra.mxu0 %v722
  %v761 = vpop.f32.mrf.mxu0
  %v762 = vadd.f32 0.0, %v761
  %v763 = vpop.f32.mrf.mxu0
  %v764 = vpop.f32.mrf.mxu0
  %v765 = vpop.f32.mrf.mxu0
  %766 = vdwg.mxu0
  %v768 = vsel %vm62, %v716, 0
  %v771 = vsel %vm62, %v718, 0
  %773 = vmatprep.subr.bf16.mxu0 0
  %774 = vmatpush1.bf16.xpose.msra.mxu0 0
  %775 = vmatprep.subr.bf16.mxu0 0
  %776 = vmatpush1.bf16.xpose.msra.mxu0 0
  %777 = vmatprep.subr.bf16.mxu0 0
  %778 = vmatpush1.bf16.xpose.msra.mxu0 0
  %779 = vmatprep.subr.bf16.mxu0 0
  %780 = vmatpush1.bf16.xpose.msra.mxu0 0
  %781 = vmatprep.subr.bf16.mxu0 0
  %782 = vmatpush1.bf16.xpose.msra.mxu0 0
  %783 = vmatprep.subr.bf16.mxu0 0
  %784 = vmatpush1.bf16.xpose.msra.mxu0 0
  %785 = vmatprep.subr.bf16.mxu0 0
  %786 = vmatpush1.bf16.xpose.msra.mxu0 0
  %787 = vmatprep.subr.bf16.mxu0 0
  %788 = vmatpush1.bf16.xpose.msra.mxu0 %v771
  %789 = vmatprep.subr.bf16.mxu0 0
  %790 = vmatpush2.bf16.xpose.msra.mxu0 0
  %791 = vmatprep.subr.bf16.mxu0 0
  %792 = vmatpush2.bf16.xpose.msra.mxu0 0
  %793 = vmatprep.subr.bf16.mxu0 0
  %794 = vmatpush2.bf16.xpose.msra.mxu0 0
  %795 = vmatprep.subr.bf16.mxu0 0
  %796 = vmatpush2.bf16.xpose.msra.mxu0 0
  %797 = vmatprep.subr.bf16.mxu0 0
  %798 = vmatpush2.bf16.xpose.msra.mxu0 0
  %799 = vmatprep.subr.bf16.mxu0 0
  %800 = vmatpush2.bf16.xpose.msra.mxu0 0
  %801 = vmatprep.subr.bf16.mxu0 0
  %802 = vmatpush2.bf16.xpose.msra.mxu0 0
  %803 = vmatprep.subr.bf16.mxu0 0
  %804 = vmatpush2.bf16.xpose.msra.mxu0 0
  %805 = vmatprep.mubr.bf16.mxu0 0
  %806 = vmatmul.mubr.bf16.gmra.mxu0 %v768
  %v807 = vpop.f32.mrf.mxu0
  %v808 = vadd.f32 0.0, %v807
  %v809 = vpop.f32.mrf.mxu0
  %v810 = vpop.f32.mrf.mxu0
  %v811 = vpop.f32.mrf.mxu0
  %812 = vdwg.mxu0
  %v813 = vmul.f32 %v762, 0.35355338
  %v814 = vmul.f32 %v808, 0.35355338
  %v815 = vsel %vm62, %v813, -inf
  %816 = vmax.xlane.f32.xlu0 %v815
  %v817 = vpop.xlane.xlu0 %816
  %v818 = vsel %vm62, %v814, -inf
  %819 = vmax.xlane.f32.xlu0 %v818
  %v820 = vpop.xlane.xlu0 %819
  %v821 = vsub.f32 %v813, %v817
  %v822 = vsub.f32 %v814, %v820
  %v823 = vmul.f32 %v821, 1.442695
  %v824 = vpow.pop %v823
  %v825 = vmul.f32 %v822, 1.442695
  %v826 = vpow.pop %v825
  %v827 = vsel %vm62, %v824, 0.0
  %828 = vadd.xlane.f32.xlu0 %v827
  %v829 = vpop.xlane.xlu0 %828
  %v830 = vsel %vm62, %v826, 0.0
  %831 = vadd.xlane.f32.xlu0 %v830
  %v832 = vpop.xlane.xlu0 %831
  %v833 = vrcp.pop %v829
  %v834 = vrcp.pop %v832
  %v835 = vmul.f32 %v824, %v833
  %v836 = vmul.f32 %v826, %v834
  %v837 = vpack.c.bf16 %v835, %v835
  %v838 = vpack.c.bf16 %v836, %v836
  %v840 = vsel %vm62, %v837, 0
  %v843 = vsel %vm66, %v719, 0
  %845 = vmatprep.subr.bf16.mxu0 0
  %846 = vmatpush1.bf16.msra.mxu0 0
  %847 = vmatprep.subr.bf16.mxu0 0
  %848 = vmatpush1.bf16.msra.mxu0 0
  %849 = vmatprep.subr.bf16.mxu0 0
  %850 = vmatpush1.bf16.msra.mxu0 0
  %851 = vmatprep.subr.bf16.mxu0 0
  %852 = vmatpush1.bf16.msra.mxu0 0
  %853 = vmatprep.subr.bf16.mxu0 0
  %854 = vmatpush1.bf16.msra.mxu0 0
  %855 = vmatprep.subr.bf16.mxu0 0
  %856 = vmatpush1.bf16.msra.mxu0 0
  %857 = vmatprep.subr.bf16.mxu0 0
  %858 = vmatpush1.bf16.msra.mxu0 0
  %859 = vmatprep.subr.bf16.mxu0 0
  %860 = vmatpush1.bf16.msra.mxu0 %v843
  %861 = vmatprep.subr.bf16.mxu0 0
  %862 = vmatpush2.bf16.msra.mxu0 0
  %863 = vmatprep.subr.bf16.mxu0 0
  %864 = vmatpush2.bf16.msra.mxu0 0
  %865 = vmatprep.subr.bf16.mxu0 0
  %866 = vmatpush2.bf16.msra.mxu0 0
  %867 = vmatprep.subr.bf16.mxu0 0
  %868 = vmatpush2.bf16.msra.mxu0 0
  %869 = vmatprep.subr.bf16.mxu0 0
  %870 = vmatpush2.bf16.msra.mxu0 0
  %871 = vmatprep.subr.bf16.mxu0 0
  %872 = vmatpush2.bf16.msra.mxu0 0
  %873 = vmatprep.subr.bf16.mxu0 0
  %874 = vmatpush2.bf16.msra.mxu0 0
  %875 = vmatprep.subr.bf16.mxu0 0
  %876 = vmatpush2.bf16.msra.mxu0 0
  %877 = vmatprep.mubr.bf16.mxu0 0
  %878 = vmatmul.mubr.bf16.gmra.mxu0 %v840
  %v879 = vpop.f32.mrf.mxu0
  %v880 = vadd.f32 0.0, %v879
  %v881 = vpop.f32.mrf.mxu0
  %v882 = vpop.f32.mrf.mxu0
  %v883 = vpop.f32.mrf.mxu0
  %884 = vdwg.mxu0
  %v886 = vsel %vm62, %v838, 0
  %v889 = vsel %vm66, %v720, 0
  %891 = vmatprep.subr.bf16.mxu0 0
  %892 = vmatpush1.bf16.msra.mxu0 0
  %893 = vmatprep.subr.bf16.mxu0 0
  %894 = vmatpush1.bf16.msra.mxu0 0
  %895 = vmatprep.subr.bf16.mxu0 0
  %896 = vmatpush1.bf16.msra.mxu0 0
  %897 = vmatprep.subr.bf16.mxu0 0
  %898 = vmatpush1.bf16.msra.mxu0 0
  %899 = vmatprep.subr.bf16.mxu0 0
  %900 = vmatpush1.bf16.msra.mxu0 0
  %901 = vmatprep.subr.bf16.mxu0 0
  %902 = vmatpush1.bf16.msra.mxu0 0
  %903 = vmatprep.subr.bf16.mxu0 0
  %904 = vmatpush1.bf16.msra.mxu0 0
  %905 = vmatprep.subr.bf16.mxu0 0
  %906 = vmatpush1.bf16.msra.mxu0 %v889
  %907 = vmatprep.subr.bf16.mxu0 0
  %908 = vmatpush2.bf16.msra.mxu0 0
  %909 = vmatprep.subr.bf16.mxu0 0
  %910 = vmatpush2.bf16.msra.mxu0 0
  %911 = vmatprep.subr.bf16.mxu0 0
  %912 = vmatpush2.bf16.msra.mxu0 0
  %913 = vmatprep.subr.bf16.mxu0 0
  %914 = vmatpush2.bf16.msra.mxu0 0
  %915 = vmatprep.subr.bf16.mxu0 0
  %916 = vmatpush2.bf16.msra.mxu0 0
  %917 = vmatprep.subr.bf16.mxu0 0
  %918 = vmatpush2.bf16.msra.mxu0 0
  %919 = vmatprep.subr.bf16.mxu0 0
  %920 = vmatpush2.bf16.msra.mxu0 0
  %921 = vmatprep.subr.bf16.mxu0 0
  %922 = vmatpush2.bf16.msra.mxu0 0
  %923 = vmatprep.mubr.bf16.mxu0 0
  %924 = vmatmul.mubr.bf16.gmra.mxu0 %v886
  %v925 = vpop.f32.mrf.mxu0
  %v926 = vadd.f32 0.0, %v925
  %v927 = vpop.f32.mrf.mxu0
  %v928 = vpop.f32.mrf.mxu0
  %v929 = vpop.f32.mrf.mxu0
  %930 = vdwg.mxu0
  %v931 = vpack.c.bf16 %v926, %v880
  %s932 = scalar_lea.vmem %s7, 4
  %v933 = vld [vmem:[%s932] sm:$0xf]
  %v935 = vsel %vm62, %v931, 0
  %v938 = vsel %vm66, %v933, 0
  %940 = vmatprep.subr.bf16.mxu0 0
  %941 = vmatpush1.bf16.msra.mxu0 0
  %942 = vmatprep.subr.bf16.mxu0 0
  %943 = vmatpush1.bf16.msra.mxu0 0
  %944 = vmatprep.subr.bf16.mxu0 0
  %945 = vmatpush1.bf16.msra.mxu0 0
  %946 = vmatprep.subr.bf16.mxu0 0
  %947 = vmatpush1.bf16.msra.mxu0 0
  %948 = vmatprep.subr.bf16.mxu0 0
  %949 = vmatpush1.bf16.msra.mxu0 0
  %950 = vmatprep.subr.bf16.mxu0 0
  %951 = vmatpush1.bf16.msra.mxu0 0
  %952 = vmatprep.subr.bf16.mxu0 0
  %953 = vmatpush1.bf16.msra.mxu0 0
  %954 = vmatprep.subr.bf16.mxu0 0
  %955 = vmatpush1.bf16.msra.mxu0 %v938
  %956 = vmatprep.subr.bf16.mxu0 0
  %957 = vmatpush2.bf16.msra.mxu0 0
  %958 = vmatprep.subr.bf16.mxu0 0
  %959 = vmatpush2.bf16.msra.mxu0 0
  %960 = vmatprep.subr.bf16.mxu0 0
  %961 = vmatpush2.bf16.msra.mxu0 0
  %962 = vmatprep.subr.bf16.mxu0 0
  %963 = vmatpush2.bf16.msra.mxu0 0
  %964 = vmatprep.subr.bf16.mxu0 0
  %965 = vmatpush2.bf16.msra.mxu0 0
  %966 = vmatprep.subr.bf16.mxu0 0
  %967 = vmatpush2.bf16.msra.mxu0 0
  %968 = vmatprep.subr.bf16.mxu0 0
  %969 = vmatpush2.bf16.msra.mxu0 0
  %970 = vmatprep.subr.bf16.mxu0 0
  %971 = vmatpush2.bf16.msra.mxu0 0
  %972 = vmatprep.mubr.bf16.mxu0 0
  %973 = vmatmul.mubr.bf16.gmra.mxu0 %v935
  %v974 = vpop.f32.mrf.mxu0
  %v975 = vadd.f32 0.0, %v974
  %v976 = vpop.f32.mrf.mxu0
  %v977 = vpop.f32.mrf.mxu0
  %v978 = vadd.f32 0.0, %v977
  %v979 = vpop.f32.mrf.mxu0
  %980 = vdwg.mxu0
  %v982 = vsel %vm62, %v525, 0
  %v985 = vsel %vm66, %v526, 0
  %987 = vmatprep.subr.bf16.mxu0 0
  %988 = vmatpush1.bf16.msra.mxu0 0
  %989 = vmatprep.subr.bf16.mxu0 0
  %990 = vmatpush1.bf16.msra.mxu0 0
  %991 = vmatprep.subr.bf16.mxu0 0
  %992 = vmatpush1.bf16.msra.mxu0 0
  %993 = vmatprep.subr.bf16.mxu0 0
  %994 = vmatpush1.bf16.msra.mxu0 0
  %995 = vmatprep.subr.bf16.mxu0 0
  %996 = vmatpush1.bf16.msra.mxu0 0
  %997 = vmatprep.subr.bf16.mxu0 0
  %998 = vmatpush1.bf16.msra.mxu0 0
  %999 = vmatprep.subr.bf16.mxu0 0
  %1000 = vmatpush1.bf16.msra.mxu0 0
  %1001 = vmatprep.subr.bf16.mxu0 0
  %1002 = vmatpush1.bf16.msra.mxu0 %v985
  %1003 = vmatprep.subr.bf16.mxu0 0
  %1004 = vmatpush2.bf16.msra.mxu0 0
  %1005 = vmatprep.subr.bf16.mxu0 0
  %1006 = vmatpush2.bf16.msra.mxu0 0
  %1007 = vmatprep.subr.bf16.mxu0 0
  %1008 = vmatpush2.bf16.msra.mxu0 0
  %1009 = vmatprep.subr.bf16.mxu0 0
  %1010 = vmatpush2.bf16.msra.mxu0 0
  %1011 = vmatprep.subr.bf16.mxu0 0
  %1012 = vmatpush2.bf16.msra.mxu0 0
  %1013 = vmatprep.subr.bf16.mxu0 0
  %1014 = vmatpush2.bf16.msra.mxu0 0
  %1015 = vmatprep.subr.bf16.mxu0 0
  %1016 = vmatpush2.bf16.msra.mxu0 0
  %1017 = vmatprep.subr.bf16.mxu0 0
  %1018 = vmatpush2.bf16.msra.mxu0 0
  %1019 = vmatprep.mubr.bf16.mxu0 0
  %1020 = vmatmul.mubr.bf16.gmra.mxu0 %v982
  %v1021 = vpop.f32.mrf.mxu0
  %v1022 = vadd.f32 %v975, %v1021
  %v1023 = vpop.f32.mrf.mxu0
  %v1024 = vpop.f32.mrf.mxu0
  %v1025 = vadd.f32 %v978, %v1024
  %v1026 = vpop.f32.mrf.mxu0
  %1027 = vdwg.mxu0
  %s1028 = scalar_lea.vmem %s8, 8
  %v1029 = vld [vmem:[%s1028] sm:$0x7]
  %s1030 = scalar_lea.vmem %s4, 32
  %v1031 = vld [vmem:[%s1030] sm:$0xf]
  %v1032 = vld [vmem:[%s1030 + $0x4] sm:$0xf]
  %v1033 = vld [vmem:[%s1030 + $0x8] sm:$0xf]
  %v1034 = vld [vmem:[%s1030 + $0xc] sm:$0xf]
  %v1035 = vlaneseq
  %v1036 = vshrl.u32 %v1035, 7
  %v1037 = vsub.s32 0, %v1036
  %v1038 = vrot.slane %v1029, %v1037
  %v1043 = vunpack.c.l.b16 %v1031
  %v1044 = vunpack.c.l.b16 %v1032
  %v1045 = vunpack.c.l.b16 %v1033
  %v1046 = vunpack.c.l.b16 %v1034
  %v1047 = vpack.c.b16 %v1044, %v1043
  %v1048 = vpack.c.b16 %v1046, %v1045
  %1051 = vmatprep.subr.bf16.mxu0 0
  %1052 = vmatpush1.bf16.msra.mxu0 0
  %1053 = vmatprep.subr.bf16.mxu0 0
  %1054 = vmatpush1.bf16.msra.mxu0 0
  %1055 = vmatprep.subr.bf16.mxu0 0
  %1056 = vmatpush1.bf16.msra.mxu0 0
  %1057 = vmatprep.subr.bf16.mxu0 0
  %1058 = vmatpush1.bf16.msra.mxu0 0
  %1059 = vmatprep.subr.bf16.mxu0 0
  %1060 = vmatpush1.bf16.msra.mxu0 0
  %1061 = vmatprep.subr.bf16.mxu0 0
  %1062 = vmatpush1.bf16.msra.mxu0 0
  %1063 = vmatprep.subr.bf16.mxu0 0
  %1064 = vmatpush1.bf16.msra.mxu0 %v1048
  %1065 = vmatprep.subr.bf16.mxu0 0
  %1066 = vmatpush1.bf16.msra.mxu0 %v1047
  %1067 = vmatprep.subr.bf16.mxu0 0
  %1068 = vmatpush2.bf16.msra.mxu0 0
  %1069 = vmatprep.subr.bf16.mxu0 0
  %1070 = vmatpush2.bf16.msra.mxu0 0
  %1071 = vmatprep.subr.bf16.mxu0 0
  %1072 = vmatpush2.bf16.msra.mxu0 0
  %1073 = vmatprep.subr.bf16.mxu0 0
  %1074 = vmatpush2.bf16.msra.mxu0 0
  %1075 = vmatprep.subr.bf16.mxu0 0
  %1076 = vmatpush2.bf16.msra.mxu0 0
  %1077 = vmatprep.subr.bf16.mxu0 0
  %1078 = vmatpush2.bf16.msra.mxu0 0
  %1079 = vmatprep.subr.bf16.mxu0 0
  %1080 = vmatpush2.bf16.msra.mxu0 0
  %1081 = vmatprep.subr.bf16.mxu0 0
  %1082 = vmatpush2.bf16.msra.mxu0 0
  %1083 = vmatprep.mubr.bf16.mxu0 0
  %1084 = vmatmul.mubr.bf16.gmra.mxu0 %v144
  %v1085 = vpop.f32.mrf.mxu0
  %v1086 = vadd.f32 %v1038, %v1085
  %v1087 = vpop.f32.mrf.mxu0
  %v1088 = vpop.f32.mrf.mxu0
  %v1089 = vadd.f32 %v1038, %v1088
  %v1090 = vpop.f32.mrf.mxu0
  %1091 = vdwg.mxu0
  %s1092 = scalar_lea.vmem %s5, 32
  %v1093 = vld [vmem:[%s1092] sm:$0xf]
  %v1094 = vld [vmem:[%s1092 + $0x4] sm:$0xf]
  %v1095 = vld [vmem:[%s1092 + $0x8] sm:$0xf]
  %v1096 = vld [vmem:[%s1092 + $0xc] sm:$0xf]
  %v1097 = vlaneseq
  %v1098 = vshrl.u32 %v1097, 7
  %v1099 = vsub.s32 1, %v1098
  %v1100 = vrot.slane %v1029, %v1099
  %v1105 = vunpack.c.l.b16 %v1093
  %v1106 = vunpack.c.l.b16 %v1094
  %v1107 = vunpack.c.l.b16 %v1095
  %v1108 = vunpack.c.l.b16 %v1096
  %v1109 = vpack.c.b16 %v1106, %v1105
  %v1110 = vpack.c.b16 %v1108, %v1107
  %1113 = vmatprep.subr.bf16.mxu0 0
  %1114 = vmatpush1.bf16.msra.mxu0 0
  %1115 = vmatprep.subr.bf16.mxu0 0
  %1116 = vmatpush1.bf16.msra.mxu0 0
  %1117 = vmatprep.subr.bf16.mxu0 0
  %1118 = vmatpush1.bf16.msra.mxu0 0
  %1119 = vmatprep.subr.bf16.mxu0 0
  %1120 = vmatpush1.bf16.msra.mxu0 0
  %1121 = vmatprep.subr.bf16.mxu0 0
  %1122 = vmatpush1.bf16.msra.mxu0 0
  %1123 = vmatprep.subr.bf16.mxu0 0
  %1124 = vmatpush1.bf16.msra.mxu0 0
  %1125 = vmatprep.subr.bf16.mxu0 0
  %1126 = vmatpush1.bf16.msra.mxu0 %v1110
  %1127 = vmatprep.subr.bf16.mxu0 0
  %1128 = vmatpush1.bf16.msra.mxu0 %v1109
  %1129 = vmatprep.subr.bf16.mxu0 0
  %1130 = vmatpush2.bf16.msra.mxu0 0
  %1131 = vmatprep.subr.bf16.mxu0 0
  %1132 = vmatpush2.bf16.msra.mxu0 0
  %1133 = vmatprep.subr.bf16.mxu0 0
  %1134 = vmatpush2.bf16.msra.mxu0 0
  %1135 = vmatprep.subr.bf16.mxu0 0
  %1136 = vmatpush2.bf16.msra.mxu0 0
  %1137 = vmatprep.subr.bf16.mxu0 0
  %1138 = vmatpush2.bf16.msra.mxu0 0
  %1139 = vmatprep.subr.bf16.mxu0 0
  %1140 = vmatpush2.bf16.msra.mxu0 0
  %1141 = vmatprep.subr.bf16.mxu0 0
  %1142 = vmatpush2.bf16.msra.mxu0 0
  %1143 = vmatprep.subr.bf16.mxu0 0
  %1144 = vmatpush2.bf16.msra.mxu0 0
  %1145 = vmatprep.mubr.bf16.mxu0 0
  %1146 = vmatmul.mubr.bf16.gmra.mxu0 %v144
  %v1147 = vpop.f32.mrf.mxu0
  %v1148 = vadd.f32 %v1100, %v1147
  %v1149 = vpop.f32.mrf.mxu0
  %v1150 = vpop.f32.mrf.mxu0
  %v1151 = vadd.f32 %v1100, %v1150
  %v1152 = vpop.f32.mrf.mxu0
  %1153 = vdwg.mxu0
  %s1154 = scalar_lea.vmem %s6, 32
  %v1155 = vld [vmem:[%s1154] sm:$0xf]
  %v1156 = vld [vmem:[%s1154 + $0x4] sm:$0xf]
  %v1157 = vld [vmem:[%s1154 + $0x8] sm:$0xf]
  %v1158 = vld [vmem:[%s1154 + $0xc] sm:$0xf]
  %v1159 = vlaneseq
  %v1160 = vshrl.u32 %v1159, 7
  %v1161 = vsub.s32 2, %v1160
  %v1162 = vrot.slane %v1029, %v1161
  %v1167 = vunpack.c.l.b16 %v1155
  %v1168 = vunpack.c.l.b16 %v1156
  %v1169 = vunpack.c.l.b16 %v1157
  %v1170 = vunpack.c.l.b16 %v1158
  %v1171 = vpack.c.b16 %v1168, %v1167
  %v1172 = vpack.c.b16 %v1170, %v1169
  %1175 = vmatprep.subr.bf16.mxu0 0
  %1176 = vmatpush1.bf16.msra.mxu0 0
  %1177 = vmatprep.subr.bf16.mxu0 0
  %1178 = vmatpush1.bf16.msra.mxu0 0
  %1179 = vmatprep.subr.bf16.mxu0 0
  %1180 = vmatpush1.bf16.msra.mxu0 0
  %1181 = vmatprep.subr.bf16.mxu0 0
  %1182 = vmatpush1.bf16.msra.mxu0 0
  %1183 = vmatprep.subr.bf16.mxu0 0
  %1184 = vmatpush1.bf16.msra.mxu0 0
  %1185 = vmatprep.subr.bf16.mxu0 0
  %1186 = vmatpush1.bf16.msra.mxu0 0
  %1187 = vmatprep.subr.bf16.mxu0 0
  %1188 = vmatpush1.bf16.msra.mxu0 %v1172
  %1189 = vmatprep.subr.bf16.mxu0 0
  %1190 = vmatpush1.bf16.msra.mxu0 %v1171
  %1191 = vmatprep.subr.bf16.mxu0 0
  %1192 = vmatpush2.bf16.msra.mxu0 0
  %1193 = vmatprep.subr.bf16.mxu0 0
  %1194 = vmatpush2.bf16.msra.mxu0 0
  %1195 = vmatprep.subr.bf16.mxu0 0
  %1196 = vmatpush2.bf16.msra.mxu0 0
  %1197 = vmatprep.subr.bf16.mxu0 0
  %1198 = vmatpush2.bf16.msra.mxu0 0
  %1199 = vmatprep.subr.bf16.mxu0 0
  %1200 = vmatpush2.bf16.msra.mxu0 0
  %1201 = vmatprep.subr.bf16.mxu0 0
  %1202 = vmatpush2.bf16.msra.mxu0 0
  %1203 = vmatprep.subr.bf16.mxu0 0
  %1204 = vmatpush2.bf16.msra.mxu0 0
  %1205 = vmatprep.subr.bf16.mxu0 0
  %1206 = vmatpush2.bf16.msra.mxu0 0
  %1207 = vmatprep.mubr.bf16.mxu0 0
  %1208 = vmatmul.mubr.bf16.gmra.mxu0 %v144
  %v1209 = vpop.f32.mrf.mxu0
  %v1210 = vadd.f32 %v1162, %v1209
  %v1211 = vpop.f32.mrf.mxu0
  %v1212 = vpop.f32.mrf.mxu0
  %v1213 = vadd.f32 %v1162, %v1212
  %v1214 = vpop.f32.mrf.mxu0
  %1215 = vdwg.mxu0
  %v1216 = vpack.c.bf16 %v1086, %v1086
  %v1217 = vpack.c.bf16 %v1089, %v1089
  %v1218 = vpack.c.bf16 %v1148, %v1148
  %v1219 = vpack.c.bf16 %v1151, %v1151
  %v1220 = vpack.c.bf16 %v1210, %v1210
  %v1221 = vpack.c.bf16 %v1213, %v1213
  %v1223 = vsel %vm62, %v1216, 0
  %v1226 = vsel %vm62, %v1218, 0
  %1228 = vmatprep.subr.bf16.mxu0 0
  %1229 = vmatpush1.bf16.xpose.msra.mxu0 0
  %1230 = vmatprep.subr.bf16.mxu0 0
  %1231 = vmatpush1.bf16.xpose.msra.mxu0 0
  %1232 = vmatprep.subr.bf16.mxu0 0
  %1233 = vmatpush1.bf16.xpose.msra.mxu0 0
  %1234 = vmatprep.subr.bf16.mxu0 0
  %1235 = vmatpush1.bf16.xpose.msra.mxu0 0
  %1236 = vmatprep.subr.bf16.mxu0 0
  %1237 = vmatpush1.bf16.xpose.msra.mxu0 0
  %1238 = vmatprep.subr.bf16.mxu0 0
  %1239 = vmatpush1.bf16.xpose.msra.mxu0 0
  %1240 = vmatprep.subr.bf16.mxu0 0
  %1241 = vmatpush1.bf16.xpose.msra.mxu0 0
  %1242 = vmatprep.subr.bf16.mxu0 0
  %1243 = vmatpush1.bf16.xpose.msra.mxu0 %v1226
  %1244 = vmatprep.subr.bf16.mxu0 0
  %1245 = vmatpush2.bf16.xpose.msra.mxu0 0
  %1246 = vmatprep.subr.bf16.mxu0 0
  %1247 = vmatpush2.bf16.xpose.msra.mxu0 0
  %1248 = vmatprep.subr.bf16.mxu0 0
  %1249 = vmatpush2.bf16.xpose.msra.mxu0 0
  %1250 = vmatprep.subr.bf16.mxu0 0
  %1251 = vmatpush2.bf16.xpose.msra.mxu0 0
  %1252 = vmatprep.subr.bf16.mxu0 0
  %1253 = vmatpush2.bf16.xpose.msra.mxu0 0
  %1254 = vmatprep.subr.bf16.mxu0 0
  %1255 = vmatpush2.bf16.xpose.msra.mxu0 0
  %1256 = vmatprep.subr.bf16.mxu0 0
  %1257 = vmatpush2.bf16.xpose.msra.mxu0 0
  %1258 = vmatprep.subr.bf16.mxu0 0
  %1259 = vmatpush2.bf16.xpose.msra.mxu0 0
  %1260 = vmatprep.mubr.bf16.mxu0 0
  %1261 = vmatmul.mubr.bf16.gmra.mxu0 %v1223
  %v1262 = vpop.f32.mrf.mxu0
  %v1263 = vadd.f32 0.0, %v1262
  %v1264 = vpop.f32.mrf.mxu0
  %v1265 = vpop.f32.mrf.mxu0
  %v1266 = vpop.f32.mrf.mxu0
  %1267 = vdwg.mxu0
  %v1269 = vsel %vm62, %v1217, 0
  %v1272 = vsel %vm62, %v1219, 0
  %1274 = vmatprep.subr.bf16.mxu0 0
  %1275 = vmatpush1.bf16.xpose.msra.mxu0 0
  %1276 = vmatprep.subr.bf16.mxu0 0
  %1277 = vmatpush1.bf16.xpose.msra.mxu0 0
  %1278 = vmatprep.subr.bf16.mxu0 0
  %1279 = vmatpush1.bf16.xpose.msra.mxu0 0
  %1280 = vmatprep.subr.bf16.mxu0 0
  %1281 = vmatpush1.bf16.xpose.msra.mxu0 0
  %1282 = vmatprep.subr.bf16.mxu0 0
  %1283 = vmatpush1.bf16.xpose.msra.mxu0 0
  %1284 = vmatprep.subr.bf16.mxu0 0
  %1285 = vmatpush1.bf16.xpose.msra.mxu0 0
  %1286 = vmatprep.subr.bf16.mxu0 0
  %1287 = vmatpush1.bf16.xpose.msra.mxu0 0
  %1288 = vmatprep.subr.bf16.mxu0 0
  %1289 = vmatpush1.bf16.xpose.msra.mxu0 %v1272
  %1290 = vmatprep.subr.bf16.mxu0 0
  %1291 = vmatpush2.bf16.xpose.msra.mxu0 0
  %1292 = vmatprep.subr.bf16.mxu0 0
  %1293 = vmatpush2.bf16.xpose.msra.mxu0 0
  %1294 = vmatprep.subr.bf16.mxu0 0
  %1295 = vmatpush2.bf16.xpose.msra.mxu0 0
  %1296 = vmatprep.subr.bf16.mxu0 0
  %1297 = vmatpush2.bf16.xpose.msra.mxu0 0
  %1298 = vmatprep.subr.bf16.mxu0 0
  %1299 = vmatpush2.bf16.xpose.msra.mxu0 0
  %1300 = vmatprep.subr.bf16.mxu0 0
  %1301 = vmatpush2.bf16.xpose.msra.mxu0 0
  %1302 = vmatprep.subr.bf16.mxu0 0
  %1303 = vmatpush2.bf16.xpose.msra.mxu0 0
  %1304 = vmatprep.subr.bf16.mxu0 0
  %1305 = vmatpush2.bf16.xpose.msra.mxu0 0
  %1306 = vmatprep.mubr.bf16.mxu0 0
  %1307 = vmatmul.mubr.bf16.gmra.mxu0 %v1269
  %v1308 = vpop.f32.mrf.mxu0
  %v1309 = vadd.f32 0.0, %v1308
  %v1310 = vpop.f32.mrf.mxu0
  %v1311 = vpop.f32.mrf.mxu0
  %v1312 = vpop.f32.mrf.mxu0
  %1313 = vdwg.mxu0
  %v1314 = vmul.f32 %v1263, 0.35355338
  %v1315 = vmul.f32 %v1309, 0.35355338
  %v1316 = vsel %vm62, %v1314, -inf
  %1317 = vmax.xlane.f32.xlu0 %v1316
  %v1318 = vpop.xlane.xlu0 %1317
  %v1319 = vsel %vm62, %v1315, -inf
  %1320 = vmax.xlane.f32.xlu0 %v1319
  %v1321 = vpop.xlane.xlu0 %1320
  %v1322 = vsub.f32 %v1314, %v1318
  %v1323 = vsub.f32 %v1315, %v1321
  %v1324 = vmul.f32 %v1322, 1.442695
  %v1325 = vpow.pop %v1324
  %v1326 = vmul.f32 %v1323, 1.442695
  %v1327 = vpow.pop %v1326
  %v1328 = vsel %vm62, %v1325, 0.0
  %1329 = vadd.xlane.f32.xlu0 %v1328
  %v1330 = vpop.xlane.xlu0 %1329
  %v1331 = vsel %vm62, %v1327, 0.0
  %1332 = vadd.xlane.f32.xlu0 %v1331
  %v1333 = vpop.xlane.xlu0 %1332
  %v1334 = vrcp.pop %v1330
  %v1335 = vrcp.pop %v1333
  %v1336 = vmul.f32 %v1325, %v1334
  %v1337 = vmul.f32 %v1327, %v1335
  %v1338 = vpack.c.bf16 %v1336, %v1336
  %v1339 = vpack.c.bf16 %v1337, %v1337
  %v1341 = vsel %vm62, %v1338, 0
  %v1344 = vsel %vm66, %v1220, 0
  %1346 = vmatprep.subr.bf16.mxu0 0
  %1347 = vmatpush1.bf16.msra.mxu0 0
  %1348 = vmatprep.subr.bf16.mxu0 0
  %1349 = vmatpush1.bf16.msra.mxu0 0
  %1350 = vmatprep.subr.bf16.mxu0 0
  %1351 = vmatpush1.bf16.msra.mxu0 0
  %1352 = vmatprep.subr.bf16.mxu0 0
  %1353 = vmatpush1.bf16.msra.mxu0 0
  %1354 = vmatprep.subr.bf16.mxu0 0
  %1355 = vmatpush1.bf16.msra.mxu0 0
  %1356 = vmatprep.subr.bf16.mxu0 0
  %1357 = vmatpush1.bf16.msra.mxu0 0
  %1358 = vmatprep.subr.bf16.mxu0 0
  %1359 = vmatpush1.bf16.msra.mxu0 0
  %1360 = vmatprep.subr.bf16.mxu0 0
  %1361 = vmatpush1.bf16.msra.mxu0 %v1344
  %1362 = vmatprep.subr.bf16.mxu0 0
  %1363 = vmatpush2.bf16.msra.mxu0 0
  %1364 = vmatprep.subr.bf16.mxu0 0
  %1365 = vmatpush2.bf16.msra.mxu0 0
  %1366 = vmatprep.subr.bf16.mxu0 0
  %1367 = vmatpush2.bf16.msra.mxu0 0
  %1368 = vmatprep.subr.bf16.mxu0 0
  %1369 = vmatpush2.bf16.msra.mxu0 0
  %1370 = vmatprep.subr.bf16.mxu0 0
  %1371 = vmatpush2.bf16.msra.mxu0 0
  %1372 = vmatprep.subr.bf16.mxu0 0
  %1373 = vmatpush2.bf16.msra.mxu0 0
  %1374 = vmatprep.subr.bf16.mxu0 0
  %1375 = vmatpush2.bf16.msra.mxu0 0
  %1376 = vmatprep.subr.bf16.mxu0 0
  %1377 = vmatpush2.bf16.msra.mxu0 0
  %1378 = vmatprep.mubr.bf16.mxu0 0
  %1379 = vmatmul.mubr.bf16.gmra.mxu0 %v1341
  %v1380 = vpop.f32.mrf.mxu0
  %v1381 = vadd.f32 0.0, %v1380
  %v1382 = vpop.f32.mrf.mxu0
  %v1383 = vpop.f32.mrf.mxu0
  %v1384 = vpop.f32.mrf.mxu0
  %1385 = vdwg.mxu0
  %v1387 = vsel %vm62, %v1339, 0
  %v1390 = vsel %vm66, %v1221, 0
  %1392 = vmatprep.subr.bf16.mxu0 0
  %1393 = vmatpush1.bf16.msra.mxu0 0
  %1394 = vmatprep.subr.bf16.mxu0 0
  %1395 = vmatpush1.bf16.msra.mxu0 0
  %1396 = vmatprep.subr.bf16.mxu0 0
  %1397 = vmatpush1.bf16.msra.mxu0 0
  %1398 = vmatprep.subr.bf16.mxu0 0
  %1399 = vmatpush1.bf16.msra.mxu0 0
  %1400 = vmatprep.subr.bf16.mxu0 0
  %1401 = vmatpush1.bf16.msra.mxu0 0
  %1402 = vmatprep.subr.bf16.mxu0 0
  %1403 = vmatpush1.bf16.msra.mxu0 0
  %1404 = vmatprep.subr.bf16.mxu0 0
  %1405 = vmatpush1.bf16.msra.mxu0 0
  %1406 = vmatprep.subr.bf16.mxu0 0
  %1407 = vmatpush1.bf16.msra.mxu0 %v1390
  %1408 = vmatprep.subr.bf16.mxu0 0
  %1409 = vmatpush2.bf16.msra.mxu0 0
  %1410 = vmatprep.subr.bf16.mxu0 0
  %1411 = vmatpush2.bf16.msra.mxu0 0
  %1412 = vmatprep.subr.bf16.mxu0 0
  %1413 = vmatpush2.bf16.msra.mxu0 0
  %1414 = vmatprep.subr.bf16.mxu0 0
  %1415 = vmatpush2.bf16.msra.mxu0 0
  %1416 = vmatprep.subr.bf16.mxu0 0
  %1417 = vmatpush2.bf16.msra.mxu0 0
  %1418 = vmatprep.subr.bf16.mxu0 0
  %1419 = vmatpush2.bf16.msra.mxu0 0
  %1420 = vmatprep.subr.bf16.mxu0 0
  %1421 = vmatpush2.bf16.msra.mxu0 0
  %1422 = vmatprep.subr.bf16.mxu0 0
  %1423 = vmatpush2.bf16.msra.mxu0 0
  %1424 = vmatprep.mubr.bf16.mxu0 0
  %1425 = vmatmul.mubr.bf16.gmra.mxu0 %v1387
  %v1426 = vpop.f32.mrf.mxu0
  %v1427 = vadd.f32 0.0, %v1426
  %v1428 = vpop.f32.mrf.mxu0
  %v1429 = vpop.f32.mrf.mxu0
  %v1430 = vpop.f32.mrf.mxu0
  %1431 = vdwg.mxu0
  %v1432 = vpack.c.bf16 %v1427, %v1381
  %s1433 = scalar_lea.vmem %s7, 8
  %v1434 = vld [vmem:[%s1433] sm:$0xf]
  %v1436 = vsel %vm62, %v1432, 0
  %v1439 = vsel %vm66, %v1434, 0
  %1441 = vmatprep.subr.bf16.mxu0 0
  %1442 = vmatpush1.bf16.msra.mxu0 0
  %1443 = vmatprep.subr.bf16.mxu0 0
  %1444 = vmatpush1.bf16.msra.mxu0 0
  %1445 = vmatprep.subr.bf16.mxu0 0
  %1446 = vmatpush1.bf16.msra.mxu0 0
  %1447 = vmatprep.subr.bf16.mxu0 0
  %1448 = vmatpush1.bf16.msra.mxu0 0
  %1449 = vmatprep.subr.bf16.mxu0 0
  %1450 = vmatpush1.bf16.msra.mxu0 0
  %1451 = vmatprep.subr.bf16.mxu0 0
  %1452 = vmatpush1.bf16.msra.mxu0 0
  %1453 = vmatprep.subr.bf16.mxu0 0
  %1454 = vmatpush1.bf16.msra.mxu0 0
  %1455 = vmatprep.subr.bf16.mxu0 0
  %1456 = vmatpush1.bf16.msra.mxu0 %v1439
  %1457 = vmatprep.subr.bf16.mxu0 0
  %1458 = vmatpush2.bf16.msra.mxu0 0
  %1459 = vmatprep.subr.bf16.mxu0 0
  %1460 = vmatpush2.bf16.msra.mxu0 0
  %1461 = vmatprep.subr.bf16.mxu0 0
  %1462 = vmatpush2.bf16.msra.mxu0 0
  %1463 = vmatprep.subr.bf16.mxu0 0
  %1464 = vmatpush2.bf16.msra.mxu0 0
  %1465 = vmatprep.subr.bf16.mxu0 0
  %1466 = vmatpush2.bf16.msra.mxu0 0
  %1467 = vmatprep.subr.bf16.mxu0 0
  %1468 = vmatpush2.bf16.msra.mxu0 0
  %1469 = vmatprep.subr.bf16.mxu0 0
  %1470 = vmatpush2.bf16.msra.mxu0 0
  %1471 = vmatprep.subr.bf16.mxu0 0
  %1472 = vmatpush2.bf16.msra.mxu0 0
  %1473 = vmatprep.mubr.bf16.mxu0 0
  %1474 = vmatmul.mubr.bf16.gmra.mxu0 %v1436
  %v1475 = vpop.f32.mrf.mxu0
  %v1476 = vadd.f32 0.0, %v1475
  %v1477 = vpop.f32.mrf.mxu0
  %v1478 = vpop.f32.mrf.mxu0
  %v1479 = vadd.f32 0.0, %v1478
  %v1480 = vpop.f32.mrf.mxu0
  %1481 = vdwg.mxu0
  %v1482 = vadd.f32 %v1022, %v1476
  %v1483 = vadd.f32 %v1025, %v1479
  %s1484 = scalar_lea.vmem %s8, 12
  %v1485 = vld [vmem:[%s1484] sm:$0x7]
  %s1486 = scalar_lea.vmem %s4, 48
  %v1487 = vld [vmem:[%s1486] sm:$0xf]
  %v1488 = vld [vmem:[%s1486 + $0x4] sm:$0xf]
  %v1489 = vld [vmem:[%s1486 + $0x8] sm:$0xf]
  %v1490 = vld [vmem:[%s1486 + $0xc] sm:$0xf]
  %v1491 = vlaneseq
  %v1492 = vshrl.u32 %v1491, 7
  %v1493 = vsub.s32 0, %v1492
  %v1494 = vrot.slane %v1485, %v1493
  %v1499 = vunpack.c.l.b16 %v1487
  %v1500 = vunpack.c.l.b16 %v1488
  %v1501 = vunpack.c.l.b16 %v1489
  %v1502 = vunpack.c.l.b16 %v1490
  %v1503 = vpack.c.b16 %v1500, %v1499
  %v1504 = vpack.c.b16 %v1502, %v1501
  %1507 = vmatprep.subr.bf16.mxu0 0
  %1508 = vmatpush1.bf16.msra.mxu0 0
  %1509 = vmatprep.subr.bf16.mxu0 0
  %1510 = vmatpush1.bf16.msra.mxu0 0
  %1511 = vmatprep.subr.bf16.mxu0 0
  %1512 = vmatpush1.bf16.msra.mxu0 0
  %1513 = vmatprep.subr.bf16.mxu0 0
  %1514 = vmatpush1.bf16.msra.mxu0 0
  %1515 = vmatprep.subr.bf16.mxu0 0
  %1516 = vmatpush1.bf16.msra.mxu0 0
  %1517 = vmatprep.subr.bf16.mxu0 0
  %1518 = vmatpush1.bf16.msra.mxu0 0
  %1519 = vmatprep.subr.bf16.mxu0 0
  %1520 = vmatpush1.bf16.msra.mxu0 %v1504
  %1521 = vmatprep.subr.bf16.mxu0 0
  %1522 = vmatpush1.bf16.msra.mxu0 %v1503
  %1523 = vmatprep.subr.bf16.mxu0 0
  %1524 = vmatpush2.bf16.msra.mxu0 0
  %1525 = vmatprep.subr.bf16.mxu0 0
  %1526 = vmatpush2.bf16.msra.mxu0 0
  %1527 = vmatprep.subr.bf16.mxu0 0
  %1528 = vmatpush2.bf16.msra.mxu0 0
  %1529 = vmatprep.subr.bf16.mxu0 0
  %1530 = vmatpush2.bf16.msra.mxu0 0
  %1531 = vmatprep.subr.bf16.mxu0 0
  %1532 = vmatpush2.bf16.msra.mxu0 0
  %1533 = vmatprep.subr.bf16.mxu0 0
  %1534 = vmatpush2.bf16.msra.mxu0 0
  %1535 = vmatprep.subr.bf16.mxu0 0
  %1536 = vmatpush2.bf16.msra.mxu0 0
  %1537 = vmatprep.subr.bf16.mxu0 0
  %1538 = vmatpush2.bf16.msra.mxu0 0
  %1539 = vmatprep.mubr.bf16.mxu0 0
  %1540 = vmatmul.mubr.bf16.gmra.mxu0 %v144
  %v1541 = vpop.f32.mrf.mxu0
  %v1542 = vadd.f32 %v1494, %v1541
  %v1543 = vpop.f32.mrf.mxu0
  %v1544 = vpop.f32.mrf.mxu0
  %v1545 = vadd.f32 %v1494, %v1544
  %v1546 = vpop.f32.mrf.mxu0
  %1547 = vdwg.mxu0
  %s1548 = scalar_lea.vmem %s5, 48
  %v1549 = vld [vmem:[%s1548] sm:$0xf]
  %v1550 = vld [vmem:[%s1548 + $0x4] sm:$0xf]
  %v1551 = vld [vmem:[%s1548 + $0x8] sm:$0xf]
  %v1552 = vld [vmem:[%s1548 + $0xc] sm:$0xf]
  %v1553 = vlaneseq
  %v1554 = vshrl.u32 %v1553, 7
  %v1555 = vsub.s32 1, %v1554
  %v1556 = vrot.slane %v1485, %v1555
  %v1561 = vunpack.c.l.b16 %v1549
  %v1562 = vunpack.c.l.b16 %v1550
  %v1563 = vunpack.c.l.b16 %v1551
  %v1564 = vunpack.c.l.b16 %v1552
  %v1565 = vpack.c.b16 %v1562, %v1561
  %v1566 = vpack.c.b16 %v1564, %v1563
  %1569 = vmatprep.subr.bf16.mxu0 0
  %1570 = vmatpush1.bf16.msra.mxu0 0
  %1571 = vmatprep.subr.bf16.mxu0 0
  %1572 = vmatpush1.bf16.msra.mxu0 0
  %1573 = vmatprep.subr.bf16.mxu0 0
  %1574 = vmatpush1.bf16.msra.mxu0 0
  %1575 = vmatprep.subr.bf16.mxu0 0
  %1576 = vmatpush1.bf16.msra.mxu0 0
  %1577 = vmatprep.subr.bf16.mxu0 0
  %1578 = vmatpush1.bf16.msra.mxu0 0
  %1579 = vmatprep.subr.bf16.mxu0 0
  %1580 = vmatpush1.bf16.msra.mxu0 0
  %1581 = vmatprep.subr.bf16.mxu0 0
  %1582 = vmatpush1.bf16.msra.mxu0 %v1566
  %1583 = vmatprep.subr.bf16.mxu0 0
  %1584 = vmatpush1.bf16.msra.mxu0 %v1565
  %1585 = vmatprep.subr.bf16.mxu0 0
  %1586 = vmatpush2.bf16.msra.mxu0 0
  %1587 = vmatprep.subr.bf16.mxu0 0
  %1588 = vmatpush2.bf16.msra.mxu0 0
  %1589 = vmatprep.subr.bf16.mxu0 0
  %1590 = vmatpush2.bf16.msra.mxu0 0
  %1591 = vmatprep.subr.bf16.mxu0 0
  %1592 = vmatpush2.bf16.msra.mxu0 0
  %1593 = vmatprep.subr.bf16.mxu0 0
  %1594 = vmatpush2.bf16.msra.mxu0 0
  %1595 = vmatprep.subr.bf16.mxu0 0
  %1596 = vmatpush2.bf16.msra.mxu0 0
  %1597 = vmatprep.subr.bf16.mxu0 0
  %1598 = vmatpush2.bf16.msra.mxu0 0
  %1599 = vmatprep.subr.bf16.mxu0 0
  %1600 = vmatpush2.bf16.msra.mxu0 0
  %1601 = vmatprep.mubr.bf16.mxu0 0
  %1602 = vmatmul.mubr.bf16.gmra.mxu0 %v144
  %v1603 = vpop.f32.mrf.mxu0
  %v1604 = vadd.f32 %v1556, %v1603
  %v1605 = vpop.f32.mrf.mxu0
  %v1606 = vpop.f32.mrf.mxu0
  %v1607 = vadd.f32 %v1556, %v1606
  %v1608 = vpop.f32.mrf.mxu0
  %1609 = vdwg.mxu0
  %s1610 = scalar_lea.vmem %s6, 48
  %v1611 = vld [vmem:[%s1610] sm:$0xf]
  %v1612 = vld [vmem:[%s1610 + $0x4] sm:$0xf]
  %v1613 = vld [vmem:[%s1610 + $0x8] sm:$0xf]
  %v1614 = vld [vmem:[%s1610 + $0xc] sm:$0xf]
  %v1615 = vlaneseq
  %v1616 = vshrl.u32 %v1615, 7
  %v1617 = vsub.s32 2, %v1616
  %v1618 = vrot.slane %v1485, %v1617
  %v1623 = vunpack.c.l.b16 %v1611
  %v1624 = vunpack.c.l.b16 %v1612
  %v1625 = vunpack.c.l.b16 %v1613
  %v1626 = vunpack.c.l.b16 %v1614
  %v1627 = vpack.c.b16 %v1624, %v1623
  %v1628 = vpack.c.b16 %v1626, %v1625
  %1631 = vmatprep.subr.bf16.mxu0 0
  %1632 = vmatpush1.bf16.msra.mxu0 0
  %1633 = vmatprep.subr.bf16.mxu0 0
  %1634 = vmatpush1.bf16.msra.mxu0 0
  %1635 = vmatprep.subr.bf16.mxu0 0
  %1636 = vmatpush1.bf16.msra.mxu0 0
  %1637 = vmatprep.subr.bf16.mxu0 0
  %1638 = vmatpush1.bf16.msra.mxu0 0
  %1639 = vmatprep.subr.bf16.mxu0 0
  %1640 = vmatpush1.bf16.msra.mxu0 0
  %1641 = vmatprep.subr.bf16.mxu0 0
  %1642 = vmatpush1.bf16.msra.mxu0 0
  %1643 = vmatprep.subr.bf16.mxu0 0
  %1644 = vmatpush1.bf16.msra.mxu0 %v1628
  %1645 = vmatprep.subr.bf16.mxu0 0
  %1646 = vmatpush1.bf16.msra.mxu0 %v1627
  %1647 = vmatprep.subr.bf16.mxu0 0
  %1648 = vmatpush2.bf16.msra.mxu0 0
  %1649 = vmatprep.subr.bf16.mxu0 0
  %1650 = vmatpush2.bf16.msra.mxu0 0
  %1651 = vmatprep.subr.bf16.mxu0 0
  %1652 = vmatpush2.bf16.msra.mxu0 0
  %1653 = vmatprep.subr.bf16.mxu0 0
  %1654 = vmatpush2.bf16.msra.mxu0 0
  %1655 = vmatprep.subr.bf16.mxu0 0
  %1656 = vmatpush2.bf16.msra.mxu0 0
  %1657 = vmatprep.subr.bf16.mxu0 0
  %1658 = vmatpush2.bf16.msra.mxu0 0
  %1659 = vmatprep.subr.bf16.mxu0 0
  %1660 = vmatpush2.bf16.msra.mxu0 0
  %1661 = vmatprep.subr.bf16.mxu0 0
  %1662 = vmatpush2.bf16.msra.mxu0 0
  %1663 = vmatprep.mubr.bf16.mxu0 0
  %1664 = vmatmul.mubr.bf16.gmra.mxu0 %v144
  %v1665 = vpop.f32.mrf.mxu0
  %v1666 = vadd.f32 %v1618, %v1665
  %v1667 = vpop.f32.mrf.mxu0
  %v1668 = vpop.f32.mrf.mxu0
  %v1669 = vadd.f32 %v1618, %v1668
  %v1670 = vpop.f32.mrf.mxu0
  %1671 = vdwg.mxu0
  %v1672 = vpack.c.bf16 %v1542, %v1542
  %v1673 = vpack.c.bf16 %v1545, %v1545
  %v1674 = vpack.c.bf16 %v1604, %v1604
  %v1675 = vpack.c.bf16 %v1607, %v1607
  %v1676 = vpack.c.bf16 %v1666, %v1666
  %v1677 = vpack.c.bf16 %v1669, %v1669
  %v1679 = vsel %vm62, %v1672, 0
  %v1682 = vsel %vm62, %v1674, 0
  %1684 = vmatprep.subr.bf16.mxu0 0
  %1685 = vmatpush1.bf16.xpose.msra.mxu0 0
  %1686 = vmatprep.subr.bf16.mxu0 0
  %1687 = vmatpush1.bf16.xpose.msra.mxu0 0
  %1688 = vmatprep.subr.bf16.mxu0 0
  %1689 = vmatpush1.bf16.xpose.msra.mxu0 0
  %1690 = vmatprep.subr.bf16.mxu0 0
  %1691 = vmatpush1.bf16.xpose.msra.mxu0 0
  %1692 = vmatprep.subr.bf16.mxu0 0
  %1693 = vmatpush1.bf16.xpose.msra.mxu0 0
  %1694 = vmatprep.subr.bf16.mxu0 0
  %1695 = vmatpush1.bf16.xpose.msra.mxu0 0
  %1696 = vmatprep.subr.bf16.mxu0 0
  %1697 = vmatpush1.bf16.xpose.msra.mxu0 0
  %1698 = vmatprep.subr.bf16.mxu0 0
  %1699 = vmatpush1.bf16.xpose.msra.mxu0 %v1682
  %1700 = vmatprep.subr.bf16.mxu0 0
  %1701 = vmatpush2.bf16.xpose.msra.mxu0 0
  %1702 = vmatprep.subr.bf16.mxu0 0
  %1703 = vmatpush2.bf16.xpose.msra.mxu0 0
  %1704 = vmatprep.subr.bf16.mxu0 0
  %1705 = vmatpush2.bf16.xpose.msra.mxu0 0
  %1706 = vmatprep.subr.bf16.mxu0 0
  %1707 = vmatpush2.bf16.xpose.msra.mxu0 0
  %1708 = vmatprep.subr.bf16.mxu0 0
  %1709 = vmatpush2.bf16.xpose.msra.mxu0 0
  %1710 = vmatprep.subr.bf16.mxu0 0
  %1711 = vmatpush2.bf16.xpose.msra.mxu0 0
  %1712 = vmatprep.subr.bf16.mxu0 0
  %1713 = vmatpush2.bf16.xpose.msra.mxu0 0
  %1714 = vmatprep.subr.bf16.mxu0 0
  %1715 = vmatpush2.bf16.xpose.msra.mxu0 0
  %1716 = vmatprep.mubr.bf16.mxu0 0
  %1717 = vmatmul.mubr.bf16.gmra.mxu0 %v1679
  %v1718 = vpop.f32.mrf.mxu0
  %v1719 = vadd.f32 0.0, %v1718
  %v1720 = vpop.f32.mrf.mxu0
  %v1721 = vpop.f32.mrf.mxu0
  %v1722 = vpop.f32.mrf.mxu0
  %1723 = vdwg.mxu0
  %v1725 = vsel %vm62, %v1673, 0
  %v1728 = vsel %vm62, %v1675, 0
  %1730 = vmatprep.subr.bf16.mxu0 0
  %1731 = vmatpush1.bf16.xpose.msra.mxu0 0
  %1732 = vmatprep.subr.bf16.mxu0 0
  %1733 = vmatpush1.bf16.xpose.msra.mxu0 0
  %1734 = vmatprep.subr.bf16.mxu0 0
  %1735 = vmatpush1.bf16.xpose.msra.mxu0 0
  %1736 = vmatprep.subr.bf16.mxu0 0
  %1737 = vmatpush1.bf16.xpose.msra.mxu0 0
  %1738 = vmatprep.subr.bf16.mxu0 0
  %1739 = vmatpush1.bf16.xpose.msra.mxu0 0
  %1740 = vmatprep.subr.bf16.mxu0 0
  %1741 = vmatpush1.bf16.xpose.msra.mxu0 0
  %1742 = vmatprep.subr.bf16.mxu0 0
  %1743 = vmatpush1.bf16.xpose.msra.mxu0 0
  %1744 = vmatprep.subr.bf16.mxu0 0
  %1745 = vmatpush1.bf16.xpose.msra.mxu0 %v1728
  %1746 = vmatprep.subr.bf16.mxu0 0
  %1747 = vmatpush2.bf16.xpose.msra.mxu0 0
  %1748 = vmatprep.subr.bf16.mxu0 0
  %1749 = vmatpush2.bf16.xpose.msra.mxu0 0
  %1750 = vmatprep.subr.bf16.mxu0 0
  %1751 = vmatpush2.bf16.xpose.msra.mxu0 0
  %1752 = vmatprep.subr.bf16.mxu0 0
  %1753 = vmatpush2.bf16.xpose.msra.mxu0 0
  %1754 = vmatprep.subr.bf16.mxu0 0
  %1755 = vmatpush2.bf16.xpose.msra.mxu0 0
  %1756 = vmatprep.subr.bf16.mxu0 0
  %1757 = vmatpush2.bf16.xpose.msra.mxu0 0
  %1758 = vmatprep.subr.bf16.mxu0 0
  %1759 = vmatpush2.bf16.xpose.msra.mxu0 0
  %1760 = vmatprep.subr.bf16.mxu0 0
  %1761 = vmatpush2.bf16.xpose.msra.mxu0 0
  %1762 = vmatprep.mubr.bf16.mxu0 0
  %1763 = vmatmul.mubr.bf16.gmra.mxu0 %v1725
  %v1764 = vpop.f32.mrf.mxu0
  %v1765 = vadd.f32 0.0, %v1764
  %v1766 = vpop.f32.mrf.mxu0
  %v1767 = vpop.f32.mrf.mxu0
  %v1768 = vpop.f32.mrf.mxu0
  %1769 = vdwg.mxu0
  %v1770 = vmul.f32 %v1719, 0.35355338
  %v1771 = vmul.f32 %v1765, 0.35355338
  %v1772 = vsel %vm62, %v1770, -inf
  %1773 = vmax.xlane.f32.xlu0 %v1772
  %v1774 = vpop.xlane.xlu0 %1773
  %v1775 = vsel %vm62, %v1771, -inf
  %1776 = vmax.xlane.f32.xlu0 %v1775
  %v1777 = vpop.xlane.xlu0 %1776
  %v1778 = vsub.f32 %v1770, %v1774
  %v1779 = vsub.f32 %v1771, %v1777
  %v1780 = vmul.f32 %v1778, 1.442695
  %v1781 = vpow.pop %v1780
  %v1782 = vmul.f32 %v1779, 1.442695
  %v1783 = vpow.pop %v1782
  %v1784 = vsel %vm62, %v1781, 0.0
  %1785 = vadd.xlane.f32.xlu0 %v1784
  %v1786 = vpop.xlane.xlu0 %1785
  %v1787 = vsel %vm62, %v1783, 0.0
  %1788 = vadd.xlane.f32.xlu0 %v1787
  %v1789 = vpop.xlane.xlu0 %1788
  %v1790 = vrcp.pop %v1786
  %v1791 = vrcp.pop %v1789
  %v1792 = vmul.f32 %v1781, %v1790
  %v1793 = vmul.f32 %v1783, %v1791
  %v1794 = vpack.c.bf16 %v1792, %v1792
  %v1795 = vpack.c.bf16 %v1793, %v1793
  %v1797 = vsel %vm62, %v1794, 0
  %v1800 = vsel %vm66, %v1676, 0
  %1802 = vmatprep.subr.bf16.mxu0 0
  %1803 = vmatpush1.bf16.msra.mxu0 0
  %1804 = vmatprep.subr.bf16.mxu0 0
  %1805 = vmatpush1.bf16.msra.mxu0 0
  %1806 = vmatprep.subr.bf16.mxu0 0
  %1807 = vmatpush1.bf16.msra.mxu0 0
  %1808 = vmatprep.subr.bf16.mxu0 0
  %1809 = vmatpush1.bf16.msra.mxu0 0
  %1810 = vmatprep.subr.bf16.mxu0 0
  %1811 = vmatpush1.bf16.msra.mxu0 0
  %1812 = vmatprep.subr.bf16.mxu0 0
  %1813 = vmatpush1.bf16.msra.mxu0 0
  %1814 = vmatprep.subr.bf16.mxu0 0
  %1815 = vmatpush1.bf16.msra.mxu0 0
  %1816 = vmatprep.subr.bf16.mxu0 0
  %1817 = vmatpush1.bf16.msra.mxu0 %v1800
  %1818 = vmatprep.subr.bf16.mxu0 0
  %1819 = vmatpush2.bf16.msra.mxu0 0
  %1820 = vmatprep.subr.bf16.mxu0 0
  %1821 = vmatpush2.bf16.msra.mxu0 0
  %1822 = vmatprep.subr.bf16.mxu0 0
  %1823 = vmatpush2.bf16.msra.mxu0 0
  %1824 = vmatprep.subr.bf16.mxu0 0
  %1825 = vmatpush2.bf16.msra.mxu0 0
  %1826 = vmatprep.subr.bf16.mxu0 0
  %1827 = vmatpush2.bf16.msra.mxu0 0
  %1828 = vmatprep.subr.bf16.mxu0 0
  %1829 = vmatpush2.bf16.msra.mxu0 0
  %1830 = vmatprep.subr.bf16.mxu0 0
  %1831 = vmatpush2.bf16.msra.mxu0 0
  %1832 = vmatprep.subr.bf16.mxu0 0
  %1833 = vmatpush2.bf16.msra.mxu0 0
  %1834 = vmatprep.mubr.bf16.mxu0 0
  %1835 = vmatmul.mubr.bf16.gmra.mxu0 %v1797
  %v1836 = vpop.f32.mrf.mxu0
  %v1837 = vadd.f32 0.0, %v1836
  %v1838 = vpop.f32.mrf.mxu0
  %v1839 = vpop.f32.mrf.mxu0
  %v1840 = vpop.f32.mrf.mxu0
  %1841 = vdwg.mxu0
  %v1843 = vsel %vm62, %v1795, 0
  %v1846 = vsel %vm66, %v1677, 0
  %1848 = vmatprep.subr.bf16.mxu0 0
  %1849 = vmatpush1.bf16.msra.mxu0 0
  %1850 = vmatprep.subr.bf16.mxu0 0
  %1851 = vmatpush1.bf16.msra.mxu0 0
  %1852 = vmatprep.subr.bf16.mxu0 0
  %1853 = vmatpush1.bf16.msra.mxu0 0
  %1854 = vmatprep.subr.bf16.mxu0 0
  %1855 = vmatpush1.bf16.msra.mxu0 0
  %1856 = vmatprep.subr.bf16.mxu0 0
  %1857 = vmatpush1.bf16.msra.mxu0 0
  %1858 = vmatprep.subr.bf16.mxu0 0
  %1859 = vmatpush1.bf16.msra.mxu0 0
  %1860 = vmatprep.subr.bf16.mxu0 0
  %1861 = vmatpush1.bf16.msra.mxu0 0
  %1862 = vmatprep.subr.bf16.mxu0 0
  %1863 = vmatpush1.bf16.msra.mxu0 %v1846
  %1864 = vmatprep.subr.bf16.mxu0 0
  %1865 = vmatpush2.bf16.msra.mxu0 0
  %1866 = vmatprep.subr.bf16.mxu0 0
  %1867 = vmatpush2.bf16.msra.mxu0 0
  %1868 = vmatprep.subr.bf16.mxu0 0
  %1869 = vmatpush2.bf16.msra.mxu0 0
  %1870 = vmatprep.subr.bf16.mxu0 0
  %1871 = vmatpush2.bf16.msra.mxu0 0
  %1872 = vmatprep.subr.bf16.mxu0 0
  %1873 = vmatpush2.bf16.msra.mxu0 0
  %1874 = vmatprep.subr.bf16.mxu0 0
  %1875 = vmatpush2.bf16.msra.mxu0 0
  %1876 = vmatprep.subr.bf16.mxu0 0
  %1877 = vmatpush2.bf16.msra.mxu0 0
  %1878 = vmatprep.subr.bf16.mxu0 0
  %1879 = vmatpush2.bf16.msra.mxu0 0
  %1880 = vmatprep.mubr.bf16.mxu0 0
  %1881 = vmatmul.mubr.bf16.gmra.mxu0 %v1843
  %v1882 = vpop.f32.mrf.mxu0
  %v1883 = vadd.f32 0.0, %v1882
  %v1884 = vpop.f32.mrf.mxu0
  %v1885 = vpop.f32.mrf.mxu0
  %v1886 = vpop.f32.mrf.mxu0
  %1887 = vdwg.mxu0
  %v1888 = vpack.c.bf16 %v1883, %v1837
  %s1889 = scalar_lea.vmem %s7, 12
  %v1890 = vld [vmem:[%s1889] sm:$0xf]
  %v1892 = vsel %vm62, %v1888, 0
  %v1895 = vsel %vm66, %v1890, 0
  %1897 = vmatprep.subr.bf16.mxu0 0
  %1898 = vmatpush1.bf16.msra.mxu0 0
  %1899 = vmatprep.subr.bf16.mxu0 0
  %1900 = vmatpush1.bf16.msra.mxu0 0
  %1901 = vmatprep.subr.bf16.mxu0 0
  %1902 = vmatpush1.bf16.msra.mxu0 0
  %1903 = vmatprep.subr.bf16.mxu0 0
  %1904 = vmatpush1.bf16.msra.mxu0 0
  %1905 = vmatprep.subr.bf16.mxu0 0
  %1906 = vmatpush1.bf16.msra.mxu0 0
  %1907 = vmatprep.subr.bf16.mxu0 0
  %1908 = vmatpush1.bf16.msra.mxu0 0
  %1909 = vmatprep.subr.bf16.mxu0 0
  %1910 = vmatpush1.bf16.msra.mxu0 0
  %1911 = vmatprep.subr.bf16.mxu0 0
  %1912 = vmatpush1.bf16.msra.mxu0 %v1895
  %1913 = vmatprep.subr.bf16.mxu0 0
  %1914 = vmatpush2.bf16.msra.mxu0 0
  %1915 = vmatprep.subr.bf16.mxu0 0
  %1916 = vmatpush2.bf16.msra.mxu0 0
  %1917 = vmatprep.subr.bf16.mxu0 0
  %1918 = vmatpush2.bf16.msra.mxu0 0
  %1919 = vmatprep.subr.bf16.mxu0 0
  %1920 = vmatpush2.bf16.msra.mxu0 0
  %1921 = vmatprep.subr.bf16.mxu0 0
  %1922 = vmatpush2.bf16.msra.mxu0 0
  %1923 = vmatprep.subr.bf16.mxu0 0
  %1924 = vmatpush2.bf16.msra.mxu0 0
  %1925 = vmatprep.subr.bf16.mxu0 0
  %1926 = vmatpush2.bf16.msra.mxu0 0
  %1927 = vmatprep.subr.bf16.mxu0 0
  %1928 = vmatpush2.bf16.msra.mxu0 0
  %1929 = vmatprep.mubr.bf16.mxu0 0
  %1930 = vmatmul.mubr.bf16.gmra.mxu0 %v1892
  %v1931 = vpop.f32.mrf.mxu0
  %v1932 = vadd.f32 0.0, %v1931
  %v1933 = vpop.f32.mrf.mxu0
  %v1934 = vpop.f32.mrf.mxu0
  %v1935 = vadd.f32 0.0, %v1934
  %v1936 = vpop.f32.mrf.mxu0
  %1937 = vdwg.mxu0
  %v1938 = vadd.f32 %v1482, %v1932
  %v1939 = vadd.f32 %v1483, %v1935
  %v1940 = vlaneseq
  %v1941 = vshrl.u32 %v1940, 7
  %v1942 = vsub.s32 0, %v1941
  %v1943 = vrot.slane %v121, %v1942
  %v1944 = vadd.f32 %v1938, %v1943
  %v1945 = vadd.f32 %v1939, %v1943
  %v1946 = vadd.f32 %v118, %v1944
  %v1947 = vadd.f32 %v119, %v1945
  %v1948 = vsel %vm115, %v1946, 0.0
  %1949 = vadd.xlane.f32.xlu0 %v1948
  %v1950 = vpop.xlane.xlu0 %1949
  %v1951 = vsel %vm115, %v1947, 0.0
  %1952 = vadd.xlane.f32.xlu0 %v1951
  %v1953 = vpop.xlane.xlu0 %1952
  %v1954 = vrcp.pop 32.0
  %v1955 = vmul.f32 %v1950, %v1954
  %v1956 = vmul.f32 %v1953, %v1954
  %v1957 = vsub.f32 %v1946, %v1955
  %v1958 = vsub.f32 %v1947, %v1956
  %v1959 = vmul.f32 %v1957, %v1957
  %v1960 = vmul.f32 %v1958, %v1958
  %v1961 = vsel %vm115, %v1959, 0.0
  %1962 = vadd.xlane.f32.xlu0 %v1961
  %v1963 = vpop.xlane.xlu0 %1962
  %v1964 = vsel %vm115, %v1960, 0.0
  %1965 = vadd.xlane.f32.xlu0 %v1964
  %v1966 = vpop.xlane.xlu0 %1965
  %v1967 = vmul.f32 %v1963, %v1954
  %v1968 = vmul.f32 %v1966, %v1954
  %v1969 = vadd.f32 %v1967, 1e-05
  %v1970 = vadd.f32 %v1968, 1e-05
  %v1971 = vrsqrt.pop %v1969
  %v1972 = vrsqrt.pop %v1970
  %v1973 = vmul.f32 %v1957, %v1971
  %v1974 = vmul.f32 %v1958, %v1972
  %v1975 = vlaneseq
  %v1976 = vshrl.u32 %v1975, 7
  %v1977 = vsub.s32 1, %v1976
  %v1978 = vrot.slane %v121, %v1977
  %v1979 = vmul.f32 %v1973, %v1978
  %v1980 = vmul.f32 %v1974, %v1978
  %v1981 = vlaneseq
  %v1982 = vshrl.u32 %v1981, 7
  %v1983 = vsub.s32 2, %v1982
  %v1984 = vrot.slane %v121, %v1983
  %v1985 = vadd.f32 %v1979, %v1984
  %v1986 = vadd.f32 %v1980, %v1984
  %v1987 = vpack.c.bf16 %v1986, %v1985
  %v1988 = vld [vmem:[%s9] sm:$0xf]
  %v1989 = vld [vmem:[%s9 + $0x4] sm:$0xf]
  %v1990 = vld [vmem:[%s9 + $0x8] sm:$0xf]
  %v1991 = vld [vmem:[%s9 + $0xc] sm:$0xf]
  %v1992 = vld [vmem:[%s10] sm:$0x1]
  %v1994 = vlaneseq
  %v1995 = vshrl.u32 %v1994, 7
  %v1996 = vsub.s32 0, %v1995
  %v1997 = vrot.slane %v1992, %v1996
  %v2003 = vunpack.c.l.b16 %v1988
  %v2004 = vunpack.c.l.b16 %v1989
  %v2005 = vunpack.c.l.b16 %v1990
  %v2006 = vunpack.c.l.b16 %v1991
  %v2007 = vpack.c.b16 %v2004, %v2003
  %v2008 = vpack.c.b16 %v2006, %v2005
  %v2012 = vsel %vm115, %v1987, 0
  %2014 = vmatprep.subr.bf16.mxu0 0
  %2015 = vmatpush1.bf16.msra.mxu0 0
  %2016 = vmatprep.subr.bf16.mxu0 0
  %2017 = vmatpush1.bf16.msra.mxu0 0
  %2018 = vmatprep.subr.bf16.mxu0 0
  %2019 = vmatpush1.bf16.msra.mxu0 0
  %2020 = vmatprep.subr.bf16.mxu0 0
  %2021 = vmatpush1.bf16.msra.mxu0 0
  %2022 = vmatprep.subr.bf16.mxu0 0
  %2023 = vmatpush1.bf16.msra.mxu0 0
  %2024 = vmatprep.subr.bf16.mxu0 0
  %2025 = vmatpush1.bf16.msra.mxu0 0
  %2026 = vmatprep.subr.bf16.mxu0 0
  %2027 = vmatpush1.bf16.msra.mxu0 %v2008
  %2028 = vmatprep.subr.bf16.mxu0 0
  %2029 = vmatpush1.bf16.msra.mxu0 %v2007
  %2030 = vmatprep.subr.bf16.mxu0 0
  %2031 = vmatpush2.bf16.msra.mxu0 0
  %2032 = vmatprep.subr.bf16.mxu0 0
  %2033 = vmatpush2.bf16.msra.mxu0 0
  %2034 = vmatprep.subr.bf16.mxu0 0
  %2035 = vmatpush2.bf16.msra.mxu0 0
  %2036 = vmatprep.subr.bf16.mxu0 0
  %2037 = vmatpush2.bf16.msra.mxu0 0
  %2038 = vmatprep.subr.bf16.mxu0 0
  %2039 = vmatpush2.bf16.msra.mxu0 0
  %2040 = vmatprep.subr.bf16.mxu0 0
  %2041 = vmatpush2.bf16.msra.mxu0 0
  %2042 = vmatprep.subr.bf16.mxu0 0
  %2043 = vmatpush2.bf16.msra.mxu0 0
  %2044 = vmatprep.subr.bf16.mxu0 0
  %2045 = vmatpush2.bf16.msra.mxu0 0
  %2046 = vmatprep.mubr.bf16.mxu0 0
  %2047 = vmatmul.mubr.bf16.gmra.mxu0 %v2012
  %v2048 = vpop.f32.mrf.mxu0
  %v2049 = vadd.f32 %v1997, %v2048
  %v2050 = vpop.f32.mrf.mxu0
  %v2051 = vpop.f32.mrf.mxu0
  %v2052 = vadd.f32 %v1997, %v2051
  %v2053 = vpop.f32.mrf.mxu0
  %2054 = vdwg.mxu0
  %v2055 = vmul.f32 %v2049, 0.5
  %v2056 = vmul.f32 %v2052, 0.5
  %v2057 = vmul.f32 %v2049, 0.70710677
  %v2058 = vmul.f32 %v2052, 0.70710677
  %v2059 = verf.f32.pop %v2057
  %v2060 = verf.f32.pop %v2058
  %v2061 = vadd.f32 %v2059, 1.0
  %v2062 = vadd.f32 %v2060, 1.0
  %v2063 = vmul.f32 %v2055, %v2061
  %v2064 = vmul.f32 %v2056, %v2062
  %v2065 = vpack.c.bf16 %v2064, %v2063
  %v2066 = vld [vmem:[%s11] sm:$0xf]
  %v2067 = vld [vmem:[%s11 + $0x4] sm:$0xf]
  %v2068 = vld [vmem:[%s11 + $0x8] sm:$0xf]
  %v2069 = vld [vmem:[%s11 + $0xc] sm:$0xf]
  %v2070 = vld [vmem:[%s11 + $0x10] sm:$0xf]
  %v2071 = vld [vmem:[%s11 + $0x14] sm:$0xf]
  %v2072 = vld [vmem:[%s11 + $0x18] sm:$0xf]
  %v2073 = vld [vmem:[%s11 + $0x1c] sm:$0xf]
  %v2074 = vld [vmem:[%s11 + $0x20] sm:$0xf]
  %v2075 = vld [vmem:[%s11 + $0x24] sm:$0xf]
  %v2076 = vld [vmem:[%s11 + $0x28] sm:$0xf]
  %v2077 = vld [vmem:[%s11 + $0x2c] sm:$0xf]
  %v2078 = vld [vmem:[%s11 + $0x30] sm:$0xf]
  %v2079 = vld [vmem:[%s11 + $0x34] sm:$0xf]
  %v2080 = vld [vmem:[%s11 + $0x38] sm:$0xf]
  %v2081 = vld [vmem:[%s11 + $0x3c] sm:$0xf]
  %v2082 = vlaneseq
  %v2083 = vshrl.u32 %v2082, 7
  %v2084 = vsub.s32 3, %v2083
  %v2085 = vrot.slane %v121, %v2084
  %v2102 = vunpack.c.l.b16 %v2066
  %v2103 = vunpack.c.l.b16 %v2067
  %v2104 = vunpack.c.l.b16 %v2068
  %v2105 = vunpack.c.l.b16 %v2069
  %v2106 = vunpack.c.l.b16 %v2070
  %v2107 = vunpack.c.l.b16 %v2071
  %v2108 = vunpack.c.l.b16 %v2072
  %v2109 = vunpack.c.l.b16 %v2073
  %v2110 = vunpack.c.l.b16 %v2074
  %v2111 = vunpack.c.l.b16 %v2075
  %v2112 = vunpack.c.l.b16 %v2076
  %v2113 = vunpack.c.l.b16 %v2077
  %v2114 = vunpack.c.l.b16 %v2078
  %v2115 = vunpack.c.l.b16 %v2079
  %v2116 = vunpack.c.l.b16 %v2080
  %v2117 = vunpack.c.l.b16 %v2081
  %v2118 = vpack.c.b16 %v2103, %v2102
  %v2119 = vpack.c.b16 %v2105, %v2104
  %v2120 = vpack.c.b16 %v2107, %v2106
  %v2121 = vpack.c.b16 %v2109, %v2108
  %v2122 = vpack.c.b16 %v2111, %v2110
  %v2123 = vpack.c.b16 %v2113, %v2112
  %v2124 = vpack.c.b16 %v2115, %v2114
  %v2125 = vpack.c.b16 %v2117, %v2116
  %2134 = vmatprep.subr.bf16.mxu0 0
  %2135 = vmatpush1.bf16.msra.mxu0 %v2125
  %2136 = vmatprep.subr.bf16.mxu0 0
  %2137 = vmatpush1.bf16.msra.mxu0 %v2124
  %2138 = vmatprep.subr.bf16.mxu0 0
  %2139 = vmatpush1.bf16.msra.mxu0 %v2123
  %2140 = vmatprep.subr.bf16.mxu0 0
  %2141 = vmatpush1.bf16.msra.mxu0 %v2122
  %2142 = vmatprep.subr.bf16.mxu0 0
  %2143 = vmatpush1.bf16.msra.mxu0 %v2121
  %2144 = vmatprep.subr.bf16.mxu0 0
  %2145 = vmatpush1.bf16.msra.mxu0 %v2120
  %2146 = vmatprep.subr.bf16.mxu0 0
  %2147 = vmatpush1.bf16.msra.mxu0 %v2119
  %2148 = vmatprep.subr.bf16.mxu0 0
  %2149 = vmatpush1.bf16.msra.mxu0 %v2118
  %2150 = vmatprep.subr.bf16.mxu0 0
  %2151 = vmatpush2.bf16.msra.mxu0 0
  %2152 = vmatprep.subr.bf16.mxu0 0
  %2153 = vmatpush2.bf16.msra.mxu0 0
  %2154 = vmatprep.subr.bf16.mxu0 0
  %2155 = vmatpush2.bf16.msra.mxu0 0
  %2156 = vmatprep.subr.bf16.mxu0 0
  %2157 = vmatpush2.bf16.msra.mxu0 0
  %2158 = vmatprep.subr.bf16.mxu0 0
  %2159 = vmatpush2.bf16.msra.mxu0 0
  %2160 = vmatprep.subr.bf16.mxu0 0
  %2161 = vmatpush2.bf16.msra.mxu0 0
  %2162 = vmatprep.subr.bf16.mxu0 0
  %2163 = vmatpush2.bf16.msra.mxu0 0
  %2164 = vmatprep.subr.bf16.mxu0 0
  %2165 = vmatpush2.bf16.msra.mxu0 0
  %2166 = vmatprep.mubr.bf16.mxu0 0
  %2167 = vmatmul.mubr.bf16.gmra.mxu0 %v2065
  %v2168 = vpop.f32.mrf.mxu0
  %v2169 = vadd.f32 %v2085, %v2168
  %v2170 = vpop.f32.mrf.mxu0
  %v2171 = vpop.f32.mrf.mxu0
  %v2172 = vadd.f32 %v2085, %v2171
  %v2173 = vpop.f32.mrf.mxu0
  %2174 = vdwg.mxu0
  %v2175 = vadd.f32 %v1985, %v2169
  %v2176 = vadd.f32 %v1986, %v2172
  %v2177 = vsel %vm115, %v2175, 0.0
  %2178 = vadd.xlane.f32.xlu0 %v2177
  %v2179 = vpop.xlane.xlu0 %2178
  %v2180 = vsel %vm115, %v2176, 0.0
  %2181 = vadd.xlane.f32.xlu0 %v2180
  %v2182 = vpop.xlane.xlu0 %2181
  %v2183 = vmul.f32 %v2179, %v1954
  %v2184 = vmul.f32 %v2182, %v1954
  %v2185 = vsub.f32 %v2175, %v2183
  %v2186 = vsub.f32 %v2176, %v2184
  %v2187 = vmul.f32 %v2185, %v2185
  %v2188 = vmul.f32 %v2186, %v2186
  %v2189 = vsel %vm115, %v2187, 0.0
  %2190 = vadd.xlane.f32.xlu0 %v2189
  %v2191 = vpop.xlane.xlu0 %2190
  %v2192 = vsel %vm115, %v2188, 0.0
  %2193 = vadd.xlane.f32.xlu0 %v2192
  %v2194 = vpop.xlane.xlu0 %2193
  %v2195 = vmul.f32 %v2191, %v1954
  %v2196 = vmul.f32 %v2194, %v1954
  %v2197 = vadd.f32 %v2195, 1e-05
  %v2198 = vadd.f32 %v2196, 1e-05
  %v2199 = vrsqrt.pop %v2197
  %v2200 = vrsqrt.pop %v2198
  %v2201 = vmul.f32 %v2185, %v2199
  %v2202 = vmul.f32 %v2186, %v2200
  %v2203 = vlaneseq
  %v2204 = vshrl.u32 %v2203, 7
  %v2205 = vsub.s32 4, %v2204
  %v2206 = vrot.slane %v121, %v2205
  %v2207 = vmul.f32 %v2201, %v2206
  %v2208 = vmul.f32 %v2202, %v2206
  %v2209 = vlaneseq
  %v2210 = vshrl.u32 %v2209, 7
  %v2211 = vsub.s32 5, %v2210
  %v2212 = vrot.slane %v121, %v2211
  %v2213 = vadd.f32 %v2207, %v2212
  %v2214 = vadd.f32 %v2208, %v2212
  %2215 = vst.msk [vmem:[#allocation2] sm:$0xff] %vm115, %v2213
  %2216 = vst.msk [vmem:[#allocation2 + $0x8] sm:$0xff] %vm115, %v2214
  %v2217 = vld [vmem:[#allocation2] sm:$0xff]
  %v2218 = vld [vmem:[#allocation2 + $0x8] sm:$0xff]
  %v2219 = vpack.c.bf16 %v2218, %v2217
  %s2220 = scalar_lea.vmem %s12, 8
  %v2221 = vld [vmem:[%s2220] sm:$0x3f]
  %s2222 = scalar_lea.vmem %s8, 16
  %v2223 = vld [vmem:[%s2222] sm:$0x7]
  %s2224 = scalar_lea.vmem %s4, 64
  %v2225 = vld [vmem:[%s2224] sm:$0xf]
  %v2226 = vld [vmem:[%s2224 + $0x4] sm:$0xf]
  %v2227 = vld [vmem:[%s2224 + $0x8] sm:$0xf]
  %v2228 = vld [vmem:[%s2224 + $0xc] sm:$0xf]
  %v2229 = vlaneseq
  %v2230 = vshrl.u32 %v2229, 7
  %v2231 = vsub.s32 0, %v2230
  %v2232 = vrot.slane %v2223, %v2231
  %v2237 = vunpack.c.l.b16 %v2225
  %v2238 = vunpack.c.l.b16 %v2226
  %v2239 = vunpack.c.l.b16 %v2227
  %v2240 = vunpack.c.l.b16 %v2228
  %v2241 = vpack.c.b16 %v2238, %v2237
  %v2242 = vpack.c.b16 %v2240, %v2239
  %v2246 = vsel %vm115, %v2219, 0
  %2248 = vmatprep.subr.bf16.mxu0 0
  %2249 = vmatpush1.bf16.msra.mxu0 0
  %2250 = vmatprep.subr.bf16.mxu0 0
  %2251 = vmatpush1.bf16.msra.mxu0 0
  %2252 = vmatprep.subr.bf16.mxu0 0
  %2253 = vmatpush1.bf16.msra.mxu0 0
  %2254 = vmatprep.subr.bf16.mxu0 0
  %2255 = vmatpush1.bf16.msra.mxu0 0
  %2256 = vmatprep.subr.bf16.mxu0 0
  %2257 = vmatpush1.bf16.msra.mxu0 0
  %2258 = vmatprep.subr.bf16.mxu0 0
  %2259 = vmatpush1.bf16.msra.mxu0 0
  %2260 = vmatprep.subr.bf16.mxu0 0
  %2261 = vmatpush1.bf16.msra.mxu0 %v2242
  %2262 = vmatprep.subr.bf16.mxu0 0
  %2263 = vmatpush1.bf16.msra.mxu0 %v2241
  %2264 = vmatprep.subr.bf16.mxu0 0
  %2265 = vmatpush2.bf16.msra.mxu0 0
  %2266 = vmatprep.subr.bf16.mxu0 0
  %2267 = vmatpush2.bf16.msra.mxu0 0
  %2268 = vmatprep.subr.bf16.mxu0 0
  %2269 = vmatpush2.bf16.msra.mxu0 0
  %2270 = vmatprep.subr.bf16.mxu0 0
  %2271 = vmatpush2.bf16.msra.mxu0 0
  %2272 = vmatprep.subr.bf16.mxu0 0
  %2273 = vmatpush2.bf16.msra.mxu0 0
  %2274 = vmatprep.subr.bf16.mxu0 0
  %2275 = vmatpush2.bf16.msra.mxu0 0
  %2276 = vmatprep.subr.bf16.mxu0 0
  %2277 = vmatpush2.bf16.msra.mxu0 0
  %2278 = vmatprep.subr.bf16.mxu0 0
  %2279 = vmatpush2.bf16.msra.mxu0 0
  %2280 = vmatprep.mubr.bf16.mxu0 0
  %2281 = vmatmul.mubr.bf16.gmra.mxu0 %v2246
  %v2282 = vpop.f32.mrf.mxu0
  %v2283 = vadd.f32 %v2232, %v2282
  %v2284 = vpop.f32.mrf.mxu0
  %v2285 = vpop.f32.mrf.mxu0
  %v2286 = vadd.f32 %v2232, %v2285
  %v2287 = vpop.f32.mrf.mxu0
  %2288 = vdwg.mxu0
  %s2289 = scalar_lea.vmem %s5, 64
  %v2290 = vld [vmem:[%s2289] sm:$0xf]
  %v2291 = vld [vmem:[%s2289 + $0x4] sm:$0xf]
  %v2292 = vld [vmem:[%s2289 + $0x8] sm:$0xf]
  %v2293 = vld [vmem:[%s2289 + $0xc] sm:$0xf]
  %v2294 = vlaneseq
  %v2295 = vshrl.u32 %v2294, 7
  %v2296 = vsub.s32 1, %v2295
  %v2297 = vrot.slane %v2223, %v2296
  %v2302 = vunpack.c.l.b16 %v2290
  %v2303 = vunpack.c.l.b16 %v2291
  %v2304 = vunpack.c.l.b16 %v2292
  %v2305 = vunpack.c.l.b16 %v2293
  %v2306 = vpack.c.b16 %v2303, %v2302
  %v2307 = vpack.c.b16 %v2305, %v2304
  %2310 = vmatprep.subr.bf16.mxu0 0
  %2311 = vmatpush1.bf16.msra.mxu0 0
  %2312 = vmatprep.subr.bf16.mxu0 0
  %2313 = vmatpush1.bf16.msra.mxu0 0
  %2314 = vmatprep.subr.bf16.mxu0 0
  %2315 = vmatpush1.bf16.msra.mxu0 0
  %2316 = vmatprep.subr.bf16.mxu0 0
  %2317 = vmatpush1.bf16.msra.mxu0 0
  %2318 = vmatprep.subr.bf16.mxu0 0
  %2319 = vmatpush1.bf16.msra.mxu0 0
  %2320 = vmatprep.subr.bf16.mxu0 0
  %2321 = vmatpush1.bf16.msra.mxu0 0
  %2322 = vmatprep.subr.bf16.mxu0 0
  %2323 = vmatpush1.bf16.msra.mxu0 %v2307
  %2324 = vmatprep.subr.bf16.mxu0 0
  %2325 = vmatpush1.bf16.msra.mxu0 %v2306
  %2326 = vmatprep.subr.bf16.mxu0 0
  %2327 = vmatpush2.bf16.msra.mxu0 0
  %2328 = vmatprep.subr.bf16.mxu0 0
  %2329 = vmatpush2.bf16.msra.mxu0 0
  %2330 = vmatprep.subr.bf16.mxu0 0
  %2331 = vmatpush2.bf16.msra.mxu0 0
  %2332 = vmatprep.subr.bf16.mxu0 0
  %2333 = vmatpush2.bf16.msra.mxu0 0
  %2334 = vmatprep.subr.bf16.mxu0 0
  %2335 = vmatpush2.bf16.msra.mxu0 0
  %2336 = vmatprep.subr.bf16.mxu0 0
  %2337 = vmatpush2.bf16.msra.mxu0 0
  %2338 = vmatprep.subr.bf16.mxu0 0
  %2339 = vmatpush2.bf16.msra.mxu0 0
  %2340 = vmatprep.subr.bf16.mxu0 0
  %2341 = vmatpush2.bf16.msra.mxu0 0
  %2342 = vmatprep.mubr.bf16.mxu0 0
  %2343 = vmatmul.mubr.bf16.gmra.mxu0 %v2246
  %v2344 = vpop.f32.mrf.mxu0
  %v2345 = vadd.f32 %v2297, %v2344
  %v2346 = vpop.f32.mrf.mxu0
  %v2347 = vpop.f32.mrf.mxu0
  %v2348 = vadd.f32 %v2297, %v2347
  %v2349 = vpop.f32.mrf.mxu0
  %2350 = vdwg.mxu0
  %s2351 = scalar_lea.vmem %s6, 64
  %v2352 = vld [vmem:[%s2351] sm:$0xf]
  %v2353 = vld [vmem:[%s2351 + $0x4] sm:$0xf]
  %v2354 = vld [vmem:[%s2351 + $0x8] sm:$0xf]
  %v2355 = vld [vmem:[%s2351 + $0xc] sm:$0xf]
  %v2356 = vlaneseq
  %v2357 = vshrl.u32 %v2356, 7
  %v2358 = vsub.s32 2, %v2357
  %v2359 = vrot.slane %v2223, %v2358
  %v2364 = vunpack.c.l.b16 %v2352
  %v2365 = vunpack.c.l.b16 %v2353
  %v2366 = vunpack.c.l.b16 %v2354
  %v2367 = vunpack.c.l.b16 %v2355
  %v2368 = vpack.c.b16 %v2365, %v2364
  %v2369 = vpack.c.b16 %v2367, %v2366
  %2372 = vmatprep.subr.bf16.mxu0 0
  %2373 = vmatpush1.bf16.msra.mxu0 0
  %2374 = vmatprep.subr.bf16.mxu0 0
  %2375 = vmatpush1.bf16.msra.mxu0 0
  %2376 = vmatprep.subr.bf16.mxu0 0
  %2377 = vmatpush1.bf16.msra.mxu0 0
  %2378 = vmatprep.subr.bf16.mxu0 0
  %2379 = vmatpush1.bf16.msra.mxu0 0
  %2380 = vmatprep.subr.bf16.mxu0 0
  %2381 = vmatpush1.bf16.msra.mxu0 0
  %2382 = vmatprep.subr.bf16.mxu0 0
  %2383 = vmatpush1.bf16.msra.mxu0 0
  %2384 = vmatprep.subr.bf16.mxu0 0
  %2385 = vmatpush1.bf16.msra.mxu0 %v2369
  %2386 = vmatprep.subr.bf16.mxu0 0
  %2387 = vmatpush1.bf16.msra.mxu0 %v2368
  %2388 = vmatprep.subr.bf16.mxu0 0
  %2389 = vmatpush2.bf16.msra.mxu0 0
  %2390 = vmatprep.subr.bf16.mxu0 0
  %2391 = vmatpush2.bf16.msra.mxu0 0
  %2392 = vmatprep.subr.bf16.mxu0 0
  %2393 = vmatpush2.bf16.msra.mxu0 0
  %2394 = vmatprep.subr.bf16.mxu0 0
  %2395 = vmatpush2.bf16.msra.mxu0 0
  %2396 = vmatprep.subr.bf16.mxu0 0
  %2397 = vmatpush2.bf16.msra.mxu0 0
  %2398 = vmatprep.subr.bf16.mxu0 0
  %2399 = vmatpush2.bf16.msra.mxu0 0
  %2400 = vmatprep.subr.bf16.mxu0 0
  %2401 = vmatpush2.bf16.msra.mxu0 0
  %2402 = vmatprep.subr.bf16.mxu0 0
  %2403 = vmatpush2.bf16.msra.mxu0 0
  %2404 = vmatprep.mubr.bf16.mxu0 0
  %2405 = vmatmul.mubr.bf16.gmra.mxu0 %v2246
  %v2406 = vpop.f32.mrf.mxu0
  %v2407 = vadd.f32 %v2359, %v2406
  %v2408 = vpop.f32.mrf.mxu0
  %v2409 = vpop.f32.mrf.mxu0
  %v2410 = vadd.f32 %v2359, %v2409
  %v2411 = vpop.f32.mrf.mxu0
  %2412 = vdwg.mxu0
  %v2413 = vpack.c.bf16 %v2283, %v2283
  %v2414 = vpack.c.bf16 %v2286, %v2286
  %v2415 = vpack.c.bf16 %v2345, %v2345
  %v2416 = vpack.c.bf16 %v2348, %v2348
  %v2417 = vpack.c.bf16 %v2407, %v2407
  %v2418 = vpack.c.bf16 %v2410, %v2410
  %v2420 = vsel %vm62, %v2413, 0
  %v2423 = vsel %vm62, %v2415, 0
  %2425 = vmatprep.subr.bf16.mxu0 0
  %2426 = vmatpush1.bf16.xpose.msra.mxu0 0
  %2427 = vmatprep.subr.bf16.mxu0 0
  %2428 = vmatpush1.bf16.xpose.msra.mxu0 0
  %2429 = vmatprep.subr.bf16.mxu0 0
  %2430 = vmatpush1.bf16.xpose.msra.mxu0 0
  %2431 = vmatprep.subr.bf16.mxu0 0
  %2432 = vmatpush1.bf16.xpose.msra.mxu0 0
  %2433 = vmatprep.subr.bf16.mxu0 0
  %2434 = vmatpush1.bf16.xpose.msra.mxu0 0
  %2435 = vmatprep.subr.bf16.mxu0 0
  %2436 = vmatpush1.bf16.xpose.msra.mxu0 0
  %2437 = vmatprep.subr.bf16.mxu0 0
  %2438 = vmatpush1.bf16.xpose.msra.mxu0 0
  %2439 = vmatprep.subr.bf16.mxu0 0
  %2440 = vmatpush1.bf16.xpose.msra.mxu0 %v2423
  %2441 = vmatprep.subr.bf16.mxu0 0
  %2442 = vmatpush2.bf16.xpose.msra.mxu0 0
  %2443 = vmatprep.subr.bf16.mxu0 0
  %2444 = vmatpush2.bf16.xpose.msra.mxu0 0
  %2445 = vmatprep.subr.bf16.mxu0 0
  %2446 = vmatpush2.bf16.xpose.msra.mxu0 0
  %2447 = vmatprep.subr.bf16.mxu0 0
  %2448 = vmatpush2.bf16.xpose.msra.mxu0 0
  %2449 = vmatprep.subr.bf16.mxu0 0
  %2450 = vmatpush2.bf16.xpose.msra.mxu0 0
  %2451 = vmatprep.subr.bf16.mxu0 0
  %2452 = vmatpush2.bf16.xpose.msra.mxu0 0
  %2453 = vmatprep.subr.bf16.mxu0 0
  %2454 = vmatpush2.bf16.xpose.msra.mxu0 0
  %2455 = vmatprep.subr.bf16.mxu0 0
  %2456 = vmatpush2.bf16.xpose.msra.mxu0 0
  %2457 = vmatprep.mubr.bf16.mxu0 0
  %2458 = vmatmul.mubr.bf16.gmra.mxu0 %v2420
  %v2459 = vpop.f32.mrf.mxu0
  %v2460 = vadd.f32 0.0, %v2459
  %v2461 = vpop.f32.mrf.mxu0
  %v2462 = vpop.f32.mrf.mxu0
  %v2463 = vpop.f32.mrf.mxu0
  %2464 = vdwg.mxu0
  %v2466 = vsel %vm62, %v2414, 0
  %v2469 = vsel %vm62, %v2416, 0
  %2471 = vmatprep.subr.bf16.mxu0 0
  %2472 = vmatpush1.bf16.xpose.msra.mxu0 0
  %2473 = vmatprep.subr.bf16.mxu0 0
  %2474 = vmatpush1.bf16.xpose.msra.mxu0 0
  %2475 = vmatprep.subr.bf16.mxu0 0
  %2476 = vmatpush1.bf16.xpose.msra.mxu0 0
  %2477 = vmatprep.subr.bf16.mxu0 0
  %2478 = vmatpush1.bf16.xpose.msra.mxu0 0
  %2479 = vmatprep.subr.bf16.mxu0 0
  %2480 = vmatpush1.bf16.xpose.msra.mxu0 0
  %2481 = vmatprep.subr.bf16.mxu0 0
  %2482 = vmatpush1.bf16.xpose.msra.mxu0 0
  %2483 = vmatprep.subr.bf16.mxu0 0
  %2484 = vmatpush1.bf16.xpose.msra.mxu0 0
  %2485 = vmatprep.subr.bf16.mxu0 0
  %2486 = vmatpush1.bf16.xpose.msra.mxu0 %v2469
  %2487 = vmatprep.subr.bf16.mxu0 0
  %2488 = vmatpush2.bf16.xpose.msra.mxu0 0
  %2489 = vmatprep.subr.bf16.mxu0 0
  %2490 = vmatpush2.bf16.xpose.msra.mxu0 0
  %2491 = vmatprep.subr.bf16.mxu0 0
  %2492 = vmatpush2.bf16.xpose.msra.mxu0 0
  %2493 = vmatprep.subr.bf16.mxu0 0
  %2494 = vmatpush2.bf16.xpose.msra.mxu0 0
  %2495 = vmatprep.subr.bf16.mxu0 0
  %2496 = vmatpush2.bf16.xpose.msra.mxu0 0
  %2497 = vmatprep.subr.bf16.mxu0 0
  %2498 = vmatpush2.bf16.xpose.msra.mxu0 0
  %2499 = vmatprep.subr.bf16.mxu0 0
  %2500 = vmatpush2.bf16.xpose.msra.mxu0 0
  %2501 = vmatprep.subr.bf16.mxu0 0
  %2502 = vmatpush2.bf16.xpose.msra.mxu0 0
  %2503 = vmatprep.mubr.bf16.mxu0 0
  %2504 = vmatmul.mubr.bf16.gmra.mxu0 %v2466
  %v2505 = vpop.f32.mrf.mxu0
  %v2506 = vadd.f32 0.0, %v2505
  %v2507 = vpop.f32.mrf.mxu0
  %v2508 = vpop.f32.mrf.mxu0
  %v2509 = vpop.f32.mrf.mxu0
  %2510 = vdwg.mxu0
  %v2511 = vmul.f32 %v2460, 0.35355338
  %v2512 = vmul.f32 %v2506, 0.35355338
  %v2513 = vsel %vm62, %v2511, -inf
  %2514 = vmax.xlane.f32.xlu0 %v2513
  %v2515 = vpop.xlane.xlu0 %2514
  %v2516 = vsel %vm62, %v2512, -inf
  %2517 = vmax.xlane.f32.xlu0 %v2516
  %v2518 = vpop.xlane.xlu0 %2517
  %v2519 = vsub.f32 %v2511, %v2515
  %v2520 = vsub.f32 %v2512, %v2518
  %v2521 = vmul.f32 %v2519, 1.442695
  %v2522 = vpow.pop %v2521
  %v2523 = vmul.f32 %v2520, 1.442695
  %v2524 = vpow.pop %v2523
  %v2525 = vsel %vm62, %v2522, 0.0
  %2526 = vadd.xlane.f32.xlu0 %v2525
  %v2527 = vpop.xlane.xlu0 %2526
  %v2528 = vsel %vm62, %v2524, 0.0
  %2529 = vadd.xlane.f32.xlu0 %v2528
  %v2530 = vpop.xlane.xlu0 %2529
  %v2531 = vrcp.pop %v2527
  %v2532 = vrcp.pop %v2530
  %v2533 = vmul.f32 %v2522, %v2531
  %v2534 = vmul.f32 %v2524, %v2532
  %v2535 = vpack.c.bf16 %v2533, %v2533
  %v2536 = vpack.c.bf16 %v2534, %v2534
  %v2538 = vsel %vm62, %v2535, 0
  %v2541 = vsel %vm66, %v2417, 0
  %2543 = vmatprep.subr.bf16.mxu0 0
  %2544 = vmatpush1.bf16.msra.mxu0 0
  %2545 = vmatprep.subr.bf16.mxu0 0
  %2546 = vmatpush1.bf16.msra.mxu0 0
  %2547 = vmatprep.subr.bf16.mxu0 0
  %2548 = vmatpush1.bf16.msra.mxu0 0
  %2549 = vmatprep.subr.bf16.mxu0 0
  %2550 = vmatpush1.bf16.msra.mxu0 0
  %2551 = vmatprep.subr.bf16.mxu0 0
  %2552 = vmatpush1.bf16.msra.mxu0 0
  %2553 = vmatprep.subr.bf16.mxu0 0
  %2554 = vmatpush1.bf16.msra.mxu0 0
  %2555 = vmatprep.subr.bf16.mxu0 0
  %2556 = vmatpush1.bf16.msra.mxu0 0
  %2557 = vmatprep.subr.bf16.mxu0 0
  %2558 = vmatpush1.bf16.msra.mxu0 %v2541
  %2559 = vmatprep.subr.bf16.mxu0 0
  %2560 = vmatpush2.bf16.msra.mxu0 0
  %2561 = vmatprep.subr.bf16.mxu0 0
  %2562 = vmatpush2.bf16.msra.mxu0 0
  %2563 = vmatprep.subr.bf16.mxu0 0
  %2564 = vmatpush2.bf16.msra.mxu0 0
  %2565 = vmatprep.subr.bf16.mxu0 0
  %2566 = vmatpush2.bf16.msra.mxu0 0
  %2567 = vmatprep.subr.bf16.mxu0 0
  %2568 = vmatpush2.bf16.msra.mxu0 0
  %2569 = vmatprep.subr.bf16.mxu0 0
  %2570 = vmatpush2.bf16.msra.mxu0 0
  %2571 = vmatprep.subr.bf16.mxu0 0
  %2572 = vmatpush2.bf16.msra.mxu0 0
  %2573 = vmatprep.subr.bf16.mxu0 0
  %2574 = vmatpush2.bf16.msra.mxu0 0
  %2575 = vmatprep.mubr.bf16.mxu0 0
  %2576 = vmatmul.mubr.bf16.gmra.mxu0 %v2538
  %v2577 = vpop.f32.mrf.mxu0
  %v2578 = vadd.f32 0.0, %v2577
  %v2579 = vpop.f32.mrf.mxu0
  %v2580 = vpop.f32.mrf.mxu0
  %v2581 = vpop.f32.mrf.mxu0
  %2582 = vdwg.mxu0
  %v2584 = vsel %vm62, %v2536, 0
  %v2587 = vsel %vm66, %v2418, 0
  %2589 = vmatprep.subr.bf16.mxu0 0
  %2590 = vmatpush1.bf16.msra.mxu0 0
  %2591 = vmatprep.subr.bf16.mxu0 0
  %2592 = vmatpush1.bf16.msra.mxu0 0
  %2593 = vmatprep.subr.bf16.mxu0 0
  %2594 = vmatpush1.bf16.msra.mxu0 0
  %2595 = vmatprep.subr.bf16.mxu0 0
  %2596 = vmatpush1.bf16.msra.mxu0 0
  %2597 = vmatprep.subr.bf16.mxu0 0
  %2598 = vmatpush1.bf16.msra.mxu0 0
  %2599 = vmatprep.subr.bf16.mxu0 0
  %2600 = vmatpush1.bf16.msra.mxu0 0
  %2601 = vmatprep.subr.bf16.mxu0 0
  %2602 = vmatpush1.bf16.msra.mxu0 0
  %2603 = vmatprep.subr.bf16.mxu0 0
  %2604 = vmatpush1.bf16.msra.mxu0 %v2587
  %2605 = vmatprep.subr.bf16.mxu0 0
  %2606 = vmatpush2.bf16.msra.mxu0 0
  %2607 = vmatprep.subr.bf16.mxu0 0
  %2608 = vmatpush2.bf16.msra.mxu0 0
  %2609 = vmatprep.subr.bf16.mxu0 0
  %2610 = vmatpush2.bf16.msra.mxu0 0
  %2611 = vmatprep.subr.bf16.mxu0 0
  %2612 = vmatpush2.bf16.msra.mxu0 0
  %2613 = vmatprep.subr.bf16.mxu0 0
  %2614 = vmatpush2.bf16.msra.mxu0 0
  %2615 = vmatprep.subr.bf16.mxu0 0
  %2616 = vmatpush2.bf16.msra.mxu0 0
  %2617 = vmatprep.subr.bf16.mxu0 0
  %2618 = vmatpush2.bf16.msra.mxu0 0
  %2619 = vmatprep.subr.bf16.mxu0 0
  %2620 = vmatpush2.bf16.msra.mxu0 0
  %2621 = vmatprep.mubr.bf16.mxu0 0
  %2622 = vmatmul.mubr.bf16.gmra.mxu0 %v2584
  %v2623 = vpop.f32.mrf.mxu0
  %v2624 = vadd.f32 0.0, %v2623
  %v2625 = vpop.f32.mrf.mxu0
  %v2626 = vpop.f32.mrf.mxu0
  %v2627 = vpop.f32.mrf.mxu0
  %2628 = vdwg.mxu0
  %v2629 = vpack.c.bf16 %v2624, %v2578
  %s2630 = scalar_lea.vmem %s7, 16
  %v2631 = vld [vmem:[%s2630] sm:$0xf]
  %s2632 = scalar_lea.vmem %s8, 20
  %v2633 = vld [vmem:[%s2632] sm:$0x7]
  %s2634 = scalar_lea.vmem %s4, 80
  %v2635 = vld [vmem:[%s2634] sm:$0xf]
  %v2636 = vld [vmem:[%s2634 + $0x4] sm:$0xf]
  %v2637 = vld [vmem:[%s2634 + $0x8] sm:$0xf]
  %v2638 = vld [vmem:[%s2634 + $0xc] sm:$0xf]
  %v2639 = vlaneseq
  %v2640 = vshrl.u32 %v2639, 7
  %v2641 = vsub.s32 0, %v2640
  %v2642 = vrot.slane %v2633, %v2641
  %v2647 = vunpack.c.l.b16 %v2635
  %v2648 = vunpack.c.l.b16 %v2636
  %v2649 = vunpack.c.l.b16 %v2637
  %v2650 = vunpack.c.l.b16 %v2638
  %v2651 = vpack.c.b16 %v2648, %v2647
  %v2652 = vpack.c.b16 %v2650, %v2649
  %2655 = vmatprep.subr.bf16.mxu0 0
  %2656 = vmatpush1.bf16.msra.mxu0 0
  %2657 = vmatprep.subr.bf16.mxu0 0
  %2658 = vmatpush1.bf16.msra.mxu0 0
  %2659 = vmatprep.subr.bf16.mxu0 0
  %2660 = vmatpush1.bf16.msra.mxu0 0
  %2661 = vmatprep.subr.bf16.mxu0 0
  %2662 = vmatpush1.bf16.msra.mxu0 0
  %2663 = vmatprep.subr.bf16.mxu0 0
  %2664 = vmatpush1.bf16.msra.mxu0 0
  %2665 = vmatprep.subr.bf16.mxu0 0
  %2666 = vmatpush1.bf16.msra.mxu0 0
  %2667 = vmatprep.subr.bf16.mxu0 0
  %2668 = vmatpush1.bf16.msra.mxu0 %v2652
  %2669 = vmatprep.subr.bf16.mxu0 0
  %2670 = vmatpush1.bf16.msra.mxu0 %v2651
  %2671 = vmatprep.subr.bf16.mxu0 0
  %2672 = vmatpush2.bf16.msra.mxu0 0
  %2673 = vmatprep.subr.bf16.mxu0 0
  %2674 = vmatpush2.bf16.msra.mxu0 0
  %2675 = vmatprep.subr.bf16.mxu0 0
  %2676 = vmatpush2.bf16.msra.mxu0 0
  %2677 = vmatprep.subr.bf16.mxu0 0
  %2678 = vmatpush2.bf16.msra.mxu0 0
  %2679 = vmatprep.subr.bf16.mxu0 0
  %2680 = vmatpush2.bf16.msra.mxu0 0
  %2681 = vmatprep.subr.bf16.mxu0 0
  %2682 = vmatpush2.bf16.msra.mxu0 0
  %2683 = vmatprep.subr.bf16.mxu0 0
  %2684 = vmatpush2.bf16.msra.mxu0 0
  %2685 = vmatprep.subr.bf16.mxu0 0
  %2686 = vmatpush2.bf16.msra.mxu0 0
  %2687 = vmatprep.mubr.bf16.mxu0 0
  %2688 = vmatmul.mubr.bf16.gmra.mxu0 %v2246
  %v2689 = vpop.f32.mrf.mxu0
  %v2690 = vadd.f32 %v2642, %v2689
  %v2691 = vpop.f32.mrf.mxu0
  %v2692 = vpop.f32.mrf.mxu0
  %v2693 = vadd.f32 %v2642, %v2692
  %v2694 = vpop.f32.mrf.mxu0
  %2695 = vdwg.mxu0
  %s2696 = scalar_lea.vmem %s5, 80
  %v2697 = vld [vmem:[%s2696] sm:$0xf]
  %v2698 = vld [vmem:[%s2696 + $0x4] sm:$0xf]
  %v2699 = vld [vmem:[%s2696 + $0x8] sm:$0xf]
  %v2700 = vld [vmem:[%s2696 + $0xc] sm:$0xf]
  %v2701 = vlaneseq
  %v2702 = vshrl.u32 %v2701, 7
  %v2703 = vsub.s32 1, %v2702
  %v2704 = vrot.slane %v2633, %v2703
  %v2709 = vunpack.c.l.b16 %v2697
  %v2710 = vunpack.c.l.b16 %v2698
  %v2711 = vunpack.c.l.b16 %v2699
  %v2712 = vunpack.c.l.b16 %v2700
  %v2713 = vpack.c.b16 %v2710, %v2709
  %v2714 = vpack.c.b16 %v2712, %v2711
  %2717 = vmatprep.subr.bf16.mxu0 0
  %2718 = vmatpush1.bf16.msra.mxu0 0
  %2719 = vmatprep.subr.bf16.mxu0 0
  %2720 = vmatpush1.bf16.msra.mxu0 0
  %2721 = vmatprep.subr.bf16.mxu0 0
  %2722 = vmatpush1.bf16.msra.mxu0 0
  %2723 = vmatprep.subr.bf16.mxu0 0
  %2724 = vmatpush1.bf16.msra.mxu0 0
  %2725 = vmatprep.subr.bf16.mxu0 0
  %2726 = vmatpush1.bf16.msra.mxu0 0
  %2727 = vmatprep.subr.bf16.mxu0 0
  %2728 = vmatpush1.bf16.msra.mxu0 0
  %2729 = vmatprep.subr.bf16.mxu0 0
  %2730 = vmatpush1.bf16.msra.mxu0 %v2714
  %2731 = vmatprep.subr.bf16.mxu0 0
  %2732 = vmatpush1.bf16.msra.mxu0 %v2713
  %2733 = vmatprep.subr.bf16.mxu0 0
  %2734 = vmatpush2.bf16.msra.mxu0 0
  %2735 = vmatprep.subr.bf16.mxu0 0
  %2736 = vmatpush2.bf16.msra.mxu0 0
  %2737 = vmatprep.subr.bf16.mxu0 0
  %2738 = vmatpush2.bf16.msra.mxu0 0
  %2739 = vmatprep.subr.bf16.mxu0 0
  %2740 = vmatpush2.bf16.msra.mxu0 0
  %2741 = vmatprep.subr.bf16.mxu0 0
  %2742 = vmatpush2.bf16.msra.mxu0 0
  %2743 = vmatprep.subr.bf16.mxu0 0
  %2744 = vmatpush2.bf16.msra.mxu0 0
  %2745 = vmatprep.subr.bf16.mxu0 0
  %2746 = vmatpush2.bf16.msra.mxu0 0
  %2747 = vmatprep.subr.bf16.mxu0 0
  %2748 = vmatpush2.bf16.msra.mxu0 0
  %2749 = vmatprep.mubr.bf16.mxu0 0
  %2750 = vmatmul.mubr.bf16.gmra.mxu0 %v2246
  %v2751 = vpop.f32.mrf.mxu0
  %v2752 = vadd.f32 %v2704, %v2751
  %v2753 = vpop.f32.mrf.mxu0
  %v2754 = vpop.f32.mrf.mxu0
  %v2755 = vadd.f32 %v2704, %v2754
  %v2756 = vpop.f32.mrf.mxu0
  %2757 = vdwg.mxu0
  %s2758 = scalar_lea.vmem %s6, 80
  %v2759 = vld [vmem:[%s2758] sm:$0xf]
  %v2760 = vld [vmem:[%s2758 + $0x4] sm:$0xf]
  %v2761 = vld [vmem:[%s2758 + $0x8] sm:$0xf]
  %v2762 = vld [vmem:[%s2758 + $0xc] sm:$0xf]
  %v2763 = vlaneseq
  %v2764 = vshrl.u32 %v2763, 7
  %v2765 = vsub.s32 2, %v2764
  %v2766 = vrot.slane %v2633, %v2765
  %v2771 = vunpack.c.l.b16 %v2759
  %v2772 = vunpack.c.l.b16 %v2760
  %v2773 = vunpack.c.l.b16 %v2761
  %v2774 = vunpack.c.l.b16 %v2762
  %v2775 = vpack.c.b16 %v2772, %v2771
  %v2776 = vpack.c.b16 %v2774, %v2773
  %2779 = vmatprep.subr.bf16.mxu0 0
  %2780 = vmatpush1.bf16.msra.mxu0 0
  %2781 = vmatprep.subr.bf16.mxu0 0
  %2782 = vmatpush1.bf16.msra.mxu0 0
  %2783 = vmatprep.subr.bf16.mxu0 0
  %2784 = vmatpush1.bf16.msra.mxu0 0
  %2785 = vmatprep.subr.bf16.mxu0 0
  %2786 = vmatpush1.bf16.msra.mxu0 0
  %2787 = vmatprep.subr.bf16.mxu0 0
  %2788 = vmatpush1.bf16.msra.mxu0 0
  %2789 = vmatprep.subr.bf16.mxu0 0
  %2790 = vmatpush1.bf16.msra.mxu0 0
  %2791 = vmatprep.subr.bf16.mxu0 0
  %2792 = vmatpush1.bf16.msra.mxu0 %v2776
  %2793 = vmatprep.subr.bf16.mxu0 0
  %2794 = vmatpush1.bf16.msra.mxu0 %v2775
  %2795 = vmatprep.subr.bf16.mxu0 0
  %2796 = vmatpush2.bf16.msra.mxu0 0
  %2797 = vmatprep.subr.bf16.mxu0 0
  %2798 = vmatpush2.bf16.msra.mxu0 0
  %2799 = vmatprep.subr.bf16.mxu0 0
  %2800 = vmatpush2.bf16.msra.mxu0 0
  %2801 = vmatprep.subr.bf16.mxu0 0
  %2802 = vmatpush2.bf16.msra.mxu0 0
  %2803 = vmatprep.subr.bf16.mxu0 0
  %2804 = vmatpush2.bf16.msra.mxu0 0
  %2805 = vmatprep.subr.bf16.mxu0 0
  %2806 = vmatpush2.bf16.msra.mxu0 0
  %2807 = vmatprep.subr.bf16.mxu0 0
  %2808 = vmatpush2.bf16.msra.mxu0 0
  %2809 = vmatprep.subr.bf16.mxu0 0
  %2810 = vmatpush2.bf16.msra.mxu0 0
  %2811 = vmatprep.mubr.bf16.mxu0 0
  %2812 = vmatmul.mubr.bf16.gmra.mxu0 %v2246
  %v2813 = vpop.f32.mrf.mxu0
  %v2814 = vadd.f32 %v2766, %v2813
  %v2815 = vpop.f32.mrf.mxu0
  %v2816 = vpop.f32.mrf.mxu0
  %v2817 = vadd.f32 %v2766, %v2816
  %v2818 = vpop.f32.mrf.mxu0
  %2819 = vdwg.mxu0
  %v2820 = vpack.c.bf16 %v2690, %v2690
  %v2821 = vpack.c.bf16 %v2693, %v2693
  %v2822 = vpack.c.bf16 %v2752, %v2752
  %v2823 = vpack.c.bf16 %v2755, %v2755
  %v2824 = vpack.c.bf16 %v2814, %v2814
  %v2825 = vpack.c.bf16 %v2817, %v2817
  %v2827 = vsel %vm62, %v2820, 0
  %v2830 = vsel %vm62, %v2822, 0
  %2832 = vmatprep.subr.bf16.mxu0 0
  %2833 = vmatpush1.bf16.xpose.msra.mxu0 0
  %2834 = vmatprep.subr.bf16.mxu0 0
  %2835 = vmatpush1.bf16.xpose.msra.mxu0 0
  %2836 = vmatprep.subr.bf16.mxu0 0
  %2837 = vmatpush1.bf16.xpose.msra.mxu0 0
  %2838 = vmatprep.subr.bf16.mxu0 0
  %2839 = vmatpush1.bf16.xpose.msra.mxu0 0
  %2840 = vmatprep.subr.bf16.mxu0 0
  %2841 = vmatpush1.bf16.xpose.msra.mxu0 0
  %2842 = vmatprep.subr.bf16.mxu0 0
  %2843 = vmatpush1.bf16.xpose.msra.mxu0 0
  %2844 = vmatprep.subr.bf16.mxu0 0
  %2845 = vmatpush1.bf16.xpose.msra.mxu0 0
  %2846 = vmatprep.subr.bf16.mxu0 0
  %2847 = vmatpush1.bf16.xpose.msra.mxu0 %v2830
  %2848 = vmatprep.subr.bf16.mxu0 0
  %2849 = vmatpush2.bf16.xpose.msra.mxu0 0
  %2850 = vmatprep.subr.bf16.mxu0 0
  %2851 = vmatpush2.bf16.xpose.msra.mxu0 0
  %2852 = vmatprep.subr.bf16.mxu0 0
  %2853 = vmatpush2.bf16.xpose.msra.mxu0 0
  %2854 = vmatprep.subr.bf16.mxu0 0
  %2855 = vmatpush2.bf16.xpose.msra.mxu0 0
  %2856 = vmatprep.subr.bf16.mxu0 0
  %2857 = vmatpush2.bf16.xpose.msra.mxu0 0
  %2858 = vmatprep.subr.bf16.mxu0 0
  %2859 = vmatpush2.bf16.xpose.msra.mxu0 0
  %2860 = vmatprep.subr.bf16.mxu0 0
  %2861 = vmatpush2.bf16.xpose.msra.mxu0 0
  %2862 = vmatprep.subr.bf16.mxu0 0
  %2863 = vmatpush2.bf16.xpose.msra.mxu0 0
  %2864 = vmatprep.mubr.bf16.mxu0 0
  %2865 = vmatmul.mubr.bf16.gmra.mxu0 %v2827
  %v2866 = vpop.f32.mrf.mxu0
  %v2867 = vadd.f32 0.0, %v2866
  %v2868 = vpop.f32.mrf.mxu0
  %v2869 = vpop.f32.mrf.mxu0
  %v2870 = vpop.f32.mrf.mxu0
  %2871 = vdwg.mxu0
  %v2873 = vsel %vm62, %v2821, 0
  %v2876 = vsel %vm62, %v2823, 0
  %2878 = vmatprep.subr.bf16.mxu0 0
  %2879 = vmatpush1.bf16.xpose.msra.mxu0 0
  %2880 = vmatprep.subr.bf16.mxu0 0
  %2881 = vmatpush1.bf16.xpose.msra.mxu0 0
  %2882 = vmatprep.subr.bf16.mxu0 0
  %2883 = vmatpush1.bf16.xpose.msra.mxu0 0
  %2884 = vmatprep.subr.bf16.mxu0 0
  %2885 = vmatpush1.bf16.xpose.msra.mxu0 0
  %2886 = vmatprep.subr.bf16.mxu0 0
  %2887 = vmatpush1.bf16.xpose.msra.mxu0 0
  %2888 = vmatprep.subr.bf16.mxu0 0
  %2889 = vmatpush1.bf16.xpose.msra.mxu0 0
  %2890 = vmatprep.subr.bf16.mxu0 0
  %2891 = vmatpush1.bf16.xpose.msra.mxu0 0
  %2892 = vmatprep.subr.bf16.mxu0 0
  %2893 = vmatpush1.bf16.xpose.msra.mxu0 %v2876
  %2894 = vmatprep.subr.bf16.mxu0 0
  %2895 = vmatpush2.bf16.xpose.msra.mxu0 0
  %2896 = vmatprep.subr.bf16.mxu0 0
  %2897 = vmatpush2.bf16.xpose.msra.mxu0 0
  %2898 = vmatprep.subr.bf16.mxu0 0
  %2899 = vmatpush2.bf16.xpose.msra.mxu0 0
  %2900 = vmatprep.subr.bf16.mxu0 0
  %2901 = vmatpush2.bf16.xpose.msra.mxu0 0
  %2902 = vmatprep.subr.bf16.mxu0 0
  %2903 = vmatpush2.bf16.xpose.msra.mxu0 0
  %2904 = vmatprep.subr.bf16.mxu0 0
  %2905 = vmatpush2.bf16.xpose.msra.mxu0 0
  %2906 = vmatprep.subr.bf16.mxu0 0
  %2907 = vmatpush2.bf16.xpose.msra.mxu0 0
  %2908 = vmatprep.subr.bf16.mxu0 0
  %2909 = vmatpush2.bf16.xpose.msra.mxu0 0
  %2910 = vmatprep.mubr.bf16.mxu0 0
  %2911 = vmatmul.mubr.bf16.gmra.mxu0 %v2873
  %v2912 = vpop.f32.mrf.mxu0
  %v2913 = vadd.f32 0.0, %v2912
  %v2914 = vpop.f32.mrf.mxu0
  %v2915 = vpop.f32.mrf.mxu0
  %v2916 = vpop.f32.mrf.mxu0
  %2917 = vdwg.mxu0
  %v2918 = vmul.f32 %v2867, 0.35355338
  %v2919 = vmul.f32 %v2913, 0.35355338
  %v2920 = vsel %vm62, %v2918, -inf
  %2921 = vmax.xlane.f32.xlu0 %v2920
  %v2922 = vpop.xlane.xlu0 %2921
  %v2923 = vsel %vm62, %v2919, -inf
  %2924 = vmax.xlane.f32.xlu0 %v2923
  %v2925 = vpop.xlane.xlu0 %2924
  %v2926 = vsub.f32 %v2918, %v2922
  %v2927 = vsub.f32 %v2919, %v2925
  %v2928 = vmul.f32 %v2926, 1.442695
  %v2929 = vpow.pop %v2928
  %v2930 = vmul.f32 %v2927, 1.442695
  %v2931 = vpow.pop %v2930
  %v2932 = vsel %vm62, %v2929, 0.0
  %2933 = vadd.xlane.f32.xlu0 %v2932
  %v2934 = vpop.xlane.xlu0 %2933
  %v2935 = vsel %vm62, %v2931, 0.0
  %2936 = vadd.xlane.f32.xlu0 %v2935
  %v2937 = vpop.xlane.xlu0 %2936
  %v2938 = vrcp.pop %v2934
  %v2939 = vrcp.pop %v2937
  %v2940 = vmul.f32 %v2929, %v2938
  %v2941 = vmul.f32 %v2931, %v2939
  %v2942 = vpack.c.bf16 %v2940, %v2940
  %v2943 = vpack.c.bf16 %v2941, %v2941
  %v2945 = vsel %vm62, %v2942, 0
  %v2948 = vsel %vm66, %v2824, 0
  %2950 = vmatprep.subr.bf16.mxu0 0
  %2951 = vmatpush1.bf16.msra.mxu0 0
  %2952 = vmatprep.subr.bf16.mxu0 0
  %2953 = vmatpush1.bf16.msra.mxu0 0
  %2954 = vmatprep.subr.bf16.mxu0 0
  %2955 = vmatpush1.bf16.msra.mxu0 0
  %2956 = vmatprep.subr.bf16.mxu0 0
  %2957 = vmatpush1.bf16.msra.mxu0 0
  %2958 = vmatprep.subr.bf16.mxu0 0
  %2959 = vmatpush1.bf16.msra.mxu0 0
  %2960 = vmatprep.subr.bf16.mxu0 0
  %2961 = vmatpush1.bf16.msra.mxu0 0
  %2962 = vmatprep.subr.bf16.mxu0 0
  %2963 = vmatpush1.bf16.msra.mxu0 0
  %2964 = vmatprep.subr.bf16.mxu0 0
  %2965 = vmatpush1.bf16.msra.mxu0 %v2948
  %2966 = vmatprep.subr.bf16.mxu0 0
  %2967 = vmatpush2.bf16.msra.mxu0 0
  %2968 = vmatprep.subr.bf16.mxu0 0
  %2969 = vmatpush2.bf16.msra.mxu0 0
  %2970 = vmatprep.subr.bf16.mxu0 0
  %2971 = vmatpush2.bf16.msra.mxu0 0
  %2972 = vmatprep.subr.bf16.mxu0 0
  %2973 = vmatpush2.bf16.msra.mxu0 0
  %2974 = vmatprep.subr.bf16.mxu0 0
  %2975 = vmatpush2.bf16.msra.mxu0 0
  %2976 = vmatprep.subr.bf16.mxu0 0
  %2977 = vmatpush2.bf16.msra.mxu0 0
  %2978 = vmatprep.subr.bf16.mxu0 0
  %2979 = vmatpush2.bf16.msra.mxu0 0
  %2980 = vmatprep.subr.bf16.mxu0 0
  %2981 = vmatpush2.bf16.msra.mxu0 0
  %2982 = vmatprep.mubr.bf16.mxu0 0
  %2983 = vmatmul.mubr.bf16.gmra.mxu0 %v2945
  %v2984 = vpop.f32.mrf.mxu0
  %v2985 = vadd.f32 0.0, %v2984
  %v2986 = vpop.f32.mrf.mxu0
  %v2987 = vpop.f32.mrf.mxu0
  %v2988 = vpop.f32.mrf.mxu0
  %2989 = vdwg.mxu0
  %v2991 = vsel %vm62, %v2943, 0
  %v2994 = vsel %vm66, %v2825, 0
  %2996 = vmatprep.subr.bf16.mxu0 0
  %2997 = vmatpush1.bf16.msra.mxu0 0
  %2998 = vmatprep.subr.bf16.mxu0 0
  %2999 = vmatpush1.bf16.msra.mxu0 0
  %3000 = vmatprep.subr.bf16.mxu0 0
  %3001 = vmatpush1.bf16.msra.mxu0 0
  %3002 = vmatprep.subr.bf16.mxu0 0
  %3003 = vmatpush1.bf16.msra.mxu0 0
  %3004 = vmatprep.subr.bf16.mxu0 0
  %3005 = vmatpush1.bf16.msra.mxu0 0
  %3006 = vmatprep.subr.bf16.mxu0 0
  %3007 = vmatpush1.bf16.msra.mxu0 0
  %3008 = vmatprep.subr.bf16.mxu0 0
  %3009 = vmatpush1.bf16.msra.mxu0 0
  %3010 = vmatprep.subr.bf16.mxu0 0
  %3011 = vmatpush1.bf16.msra.mxu0 %v2994
  %3012 = vmatprep.subr.bf16.mxu0 0
  %3013 = vmatpush2.bf16.msra.mxu0 0
  %3014 = vmatprep.subr.bf16.mxu0 0
  %3015 = vmatpush2.bf16.msra.mxu0 0
  %3016 = vmatprep.subr.bf16.mxu0 0
  %3017 = vmatpush2.bf16.msra.mxu0 0
  %3018 = vmatprep.subr.bf16.mxu0 0
  %3019 = vmatpush2.bf16.msra.mxu0 0
  %3020 = vmatprep.subr.bf16.mxu0 0
  %3021 = vmatpush2.bf16.msra.mxu0 0
  %3022 = vmatprep.subr.bf16.mxu0 0
  %3023 = vmatpush2.bf16.msra.mxu0 0
  %3024 = vmatprep.subr.bf16.mxu0 0
  %3025 = vmatpush2.bf16.msra.mxu0 0
  %3026 = vmatprep.subr.bf16.mxu0 0
  %3027 = vmatpush2.bf16.msra.mxu0 0
  %3028 = vmatprep.mubr.bf16.mxu0 0
  %3029 = vmatmul.mubr.bf16.gmra.mxu0 %v2991
  %v3030 = vpop.f32.mrf.mxu0
  %v3031 = vadd.f32 0.0, %v3030
  %v3032 = vpop.f32.mrf.mxu0
  %v3033 = vpop.f32.mrf.mxu0
  %v3034 = vpop.f32.mrf.mxu0
  %3035 = vdwg.mxu0
  %v3036 = vpack.c.bf16 %v3031, %v2985
  %s3037 = scalar_lea.vmem %s7, 20
  %v3038 = vld [vmem:[%s3037] sm:$0xf]
  %v3040 = vsel %vm62, %v3036, 0
  %v3043 = vsel %vm66, %v3038, 0
  %3045 = vmatprep.subr.bf16.mxu0 0
  %3046 = vmatpush1.bf16.msra.mxu0 0
  %3047 = vmatprep.subr.bf16.mxu0 0
  %3048 = vmatpush1.bf16.msra.mxu0 0
  %3049 = vmatprep.subr.bf16.mxu0 0
  %3050 = vmatpush1.bf16.msra.mxu0 0
  %3051 = vmatprep.subr.bf16.mxu0 0
  %3052 = vmatpush1.bf16.msra.mxu0 0
  %3053 = vmatprep.subr.bf16.mxu0 0
  %3054 = vmatpush1.bf16.msra.mxu0 0
  %3055 = vmatprep.subr.bf16.mxu0 0
  %3056 = vmatpush1.bf16.msra.mxu0 0
  %3057 = vmatprep.subr.bf16.mxu0 0
  %3058 = vmatpush1.bf16.msra.mxu0 0
  %3059 = vmatprep.subr.bf16.mxu0 0
  %3060 = vmatpush1.bf16.msra.mxu0 %v3043
  %3061 = vmatprep.subr.bf16.mxu0 0
  %3062 = vmatpush2.bf16.msra.mxu0 0
  %3063 = vmatprep.subr.bf16.mxu0 0
  %3064 = vmatpush2.bf16.msra.mxu0 0
  %3065 = vmatprep.subr.bf16.mxu0 0
  %3066 = vmatpush2.bf16.msra.mxu0 0
  %3067 = vmatprep.subr.bf16.mxu0 0
  %3068 = vmatpush2.bf16.msra.mxu0 0
  %3069 = vmatprep.subr.bf16.mxu0 0
  %3070 = vmatpush2.bf16.msra.mxu0 0
  %3071 = vmatprep.subr.bf16.mxu0 0
  %3072 = vmatpush2.bf16.msra.mxu0 0
  %3073 = vmatprep.subr.bf16.mxu0 0
  %3074 = vmatpush2.bf16.msra.mxu0 0
  %3075 = vmatprep.subr.bf16.mxu0 0
  %3076 = vmatpush2.bf16.msra.mxu0 0
  %3077 = vmatprep.mubr.bf16.mxu0 0
  %3078 = vmatmul.mubr.bf16.gmra.mxu0 %v3040
  %v3079 = vpop.f32.mrf.mxu0
  %v3080 = vadd.f32 0.0, %v3079
  %v3081 = vpop.f32.mrf.mxu0
  %v3082 = vpop.f32.mrf.mxu0
  %v3083 = vadd.f32 0.0, %v3082
  %v3084 = vpop.f32.mrf.mxu0
  %3085 = vdwg.mxu0
  %v3087 = vsel %vm62, %v2629, 0
  %v3090 = vsel %vm66, %v2631, 0
  %3092 = vmatprep.subr.bf16.mxu0 0
  %3093 = vmatpush1.bf16.msra.mxu0 0
  %3094 = vmatprep.subr.bf16.mxu0 0
  %3095 = vmatpush1.bf16.msra.mxu0 0
  %3096 = vmatprep.subr.bf16.mxu0 0
  %3097 = vmatpush1.bf16.msra.mxu0 0
  %3098 = vmatprep.subr.bf16.mxu0 0
  %3099 = vmatpush1.bf16.msra.mxu0 0
  %3100 = vmatprep.subr.bf16.mxu0 0
  %3101 = vmatpush1.bf16.msra.mxu0 0
  %3102 = vmatprep.subr.bf16.mxu0 0
  %3103 = vmatpush1.bf16.msra.mxu0 0
  %3104 = vmatprep.subr.bf16.mxu0 0
  %3105 = vmatpush1.bf16.msra.mxu0 0
  %3106 = vmatprep.subr.bf16.mxu0 0
  %3107 = vmatpush1.bf16.msra.mxu0 %v3090
  %3108 = vmatprep.subr.bf16.mxu0 0
  %3109 = vmatpush2.bf16.msra.mxu0 0
  %3110 = vmatprep.subr.bf16.mxu0 0
  %3111 = vmatpush2.bf16.msra.mxu0 0
  %3112 = vmatprep.subr.bf16.mxu0 0
  %3113 = vmatpush2.bf16.msra.mxu0 0
  %3114 = vmatprep.subr.bf16.mxu0 0
  %3115 = vmatpush2.bf16.msra.mxu0 0
  %3116 = vmatprep.subr.bf16.mxu0 0
  %3117 = vmatpush2.bf16.msra.mxu0 0
  %3118 = vmatprep.subr.bf16.mxu0 0
  %3119 = vmatpush2.bf16.msra.mxu0 0
  %3120 = vmatprep.subr.bf16.mxu0 0
  %3121 = vmatpush2.bf16.msra.mxu0 0
  %3122 = vmatprep.subr.bf16.mxu0 0
  %3123 = vmatpush2.bf16.msra.mxu0 0
  %3124 = vmatprep.mubr.bf16.mxu0 0
  %3125 = vmatmul.mubr.bf16.gmra.mxu0 %v3087
  %v3126 = vpop.f32.mrf.mxu0
  %v3127 = vadd.f32 %v3080, %v3126
  %v3128 = vpop.f32.mrf.mxu0
  %v3129 = vpop.f32.mrf.mxu0
  %v3130 = vadd.f32 %v3083, %v3129
  %v3131 = vpop.f32.mrf.mxu0
  %3132 = vdwg.mxu0
  %s3133 = scalar_lea.vmem %s8, 24
  %v3134 = vld [vmem:[%s3133] sm:$0x7]
  %s3135 = scalar_lea.vmem %s4, 96
  %v3136 = vld [vmem:[%s3135] sm:$0xf]
  %v3137 = vld [vmem:[%s3135 + $0x4] sm:$0xf]
  %v3138 = vld [vmem:[%s3135 + $0x8] sm:$0xf]
  %v3139 = vld [vmem:[%s3135 + $0xc] sm:$0xf]
  %v3140 = vlaneseq
  %v3141 = vshrl.u32 %v3140, 7
  %v3142 = vsub.s32 0, %v3141
  %v3143 = vrot.slane %v3134, %v3142
  %v3148 = vunpack.c.l.b16 %v3136
  %v3149 = vunpack.c.l.b16 %v3137
  %v3150 = vunpack.c.l.b16 %v3138
  %v3151 = vunpack.c.l.b16 %v3139
  %v3152 = vpack.c.b16 %v3149, %v3148
  %v3153 = vpack.c.b16 %v3151, %v3150
  %3156 = vmatprep.subr.bf16.mxu0 0
  %3157 = vmatpush1.bf16.msra.mxu0 0
  %3158 = vmatprep.subr.bf16.mxu0 0
  %3159 = vmatpush1.bf16.msra.mxu0 0
  %3160 = vmatprep.subr.bf16.mxu0 0
  %3161 = vmatpush1.bf16.msra.mxu0 0
  %3162 = vmatprep.subr.bf16.mxu0 0
  %3163 = vmatpush1.bf16.msra.mxu0 0
  %3164 = vmatprep.subr.bf16.mxu0 0
  %3165 = vmatpush1.bf16.msra.mxu0 0
  %3166 = vmatprep.subr.bf16.mxu0 0
  %3167 = vmatpush1.bf16.msra.mxu0 0
  %3168 = vmatprep.subr.bf16.mxu0 0
  %3169 = vmatpush1.bf16.msra.mxu0 %v3153
  %3170 = vmatprep.subr.bf16.mxu0 0
  %3171 = vmatpush1.bf16.msra.mxu0 %v3152
  %3172 = vmatprep.subr.bf16.mxu0 0
  %3173 = vmatpush2.bf16.msra.mxu0 0
  %3174 = vmatprep.subr.bf16.mxu0 0
  %3175 = vmatpush2.bf16.msra.mxu0 0
  %3176 = vmatprep.subr.bf16.mxu0 0
  %3177 = vmatpush2.bf16.msra.mxu0 0
  %3178 = vmatprep.subr.bf16.mxu0 0
  %3179 = vmatpush2.bf16.msra.mxu0 0
  %3180 = vmatprep.subr.bf16.mxu0 0
  %3181 = vmatpush2.bf16.msra.mxu0 0
  %3182 = vmatprep.subr.bf16.mxu0 0
  %3183 = vmatpush2.bf16.msra.mxu0 0
  %3184 = vmatprep.subr.bf16.mxu0 0
  %3185 = vmatpush2.bf16.msra.mxu0 0
  %3186 = vmatprep.subr.bf16.mxu0 0
  %3187 = vmatpush2.bf16.msra.mxu0 0
  %3188 = vmatprep.mubr.bf16.mxu0 0
  %3189 = vmatmul.mubr.bf16.gmra.mxu0 %v2246
  %v3190 = vpop.f32.mrf.mxu0
  %v3191 = vadd.f32 %v3143, %v3190
  %v3192 = vpop.f32.mrf.mxu0
  %v3193 = vpop.f32.mrf.mxu0
  %v3194 = vadd.f32 %v3143, %v3193
  %v3195 = vpop.f32.mrf.mxu0
  %3196 = vdwg.mxu0
  %s3197 = scalar_lea.vmem %s5, 96
  %v3198 = vld [vmem:[%s3197] sm:$0xf]
  %v3199 = vld [vmem:[%s3197 + $0x4] sm:$0xf]
  %v3200 = vld [vmem:[%s3197 + $0x8] sm:$0xf]
  %v3201 = vld [vmem:[%s3197 + $0xc] sm:$0xf]
  %v3202 = vlaneseq
  %v3203 = vshrl.u32 %v3202, 7
  %v3204 = vsub.s32 1, %v3203
  %v3205 = vrot.slane %v3134, %v3204
  %v3210 = vunpack.c.l.b16 %v3198
  %v3211 = vunpack.c.l.b16 %v3199
  %v3212 = vunpack.c.l.b16 %v3200
  %v3213 = vunpack.c.l.b16 %v3201
  %v3214 = vpack.c.b16 %v3211, %v3210
  %v3215 = vpack.c.b16 %v3213, %v3212
  %3218 = vmatprep.subr.bf16.mxu0 0
  %3219 = vmatpush1.bf16.msra.mxu0 0
  %3220 = vmatprep.subr.bf16.mxu0 0
  %3221 = vmatpush1.bf16.msra.mxu0 0
  %3222 = vmatprep.subr.bf16.mxu0 0
  %3223 = vmatpush1.bf16.msra.mxu0 0
  %3224 = vmatprep.subr.bf16.mxu0 0
  %3225 = vmatpush1.bf16.msra.mxu0 0
  %3226 = vmatprep.subr.bf16.mxu0 0
  %3227 = vmatpush1.bf16.msra.mxu0 0
  %3228 = vmatprep.subr.bf16.mxu0 0
  %3229 = vmatpush1.bf16.msra.mxu0 0
  %3230 = vmatprep.subr.bf16.mxu0 0
  %3231 = vmatpush1.bf16.msra.mxu0 %v3215
  %3232 = vmatprep.subr.bf16.mxu0 0
  %3233 = vmatpush1.bf16.msra.mxu0 %v3214
  %3234 = vmatprep.subr.bf16.mxu0 0
  %3235 = vmatpush2.bf16.msra.mxu0 0
  %3236 = vmatprep.subr.bf16.mxu0 0
  %3237 = vmatpush2.bf16.msra.mxu0 0
  %3238 = vmatprep.subr.bf16.mxu0 0
  %3239 = vmatpush2.bf16.msra.mxu0 0
  %3240 = vmatprep.subr.bf16.mxu0 0
  %3241 = vmatpush2.bf16.msra.mxu0 0
  %3242 = vmatprep.subr.bf16.mxu0 0
  %3243 = vmatpush2.bf16.msra.mxu0 0
  %3244 = vmatprep.subr.bf16.mxu0 0
  %3245 = vmatpush2.bf16.msra.mxu0 0
  %3246 = vmatprep.subr.bf16.mxu0 0
  %3247 = vmatpush2.bf16.msra.mxu0 0
  %3248 = vmatprep.subr.bf16.mxu0 0
  %3249 = vmatpush2.bf16.msra.mxu0 0
  %3250 = vmatprep.mubr.bf16.mxu0 0
  %3251 = vmatmul.mubr.bf16.gmra.mxu0 %v2246
  %v3252 = vpop.f32.mrf.mxu0
  %v3253 = vadd.f32 %v3205, %v3252
  %v3254 = vpop.f32.mrf.mxu0
  %v3255 = vpop.f32.mrf.mxu0
  %v3256 = vadd.f32 %v3205, %v3255
  %v3257 = vpop.f32.mrf.mxu0
  %3258 = vdwg.mxu0
  %s3259 = scalar_lea.vmem %s6, 96
  %v3260 = vld [vmem:[%s3259] sm:$0xf]
  %v3261 = vld [vmem:[%s3259 + $0x4] sm:$0xf]
  %v3262 = vld [vmem:[%s3259 + $0x8] sm:$0xf]
  %v3263 = vld [vmem:[%s3259 + $0xc] sm:$0xf]
  %v3264 = vlaneseq
  %v3265 = vshrl.u32 %v3264, 7
  %v3266 = vsub.s32 2, %v3265
  %v3267 = vrot.slane %v3134, %v3266
  %v3272 = vunpack.c.l.b16 %v3260
  %v3273 = vunpack.c.l.b16 %v3261
  %v3274 = vunpack.c.l.b16 %v3262
  %v3275 = vunpack.c.l.b16 %v3263
  %v3276 = vpack.c.b16 %v3273, %v3272
  %v3277 = vpack.c.b16 %v3275, %v3274
  %3280 = vmatprep.subr.bf16.mxu0 0
  %3281 = vmatpush1.bf16.msra.mxu0 0
  %3282 = vmatprep.subr.bf16.mxu0 0
  %3283 = vmatpush1.bf16.msra.mxu0 0
  %3284 = vmatprep.subr.bf16.mxu0 0
  %3285 = vmatpush1.bf16.msra.mxu0 0
  %3286 = vmatprep.subr.bf16.mxu0 0
  %3287 = vmatpush1.bf16.msra.mxu0 0
  %3288 = vmatprep.subr.bf16.mxu0 0
  %3289 = vmatpush1.bf16.msra.mxu0 0
  %3290 = vmatprep.subr.bf16.mxu0 0
  %3291 = vmatpush1.bf16.msra.mxu0 0
  %3292 = vmatprep.subr.bf16.mxu0 0
  %3293 = vmatpush1.bf16.msra.mxu0 %v3277
  %3294 = vmatprep.subr.bf16.mxu0 0
  %3295 = vmatpush1.bf16.msra.mxu0 %v3276
  %3296 = vmatprep.subr.bf16.mxu0 0
  %3297 = vmatpush2.bf16.msra.mxu0 0
  %3298 = vmatprep.subr.bf16.mxu0 0
  %3299 = vmatpush2.bf16.msra.mxu0 0
  %3300 = vmatprep.subr.bf16.mxu0 0
  %3301 = vmatpush2.bf16.msra.mxu0 0
  %3302 = vmatprep.subr.bf16.mxu0 0
  %3303 = vmatpush2.bf16.msra.mxu0 0
  %3304 = vmatprep.subr.bf16.mxu0 0
  %3305 = vmatpush2.bf16.msra.mxu0 0
  %3306 = vmatprep.subr.bf16.mxu0 0
  %3307 = vmatpush2.bf16.msra.mxu0 0
  %3308 = vmatprep.subr.bf16.mxu0 0
  %3309 = vmatpush2.bf16.msra.mxu0 0
  %3310 = vmatprep.subr.bf16.mxu0 0
  %3311 = vmatpush2.bf16.msra.mxu0 0
  %3312 = vmatprep.mubr.bf16.mxu0 0
  %3313 = vmatmul.mubr.bf16.gmra.mxu0 %v2246
  %v3314 = vpop.f32.mrf.mxu0
  %v3315 = vadd.f32 %v3267, %v3314
  %v3316 = vpop.f32.mrf.mxu0
  %v3317 = vpop.f32.mrf.mxu0
  %v3318 = vadd.f32 %v3267, %v3317
  %v3319 = vpop.f32.mrf.mxu0
  %3320 = vdwg.mxu0
  %v3321 = vpack.c.bf16 %v3191, %v3191
  %v3322 = vpack.c.bf16 %v3194, %v3194
  %v3323 = vpack.c.bf16 %v3253, %v3253
  %v3324 = vpack.c.bf16 %v3256, %v3256
  %v3325 = vpack.c.bf16 %v3315, %v3315
  %v3326 = vpack.c.bf16 %v3318, %v3318
  %v3328 = vsel %vm62, %v3321, 0
  %v3331 = vsel %vm62, %v3323, 0
  %3333 = vmatprep.subr.bf16.mxu0 0
  %3334 = vmatpush1.bf16.xpose.msra.mxu0 0
  %3335 = vmatprep.subr.bf16.mxu0 0
  %3336 = vmatpush1.bf16.xpose.msra.mxu0 0
  %3337 = vmatprep.subr.bf16.mxu0 0
  %3338 = vmatpush1.bf16.xpose.msra.mxu0 0
  %3339 = vmatprep.subr.bf16.mxu0 0
  %3340 = vmatpush1.bf16.xpose.msra.mxu0 0
  %3341 = vmatprep.subr.bf16.mxu0 0
  %3342 = vmatpush1.bf16.xpose.msra.mxu0 0
  %3343 = vmatprep.subr.bf16.mxu0 0
  %3344 = vmatpush1.bf16.xpose.msra.mxu0 0
  %3345 = vmatprep.subr.bf16.mxu0 0
  %3346 = vmatpush1.bf16.xpose.msra.mxu0 0
  %3347 = vmatprep.subr.bf16.mxu0 0
  %3348 = vmatpush1.bf16.xpose.msra.mxu0 %v3331
  %3349 = vmatprep.subr.bf16.mxu0 0
  %3350 = vmatpush2.bf16.xpose.msra.mxu0 0
  %3351 = vmatprep.subr.bf16.mxu0 0
  %3352 = vmatpush2.bf16.xpose.msra.mxu0 0
  %3353 = vmatprep.subr.bf16.mxu0 0
  %3354 = vmatpush2.bf16.xpose.msra.mxu0 0
  %3355 = vmatprep.subr.bf16.mxu0 0
  %3356 = vmatpush2.bf16.xpose.msra.mxu0 0
  %3357 = vmatprep.subr.bf16.mxu0 0
  %3358 = vmatpush2.bf16.xpose.msra.mxu0 0
  %3359 = vmatprep.subr.bf16.mxu0 0
  %3360 = vmatpush2.bf16.xpose.msra.mxu0 0
  %3361 = vmatprep.subr.bf16.mxu0 0
  %3362 = vmatpush2.bf16.xpose.msra.mxu0 0
  %3363 = vmatprep.subr.bf16.mxu0 0
  %3364 = vmatpush2.bf16.xpose.msra.mxu0 0
  %3365 = vmatprep.mubr.bf16.mxu0 0
  %3366 = vmatmul.mubr.bf16.gmra.mxu0 %v3328
  %v3367 = vpop.f32.mrf.mxu0
  %v3368 = vadd.f32 0.0, %v3367
  %v3369 = vpop.f32.mrf.mxu0
  %v3370 = vpop.f32.mrf.mxu0
  %v3371 = vpop.f32.mrf.mxu0
  %3372 = vdwg.mxu0
  %v3374 = vsel %vm62, %v3322, 0
  %v3377 = vsel %vm62, %v3324, 0
  %3379 = vmatprep.subr.bf16.mxu0 0
  %3380 = vmatpush1.bf16.xpose.msra.mxu0 0
  %3381 = vmatprep.subr.bf16.mxu0 0
  %3382 = vmatpush1.bf16.xpose.msra.mxu0 0
  %3383 = vmatprep.subr.bf16.mxu0 0
  %3384 = vmatpush1.bf16.xpose.msra.mxu0 0
  %3385 = vmatprep.subr.bf16.mxu0 0
  %3386 = vmatpush1.bf16.xpose.msra.mxu0 0
  %3387 = vmatprep.subr.bf16.mxu0 0
  %3388 = vmatpush1.bf16.xpose.msra.mxu0 0
  %3389 = vmatprep.subr.bf16.mxu0 0
  %3390 = vmatpush1.bf16.xpose.msra.mxu0 0
  %3391 = vmatprep.subr.bf16.mxu0 0
  %3392 = vmatpush1.bf16.xpose.msra.mxu0 0
  %3393 = vmatprep.subr.bf16.mxu0 0
  %3394 = vmatpush1.bf16.xpose.msra.mxu0 %v3377
  %3395 = vmatprep.subr.bf16.mxu0 0
  %3396 = vmatpush2.bf16.xpose.msra.mxu0 0
  %3397 = vmatprep.subr.bf16.mxu0 0
  %3398 = vmatpush2.bf16.xpose.msra.mxu0 0
  %3399 = vmatprep.subr.bf16.mxu0 0
  %3400 = vmatpush2.bf16.xpose.msra.mxu0 0
  %3401 = vmatprep.subr.bf16.mxu0 0
  %3402 = vmatpush2.bf16.xpose.msra.mxu0 0
  %3403 = vmatprep.subr.bf16.mxu0 0
  %3404 = vmatpush2.bf16.xpose.msra.mxu0 0
  %3405 = vmatprep.subr.bf16.mxu0 0
  %3406 = vmatpush2.bf16.xpose.msra.mxu0 0
  %3407 = vmatprep.subr.bf16.mxu0 0
  %3408 = vmatpush2.bf16.xpose.msra.mxu0 0
  %3409 = vmatprep.subr.bf16.mxu0 0
  %3410 = vmatpush2.bf16.xpose.msra.mxu0 0
  %3411 = vmatprep.mubr.bf16.mxu0 0
  %3412 = vmatmul.mubr.bf16.gmra.mxu0 %v3374
  %v3413 = vpop.f32.mrf.mxu0
  %v3414 = vadd.f32 0.0, %v3413
  %v3415 = vpop.f32.mrf.mxu0
  %v3416 = vpop.f32.mrf.mxu0
  %v3417 = vpop.f32.mrf.mxu0
  %3418 = vdwg.mxu0
  %v3419 = vmul.f32 %v3368, 0.35355338
  %v3420 = vmul.f32 %v3414, 0.35355338
  %v3421 = vsel %vm62, %v3419, -inf
  %3422 = vmax.xlane.f32.xlu0 %v3421
  %v3423 = vpop.xlane.xlu0 %3422
  %v3424 = vsel %vm62, %v3420, -inf
  %3425 = vmax.xlane.f32.xlu0 %v3424
  %v3426 = vpop.xlane.xlu0 %3425
  %v3427 = vsub.f32 %v3419, %v3423
  %v3428 = vsub.f32 %v3420, %v3426
  %v3429 = vmul.f32 %v3427, 1.442695
  %v3430 = vpow.pop %v3429
  %v3431 = vmul.f32 %v3428, 1.442695
  %v3432 = vpow.pop %v3431
  %v3433 = vsel %vm62, %v3430, 0.0
  %3434 = vadd.xlane.f32.xlu0 %v3433
  %v3435 = vpop.xlane.xlu0 %3434
  %v3436 = vsel %vm62, %v3432, 0.0
  %3437 = vadd.xlane.f32.xlu0 %v3436
  %v3438 = vpop.xlane.xlu0 %3437
  %v3439 = vrcp.pop %v3435
  %v3440 = vrcp.pop %v3438
  %v3441 = vmul.f32 %v3430, %v3439
  %v3442 = vmul.f32 %v3432, %v3440
  %v3443 = vpack.c.bf16 %v3441, %v3441
  %v3444 = vpack.c.bf16 %v3442, %v3442
  %v3446 = vsel %vm62, %v3443, 0
  %v3449 = vsel %vm66, %v3325, 0
  %3451 = vmatprep.subr.bf16.mxu0 0
  %3452 = vmatpush1.bf16.msra.mxu0 0
  %3453 = vmatprep.subr.bf16.mxu0 0
  %3454 = vmatpush1.bf16.msra.mxu0 0
  %3455 = vmatprep.subr.bf16.mxu0 0
  %3456 = vmatpush1.bf16.msra.mxu0 0
  %3457 = vmatprep.subr.bf16.mxu0 0
  %3458 = vmatpush1.bf16.msra.mxu0 0
  %3459 = vmatprep.subr.bf16.mxu0 0
  %3460 = vmatpush1.bf16.msra.mxu0 0
  %3461 = vmatprep.subr.bf16.mxu0 0
  %3462 = vmatpush1.bf16.msra.mxu0 0
  %3463 = vmatprep.subr.bf16.mxu0 0
  %3464 = vmatpush1.bf16.msra.mxu0 0
  %3465 = vmatprep.subr.bf16.mxu0 0
  %3466 = vmatpush1.bf16.msra.mxu0 %v3449
  %3467 = vmatprep.subr.bf16.mxu0 0
  %3468 = vmatpush2.bf16.msra.mxu0 0
  %3469 = vmatprep.subr.bf16.mxu0 0
  %3470 = vmatpush2.bf16.msra.mxu0 0
  %3471 = vmatprep.subr.bf16.mxu0 0
  %3472 = vmatpush2.bf16.msra.mxu0 0
  %3473 = vmatprep.subr.bf16.mxu0 0
  %3474 = vmatpush2.bf16.msra.mxu0 0
  %3475 = vmatprep.subr.bf16.mxu0 0
  %3476 = vmatpush2.bf16.msra.mxu0 0
  %3477 = vmatprep.subr.bf16.mxu0 0
  %3478 = vmatpush2.bf16.msra.mxu0 0
  %3479 = vmatprep.subr.bf16.mxu0 0
  %3480 = vmatpush2.bf16.msra.mxu0 0
  %3481 = vmatprep.subr.bf16.mxu0 0
  %3482 = vmatpush2.bf16.msra.mxu0 0
  %3483 = vmatprep.mubr.bf16.mxu0 0
  %3484 = vmatmul.mubr.bf16.gmra.mxu0 %v3446
  %v3485 = vpop.f32.mrf.mxu0
  %v3486 = vadd.f32 0.0, %v3485
  %v3487 = vpop.f32.mrf.mxu0
  %v3488 = vpop.f32.mrf.mxu0
  %v3489 = vpop.f32.mrf.mxu0
  %3490 = vdwg.mxu0
  %v3492 = vsel %vm62, %v3444, 0
  %v3495 = vsel %vm66, %v3326, 0
  %3497 = vmatprep.subr.bf16.mxu0 0
  %3498 = vmatpush1.bf16.msra.mxu0 0
  %3499 = vmatprep.subr.bf16.mxu0 0
  %3500 = vmatpush1.bf16.msra.mxu0 0
  %3501 = vmatprep.subr.bf16.mxu0 0
  %3502 = vmatpush1.bf16.msra.mxu0 0
  %3503 = vmatprep.subr.bf16.mxu0 0
  %3504 = vmatpush1.bf16.msra.mxu0 0
  %3505 = vmatprep.subr.bf16.mxu0 0
  %3506 = vmatpush1.bf16.msra.mxu0 0
  %3507 = vmatprep.subr.bf16.mxu0 0
  %3508 = vmatpush1.bf16.msra.mxu0 0
  %3509 = vmatprep.subr.bf16.mxu0 0
  %3510 = vmatpush1.bf16.msra.mxu0 0
  %3511 = vmatprep.subr.bf16.mxu0 0
  %3512 = vmatpush1.bf16.msra.mxu0 %v3495
  %3513 = vmatprep.subr.bf16.mxu0 0
  %3514 = vmatpush2.bf16.msra.mxu0 0
  %3515 = vmatprep.subr.bf16.mxu0 0
  %3516 = vmatpush2.bf16.msra.mxu0 0
  %3517 = vmatprep.subr.bf16.mxu0 0
  %3518 = vmatpush2.bf16.msra.mxu0 0
  %3519 = vmatprep.subr.bf16.mxu0 0
  %3520 = vmatpush2.bf16.msra.mxu0 0
  %3521 = vmatprep.subr.bf16.mxu0 0
  %3522 = vmatpush2.bf16.msra.mxu0 0
  %3523 = vmatprep.subr.bf16.mxu0 0
  %3524 = vmatpush2.bf16.msra.mxu0 0
  %3525 = vmatprep.subr.bf16.mxu0 0
  %3526 = vmatpush2.bf16.msra.mxu0 0
  %3527 = vmatprep.subr.bf16.mxu0 0
  %3528 = vmatpush2.bf16.msra.mxu0 0
  %3529 = vmatprep.mubr.bf16.mxu0 0
  %3530 = vmatmul.mubr.bf16.gmra.mxu0 %v3492
  %v3531 = vpop.f32.mrf.mxu0
  %v3532 = vadd.f32 0.0, %v3531
  %v3533 = vpop.f32.mrf.mxu0
  %v3534 = vpop.f32.mrf.mxu0
  %v3535 = vpop.f32.mrf.mxu0
  %3536 = vdwg.mxu0
  %v3537 = vpack.c.bf16 %v3532, %v3486
  %s3538 = scalar_lea.vmem %s7, 24
  %v3539 = vld [vmem:[%s3538] sm:$0xf]
  %v3541 = vsel %vm62, %v3537, 0
  %v3544 = vsel %vm66, %v3539, 0
  %3546 = vmatprep.subr.bf16.mxu0 0
  %3547 = vmatpush1.bf16.msra.mxu0 0
  %3548 = vmatprep.subr.bf16.mxu0 0
  %3549 = vmatpush1.bf16.msra.mxu0 0
  %3550 = vmatprep.subr.bf16.mxu0 0
  %3551 = vmatpush1.bf16.msra.mxu0 0
  %3552 = vmatprep.subr.bf16.mxu0 0
  %3553 = vmatpush1.bf16.msra.mxu0 0
  %3554 = vmatprep.subr.bf16.mxu0 0
  %3555 = vmatpush1.bf16.msra.mxu0 0
  %3556 = vmatprep.subr.bf16.mxu0 0
  %3557 = vmatpush1.bf16.msra.mxu0 0
  %3558 = vmatprep.subr.bf16.mxu0 0
  %3559 = vmatpush1.bf16.msra.mxu0 0
  %3560 = vmatprep.subr.bf16.mxu0 0
  %3561 = vmatpush1.bf16.msra.mxu0 %v3544
  %3562 = vmatprep.subr.bf16.mxu0 0
  %3563 = vmatpush2.bf16.msra.mxu0 0
  %3564 = vmatprep.subr.bf16.mxu0 0
  %3565 = vmatpush2.bf16.msra.mxu0 0
  %3566 = vmatprep.subr.bf16.mxu0 0
  %3567 = vmatpush2.bf16.msra.mxu0 0
  %3568 = vmatprep.subr.bf16.mxu0 0
  %3569 = vmatpush2.bf16.msra.mxu0 0
  %3570 = vmatprep.subr.bf16.mxu0 0
  %3571 = vmatpush2.bf16.msra.mxu0 0
  %3572 = vmatprep.subr.bf16.mxu0 0
  %3573 = vmatpush2.bf16.msra.mxu0 0
  %3574 = vmatprep.subr.bf16.mxu0 0
  %3575 = vmatpush2.bf16.msra.mxu0 0
  %3576 = vmatprep.subr.bf16.mxu0 0
  %3577 = vmatpush2.bf16.msra.mxu0 0
  %3578 = vmatprep.mubr.bf16.mxu0 0
  %3579 = vmatmul.mubr.bf16.gmra.mxu0 %v3541
  %v3580 = vpop.f32.mrf.mxu0
  %v3581 = vadd.f32 0.0, %v3580
  %v3582 = vpop.f32.mrf.mxu0
  %v3583 = vpop.f32.mrf.mxu0
  %v3584 = vadd.f32 0.0, %v3583
  %v3585 = vpop.f32.mrf.mxu0
  %3586 = vdwg.mxu0
  %v3587 = vadd.f32 %v3127, %v3581
  %v3588 = vadd.f32 %v3130, %v3584
  %s3589 = scalar_lea.vmem %s8, 28
  %v3590 = vld [vmem:[%s3589] sm:$0x7]
  %s3591 = scalar_lea.vmem %s4, 112
  %v3592 = vld [vmem:[%s3591] sm:$0xf]
  %v3593 = vld [vmem:[%s3591 + $0x4] sm:$0xf]
  %v3594 = vld [vmem:[%s3591 + $0x8] sm:$0xf]
  %v3595 = vld [vmem:[%s3591 + $0xc] sm:$0xf]
  %v3596 = vlaneseq
  %v3597 = vshrl.u32 %v3596, 7
  %v3598 = vsub.s32 0, %v3597
  %v3599 = vrot.slane %v3590, %v3598
  %v3604 = vunpack.c.l.b16 %v3592
  %v3605 = vunpack.c.l.b16 %v3593
  %v3606 = vunpack.c.l.b16 %v3594
  %v3607 = vunpack.c.l.b16 %v3595
  %v3608 = vpack.c.b16 %v3605, %v3604
  %v3609 = vpack.c.b16 %v3607, %v3606
  %3612 = vmatprep.subr.bf16.mxu0 0
  %3613 = vmatpush1.bf16.msra.mxu0 0
  %3614 = vmatprep.subr.bf16.mxu0 0
  %3615 = vmatpush1.bf16.msra.mxu0 0
  %3616 = vmatprep.subr.bf16.mxu0 0
  %3617 = vmatpush1.bf16.msra.mxu0 0
  %3618 = vmatprep.subr.bf16.mxu0 0
  %3619 = vmatpush1.bf16.msra.mxu0 0
  %3620 = vmatprep.subr.bf16.mxu0 0
  %3621 = vmatpush1.bf16.msra.mxu0 0
  %3622 = vmatprep.subr.bf16.mxu0 0
  %3623 = vmatpush1.bf16.msra.mxu0 0
  %3624 = vmatprep.subr.bf16.mxu0 0
  %3625 = vmatpush1.bf16.msra.mxu0 %v3609
  %3626 = vmatprep.subr.bf16.mxu0 0
  %3627 = vmatpush1.bf16.msra.mxu0 %v3608
  %3628 = vmatprep.subr.bf16.mxu0 0
  %3629 = vmatpush2.bf16.msra.mxu0 0
  %3630 = vmatprep.subr.bf16.mxu0 0
  %3631 = vmatpush2.bf16.msra.mxu0 0
  %3632 = vmatprep.subr.bf16.mxu0 0
  %3633 = vmatpush2.bf16.msra.mxu0 0
  %3634 = vmatprep.subr.bf16.mxu0 0
  %3635 = vmatpush2.bf16.msra.mxu0 0
  %3636 = vmatprep.subr.bf16.mxu0 0
  %3637 = vmatpush2.bf16.msra.mxu0 0
  %3638 = vmatprep.subr.bf16.mxu0 0
  %3639 = vmatpush2.bf16.msra.mxu0 0
  %3640 = vmatprep.subr.bf16.mxu0 0
  %3641 = vmatpush2.bf16.msra.mxu0 0
  %3642 = vmatprep.subr.bf16.mxu0 0
  %3643 = vmatpush2.bf16.msra.mxu0 0
  %3644 = vmatprep.mubr.bf16.mxu0 0
  %3645 = vmatmul.mubr.bf16.gmra.mxu0 %v2246
  %v3646 = vpop.f32.mrf.mxu0
  %v3647 = vadd.f32 %v3599, %v3646
  %v3648 = vpop.f32.mrf.mxu0
  %v3649 = vpop.f32.mrf.mxu0
  %v3650 = vadd.f32 %v3599, %v3649
  %v3651 = vpop.f32.mrf.mxu0
  %3652 = vdwg.mxu0
  %s3653 = scalar_lea.vmem %s5, 112
  %v3654 = vld [vmem:[%s3653] sm:$0xf]
  %v3655 = vld [vmem:[%s3653 + $0x4] sm:$0xf]
  %v3656 = vld [vmem:[%s3653 + $0x8] sm:$0xf]
  %v3657 = vld [vmem:[%s3653 + $0xc] sm:$0xf]
  %v3658 = vlaneseq
  %v3659 = vshrl.u32 %v3658, 7
  %v3660 = vsub.s32 1, %v3659
  %v3661 = vrot.slane %v3590, %v3660
  %v3666 = vunpack.c.l.b16 %v3654
  %v3667 = vunpack.c.l.b16 %v3655
  %v3668 = vunpack.c.l.b16 %v3656
  %v3669 = vunpack.c.l.b16 %v3657
  %v3670 = vpack.c.b16 %v3667, %v3666
  %v3671 = vpack.c.b16 %v3669, %v3668
  %3674 = vmatprep.subr.bf16.mxu0 0
  %3675 = vmatpush1.bf16.msra.mxu0 0
  %3676 = vmatprep.subr.bf16.mxu0 0
  %3677 = vmatpush1.bf16.msra.mxu0 0
  %3678 = vmatprep.subr.bf16.mxu0 0
  %3679 = vmatpush1.bf16.msra.mxu0 0
  %3680 = vmatprep.subr.bf16.mxu0 0
  %3681 = vmatpush1.bf16.msra.mxu0 0
  %3682 = vmatprep.subr.bf16.mxu0 0
  %3683 = vmatpush1.bf16.msra.mxu0 0
  %3684 = vmatprep.subr.bf16.mxu0 0
  %3685 = vmatpush1.bf16.msra.mxu0 0
  %3686 = vmatprep.subr.bf16.mxu0 0
  %3687 = vmatpush1.bf16.msra.mxu0 %v3671
  %3688 = vmatprep.subr.bf16.mxu0 0
  %3689 = vmatpush1.bf16.msra.mxu0 %v3670
  %3690 = vmatprep.subr.bf16.mxu0 0
  %3691 = vmatpush2.bf16.msra.mxu0 0
  %3692 = vmatprep.subr.bf16.mxu0 0
  %3693 = vmatpush2.bf16.msra.mxu0 0
  %3694 = vmatprep.subr.bf16.mxu0 0
  %3695 = vmatpush2.bf16.msra.mxu0 0
  %3696 = vmatprep.subr.bf16.mxu0 0
  %3697 = vmatpush2.bf16.msra.mxu0 0
  %3698 = vmatprep.subr.bf16.mxu0 0
  %3699 = vmatpush2.bf16.msra.mxu0 0
  %3700 = vmatprep.subr.bf16.mxu0 0
  %3701 = vmatpush2.bf16.msra.mxu0 0
  %3702 = vmatprep.subr.bf16.mxu0 0
  %3703 = vmatpush2.bf16.msra.mxu0 0
  %3704 = vmatprep.subr.bf16.mxu0 0
  %3705 = vmatpush2.bf16.msra.mxu0 0
  %3706 = vmatprep.mubr.bf16.mxu0 0
  %3707 = vmatmul.mubr.bf16.gmra.mxu0 %v2246
  %v3708 = vpop.f32.mrf.mxu0
  %v3709 = vadd.f32 %v3661, %v3708
  %v3710 = vpop.f32.mrf.mxu0
  %v3711 = vpop.f32.mrf.mxu0
  %v3712 = vadd.f32 %v3661, %v3711
  %v3713 = vpop.f32.mrf.mxu0
  %3714 = vdwg.mxu0
  %s3715 = scalar_lea.vmem %s6, 112
  %v3716 = vld [vmem:[%s3715] sm:$0xf]
  %v3717 = vld [vmem:[%s3715 + $0x4] sm:$0xf]
  %v3718 = vld [vmem:[%s3715 + $0x8] sm:$0xf]
  %v3719 = vld [vmem:[%s3715 + $0xc] sm:$0xf]
  %v3720 = vlaneseq
  %v3721 = vshrl.u32 %v3720, 7
  %v3722 = vsub.s32 2, %v3721
  %v3723 = vrot.slane %v3590, %v3722
  %v3728 = vunpack.c.l.b16 %v3716
  %v3729 = vunpack.c.l.b16 %v3717
  %v3730 = vunpack.c.l.b16 %v3718
  %v3731 = vunpack.c.l.b16 %v3719
  %v3732 = vpack.c.b16 %v3729, %v3728
  %v3733 = vpack.c.b16 %v3731, %v3730
  %3736 = vmatprep.subr.bf16.mxu0 0
  %3737 = vmatpush1.bf16.msra.mxu0 0
  %3738 = vmatprep.subr.bf16.mxu0 0
  %3739 = vmatpush1.bf16.msra.mxu0 0
  %3740 = vmatprep.subr.bf16.mxu0 0
  %3741 = vmatpush1.bf16.msra.mxu0 0
  %3742 = vmatprep.subr.bf16.mxu0 0
  %3743 = vmatpush1.bf16.msra.mxu0 0
  %3744 = vmatprep.subr.bf16.mxu0 0
  %3745 = vmatpush1.bf16.msra.mxu0 0
  %3746 = vmatprep.subr.bf16.mxu0 0
  %3747 = vmatpush1.bf16.msra.mxu0 0
  %3748 = vmatprep.subr.bf16.mxu0 0
  %3749 = vmatpush1.bf16.msra.mxu0 %v3733
  %3750 = vmatprep.subr.bf16.mxu0 0
  %3751 = vmatpush1.bf16.msra.mxu0 %v3732
  %3752 = vmatprep.subr.bf16.mxu0 0
  %3753 = vmatpush2.bf16.msra.mxu0 0
  %3754 = vmatprep.subr.bf16.mxu0 0
  %3755 = vmatpush2.bf16.msra.mxu0 0
  %3756 = vmatprep.subr.bf16.mxu0 0
  %3757 = vmatpush2.bf16.msra.mxu0 0
  %3758 = vmatprep.subr.bf16.mxu0 0
  %3759 = vmatpush2.bf16.msra.mxu0 0
  %3760 = vmatprep.subr.bf16.mxu0 0
  %3761 = vmatpush2.bf16.msra.mxu0 0
  %3762 = vmatprep.subr.bf16.mxu0 0
  %3763 = vmatpush2.bf16.msra.mxu0 0
  %3764 = vmatprep.subr.bf16.mxu0 0
  %3765 = vmatpush2.bf16.msra.mxu0 0
  %3766 = vmatprep.subr.bf16.mxu0 0
  %3767 = vmatpush2.bf16.msra.mxu0 0
  %3768 = vmatprep.mubr.bf16.mxu0 0
  %3769 = vmatmul.mubr.bf16.gmra.mxu0 %v2246
  %v3770 = vpop.f32.mrf.mxu0
  %v3771 = vadd.f32 %v3723, %v3770
  %v3772 = vpop.f32.mrf.mxu0
  %v3773 = vpop.f32.mrf.mxu0
  %v3774 = vadd.f32 %v3723, %v3773
  %v3775 = vpop.f32.mrf.mxu0
  %3776 = vdwg.mxu0
  %v3777 = vpack.c.bf16 %v3647, %v3647
  %v3778 = vpack.c.bf16 %v3650, %v3650
  %v3779 = vpack.c.bf16 %v3709, %v3709
  %v3780 = vpack.c.bf16 %v3712, %v3712
  %v3781 = vpack.c.bf16 %v3771, %v3771
  %v3782 = vpack.c.bf16 %v3774, %v3774
  %v3784 = vsel %vm62, %v3777, 0
  %v3787 = vsel %vm62, %v3779, 0
  %3789 = vmatprep.subr.bf16.mxu0 0
  %3790 = vmatpush1.bf16.xpose.msra.mxu0 0
  %3791 = vmatprep.subr.bf16.mxu0 0
  %3792 = vmatpush1.bf16.xpose.msra.mxu0 0
  %3793 = vmatprep.subr.bf16.mxu0 0
  %3794 = vmatpush1.bf16.xpose.msra.mxu0 0
  %3795 = vmatprep.subr.bf16.mxu0 0
  %3796 = vmatpush1.bf16.xpose.msra.mxu0 0
  %3797 = vmatprep.subr.bf16.mxu0 0
  %3798 = vmatpush1.bf16.xpose.msra.mxu0 0
  %3799 = vmatprep.subr.bf16.mxu0 0
  %3800 = vmatpush1.bf16.xpose.msra.mxu0 0
  %3801 = vmatprep.subr.bf16.mxu0 0
  %3802 = vmatpush1.bf16.xpose.msra.mxu0 0
  %3803 = vmatprep.subr.bf16.mxu0 0
  %3804 = vmatpush1.bf16.xpose.msra.mxu0 %v3787
  %3805 = vmatprep.subr.bf16.mxu0 0
  %3806 = vmatpush2.bf16.xpose.msra.mxu0 0
  %3807 = vmatprep.subr.bf16.mxu0 0
  %3808 = vmatpush2.bf16.xpose.msra.mxu0 0
  %3809 = vmatprep.subr.bf16.mxu0 0
  %3810 = vmatpush2.bf16.xpose.msra.mxu0 0
  %3811 = vmatprep.subr.bf16.mxu0 0
  %3812 = vmatpush2.bf16.xpose.msra.mxu0 0
  %3813 = vmatprep.subr.bf16.mxu0 0
  %3814 = vmatpush2.bf16.xpose.msra.mxu0 0
  %3815 = vmatprep.subr.bf16.mxu0 0
  %3816 = vmatpush2.bf16.xpose.msra.mxu0 0
  %3817 = vmatprep.subr.bf16.mxu0 0
  %3818 = vmatpush2.bf16.xpose.msra.mxu0 0
  %3819 = vmatprep.subr.bf16.mxu0 0
  %3820 = vmatpush2.bf16.xpose.msra.mxu0 0
  %3821 = vmatprep.mubr.bf16.mxu0 0
  %3822 = vmatmul.mubr.bf16.gmra.mxu0 %v3784
  %v3823 = vpop.f32.mrf.mxu0
  %v3824 = vadd.f32 0.0, %v3823
  %v3825 = vpop.f32.mrf.mxu0
  %v3826 = vpop.f32.mrf.mxu0
  %v3827 = vpop.f32.mrf.mxu0
  %3828 = vdwg.mxu0
  %v3830 = vsel %vm62, %v3778, 0
  %v3833 = vsel %vm62, %v3780, 0
  %3835 = vmatprep.subr.bf16.mxu0 0
  %3836 = vmatpush1.bf16.xpose.msra.mxu0 0
  %3837 = vmatprep.subr.bf16.mxu0 0
  %3838 = vmatpush1.bf16.xpose.msra.mxu0 0
  %3839 = vmatprep.subr.bf16.mxu0 0
  %3840 = vmatpush1.bf16.xpose.msra.mxu0 0
  %3841 = vmatprep.subr.bf16.mxu0 0
  %3842 = vmatpush1.bf16.xpose.msra.mxu0 0
  %3843 = vmatprep.subr.bf16.mxu0 0
  %3844 = vmatpush1.bf16.xpose.msra.mxu0 0
  %3845 = vmatprep.subr.bf16.mxu0 0
  %3846 = vmatpush1.bf16.xpose.msra.mxu0 0
  %3847 = vmatprep.subr.bf16.mxu0 0
  %3848 = vmatpush1.bf16.xpose.msra.mxu0 0
  %3849 = vmatprep.subr.bf16.mxu0 0
  %3850 = vmatpush1.bf16.xpose.msra.mxu0 %v3833
  %3851 = vmatprep.subr.bf16.mxu0 0
  %3852 = vmatpush2.bf16.xpose.msra.mxu0 0
  %3853 = vmatprep.subr.bf16.mxu0 0
  %3854 = vmatpush2.bf16.xpose.msra.mxu0 0
  %3855 = vmatprep.subr.bf16.mxu0 0
  %3856 = vmatpush2.bf16.xpose.msra.mxu0 0
  %3857 = vmatprep.subr.bf16.mxu0 0
  %3858 = vmatpush2.bf16.xpose.msra.mxu0 0
  %3859 = vmatprep.subr.bf16.mxu0 0
  %3860 = vmatpush2.bf16.xpose.msra.mxu0 0
  %3861 = vmatprep.subr.bf16.mxu0 0
  %3862 = vmatpush2.bf16.xpose.msra.mxu0 0
  %3863 = vmatprep.subr.bf16.mxu0 0
  %3864 = vmatpush2.bf16.xpose.msra.mxu0 0
  %3865 = vmatprep.subr.bf16.mxu0 0
  %3866 = vmatpush2.bf16.xpose.msra.mxu0 0
  %3867 = vmatprep.mubr.bf16.mxu0 0
  %3868 = vmatmul.mubr.bf16.gmra.mxu0 %v3830
  %v3869 = vpop.f32.mrf.mxu0
  %v3870 = vadd.f32 0.0, %v3869
  %v3871 = vpop.f32.mrf.mxu0
  %v3872 = vpop.f32.mrf.mxu0
  %v3873 = vpop.f32.mrf.mxu0
  %3874 = vdwg.mxu0
  %v3875 = vmul.f32 %v3824, 0.35355338
  %v3876 = vmul.f32 %v3870, 0.35355338
  %v3877 = vsel %vm62, %v3875, -inf
  %3878 = vmax.xlane.f32.xlu0 %v3877
  %v3879 = vpop.xlane.xlu0 %3878
  %v3880 = vsel %vm62, %v3876, -inf
  %3881 = vmax.xlane.f32.xlu0 %v3880
  %v3882 = vpop.xlane.xlu0 %3881
  %v3883 = vsub.f32 %v3875, %v3879
  %v3884 = vsub.f32 %v3876, %v3882
  %v3885 = vmul.f32 %v3883, 1.442695
  %v3886 = vpow.pop %v3885
  %v3887 = vmul.f32 %v3884, 1.442695
  %v3888 = vpow.pop %v3887
  %v3889 = vsel %vm62, %v3886, 0.0
  %3890 = vadd.xlane.f32.xlu0 %v3889
  %v3891 = vpop.xlane.xlu0 %3890
  %v3892 = vsel %vm62, %v3888, 0.0
  %3893 = vadd.xlane.f32.xlu0 %v3892
  %v3894 = vpop.xlane.xlu0 %3893
  %v3895 = vrcp.pop %v3891
  %v3896 = vrcp.pop %v3894
  %v3897 = vmul.f32 %v3886, %v3895
  %v3898 = vmul.f32 %v3888, %v3896
  %v3899 = vpack.c.bf16 %v3897, %v3897
  %v3900 = vpack.c.bf16 %v3898, %v3898
  %v3902 = vsel %vm62, %v3899, 0
  %v3905 = vsel %vm66, %v3781, 0
  %3907 = vmatprep.subr.bf16.mxu0 0
  %3908 = vmatpush1.bf16.msra.mxu0 0
  %3909 = vmatprep.subr.bf16.mxu0 0
  %3910 = vmatpush1.bf16.msra.mxu0 0
  %3911 = vmatprep.subr.bf16.mxu0 0
  %3912 = vmatpush1.bf16.msra.mxu0 0
  %3913 = vmatprep.subr.bf16.mxu0 0
  %3914 = vmatpush1.bf16.msra.mxu0 0
  %3915 = vmatprep.subr.bf16.mxu0 0
  %3916 = vmatpush1.bf16.msra.mxu0 0
  %3917 = vmatprep.subr.bf16.mxu0 0
  %3918 = vmatpush1.bf16.msra.mxu0 0
  %3919 = vmatprep.subr.bf16.mxu0 0
  %3920 = vmatpush1.bf16.msra.mxu0 0
  %3921 = vmatprep.subr.bf16.mxu0 0
  %3922 = vmatpush1.bf16.msra.mxu0 %v3905
  %3923 = vmatprep.subr.bf16.mxu0 0
  %3924 = vmatpush2.bf16.msra.mxu0 0
  %3925 = vmatprep.subr.bf16.mxu0 0
  %3926 = vmatpush2.bf16.msra.mxu0 0
  %3927 = vmatprep.subr.bf16.mxu0 0
  %3928 = vmatpush2.bf16.msra.mxu0 0
  %3929 = vmatprep.subr.bf16.mxu0 0
  %3930 = vmatpush2.bf16.msra.mxu0 0
  %3931 = vmatprep.subr.bf16.mxu0 0
  %3932 = vmatpush2.bf16.msra.mxu0 0
  %3933 = vmatprep.subr.bf16.mxu0 0
  %3934 = vmatpush2.bf16.msra.mxu0 0
  %3935 = vmatprep.subr.bf16.mxu0 0
  %3936 = vmatpush2.bf16.msra.mxu0 0
  %3937 = vmatprep.subr.bf16.mxu0 0
  %3938 = vmatpush2.bf16.msra.mxu0 0
  %3939 = vmatprep.mubr.bf16.mxu0 0
  %3940 = vmatmul.mubr.bf16.gmra.mxu0 %v3902
  %v3941 = vpop.f32.mrf.mxu0
  %v3942 = vadd.f32 0.0, %v3941
  %v3943 = vpop.f32.mrf.mxu0
  %v3944 = vpop.f32.mrf.mxu0
  %v3945 = vpop.f32.mrf.mxu0
  %3946 = vdwg.mxu0
  %v3948 = vsel %vm62, %v3900, 0
  %v3951 = vsel %vm66, %v3782, 0
  %3953 = vmatprep.subr.bf16.mxu0 0
  %3954 = vmatpush1.bf16.msra.mxu0 0
  %3955 = vmatprep.subr.bf16.mxu0 0
  %3956 = vmatpush1.bf16.msra.mxu0 0
  %3957 = vmatprep.subr.bf16.mxu0 0
  %3958 = vmatpush1.bf16.msra.mxu0 0
  %3959 = vmatprep.subr.bf16.mxu0 0
  %3960 = vmatpush1.bf16.msra.mxu0 0
  %3961 = vmatprep.subr.bf16.mxu0 0
  %3962 = vmatpush1.bf16.msra.mxu0 0
  %3963 = vmatprep.subr.bf16.mxu0 0
  %3964 = vmatpush1.bf16.msra.mxu0 0
  %3965 = vmatprep.subr.bf16.mxu0 0
  %3966 = vmatpush1.bf16.msra.mxu0 0
  %3967 = vmatprep.subr.bf16.mxu0 0
  %3968 = vmatpush1.bf16.msra.mxu0 %v3951
  %3969 = vmatprep.subr.bf16.mxu0 0
  %3970 = vmatpush2.bf16.msra.mxu0 0
  %3971 = vmatprep.subr.bf16.mxu0 0
  %3972 = vmatpush2.bf16.msra.mxu0 0
  %3973 = vmatprep.subr.bf16.mxu0 0
  %3974 = vmatpush2.bf16.msra.mxu0 0
  %3975 = vmatprep.subr.bf16.mxu0 0
  %3976 = vmatpush2.bf16.msra.mxu0 0
  %3977 = vmatprep.subr.bf16.mxu0 0
  %3978 = vmatpush2.bf16.msra.mxu0 0
  %3979 = vmatprep.subr.bf16.mxu0 0
  %3980 = vmatpush2.bf16.msra.mxu0 0
  %3981 = vmatprep.subr.bf16.mxu0 0
  %3982 = vmatpush2.bf16.msra.mxu0 0
  %3983 = vmatprep.subr.bf16.mxu0 0
  %3984 = vmatpush2.bf16.msra.mxu0 0
  %3985 = vmatprep.mubr.bf16.mxu0 0
  %3986 = vmatmul.mubr.bf16.gmra.mxu0 %v3948
  %v3987 = vpop.f32.mrf.mxu0
  %v3988 = vadd.f32 0.0, %v3987
  %v3989 = vpop.f32.mrf.mxu0
  %v3990 = vpop.f32.mrf.mxu0
  %v3991 = vpop.f32.mrf.mxu0
  %3992 = vdwg.mxu0
  %v3993 = vpack.c.bf16 %v3988, %v3942
  %s3994 = scalar_lea.vmem %s7, 28
  %v3995 = vld [vmem:[%s3994] sm:$0xf]
  %v3997 = vsel %vm62, %v3993, 0
  %v4000 = vsel %vm66, %v3995, 0
  %4002 = vmatprep.subr.bf16.mxu0 0
  %4003 = vmatpush1.bf16.msra.mxu0 0
  %4004 = vmatprep.subr.bf16.mxu0 0
  %4005 = vmatpush1.bf16.msra.mxu0 0
  %4006 = vmatprep.subr.bf16.mxu0 0
  %4007 = vmatpush1.bf16.msra.mxu0 0
  %4008 = vmatprep.subr.bf16.mxu0 0
  %4009 = vmatpush1.bf16.msra.mxu0 0
  %4010 = vmatprep.subr.bf16.mxu0 0
  %4011 = vmatpush1.bf16.msra.mxu0 0
  %4012 = vmatprep.subr.bf16.mxu0 0
  %4013 = vmatpush1.bf16.msra.mxu0 0
  %4014 = vmatprep.subr.bf16.mxu0 0
  %4015 = vmatpush1.bf16.msra.mxu0 0
  %4016 = vmatprep.subr.bf16.mxu0 0
  %4017 = vmatpush1.bf16.msra.mxu0 %v4000
  %4018 = vmatprep.subr.bf16.mxu0 0
  %4019 = vmatpush2.bf16.msra.mxu0 0
  %4020 = vmatprep.subr.bf16.mxu0 0
  %4021 = vmatpush2.bf16.msra.mxu0 0
  %4022 = vmatprep.subr.bf16.mxu0 0
  %4023 = vmatpush2.bf16.msra.mxu0 0
  %4024 = vmatprep.subr.bf16.mxu0 0
  %4025 = vmatpush2.bf16.msra.mxu0 0
  %4026 = vmatprep.subr.bf16.mxu0 0
  %4027 = vmatpush2.bf16.msra.mxu0 0
  %4028 = vmatprep.subr.bf16.mxu0 0
  %4029 = vmatpush2.bf16.msra.mxu0 0
  %4030 = vmatprep.subr.bf16.mxu0 0
  %4031 = vmatpush2.bf16.msra.mxu0 0
  %4032 = vmatprep.subr.bf16.mxu0 0
  %4033 = vmatpush2.bf16.msra.mxu0 0
  %4034 = vmatprep.mubr.bf16.mxu0 0
  %4035 = vmatmul.mubr.bf16.gmra.mxu0 %v3997
  %v4036 = vpop.f32.mrf.mxu0
  %v4037 = vadd.f32 0.0, %v4036
  %v4038 = vpop.f32.mrf.mxu0
  %v4039 = vpop.f32.mrf.mxu0
  %v4040 = vadd.f32 0.0, %v4039
  %v4041 = vpop.f32.mrf.mxu0
  %4042 = vdwg.mxu0
  %v4043 = vadd.f32 %v3587, %v4037
  %v4044 = vadd.f32 %v3588, %v4040
  %v4045 = vlaneseq
  %v4046 = vshrl.u32 %v4045, 7
  %v4047 = vsub.s32 0, %v4046
  %v4048 = vrot.slane %v2221, %v4047
  %v4049 = vadd.f32 %v4043, %v4048
  %v4050 = vadd.f32 %v4044, %v4048
  %v4051 = vadd.f32 %v2217, %v4049
  %v4052 = vadd.f32 %v2218, %v4050
  %v4053 = vsel %vm115, %v4051, 0.0
  %4054 = vadd.xlane.f32.xlu0 %v4053
  %v4055 = vpop.xlane.xlu0 %4054
  %v4056 = vsel %vm115, %v4052, 0.0
  %4057 = vadd.xlane.f32.xlu0 %v4056
  %v4058 = vpop.xlane.xlu0 %4057
  %v4059 = vmul.f32 %v4055, %v1954
  %v4060 = vmul.f32 %v4058, %v1954
  %v4061 = vsub.f32 %v4051, %v4059
  %v4062 = vsub.f32 %v4052, %v4060
  %v4063 = vmul.f32 %v4061, %v4061
  %v4064 = vmul.f32 %v4062, %v4062
  %v4065 = vsel %vm115, %v4063, 0.0
  %4066 = vadd.xlane.f32.xlu0 %v4065
  %v4067 = vpop.xlane.xlu0 %4066
  %v4068 = vsel %vm115, %v4064, 0.0
  %4069 = vadd.xlane.f32.xlu0 %v4068
  %v4070 = vpop.xlane.xlu0 %4069
  %v4071 = vmul.f32 %v4067, %v1954
  %v4072 = vmul.f32 %v4070, %v1954
  %v4073 = vadd.f32 %v4071, 1e-05
  %v4074 = vadd.f32 %v4072, 1e-05
  %v4075 = vrsqrt.pop %v4073
  %v4076 = vrsqrt.pop %v4074
  %v4077 = vmul.f32 %v4061, %v4075
  %v4078 = vmul.f32 %v4062, %v4076
  %v4079 = vlaneseq
  %v4080 = vshrl.u32 %v4079, 7
  %v4081 = vsub.s32 1, %v4080
  %v4082 = vrot.slane %v2221, %v4081
  %v4083 = vmul.f32 %v4077, %v4082
  %v4084 = vmul.f32 %v4078, %v4082
  %v4085 = vlaneseq
  %v4086 = vshrl.u32 %v4085, 7
  %v4087 = vsub.s32 2, %v4086
  %v4088 = vrot.slane %v2221, %v4087
  %v4089 = vadd.f32 %v4083, %v4088
  %v4090 = vadd.f32 %v4084, %v4088
  %v4091 = vpack.c.bf16 %v4090, %v4089
  %s4092 = scalar_lea.vmem %s9, 16
  %v4093 = vld [vmem:[%s4092] sm:$0xf]
  %v4094 = vld [vmem:[%s4092 + $0x4] sm:$0xf]
  %v4095 = vld [vmem:[%s4092 + $0x8] sm:$0xf]
  %v4096 = vld [vmem:[%s4092 + $0xc] sm:$0xf]
  %s4097 = scalar_lea.vmem %s10, 1
  %v4098 = vld [vmem:[%s4097] sm:$0x1]
  %v4100 = vlaneseq
  %v4101 = vshrl.u32 %v4100, 7
  %v4102 = vsub.s32 0, %v4101
  %v4103 = vrot.slane %v4098, %v4102
  %v4109 = vunpack.c.l.b16 %v4093
  %v4110 = vunpack.c.l.b16 %v4094
  %v4111 = vunpack.c.l.b16 %v4095
  %v4112 = vunpack.c.l.b16 %v4096
  %v4113 = vpack.c.b16 %v4110, %v4109
  %v4114 = vpack.c.b16 %v4112, %v4111
  %v4118 = vsel %vm115, %v4091, 0
  %4120 = vmatprep.subr.bf16.mxu0 0
  %4121 = vmatpush1.bf16.msra.mxu0 0
  %4122 = vmatprep.subr.bf16.mxu0 0
  %4123 = vmatpush1.bf16.msra.mxu0 0
  %4124 = vmatprep.subr.bf16.mxu0 0
  %4125 = vmatpush1.bf16.msra.mxu0 0
  %4126 = vmatprep.subr.bf16.mxu0 0
  %4127 = vmatpush1.bf16.msra.mxu0 0
  %4128 = vmatprep.subr.bf16.mxu0 0
  %4129 = vmatpush1.bf16.msra.mxu0 0
  %4130 = vmatprep.subr.bf16.mxu0 0
  %4131 = vmatpush1.bf16.msra.mxu0 0
  %4132 = vmatprep.subr.bf16.mxu0 0
  %4133 = vmatpush1.bf16.msra.mxu0 %v4114
  %4134 = vmatprep.subr.bf16.mxu0 0
  %4135 = vmatpush1.bf16.msra.mxu0 %v4113
  %4136 = vmatprep.subr.bf16.mxu0 0
  %4137 = vmatpush2.bf16.msra.mxu0 0
  %4138 = vmatprep.subr.bf16.mxu0 0
  %4139 = vmatpush2.bf16.msra.mxu0 0
  %4140 = vmatprep.subr.bf16.mxu0 0
  %4141 = vmatpush2.bf16.msra.mxu0 0
  %4142 = vmatprep.subr.bf16.mxu0 0
  %4143 = vmatpush2.bf16.msra.mxu0 0
  %4144 = vmatprep.subr.bf16.mxu0 0
  %4145 = vmatpush2.bf16.msra.mxu0 0
  %4146 = vmatprep.subr.bf16.mxu0 0
  %4147 = vmatpush2.bf16.msra.mxu0 0
  %4148 = vmatprep.subr.bf16.mxu0 0
  %4149 = vmatpush2.bf16.msra.mxu0 0
  %4150 = vmatprep.subr.bf16.mxu0 0
  %4151 = vmatpush2.bf16.msra.mxu0 0
  %4152 = vmatprep.mubr.bf16.mxu0 0
  %4153 = vmatmul.mubr.bf16.gmra.mxu0 %v4118
  %v4154 = vpop.f32.mrf.mxu0
  %v4155 = vadd.f32 %v4103, %v4154
  %v4156 = vpop.f32.mrf.mxu0
  %v4157 = vpop.f32.mrf.mxu0
  %v4158 = vadd.f32 %v4103, %v4157
  %v4159 = vpop.f32.mrf.mxu0
  %4160 = vdwg.mxu0
  %v4161 = vmul.f32 %v4155, 0.5
  %v4162 = vmul.f32 %v4158, 0.5
  %v4163 = vmul.f32 %v4155, 0.70710677
  %v4164 = vmul.f32 %v4158, 0.70710677
  %v4165 = verf.f32.pop %v4163
  %v4166 = verf.f32.pop %v4164
  %v4167 = vadd.f32 %v4165, 1.0
  %v4168 = vadd.f32 %v4166, 1.0
  %v4169 = vmul.f32 %v4161, %v4167
  %v4170 = vmul.f32 %v4162, %v4168
  %v4171 = vpack.c.bf16 %v4170, %v4169
  %s4172 = scalar_lea.vmem %s11, 64
  %v4173 = vld [vmem:[%s4172] sm:$0xf]
  %v4174 = vld [vmem:[%s4172 + $0x4] sm:$0xf]
  %v4175 = vld [vmem:[%s4172 + $0x8] sm:$0xf]
  %v4176 = vld [vmem:[%s4172 + $0xc] sm:$0xf]
  %v4177 = vld [vmem:[%s4172 + $0x10] sm:$0xf]
  %v4178 = vld [vmem:[%s4172 + $0x14] sm:$0xf]
  %v4179 = vld [vmem:[%s4172 + $0x18] sm:$0xf]
  %v4180 = vld [vmem:[%s4172 + $0x1c] sm:$0xf]
  %v4181 = vld [vmem:[%s4172 + $0x20] sm:$0xf]
  %v4182 = vld [vmem:[%s4172 + $0x24] sm:$0xf]
  %v4183 = vld [vmem:[%s4172 + $0x28] sm:$0xf]
  %v4184 = vld [vmem:[%s4172 + $0x2c] sm:$0xf]
  %v4185 = vld [vmem:[%s4172 + $0x30] sm:$0xf]
  %v4186 = vld [vmem:[%s4172 + $0x34] sm:$0xf]
  %v4187 = vld [vmem:[%s4172 + $0x38] sm:$0xf]
  %v4188 = vld [vmem:[%s4172 + $0x3c] sm:$0xf]
  %v4189 = vlaneseq
  %v4190 = vshrl.u32 %v4189, 7
  %v4191 = vsub.s32 3, %v4190
  %v4192 = vrot.slane %v2221, %v4191
  %v4209 = vunpack.c.l.b16 %v4173
  %v4210 = vunpack.c.l.b16 %v4174
  %v4211 = vunpack.c.l.b16 %v4175
  %v4212 = vunpack.c.l.b16 %v4176
  %v4213 = vunpack.c.l.b16 %v4177
  %v4214 = vunpack.c.l.b16 %v4178
  %v4215 = vunpack.c.l.b16 %v4179
  %v4216 = vunpack.c.l.b16 %v4180
  %v4217 = vunpack.c.l.b16 %v4181
  %v4218 = vunpack.c.l.b16 %v4182
  %v4219 = vunpack.c.l.b16 %v4183
  %v4220 = vunpack.c.l.b16 %v4184
  %v4221 = vunpack.c.l.b16 %v4185
  %v4222 = vunpack.c.l.b16 %v4186
  %v4223 = vunpack.c.l.b16 %v4187
  %v4224 = vunpack.c.l.b16 %v4188
  %v4225 = vpack.c.b16 %v4210, %v4209
  %v4226 = vpack.c.b16 %v4212, %v4211
  %v4227 = vpack.c.b16 %v4214, %v4213
  %v4228 = vpack.c.b16 %v4216, %v4215
  %v4229 = vpack.c.b16 %v4218, %v4217
  %v4230 = vpack.c.b16 %v4220, %v4219
  %v4231 = vpack.c.b16 %v4222, %v4221
  %v4232 = vpack.c.b16 %v4224, %v4223
  %4241 = vmatprep.subr.bf16.mxu0 0
  %4242 = vmatpush1.bf16.msra.mxu0 %v4232
  %4243 = vmatprep.subr.bf16.mxu0 0
  %4244 = vmatpush1.bf16.msra.mxu0 %v4231
  %4245 = vmatprep.subr.bf16.mxu0 0
  %4246 = vmatpush1.bf16.msra.mxu0 %v4230
  %4247 = vmatprep.subr.bf16.mxu0 0
  %4248 = vmatpush1.bf16.msra.mxu0 %v4229
  %4249 = vmatprep.subr.bf16.mxu0 0
  %4250 = vmatpush1.bf16.msra.mxu0 %v4228
  %4251 = vmatprep.subr.bf16.mxu0 0
  %4252 = vmatpush1.bf16.msra.mxu0 %v4227
  %4253 = vmatprep.subr.bf16.mxu0 0
  %4254 = vmatpush1.bf16.msra.mxu0 %v4226
  %4255 = vmatprep.subr.bf16.mxu0 0
  %4256 = vmatpush1.bf16.msra.mxu0 %v4225
  %4257 = vmatprep.subr.bf16.mxu0 0
  %4258 = vmatpush2.bf16.msra.mxu0 0
  %4259 = vmatprep.subr.bf16.mxu0 0
  %4260 = vmatpush2.bf16.msra.mxu0 0
  %4261 = vmatprep.subr.bf16.mxu0 0
  %4262 = vmatpush2.bf16.msra.mxu0 0
  %4263 = vmatprep.subr.bf16.mxu0 0
  %4264 = vmatpush2.bf16.msra.mxu0 0
  %4265 = vmatprep.subr.bf16.mxu0 0
  %4266 = vmatpush2.bf16.msra.mxu0 0
  %4267 = vmatprep.subr.bf16.mxu0 0
  %4268 = vmatpush2.bf16.msra.mxu0 0
  %4269 = vmatprep.subr.bf16.mxu0 0
  %4270 = vmatpush2.bf16.msra.mxu0 0
  %4271 = vmatprep.subr.bf16.mxu0 0
  %4272 = vmatpush2.bf16.msra.mxu0 0
  %4273 = vmatprep.mubr.bf16.mxu0 0
  %4274 = vmatmul.mubr.bf16.gmra.mxu0 %v4171
  %v4275 = vpop.f32.mrf.mxu0
  %v4276 = vadd.f32 %v4192, %v4275
  %v4277 = vpop.f32.mrf.mxu0
  %v4278 = vpop.f32.mrf.mxu0
  %v4279 = vadd.f32 %v4192, %v4278
  %v4280 = vpop.f32.mrf.mxu0
  %4281 = vdwg.mxu0
  %v4282 = vadd.f32 %v4089, %v4276
  %v4283 = vadd.f32 %v4090, %v4279
  %v4284 = vsel %vm115, %v4282, 0.0
  %4285 = vadd.xlane.f32.xlu0 %v4284
  %v4286 = vpop.xlane.xlu0 %4285
  %v4287 = vsel %vm115, %v4283, 0.0
  %4288 = vadd.xlane.f32.xlu0 %v4287
  %v4289 = vpop.xlane.xlu0 %4288
  %v4290 = vmul.f32 %v4286, %v1954
  %v4291 = vmul.f32 %v4289, %v1954
  %v4292 = vsub.f32 %v4282, %v4290
  %v4293 = vsub.f32 %v4283, %v4291
  %v4294 = vmul.f32 %v4292, %v4292
  %v4295 = vmul.f32 %v4293, %v4293
  %v4296 = vsel %vm115, %v4294, 0.0
  %4297 = vadd.xlane.f32.xlu0 %v4296
  %v4298 = vpop.xlane.xlu0 %4297
  %v4299 = vsel %vm115, %v4295, 0.0
  %4300 = vadd.xlane.f32.xlu0 %v4299
  %v4301 = vpop.xlane.xlu0 %4300
  %v4302 = vmul.f32 %v4298, %v1954
  %v4303 = vmul.f32 %v4301, %v1954
  %v4304 = vadd.f32 %v4302, 1e-05
  %v4305 = vadd.f32 %v4303, 1e-05
  %v4306 = vrsqrt.pop %v4304
  %v4307 = vrsqrt.pop %v4305
  %v4308 = vmul.f32 %v4292, %v4306
  %v4309 = vmul.f32 %v4293, %v4307
  %v4310 = vlaneseq
  %v4311 = vshrl.u32 %v4310, 7
  %v4312 = vsub.s32 4, %v4311
  %v4313 = vrot.slane %v2221, %v4312
  %v4314 = vmul.f32 %v4308, %v4313
  %v4315 = vmul.f32 %v4309, %v4313
  %v4316 = vlaneseq
  %v4317 = vshrl.u32 %v4316, 7
  %v4318 = vsub.s32 5, %v4317
  %v4319 = vrot.slane %v2221, %v4318
  %v4320 = vadd.f32 %v4314, %v4319
  %v4321 = vadd.f32 %v4315, %v4319
  %4322 = vst.msk [vmem:[#allocation2] sm:$0xff] %vm115, %v4320
  %4323 = vst.msk [vmem:[#allocation2 + $0x8] sm:$0xff] %vm115, %v4321
  %v4324 = vld [vmem:[#allocation2] sm:$0xff]
  %v4325 = vld [vmem:[#allocation2 + $0x8] sm:$0xff]
  %v4326 = vpack.c.bf16 %v4325, %v4324
  %s4327 = scalar_lea.vmem %s12, 16
  %v4328 = vld [vmem:[%s4327] sm:$0x3f]
  %s4329 = scalar_lea.vmem %s8, 32
  %v4330 = vld [vmem:[%s4329] sm:$0x7]
  %s4331 = scalar_lea.vmem %s4, 128
  %v4332 = vld [vmem:[%s4331] sm:$0xf]
  %v4333 = vld [vmem:[%s4331 + $0x4] sm:$0xf]
  %v4334 = vld [vmem:[%s4331 + $0x8] sm:$0xf]
  %v4335 = vld [vmem:[%s4331 + $0xc] sm:$0xf]
  %v4336 = vlaneseq
  %v4337 = vshrl.u32 %v4336, 7
  %v4338 = vsub.s32 0, %v4337
  %v4339 = vrot.slane %v4330, %v4338
  %v4344 = vunpack.c.l.b16 %v4332
  %v4345 = vunpack.c.l.b16 %v4333
  %v4346 = vunpack.c.l.b16 %v4334
  %v4347 = vunpack.c.l.b16 %v4335
  %v4348 = vpack.c.b16 %v4345, %v4344
  %v4349 = vpack.c.b16 %v4347, %v4346
  %v4353 = vsel %vm115, %v4326, 0
  %4355 = vmatprep.subr.bf16.mxu0 0
  %4356 = vmatpush1.bf16.msra.mxu0 0
  %4357 = vmatprep.subr.bf16.mxu0 0
  %4358 = vmatpush1.bf16.msra.mxu0 0
  %4359 = vmatprep.subr.bf16.mxu0 0
  %4360 = vmatpush1.bf16.msra.mxu0 0
  %4361 = vmatprep.subr.bf16.mxu0 0
  %4362 = vmatpush1.bf16.msra.mxu0 0
  %4363 = vmatprep.subr.bf16.mxu0 0
  %4364 = vmatpush1.bf16.msra.mxu0 0
  %4365 = vmatprep.subr.bf16.mxu0 0
  %4366 = vmatpush1.bf16.msra.mxu0 0
  %4367 = vmatprep.subr.bf16.mxu0 0
  %4368 = vmatpush1.bf16.msra.mxu0 %v4349
  %4369 = vmatprep.subr.bf16.mxu0 0
  %4370 = vmatpush1.bf16.msra.mxu0 %v4348
  %4371 = vmatprep.subr.bf16.mxu0 0
  %4372 = vmatpush2.bf16.msra.mxu0 0
  %4373 = vmatprep.subr.bf16.mxu0 0
  %4374 = vmatpush2.bf16.msra.mxu0 0
  %4375 = vmatprep.subr.bf16.mxu0 0
  %4376 = vmatpush2.bf16.msra.mxu0 0
  %4377 = vmatprep.subr.bf16.mxu0 0
  %4378 = vmatpush2.bf16.msra.mxu0 0
  %4379 = vmatprep.subr.bf16.mxu0 0
  %4380 = vmatpush2.bf16.msra.mxu0 0
  %4381 = vmatprep.subr.bf16.mxu0 0
  %4382 = vmatpush2.bf16.msra.mxu0 0
  %4383 = vmatprep.subr.bf16.mxu0 0
  %4384 = vmatpush2.bf16.msra.mxu0 0
  %4385 = vmatprep.subr.bf16.mxu0 0
  %4386 = vmatpush2.bf16.msra.mxu0 0
  %4387 = vmatprep.mubr.bf16.mxu0 0
  %4388 = vmatmul.mubr.bf16.gmra.mxu0 %v4353
  %v4389 = vpop.f32.mrf.mxu0
  %v4390 = vadd.f32 %v4339, %v4389
  %v4391 = vpop.f32.mrf.mxu0
  %v4392 = vpop.f32.mrf.mxu0
  %v4393 = vadd.f32 %v4339, %v4392
  %v4394 = vpop.f32.mrf.mxu0
  %4395 = vdwg.mxu0
  %s4396 = scalar_lea.vmem %s5, 128
  %v4397 = vld [vmem:[%s4396] sm:$0xf]
  %v4398 = vld [vmem:[%s4396 + $0x4] sm:$0xf]
  %v4399 = vld [vmem:[%s4396 + $0x8] sm:$0xf]
  %v4400 = vld [vmem:[%s4396 + $0xc] sm:$0xf]
  %v4401 = vlaneseq
  %v4402 = vshrl.u32 %v4401, 7
  %v4403 = vsub.s32 1, %v4402
  %v4404 = vrot.slane %v4330, %v4403
  %v4409 = vunpack.c.l.b16 %v4397
  %v4410 = vunpack.c.l.b16 %v4398
  %v4411 = vunpack.c.l.b16 %v4399
  %v4412 = vunpack.c.l.b16 %v4400
  %v4413 = vpack.c.b16 %v4410, %v4409
  %v4414 = vpack.c.b16 %v4412, %v4411
  %4417 = vmatprep.subr.bf16.mxu0 0
  %4418 = vmatpush1.bf16.msra.mxu0 0
  %4419 = vmatprep.subr.bf16.mxu0 0
  %4420 = vmatpush1.bf16.msra.mxu0 0
  %4421 = vmatprep.subr.bf16.mxu0 0
  %4422 = vmatpush1.bf16.msra.mxu0 0
  %4423 = vmatprep.subr.bf16.mxu0 0
  %4424 = vmatpush1.bf16.msra.mxu0 0
  %4425 = vmatprep.subr.bf16.mxu0 0
  %4426 = vmatpush1.bf16.msra.mxu0 0
  %4427 = vmatprep.subr.bf16.mxu0 0
  %4428 = vmatpush1.bf16.msra.mxu0 0
  %4429 = vmatprep.subr.bf16.mxu0 0
  %4430 = vmatpush1.bf16.msra.mxu0 %v4414
  %4431 = vmatprep.subr.bf16.mxu0 0
  %4432 = vmatpush1.bf16.msra.mxu0 %v4413
  %4433 = vmatprep.subr.bf16.mxu0 0
  %4434 = vmatpush2.bf16.msra.mxu0 0
  %4435 = vmatprep.subr.bf16.mxu0 0
  %4436 = vmatpush2.bf16.msra.mxu0 0
  %4437 = vmatprep.subr.bf16.mxu0 0
  %4438 = vmatpush2.bf16.msra.mxu0 0
  %4439 = vmatprep.subr.bf16.mxu0 0
  %4440 = vmatpush2.bf16.msra.mxu0 0
  %4441 = vmatprep.subr.bf16.mxu0 0
  %4442 = vmatpush2.bf16.msra.mxu0 0
  %4443 = vmatprep.subr.bf16.mxu0 0
  %4444 = vmatpush2.bf16.msra.mxu0 0
  %4445 = vmatprep.subr.bf16.mxu0 0
  %4446 = vmatpush2.bf16.msra.mxu0 0
  %4447 = vmatprep.subr.bf16.mxu0 0
  %4448 = vmatpush2.bf16.msra.mxu0 0
  %4449 = vmatprep.mubr.bf16.mxu0 0
  %4450 = vmatmul.mubr.bf16.gmra.mxu0 %v4353
  %v4451 = vpop.f32.mrf.mxu0
  %v4452 = vadd.f32 %v4404, %v4451
  %v4453 = vpop.f32.mrf.mxu0
  %v4454 = vpop.f32.mrf.mxu0
  %v4455 = vadd.f32 %v4404, %v4454
  %v4456 = vpop.f32.mrf.mxu0
  %4457 = vdwg.mxu0
  %s4458 = scalar_lea.vmem %s6, 128
  %v4459 = vld [vmem:[%s4458] sm:$0xf]
  %v4460 = vld [vmem:[%s4458 + $0x4] sm:$0xf]
  %v4461 = vld [vmem:[%s4458 + $0x8] sm:$0xf]
  %v4462 = vld [vmem:[%s4458 + $0xc] sm:$0xf]
  %v4463 = vlaneseq
  %v4464 = vshrl.u32 %v4463, 7
  %v4465 = vsub.s32 2, %v4464
  %v4466 = vrot.slane %v4330, %v4465
  %v4471 = vunpack.c.l.b16 %v4459
  %v4472 = vunpack.c.l.b16 %v4460
  %v4473 = vunpack.c.l.b16 %v4461
  %v4474 = vunpack.c.l.b16 %v4462
  %v4475 = vpack.c.b16 %v4472, %v4471
  %v4476 = vpack.c.b16 %v4474, %v4473
  %4479 = vmatprep.subr.bf16.mxu0 0
  %4480 = vmatpush1.bf16.msra.mxu0 0
  %4481 = vmatprep.subr.bf16.mxu0 0
  %4482 = vmatpush1.bf16.msra.mxu0 0
  %4483 = vmatprep.subr.bf16.mxu0 0
  %4484 = vmatpush1.bf16.msra.mxu0 0
  %4485 = vmatprep.subr.bf16.mxu0 0
  %4486 = vmatpush1.bf16.msra.mxu0 0
  %4487 = vmatprep.subr.bf16.mxu0 0
  %4488 = vmatpush1.bf16.msra.mxu0 0
  %4489 = vmatprep.subr.bf16.mxu0 0
  %4490 = vmatpush1.bf16.msra.mxu0 0
  %4491 = vmatprep.subr.bf16.mxu0 0
  %4492 = vmatpush1.bf16.msra.mxu0 %v4476
  %4493 = vmatprep.subr.bf16.mxu0 0
  %4494 = vmatpush1.bf16.msra.mxu0 %v4475
  %4495 = vmatprep.subr.bf16.mxu0 0
  %4496 = vmatpush2.bf16.msra.mxu0 0
  %4497 = vmatprep.subr.bf16.mxu0 0
  %4498 = vmatpush2.bf16.msra.mxu0 0
  %4499 = vmatprep.subr.bf16.mxu0 0
  %4500 = vmatpush2.bf16.msra.mxu0 0
  %4501 = vmatprep.subr.bf16.mxu0 0
  %4502 = vmatpush2.bf16.msra.mxu0 0
  %4503 = vmatprep.subr.bf16.mxu0 0
  %4504 = vmatpush2.bf16.msra.mxu0 0
  %4505 = vmatprep.subr.bf16.mxu0 0
  %4506 = vmatpush2.bf16.msra.mxu0 0
  %4507 = vmatprep.subr.bf16.mxu0 0
  %4508 = vmatpush2.bf16.msra.mxu0 0
  %4509 = vmatprep.subr.bf16.mxu0 0
  %4510 = vmatpush2.bf16.msra.mxu0 0
  %4511 = vmatprep.mubr.bf16.mxu0 0
  %4512 = vmatmul.mubr.bf16.gmra.mxu0 %v4353
  %v4513 = vpop.f32.mrf.mxu0
  %v4514 = vadd.f32 %v4466, %v4513
  %v4515 = vpop.f32.mrf.mxu0
  %v4516 = vpop.f32.mrf.mxu0
  %v4517 = vadd.f32 %v4466, %v4516
  %v4518 = vpop.f32.mrf.mxu0
  %4519 = vdwg.mxu0
  %v4520 = vpack.c.bf16 %v4390, %v4390
  %v4521 = vpack.c.bf16 %v4393, %v4393
  %v4522 = vpack.c.bf16 %v4452, %v4452
  %v4523 = vpack.c.bf16 %v4455, %v4455
  %v4524 = vpack.c.bf16 %v4514, %v4514
  %v4525 = vpack.c.bf16 %v4517, %v4517
  %v4527 = vsel %vm62, %v4520, 0
  %v4530 = vsel %vm62, %v4522, 0
  %4532 = vmatprep.subr.bf16.mxu0 0
  %4533 = vmatpush1.bf16.xpose.msra.mxu0 0
  %4534 = vmatprep.subr.bf16.mxu0 0
  %4535 = vmatpush1.bf16.xpose.msra.mxu0 0
  %4536 = vmatprep.subr.bf16.mxu0 0
  %4537 = vmatpush1.bf16.xpose.msra.mxu0 0
  %4538 = vmatprep.subr.bf16.mxu0 0
  %4539 = vmatpush1.bf16.xpose.msra.mxu0 0
  %4540 = vmatprep.subr.bf16.mxu0 0
  %4541 = vmatpush1.bf16.xpose.msra.mxu0 0
  %4542 = vmatprep.subr.bf16.mxu0 0
  %4543 = vmatpush1.bf16.xpose.msra.mxu0 0
  %4544 = vmatprep.subr.bf16.mxu0 0
  %4545 = vmatpush1.bf16.xpose.msra.mxu0 0
  %4546 = vmatprep.subr.bf16.mxu0 0
  %4547 = vmatpush1.bf16.xpose.msra.mxu0 %v4530
  %4548 = vmatprep.subr.bf16.mxu0 0
  %4549 = vmatpush2.bf16.xpose.msra.mxu0 0
  %4550 = vmatprep.subr.bf16.mxu0 0
  %4551 = vmatpush2.bf16.xpose.msra.mxu0 0
  %4552 = vmatprep.subr.bf16.mxu0 0
  %4553 = vmatpush2.bf16.xpose.msra.mxu0 0
  %4554 = vmatprep.subr.bf16.mxu0 0
  %4555 = vmatpush2.bf16.xpose.msra.mxu0 0
  %4556 = vmatprep.subr.bf16.mxu0 0
  %4557 = vmatpush2.bf16.xpose.msra.mxu0 0
  %4558 = vmatprep.subr.bf16.mxu0 0
  %4559 = vmatpush2.bf16.xpose.msra.mxu0 0
  %4560 = vmatprep.subr.bf16.mxu0 0
  %4561 = vmatpush2.bf16.xpose.msra.mxu0 0
  %4562 = vmatprep.subr.bf16.mxu0 0
  %4563 = vmatpush2.bf16.xpose.msra.mxu0 0
  %4564 = vmatprep.mubr.bf16.mxu0 0
  %4565 = vmatmul.mubr.bf16.gmra.mxu0 %v4527
  %v4566 = vpop.f32.mrf.mxu0
  %v4567 = vadd.f32 0.0, %v4566
  %v4568 = vpop.f32.mrf.mxu0
  %v4569 = vpop.f32.mrf.mxu0
  %v4570 = vpop.f32.mrf.mxu0
  %4571 = vdwg.mxu0
  %v4573 = vsel %vm62, %v4521, 0
  %v4576 = vsel %vm62, %v4523, 0
  %4578 = vmatprep.subr.bf16.mxu0 0
  %4579 = vmatpush1.bf16.xpose.msra.mxu0 0
  %4580 = vmatprep.subr.bf16.mxu0 0
  %4581 = vmatpush1.bf16.xpose.msra.mxu0 0
  %4582 = vmatprep.subr.bf16.mxu0 0
  %4583 = vmatpush1.bf16.xpose.msra.mxu0 0
  %4584 = vmatprep.subr.bf16.mxu0 0
  %4585 = vmatpush1.bf16.xpose.msra.mxu0 0
  %4586 = vmatprep.subr.bf16.mxu0 0
  %4587 = vmatpush1.bf16.xpose.msra.mxu0 0
  %4588 = vmatprep.subr.bf16.mxu0 0
  %4589 = vmatpush1.bf16.xpose.msra.mxu0 0
  %4590 = vmatprep.subr.bf16.mxu0 0
  %4591 = vmatpush1.bf16.xpose.msra.mxu0 0
  %4592 = vmatprep.subr.bf16.mxu0 0
  %4593 = vmatpush1.bf16.xpose.msra.mxu0 %v4576
  %4594 = vmatprep.subr.bf16.mxu0 0
  %4595 = vmatpush2.bf16.xpose.msra.mxu0 0
  %4596 = vmatprep.subr.bf16.mxu0 0
  %4597 = vmatpush2.bf16.xpose.msra.mxu0 0
  %4598 = vmatprep.subr.bf16.mxu0 0
  %4599 = vmatpush2.bf16.xpose.msra.mxu0 0
  %4600 = vmatprep.subr.bf16.mxu0 0
  %4601 = vmatpush2.bf16.xpose.msra.mxu0 0
  %4602 = vmatprep.subr.bf16.mxu0 0
  %4603 = vmatpush2.bf16.xpose.msra.mxu0 0
  %4604 = vmatprep.subr.bf16.mxu0 0
  %4605 = vmatpush2.bf16.xpose.msra.mxu0 0
  %4606 = vmatprep.subr.bf16.mxu0 0
  %4607 = vmatpush2.bf16.xpose.msra.mxu0 0
  %4608 = vmatprep.subr.bf16.mxu0 0
  %4609 = vmatpush2.bf16.xpose.msra.mxu0 0
  %4610 = vmatprep.mubr.bf16.mxu0 0
  %4611 = vmatmul.mubr.bf16.gmra.mxu0 %v4573
  %v4612 = vpop.f32.mrf.mxu0
  %v4613 = vadd.f32 0.0, %v4612
  %v4614 = vpop.f32.mrf.mxu0
  %v4615 = vpop.f32.mrf.mxu0
  %v4616 = vpop.f32.mrf.mxu0
  %4617 = vdwg.mxu0
  %v4618 = vmul.f32 %v4567, 0.35355338
  %v4619 = vmul.f32 %v4613, 0.35355338
  %v4620 = vsel %vm62, %v4618, -inf
  %4621 = vmax.xlane.f32.xlu0 %v4620
  %v4622 = vpop.xlane.xlu0 %4621
  %v4623 = vsel %vm62, %v4619, -inf
  %4624 = vmax.xlane.f32.xlu0 %v4623
  %v4625 = vpop.xlane.xlu0 %4624
  %v4626 = vsub.f32 %v4618, %v4622
  %v4627 = vsub.f32 %v4619, %v4625
  %v4628 = vmul.f32 %v4626, 1.442695
  %v4629 = vpow.pop %v4628
  %v4630 = vmul.f32 %v4627, 1.442695
  %v4631 = vpow.pop %v4630
  %v4632 = vsel %vm62, %v4629, 0.0
  %4633 = vadd.xlane.f32.xlu0 %v4632
  %v4634 = vpop.xlane.xlu0 %4633
  %v4635 = vsel %vm62, %v4631, 0.0
  %4636 = vadd.xlane.f32.xlu0 %v4635
  %v4637 = vpop.xlane.xlu0 %4636
  %v4638 = vrcp.pop %v4634
  %v4639 = vrcp.pop %v4637
  %v4640 = vmul.f32 %v4629, %v4638
  %v4641 = vmul.f32 %v4631, %v4639
  %v4642 = vpack.c.bf16 %v4640, %v4640
  %v4643 = vpack.c.bf16 %v4641, %v4641
  %v4645 = vsel %vm62, %v4642, 0
  %v4648 = vsel %vm66, %v4524, 0
  %4650 = vmatprep.subr.bf16.mxu0 0
  %4651 = vmatpush1.bf16.msra.mxu0 0
  %4652 = vmatprep.subr.bf16.mxu0 0
  %4653 = vmatpush1.bf16.msra.mxu0 0
  %4654 = vmatprep.subr.bf16.mxu0 0
  %4655 = vmatpush1.bf16.msra.mxu0 0
  %4656 = vmatprep.subr.bf16.mxu0 0
  %4657 = vmatpush1.bf16.msra.mxu0 0
  %4658 = vmatprep.subr.bf16.mxu0 0
  %4659 = vmatpush1.bf16.msra.mxu0 0
  %4660 = vmatprep.subr.bf16.mxu0 0
  %4661 = vmatpush1.bf16.msra.mxu0 0
  %4662 = vmatprep.subr.bf16.mxu0 0
  %4663 = vmatpush1.bf16.msra.mxu0 0
  %4664 = vmatprep.subr.bf16.mxu0 0
  %4665 = vmatpush1.bf16.msra.mxu0 %v4648
  %4666 = vmatprep.subr.bf16.mxu0 0
  %4667 = vmatpush2.bf16.msra.mxu0 0
  %4668 = vmatprep.subr.bf16.mxu0 0
  %4669 = vmatpush2.bf16.msra.mxu0 0
  %4670 = vmatprep.subr.bf16.mxu0 0
  %4671 = vmatpush2.bf16.msra.mxu0 0
  %4672 = vmatprep.subr.bf16.mxu0 0
  %4673 = vmatpush2.bf16.msra.mxu0 0
  %4674 = vmatprep.subr.bf16.mxu0 0
  %4675 = vmatpush2.bf16.msra.mxu0 0
  %4676 = vmatprep.subr.bf16.mxu0 0
  %4677 = vmatpush2.bf16.msra.mxu0 0
  %4678 = vmatprep.subr.bf16.mxu0 0
  %4679 = vmatpush2.bf16.msra.mxu0 0
  %4680 = vmatprep.subr.bf16.mxu0 0
  %4681 = vmatpush2.bf16.msra.mxu0 0
  %4682 = vmatprep.mubr.bf16.mxu0 0
  %4683 = vmatmul.mubr.bf16.gmra.mxu0 %v4645
  %v4684 = vpop.f32.mrf.mxu0
  %v4685 = vadd.f32 0.0, %v4684
  %v4686 = vpop.f32.mrf.mxu0
  %v4687 = vpop.f32.mrf.mxu0
  %v4688 = vpop.f32.mrf.mxu0
  %4689 = vdwg.mxu0
  %v4691 = vsel %vm62, %v4643, 0
  %v4694 = vsel %vm66, %v4525, 0
  %4696 = vmatprep.subr.bf16.mxu0 0
  %4697 = vmatpush1.bf16.msra.mxu0 0
  %4698 = vmatprep.subr.bf16.mxu0 0
  %4699 = vmatpush1.bf16.msra.mxu0 0
  %4700 = vmatprep.subr.bf16.mxu0 0
  %4701 = vmatpush1.bf16.msra.mxu0 0
  %4702 = vmatprep.subr.bf16.mxu0 0
  %4703 = vmatpush1.bf16.msra.mxu0 0
  %4704 = vmatprep.subr.bf16.mxu0 0
  %4705 = vmatpush1.bf16.msra.mxu0 0
  %4706 = vmatprep.subr.bf16.mxu0 0
  %4707 = vmatpush1.bf16.msra.mxu0 0
  %4708 = vmatprep.subr.bf16.mxu0 0
  %4709 = vmatpush1.bf16.msra.mxu0 0
  %4710 = vmatprep.subr.bf16.mxu0 0
  %4711 = vmatpush1.bf16.msra.mxu0 %v4694
  %4712 = vmatprep.subr.bf16.mxu0 0
  %4713 = vmatpush2.bf16.msra.mxu0 0
  %4714 = vmatprep.subr.bf16.mxu0 0
  %4715 = vmatpush2.bf16.msra.mxu0 0
  %4716 = vmatprep.subr.bf16.mxu0 0
  %4717 = vmatpush2.bf16.msra.mxu0 0
  %4718 = vmatprep.subr.bf16.mxu0 0
  %4719 = vmatpush2.bf16.msra.mxu0 0
  %4720 = vmatprep.subr.bf16.mxu0 0
  %4721 = vmatpush2.bf16.msra.mxu0 0
  %4722 = vmatprep.subr.bf16.mxu0 0
  %4723 = vmatpush2.bf16.msra.mxu0 0
  %4724 = vmatprep.subr.bf16.mxu0 0
  %4725 = vmatpush2.bf16.msra.mxu0 0
  %4726 = vmatprep.subr.bf16.mxu0 0
  %4727 = vmatpush2.bf16.msra.mxu0 0
  %4728 = vmatprep.mubr.bf16.mxu0 0
  %4729 = vmatmul.mubr.bf16.gmra.mxu0 %v4691
  %v4730 = vpop.f32.mrf.mxu0
  %v4731 = vadd.f32 0.0, %v4730
  %v4732 = vpop.f32.mrf.mxu0
  %v4733 = vpop.f32.mrf.mxu0
  %v4734 = vpop.f32.mrf.mxu0
  %4735 = vdwg.mxu0
  %v4736 = vpack.c.bf16 %v4731, %v4685
  %s4737 = scalar_lea.vmem %s7, 32
  %v4738 = vld [vmem:[%s4737] sm:$0xf]
  %s4739 = scalar_lea.vmem %s8, 36
  %v4740 = vld [vmem:[%s4739] sm:$0x7]
  %s4741 = scalar_lea.vmem %s4, 144
  %v4742 = vld [vmem:[%s4741] sm:$0xf]
  %v4743 = vld [vmem:[%s4741 + $0x4] sm:$0xf]
  %v4744 = vld [vmem:[%s4741 + $0x8] sm:$0xf]
  %v4745 = vld [vmem:[%s4741 + $0xc] sm:$0xf]
  %v4746 = vlaneseq
  %v4747 = vshrl.u32 %v4746, 7
  %v4748 = vsub.s32 0, %v4747
  %v4749 = vrot.slane %v4740, %v4748
  %v4754 = vunpack.c.l.b16 %v4742
  %v4755 = vunpack.c.l.b16 %v4743
  %v4756 = vunpack.c.l.b16 %v4744
  %v4757 = vunpack.c.l.b16 %v4745
  %v4758 = vpack.c.b16 %v4755, %v4754
  %v4759 = vpack.c.b16 %v4757, %v4756
  %4762 = vmatprep.subr.bf16.mxu0 0
  %4763 = vmatpush1.bf16.msra.mxu0 0
  %4764 = vmatprep.subr.bf16.mxu0 0
  %4765 = vmatpush1.bf16.msra.mxu0 0
  %4766 = vmatprep.subr.bf16.mxu0 0
  %4767 = vmatpush1.bf16.msra.mxu0 0
  %4768 = vmatprep.subr.bf16.mxu0 0
  %4769 = vmatpush1.bf16.msra.mxu0 0
  %4770 = vmatprep.subr.bf16.mxu0 0
  %4771 = vmatpush1.bf16.msra.mxu0 0
  %4772 = vmatprep.subr.bf16.mxu0 0
  %4773 = vmatpush1.bf16.msra.mxu0 0
  %4774 = vmatprep.subr.bf16.mxu0 0
  %4775 = vmatpush1.bf16.msra.mxu0 %v4759
  %4776 = vmatprep.subr.bf16.mxu0 0
  %4777 = vmatpush1.bf16.msra.mxu0 %v4758
  %4778 = vmatprep.subr.bf16.mxu0 0
  %4779 = vmatpush2.bf16.msra.mxu0 0
  %4780 = vmatprep.subr.bf16.mxu0 0
  %4781 = vmatpush2.bf16.msra.mxu0 0
  %4782 = vmatprep.subr.bf16.mxu0 0
  %4783 = vmatpush2.bf16.msra.mxu0 0
  %4784 = vmatprep.subr.bf16.mxu0 0
  %4785 = vmatpush2.bf16.msra.mxu0 0
  %4786 = vmatprep.subr.bf16.mxu0 0
  %4787 = vmatpush2.bf16.msra.mxu0 0
  %4788 = vmatprep.subr.bf16.mxu0 0
  %4789 = vmatpush2.bf16.msra.mxu0 0
  %4790 = vmatprep.subr.bf16.mxu0 0
  %4791 = vmatpush2.bf16.msra.mxu0 0
  %4792 = vmatprep.subr.bf16.mxu0 0
  %4793 = vmatpush2.bf16.msra.mxu0 0
  %4794 = vmatprep.mubr.bf16.mxu0 0
  %4795 = vmatmul.mubr.bf16.gmra.mxu0 %v4353
  %v4796 = vpop.f32.mrf.mxu0
  %v4797 = vadd.f32 %v4749, %v4796
  %v4798 = vpop.f32.mrf.mxu0
  %v4799 = vpop.f32.mrf.mxu0
  %v4800 = vadd.f32 %v4749, %v4799
  %v4801 = vpop.f32.mrf.mxu0
  %4802 = vdwg.mxu0
  %s4803 = scalar_lea.vmem %s5, 144
  %v4804 = vld [vmem:[%s4803] sm:$0xf]
  %v4805 = vld [vmem:[%s4803 + $0x4] sm:$0xf]
  %v4806 = vld [vmem:[%s4803 + $0x8] sm:$0xf]
  %v4807 = vld [vmem:[%s4803 + $0xc] sm:$0xf]
  %v4808 = vlaneseq
  %v4809 = vshrl.u32 %v4808, 7
  %v4810 = vsub.s32 1, %v4809
  %v4811 = vrot.slane %v4740, %v4810
  %v4816 = vunpack.c.l.b16 %v4804
  %v4817 = vunpack.c.l.b16 %v4805
  %v4818 = vunpack.c.l.b16 %v4806
  %v4819 = vunpack.c.l.b16 %v4807
  %v4820 = vpack.c.b16 %v4817, %v4816
  %v4821 = vpack.c.b16 %v4819, %v4818
  %4824 = vmatprep.subr.bf16.mxu0 0
  %4825 = vmatpush1.bf16.msra.mxu0 0
  %4826 = vmatprep.subr.bf16.mxu0 0
  %4827 = vmatpush1.bf16.msra.mxu0 0
  %4828 = vmatprep.subr.bf16.mxu0 0
  %4829 = vmatpush1.bf16.msra.mxu0 0
  %4830 = vmatprep.subr.bf16.mxu0 0
  %4831 = vmatpush1.bf16.msra.mxu0 0
  %4832 = vmatprep.subr.bf16.mxu0 0
  %4833 = vmatpush1.bf16.msra.mxu0 0
  %4834 = vmatprep.subr.bf16.mxu0 0
  %4835 = vmatpush1.bf16.msra.mxu0 0
  %4836 = vmatprep.subr.bf16.mxu0 0
  %4837 = vmatpush1.bf16.msra.mxu0 %v4821
  %4838 = vmatprep.subr.bf16.mxu0 0
  %4839 = vmatpush1.bf16.msra.mxu0 %v4820
  %4840 = vmatprep.subr.bf16.mxu0 0
  %4841 = vmatpush2.bf16.msra.mxu0 0
  %4842 = vmatprep.subr.bf16.mxu0 0
  %4843 = vmatpush2.bf16.msra.mxu0 0
  %4844 = vmatprep.subr.bf16.mxu0 0
  %4845 = vmatpush2.bf16.msra.mxu0 0
  %4846 = vmatprep.subr.bf16.mxu0 0
  %4847 = vmatpush2.bf16.msra.mxu0 0
  %4848 = vmatprep.subr.bf16.mxu0 0
  %4849 = vmatpush2.bf16.msra.mxu0 0
  %4850 = vmatprep.subr.bf16.mxu0 0
  %4851 = vmatpush2.bf16.msra.mxu0 0
  %4852 = vmatprep.subr.bf16.mxu0 0
  %4853 = vmatpush2.bf16.msra.mxu0 0
  %4854 = vmatprep.subr.bf16.mxu0 0
  %4855 = vmatpush2.bf16.msra.mxu0 0
  %4856 = vmatprep.mubr.bf16.mxu0 0
  %4857 = vmatmul.mubr.bf16.gmra.mxu0 %v4353
  %v4858 = vpop.f32.mrf.mxu0
  %v4859 = vadd.f32 %v4811, %v4858
  %v4860 = vpop.f32.mrf.mxu0
  %v4861 = vpop.f32.mrf.mxu0
  %v4862 = vadd.f32 %v4811, %v4861
  %v4863 = vpop.f32.mrf.mxu0
  %4864 = vdwg.mxu0
  %s4865 = scalar_lea.vmem %s6, 144
  %v4866 = vld [vmem:[%s4865] sm:$0xf]
  %v4867 = vld [vmem:[%s4865 + $0x4] sm:$0xf]
  %v4868 = vld [vmem:[%s4865 + $0x8] sm:$0xf]
  %v4869 = vld [vmem:[%s4865 + $0xc] sm:$0xf]
  %v4870 = vlaneseq
  %v4871 = vshrl.u32 %v4870, 7
  %v4872 = vsub.s32 2, %v4871
  %v4873 = vrot.slane %v4740, %v4872
  %v4878 = vunpack.c.l.b16 %v4866
  %v4879 = vunpack.c.l.b16 %v4867
  %v4880 = vunpack.c.l.b16 %v4868
  %v4881 = vunpack.c.l.b16 %v4869
  %v4882 = vpack.c.b16 %v4879, %v4878
  %v4883 = vpack.c.b16 %v4881, %v4880
  %4886 = vmatprep.subr.bf16.mxu0 0
  %4887 = vmatpush1.bf16.msra.mxu0 0
  %4888 = vmatprep.subr.bf16.mxu0 0
  %4889 = vmatpush1.bf16.msra.mxu0 0
  %4890 = vmatprep.subr.bf16.mxu0 0
  %4891 = vmatpush1.bf16.msra.mxu0 0
  %4892 = vmatprep.subr.bf16.mxu0 0
  %4893 = vmatpush1.bf16.msra.mxu0 0
  %4894 = vmatprep.subr.bf16.mxu0 0
  %4895 = vmatpush1.bf16.msra.mxu0 0
  %4896 = vmatprep.subr.bf16.mxu0 0
  %4897 = vmatpush1.bf16.msra.mxu0 0
  %4898 = vmatprep.subr.bf16.mxu0 0
  %4899 = vmatpush1.bf16.msra.mxu0 %v4883
  %4900 = vmatprep.subr.bf16.mxu0 0
  %4901 = vmatpush1.bf16.msra.mxu0 %v4882
  %4902 = vmatprep.subr.bf16.mxu0 0
  %4903 = vmatpush2.bf16.msra.mxu0 0
  %4904 = vmatprep.subr.bf16.mxu0 0
  %4905 = vmatpush2.bf16.msra.mxu0 0
  %4906 = vmatprep.subr.bf16.mxu0 0
  %4907 = vmatpush2.bf16.msra.mxu0 0
  %4908 = vmatprep.subr.bf16.mxu0 0
  %4909 = vmatpush2.bf16.msra.mxu0 0
  %4910 = vmatprep.subr.bf16.mxu0 0
  %4911 = vmatpush2.bf16.msra.mxu0 0
  %4912 = vmatprep.subr.bf16.mxu0 0
  %4913 = vmatpush2.bf16.msra.mxu0 0
  %4914 = vmatprep.subr.bf16.mxu0 0
  %4915 = vmatpush2.bf16.msra.mxu0 0
  %4916 = vmatprep.subr.bf16.mxu0 0
  %4917 = vmatpush2.bf16.msra.mxu0 0
  %4918 = vmatprep.mubr.bf16.mxu0 0
  %4919 = vmatmul.mubr.bf16.gmra.mxu0 %v4353
  %v4920 = vpop.f32.mrf.mxu0
  %v4921 = vadd.f32 %v4873, %v4920
  %v4922 = vpop.f32.mrf.mxu0
  %v4923 = vpop.f32.mrf.mxu0
  %v4924 = vadd.f32 %v4873, %v4923
  %v4925 = vpop.f32.mrf.mxu0
  %4926 = vdwg.mxu0
  %v4927 = vpack.c.bf16 %v4797, %v4797
  %v4928 = vpack.c.bf16 %v4800, %v4800
  %v4929 = vpack.c.bf16 %v4859, %v4859
  %v4930 = vpack.c.bf16 %v4862, %v4862
  %v4931 = vpack.c.bf16 %v4921, %v4921
  %v4932 = vpack.c.bf16 %v4924, %v4924
  %v4934 = vsel %vm62, %v4927, 0
  %v4937 = vsel %vm62, %v4929, 0
  %4939 = vmatprep.subr.bf16.mxu0 0
  %4940 = vmatpush1.bf16.xpose.msra.mxu0 0
  %4941 = vmatprep.subr.bf16.mxu0 0
  %4942 = vmatpush1.bf16.xpose.msra.mxu0 0
  %4943 = vmatprep.subr.bf16.mxu0 0
  %4944 = vmatpush1.bf16.xpose.msra.mxu0 0
  %4945 = vmatprep.subr.bf16.mxu0 0
  %4946 = vmatpush1.bf16.xpose.msra.mxu0 0
  %4947 = vmatprep.subr.bf16.mxu0 0
  %4948 = vmatpush1.bf16.xpose.msra.mxu0 0
  %4949 = vmatprep.subr.bf16.mxu0 0
  %4950 = vmatpush1.bf16.xpose.msra.mxu0 0
  %4951 = vmatprep.subr.bf16.mxu0 0
  %4952 = vmatpush1.bf16.xpose.msra.mxu0 0
  %4953 = vmatprep.subr.bf16.mxu0 0
  %4954 = vmatpush1.bf16.xpose.msra.mxu0 %v4937
  %4955 = vmatprep.subr.bf16.mxu0 0
  %4956 = vmatpush2.bf16.xpose.msra.mxu0 0
  %4957 = vmatprep.subr.bf16.mxu0 0
  %4958 = vmatpush2.bf16.xpose.msra.mxu0 0
  %4959 = vmatprep.subr.bf16.mxu0 0
  %4960 = vmatpush2.bf16.xpose.msra.mxu0 0
  %4961 = vmatprep.subr.bf16.mxu0 0
  %4962 = vmatpush2.bf16.xpose.msra.mxu0 0
  %4963 = vmatprep.subr.bf16.mxu0 0
  %4964 = vmatpush2.bf16.xpose.msra.mxu0 0
  %4965 = vmatprep.subr.bf16.mxu0 0
  %4966 = vmatpush2.bf16.xpose.msra.mxu0 0
  %4967 = vmatprep.subr.bf16.mxu0 0
  %4968 = vmatpush2.bf16.xpose.msra.mxu0 0
  %4969 = vmatprep.subr.bf16.mxu0 0
  %4970 = vmatpush2.bf16.xpose.msra.mxu0 0
  %4971 = vmatprep.mubr.bf16.mxu0 0
  %4972 = vmatmul.mubr.bf16.gmra.mxu0 %v4934
  %v4973 = vpop.f32.mrf.mxu0
  %v4974 = vadd.f32 0.0, %v4973
  %v4975 = vpop.f32.mrf.mxu0
  %v4976 = vpop.f32.mrf.mxu0
  %v4977 = vpop.f32.mrf.mxu0
  %4978 = vdwg.mxu0
  %v4980 = vsel %vm62, %v4928, 0
  %v4983 = vsel %vm62, %v4930, 0
  %4985 = vmatprep.subr.bf16.mxu0 0
  %4986 = vmatpush1.bf16.xpose.msra.mxu0 0
  %4987 = vmatprep.subr.bf16.mxu0 0
  %4988 = vmatpush1.bf16.xpose.msra.mxu0 0
  %4989 = vmatprep.subr.bf16.mxu0 0
  %4990 = vmatpush1.bf16.xpose.msra.mxu0 0
  %4991 = vmatprep.subr.bf16.mxu0 0
  %4992 = vmatpush1.bf16.xpose.msra.mxu0 0
  %4993 = vmatprep.subr.bf16.mxu0 0
  %4994 = vmatpush1.bf16.xpose.msra.mxu0 0
  %4995 = vmatprep.subr.bf16.mxu0 0
  %4996 = vmatpush1.bf16.xpose.msra.mxu0 0
  %4997 = vmatprep.subr.bf16.mxu0 0
  %4998 = vmatpush1.bf16.xpose.msra.mxu0 0
  %4999 = vmatprep.subr.bf16.mxu0 0
  %5000 = vmatpush1.bf16.xpose.msra.mxu0 %v4983
  %5001 = vmatprep.subr.bf16.mxu0 0
  %5002 = vmatpush2.bf16.xpose.msra.mxu0 0
  %5003 = vmatprep.subr.bf16.mxu0 0
  %5004 = vmatpush2.bf16.xpose.msra.mxu0 0
  %5005 = vmatprep.subr.bf16.mxu0 0
  %5006 = vmatpush2.bf16.xpose.msra.mxu0 0
  %5007 = vmatprep.subr.bf16.mxu0 0
  %5008 = vmatpush2.bf16.xpose.msra.mxu0 0
  %5009 = vmatprep.subr.bf16.mxu0 0
  %5010 = vmatpush2.bf16.xpose.msra.mxu0 0
  %5011 = vmatprep.subr.bf16.mxu0 0
  %5012 = vmatpush2.bf16.xpose.msra.mxu0 0
  %5013 = vmatprep.subr.bf16.mxu0 0
  %5014 = vmatpush2.bf16.xpose.msra.mxu0 0
  %5015 = vmatprep.subr.bf16.mxu0 0
  %5016 = vmatpush2.bf16.xpose.msra.mxu0 0
  %5017 = vmatprep.mubr.bf16.mxu0 0
  %5018 = vmatmul.mubr.bf16.gmra.mxu0 %v4980
  %v5019 = vpop.f32.mrf.mxu0
  %v5020 = vadd.f32 0.0, %v5019
  %v5021 = vpop.f32.mrf.mxu0
  %v5022 = vpop.f32.mrf.mxu0
  %v5023 = vpop.f32.mrf.mxu0
  %5024 = vdwg.mxu0
  %v5025 = vmul.f32 %v4974, 0.35355338
  %v5026 = vmul.f32 %v5020, 0.35355338
  %v5027 = vsel %vm62, %v5025, -inf
  %5028 = vmax.xlane.f32.xlu0 %v5027
  %v5029 = vpop.xlane.xlu0 %5028
  %v5030 = vsel %vm62, %v5026, -inf
  %5031 = vmax.xlane.f32.xlu0 %v5030
  %v5032 = vpop.xlane.xlu0 %5031
  %v5033 = vsub.f32 %v5025, %v5029
  %v5034 = vsub.f32 %v5026, %v5032
  %v5035 = vmul.f32 %v5033, 1.442695
  %v5036 = vpow.pop %v5035
  %v5037 = vmul.f32 %v5034, 1.442695
  %v5038 = vpow.pop %v5037
  %v5039 = vsel %vm62, %v5036, 0.0
  %5040 = vadd.xlane.f32.xlu0 %v5039
  %v5041 = vpop.xlane.xlu0 %5040
  %v5042 = vsel %vm62, %v5038, 0.0
  %5043 = vadd.xlane.f32.xlu0 %v5042
  %v5044 = vpop.xlane.xlu0 %5043
  %v5045 = vrcp.pop %v5041
  %v5046 = vrcp.pop %v5044
  %v5047 = vmul.f32 %v5036, %v5045
  %v5048 = vmul.f32 %v5038, %v5046
  %v5049 = vpack.c.bf16 %v5047, %v5047
  %v5050 = vpack.c.bf16 %v5048, %v5048
  %v5052 = vsel %vm62, %v5049, 0
  %v5055 = vsel %vm66, %v4931, 0
  %5057 = vmatprep.subr.bf16.mxu0 0
  %5058 = vmatpush1.bf16.msra.mxu0 0
  %5059 = vmatprep.subr.bf16.mxu0 0
  %5060 = vmatpush1.bf16.msra.mxu0 0
  %5061 = vmatprep.subr.bf16.mxu0 0
  %5062 = vmatpush1.bf16.msra.mxu0 0
  %5063 = vmatprep.subr.bf16.mxu0 0
  %5064 = vmatpush1.bf16.msra.mxu0 0
  %5065 = vmatprep.subr.bf16.mxu0 0
  %5066 = vmatpush1.bf16.msra.mxu0 0
  %5067 = vmatprep.subr.bf16.mxu0 0
  %5068 = vmatpush1.bf16.msra.mxu0 0
  %5069 = vmatprep.subr.bf16.mxu0 0
  %5070 = vmatpush1.bf16.msra.mxu0 0
  %5071 = vmatprep.subr.bf16.mxu0 0
  %5072 = vmatpush1.bf16.msra.mxu0 %v5055
  %5073 = vmatprep.subr.bf16.mxu0 0
  %5074 = vmatpush2.bf16.msra.mxu0 0
  %5075 = vmatprep.subr.bf16.mxu0 0
  %5076 = vmatpush2.bf16.msra.mxu0 0
  %5077 = vmatprep.subr.bf16.mxu0 0
  %5078 = vmatpush2.bf16.msra.mxu0 0
  %5079 = vmatprep.subr.bf16.mxu0 0
  %5080 = vmatpush2.bf16.msra.mxu0 0
  %5081 = vmatprep.subr.bf16.mxu0 0
  %5082 = vmatpush2.bf16.msra.mxu0 0
  %5083 = vmatprep.subr.bf16.mxu0 0
  %5084 = vmatpush2.bf16.msra.mxu0 0
  %5085 = vmatprep.subr.bf16.mxu0 0
  %5086 = vmatpush2.bf16.msra.mxu0 0
  %5087 = vmatprep.subr.bf16.mxu0 0
  %5088 = vmatpush2.bf16.msra.mxu0 0
  %5089 = vmatprep.mubr.bf16.mxu0 0
  %5090 = vmatmul.mubr.bf16.gmra.mxu0 %v5052
  %v5091 = vpop.f32.mrf.mxu0
  %v5092 = vadd.f32 0.0, %v5091
  %v5093 = vpop.f32.mrf.mxu0
  %v5094 = vpop.f32.mrf.mxu0
  %v5095 = vpop.f32.mrf.mxu0
  %5096 = vdwg.mxu0
  %v5098 = vsel %vm62, %v5050, 0
  %v5101 = vsel %vm66, %v4932, 0
  %5103 = vmatprep.subr.bf16.mxu0 0
  %5104 = vmatpush1.bf16.msra.mxu0 0
  %5105 = vmatprep.subr.bf16.mxu0 0
  %5106 = vmatpush1.bf16.msra.mxu0 0
  %5107 = vmatprep.subr.bf16.mxu0 0
  %5108 = vmatpush1.bf16.msra.mxu0 0
  %5109 = vmatprep.subr.bf16.mxu0 0
  %5110 = vmatpush1.bf16.msra.mxu0 0
  %5111 = vmatprep.subr.bf16.mxu0 0
  %5112 = vmatpush1.bf16.msra.mxu0 0
  %5113 = vmatprep.subr.bf16.mxu0 0
  %5114 = vmatpush1.bf16.msra.mxu0 0
  %5115 = vmatprep.subr.bf16.mxu0 0
  %5116 = vmatpush1.bf16.msra.mxu0 0
  %5117 = vmatprep.subr.bf16.mxu0 0
  %5118 = vmatpush1.bf16.msra.mxu0 %v5101
  %5119 = vmatprep.subr.bf16.mxu0 0
  %5120 = vmatpush2.bf16.msra.mxu0 0
  %5121 = vmatprep.subr.bf16.mxu0 0
  %5122 = vmatpush2.bf16.msra.mxu0 0
  %5123 = vmatprep.subr.bf16.mxu0 0
  %5124 = vmatpush2.bf16.msra.mxu0 0
  %5125 = vmatprep.subr.bf16.mxu0 0
  %5126 = vmatpush2.bf16.msra.mxu0 0
  %5127 = vmatprep.subr.bf16.mxu0 0
  %5128 = vmatpush2.bf16.msra.mxu0 0
  %5129 = vmatprep.subr.bf16.mxu0 0
  %5130 = vmatpush2.bf16.msra.mxu0 0
  %5131 = vmatprep.subr.bf16.mxu0 0
  %5132 = vmatpush2.bf16.msra.mxu0 0
  %5133 = vmatprep.subr.bf16.mxu0 0
  %5134 = vmatpush2.bf16.msra.mxu0 0
  %5135 = vmatprep.mubr.bf16.mxu0 0
  %5136 = vmatmul.mubr.bf16.gmra.mxu0 %v5098
  %v5137 = vpop.f32.mrf.mxu0
  %v5138 = vadd.f32 0.0, %v5137
  %v5139 = vpop.f32.mrf.mxu0
  %v5140 = vpop.f32.mrf.mxu0
  %v5141 = vpop.f32.mrf.mxu0
  %5142 = vdwg.mxu0
  %v5143 = vpack.c.bf16 %v5138, %v5092
  %s5144 = scalar_lea.vmem %s7, 36
  %v5145 = vld [vmem:[%s5144] sm:$0xf]
  %v5147 = vsel %vm62, %v5143, 0
  %v5150 = vsel %vm66, %v5145, 0
  %5152 = vmatprep.subr.bf16.mxu0 0
  %5153 = vmatpush1.bf16.msra.mxu0 0
  %5154 = vmatprep.subr.bf16.mxu0 0
  %5155 = vmatpush1.bf16.msra.mxu0 0
  %5156 = vmatprep.subr.bf16.mxu0 0
  %5157 = vmatpush1.bf16.msra.mxu0 0
  %5158 = vmatprep.subr.bf16.mxu0 0
  %5159 = vmatpush1.bf16.msra.mxu0 0
  %5160 = vmatprep.subr.bf16.mxu0 0
  %5161 = vmatpush1.bf16.msra.mxu0 0
  %5162 = vmatprep.subr.bf16.mxu0 0
  %5163 = vmatpush1.bf16.msra.mxu0 0
  %5164 = vmatprep.subr.bf16.mxu0 0
  %5165 = vmatpush1.bf16.msra.mxu0 0
  %5166 = vmatprep.subr.bf16.mxu0 0
  %5167 = vmatpush1.bf16.msra.mxu0 %v5150
  %5168 = vmatprep.subr.bf16.mxu0 0
  %5169 = vmatpush2.bf16.msra.mxu0 0
  %5170 = vmatprep.subr.bf16.mxu0 0
  %5171 = vmatpush2.bf16.msra.mxu0 0
  %5172 = vmatprep.subr.bf16.mxu0 0
  %5173 = vmatpush2.bf16.msra.mxu0 0
  %5174 = vmatprep.subr.bf16.mxu0 0
  %5175 = vmatpush2.bf16.msra.mxu0 0
  %5176 = vmatprep.subr.bf16.mxu0 0
  %5177 = vmatpush2.bf16.msra.mxu0 0
  %5178 = vmatprep.subr.bf16.mxu0 0
  %5179 = vmatpush2.bf16.msra.mxu0 0
  %5180 = vmatprep.subr.bf16.mxu0 0
  %5181 = vmatpush2.bf16.msra.mxu0 0
  %5182 = vmatprep.subr.bf16.mxu0 0
  %5183 = vmatpush2.bf16.msra.mxu0 0
  %5184 = vmatprep.mubr.bf16.mxu0 0
  %5185 = vmatmul.mubr.bf16.gmra.mxu0 %v5147
  %v5186 = vpop.f32.mrf.mxu0
  %v5187 = vadd.f32 0.0, %v5186
  %v5188 = vpop.f32.mrf.mxu0
  %v5189 = vpop.f32.mrf.mxu0
  %v5190 = vadd.f32 0.0, %v5189
  %v5191 = vpop.f32.mrf.mxu0
  %5192 = vdwg.mxu0
  %v5194 = vsel %vm62, %v4736, 0
  %v5197 = vsel %vm66, %v4738, 0
  %5199 = vmatprep.subr.bf16.mxu0 0
  %5200 = vmatpush1.bf16.msra.mxu0 0
  %5201 = vmatprep.subr.bf16.mxu0 0
  %5202 = vmatpush1.bf16.msra.mxu0 0
  %5203 = vmatprep.subr.bf16.mxu0 0
  %5204 = vmatpush1.bf16.msra.mxu0 0
  %5205 = vmatprep.subr.bf16.mxu0 0
  %5206 = vmatpush1.bf16.msra.mxu0 0
  %5207 = vmatprep.subr.bf16.mxu0 0
  %5208 = vmatpush1.bf16.msra.mxu0 0
  %5209 = vmatprep.subr.bf16.mxu0 0
  %5210 = vmatpush1.bf16.msra.mxu0 0
  %5211 = vmatprep.subr.bf16.mxu0 0
  %5212 = vmatpush1.bf16.msra.mxu0 0
  %5213 = vmatprep.subr.bf16.mxu0 0
  %5214 = vmatpush1.bf16.msra.mxu0 %v5197
  %5215 = vmatprep.subr.bf16.mxu0 0
  %5216 = vmatpush2.bf16.msra.mxu0 0
  %5217 = vmatprep.subr.bf16.mxu0 0
  %5218 = vmatpush2.bf16.msra.mxu0 0
  %5219 = vmatprep.subr.bf16.mxu0 0
  %5220 = vmatpush2.bf16.msra.mxu0 0
  %5221 = vmatprep.subr.bf16.mxu0 0
  %5222 = vmatpush2.bf16.msra.mxu0 0
  %5223 = vmatprep.subr.bf16.mxu0 0
  %5224 = vmatpush2.bf16.msra.mxu0 0
  %5225 = vmatprep.subr.bf16.mxu0 0
  %5226 = vmatpush2.bf16.msra.mxu0 0
  %5227 = vmatprep.subr.bf16.mxu0 0
  %5228 = vmatpush2.bf16.msra.mxu0 0
  %5229 = vmatprep.subr.bf16.mxu0 0
  %5230 = vmatpush2.bf16.msra.mxu0 0
  %5231 = vmatprep.mubr.bf16.mxu0 0
  %5232 = vmatmul.mubr.bf16.gmra.mxu0 %v5194
  %v5233 = vpop.f32.mrf.mxu0
  %v5234 = vadd.f32 %v5187, %v5233
  %v5235 = vpop.f32.mrf.mxu0
  %v5236 = vpop.f32.mrf.mxu0
  %v5237 = vadd.f32 %v5190, %v5236
  %v5238 = vpop.f32.mrf.mxu0
  %5239 = vdwg.mxu0
  %s5240 = scalar_lea.vmem %s8, 40
  %v5241 = vld [vmem:[%s5240] sm:$0x7]
  %s5242 = scalar_lea.vmem %s4, 160
  %v5243 = vld [vmem:[%s5242] sm:$0xf]
  %v5244 = vld [vmem:[%s5242 + $0x4] sm:$0xf]
  %v5245 = vld [vmem:[%s5242 + $0x8] sm:$0xf]
  %v5246 = vld [vmem:[%s5242 + $0xc] sm:$0xf]
  %v5247 = vlaneseq
  %v5248 = vshrl.u32 %v5247, 7
  %v5249 = vsub.s32 0, %v5248
  %v5250 = vrot.slane %v5241, %v5249
  %v5255 = vunpack.c.l.b16 %v5243
  %v5256 = vunpack.c.l.b16 %v5244
  %v5257 = vunpack.c.l.b16 %v5245
  %v5258 = vunpack.c.l.b16 %v5246
  %v5259 = vpack.c.b16 %v5256, %v5255
  %v5260 = vpack.c.b16 %v5258, %v5257
  %5263 = vmatprep.subr.bf16.mxu0 0
  %5264 = vmatpush1.bf16.msra.mxu0 0
  %5265 = vmatprep.subr.bf16.mxu0 0
  %5266 = vmatpush1.bf16.msra.mxu0 0
  %5267 = vmatprep.subr.bf16.mxu0 0
  %5268 = vmatpush1.bf16.msra.mxu0 0
  %5269 = vmatprep.subr.bf16.mxu0 0
  %5270 = vmatpush1.bf16.msra.mxu0 0
  %5271 = vmatprep.subr.bf16.mxu0 0
  %5272 = vmatpush1.bf16.msra.mxu0 0
  %5273 = vmatprep.subr.bf16.mxu0 0
  %5274 = vmatpush1.bf16.msra.mxu0 0
  %5275 = vmatprep.subr.bf16.mxu0 0
  %5276 = vmatpush1.bf16.msra.mxu0 %v5260
  %5277 = vmatprep.subr.bf16.mxu0 0
  %5278 = vmatpush1.bf16.msra.mxu0 %v5259
  %5279 = vmatprep.subr.bf16.mxu0 0
  %5280 = vmatpush2.bf16.msra.mxu0 0
  %5281 = vmatprep.subr.bf16.mxu0 0
  %5282 = vmatpush2.bf16.msra.mxu0 0
  %5283 = vmatprep.subr.bf16.mxu0 0
  %5284 = vmatpush2.bf16.msra.mxu0 0
  %5285 = vmatprep.subr.bf16.mxu0 0
  %5286 = vmatpush2.bf16.msra.mxu0 0
  %5287 = vmatprep.subr.bf16.mxu0 0
  %5288 = vmatpush2.bf16.msra.mxu0 0
  %5289 = vmatprep.subr.bf16.mxu0 0
  %5290 = vmatpush2.bf16.msra.mxu0 0
  %5291 = vmatprep.subr.bf16.mxu0 0
  %5292 = vmatpush2.bf16.msra.mxu0 0
  %5293 = vmatprep.subr.bf16.mxu0 0
  %5294 = vmatpush2.bf16.msra.mxu0 0
  %5295 = vmatprep.mubr.bf16.mxu0 0
  %5296 = vmatmul.mubr.bf16.gmra.mxu0 %v4353
  %v5297 = vpop.f32.mrf.mxu0
  %v5298 = vadd.f32 %v5250, %v5297
  %v5299 = vpop.f32.mrf.mxu0
  %v5300 = vpop.f32.mrf.mxu0
  %v5301 = vadd.f32 %v5250, %v5300
  %v5302 = vpop.f32.mrf.mxu0
  %5303 = vdwg.mxu0
  %s5304 = scalar_lea.vmem %s5, 160
  %v5305 = vld [vmem:[%s5304] sm:$0xf]
  %v5306 = vld [vmem:[%s5304 + $0x4] sm:$0xf]
  %v5307 = vld [vmem:[%s5304 + $0x8] sm:$0xf]
  %v5308 = vld [vmem:[%s5304 + $0xc] sm:$0xf]
  %v5309 = vlaneseq
  %v5310 = vshrl.u32 %v5309, 7
  %v5311 = vsub.s32 1, %v5310
  %v5312 = vrot.slane %v5241, %v5311
  %v5317 = vunpack.c.l.b16 %v5305
  %v5318 = vunpack.c.l.b16 %v5306
  %v5319 = vunpack.c.l.b16 %v5307
  %v5320 = vunpack.c.l.b16 %v5308
  %v5321 = vpack.c.b16 %v5318, %v5317
  %v5322 = vpack.c.b16 %v5320, %v5319
  %5325 = vmatprep.subr.bf16.mxu0 0
  %5326 = vmatpush1.bf16.msra.mxu0 0
  %5327 = vmatprep.subr.bf16.mxu0 0
  %5328 = vmatpush1.bf16.msra.mxu0 0
  %5329 = vmatprep.subr.bf16.mxu0 0
  %5330 = vmatpush1.bf16.msra.mxu0 0
  %5331 = vmatprep.subr.bf16.mxu0 0
  %5332 = vmatpush1.bf16.msra.mxu0 0
  %5333 = vmatprep.subr.bf16.mxu0 0
  %5334 = vmatpush1.bf16.msra.mxu0 0
  %5335 = vmatprep.subr.bf16.mxu0 0
  %5336 = vmatpush1.bf16.msra.mxu0 0
  %5337 = vmatprep.subr.bf16.mxu0 0
  %5338 = vmatpush1.bf16.msra.mxu0 %v5322
  %5339 = vmatprep.subr.bf16.mxu0 0
  %5340 = vmatpush1.bf16.msra.mxu0 %v5321
  %5341 = vmatprep.subr.bf16.mxu0 0
  %5342 = vmatpush2.bf16.msra.mxu0 0
  %5343 = vmatprep.subr.bf16.mxu0 0
  %5344 = vmatpush2.bf16.msra.mxu0 0
  %5345 = vmatprep.subr.bf16.mxu0 0
  %5346 = vmatpush2.bf16.msra.mxu0 0
  %5347 = vmatprep.subr.bf16.mxu0 0
  %5348 = vmatpush2.bf16.msra.mxu0 0
  %5349 = vmatprep.subr.bf16.mxu0 0
  %5350 = vmatpush2.bf16.msra.mxu0 0
  %5351 = vmatprep.subr.bf16.mxu0 0
  %5352 = vmatpush2.bf16.msra.mxu0 0
  %5353 = vmatprep.subr.bf16.mxu0 0
  %5354 = vmatpush2.bf16.msra.mxu0 0
  %5355 = vmatprep.subr.bf16.mxu0 0
  %5356 = vmatpush2.bf16.msra.mxu0 0
  %5357 = vmatprep.mubr.bf16.mxu0 0
  %5358 = vmatmul.mubr.bf16.gmra.mxu0 %v4353
  %v5359 = vpop.f32.mrf.mxu0
  %v5360 = vadd.f32 %v5312, %v5359
  %v5361 = vpop.f32.mrf.mxu0
  %v5362 = vpop.f32.mrf.mxu0
  %v5363 = vadd.f32 %v5312, %v5362
  %v5364 = vpop.f32.mrf.mxu0
  %5365 = vdwg.mxu0
  %s5366 = scalar_lea.vmem %s6, 160
  %v5367 = vld [vmem:[%s5366] sm:$0xf]
  %v5368 = vld [vmem:[%s5366 + $0x4] sm:$0xf]
  %v5369 = vld [vmem:[%s5366 + $0x8] sm:$0xf]
  %v5370 = vld [vmem:[%s5366 + $0xc] sm:$0xf]
  %v5371 = vlaneseq
  %v5372 = vshrl.u32 %v5371, 7
  %v5373 = vsub.s32 2, %v5372
  %v5374 = vrot.slane %v5241, %v5373
  %v5379 = vunpack.c.l.b16 %v5367
  %v5380 = vunpack.c.l.b16 %v5368
  %v5381 = vunpack.c.l.b16 %v5369
  %v5382 = vunpack.c.l.b16 %v5370
  %v5383 = vpack.c.b16 %v5380, %v5379
  %v5384 = vpack.c.b16 %v5382, %v5381
  %5387 = vmatprep.subr.bf16.mxu0 0
  %5388 = vmatpush1.bf16.msra.mxu0 0
  %5389 = vmatprep.subr.bf16.mxu0 0
  %5390 = vmatpush1.bf16.msra.mxu0 0
  %5391 = vmatprep.subr.bf16.mxu0 0
  %5392 = vmatpush1.bf16.msra.mxu0 0
  %5393 = vmatprep.subr.bf16.mxu0 0
  %5394 = vmatpush1.bf16.msra.mxu0 0
  %5395 = vmatprep.subr.bf16.mxu0 0
  %5396 = vmatpush1.bf16.msra.mxu0 0
  %5397 = vmatprep.subr.bf16.mxu0 0
  %5398 = vmatpush1.bf16.msra.mxu0 0
  %5399 = vmatprep.subr.bf16.mxu0 0
  %5400 = vmatpush1.bf16.msra.mxu0 %v5384
  %5401 = vmatprep.subr.bf16.mxu0 0
  %5402 = vmatpush1.bf16.msra.mxu0 %v5383
  %5403 = vmatprep.subr.bf16.mxu0 0
  %5404 = vmatpush2.bf16.msra.mxu0 0
  %5405 = vmatprep.subr.bf16.mxu0 0
  %5406 = vmatpush2.bf16.msra.mxu0 0
  %5407 = vmatprep.subr.bf16.mxu0 0
  %5408 = vmatpush2.bf16.msra.mxu0 0
  %5409 = vmatprep.subr.bf16.mxu0 0
  %5410 = vmatpush2.bf16.msra.mxu0 0
  %5411 = vmatprep.subr.bf16.mxu0 0
  %5412 = vmatpush2.bf16.msra.mxu0 0
  %5413 = vmatprep.subr.bf16.mxu0 0
  %5414 = vmatpush2.bf16.msra.mxu0 0
  %5415 = vmatprep.subr.bf16.mxu0 0
  %5416 = vmatpush2.bf16.msra.mxu0 0
  %5417 = vmatprep.subr.bf16.mxu0 0
  %5418 = vmatpush2.bf16.msra.mxu0 0
  %5419 = vmatprep.mubr.bf16.mxu0 0
  %5420 = vmatmul.mubr.bf16.gmra.mxu0 %v4353
  %v5421 = vpop.f32.mrf.mxu0
  %v5422 = vadd.f32 %v5374, %v5421
  %v5423 = vpop.f32.mrf.mxu0
  %v5424 = vpop.f32.mrf.mxu0
  %v5425 = vadd.f32 %v5374, %v5424
  %v5426 = vpop.f32.mrf.mxu0
  %5427 = vdwg.mxu0
  %v5428 = vpack.c.bf16 %v5298, %v5298
  %v5429 = vpack.c.bf16 %v5301, %v5301
  %v5430 = vpack.c.bf16 %v5360, %v5360
  %v5431 = vpack.c.bf16 %v5363, %v5363
  %v5432 = vpack.c.bf16 %v5422, %v5422
  %v5433 = vpack.c.bf16 %v5425, %v5425
  %v5435 = vsel %vm62, %v5428, 0
  %v5438 = vsel %vm62, %v5430, 0
  %5440 = vmatprep.subr.bf16.mxu0 0
  %5441 = vmatpush1.bf16.xpose.msra.mxu0 0
  %5442 = vmatprep.subr.bf16.mxu0 0
  %5443 = vmatpush1.bf16.xpose.msra.mxu0 0
  %5444 = vmatprep.subr.bf16.mxu0 0
  %5445 = vmatpush1.bf16.xpose.msra.mxu0 0
  %5446 = vmatprep.subr.bf16.mxu0 0
  %5447 = vmatpush1.bf16.xpose.msra.mxu0 0
  %5448 = vmatprep.subr.bf16.mxu0 0
  %5449 = vmatpush1.bf16.xpose.msra.mxu0 0
  %5450 = vmatprep.subr.bf16.mxu0 0
  %5451 = vmatpush1.bf16.xpose.msra.mxu0 0
  %5452 = vmatprep.subr.bf16.mxu0 0
  %5453 = vmatpush1.bf16.xpose.msra.mxu0 0
  %5454 = vmatprep.subr.bf16.mxu0 0
  %5455 = vmatpush1.bf16.xpose.msra.mxu0 %v5438
  %5456 = vmatprep.subr.bf16.mxu0 0
  %5457 = vmatpush2.bf16.xpose.msra.mxu0 0
  %5458 = vmatprep.subr.bf16.mxu0 0
  %5459 = vmatpush2.bf16.xpose.msra.mxu0 0
  %5460 = vmatprep.subr.bf16.mxu0 0
  %5461 = vmatpush2.bf16.xpose.msra.mxu0 0
  %5462 = vmatprep.subr.bf16.mxu0 0
  %5463 = vmatpush2.bf16.xpose.msra.mxu0 0
  %5464 = vmatprep.subr.bf16.mxu0 0
  %5465 = vmatpush2.bf16.xpose.msra.mxu0 0
  %5466 = vmatprep.subr.bf16.mxu0 0
  %5467 = vmatpush2.bf16.xpose.msra.mxu0 0
  %5468 = vmatprep.subr.bf16.mxu0 0
  %5469 = vmatpush2.bf16.xpose.msra.mxu0 0
  %5470 = vmatprep.subr.bf16.mxu0 0
  %5471 = vmatpush2.bf16.xpose.msra.mxu0 0
  %5472 = vmatprep.mubr.bf16.mxu0 0
  %5473 = vmatmul.mubr.bf16.gmra.mxu0 %v5435
  %v5474 = vpop.f32.mrf.mxu0
  %v5475 = vadd.f32 0.0, %v5474
  %v5476 = vpop.f32.mrf.mxu0
  %v5477 = vpop.f32.mrf.mxu0
  %v5478 = vpop.f32.mrf.mxu0
  %5479 = vdwg.mxu0
  %v5481 = vsel %vm62, %v5429, 0
  %v5484 = vsel %vm62, %v5431, 0
  %5486 = vmatprep.subr.bf16.mxu0 0
  %5487 = vmatpush1.bf16.xpose.msra.mxu0 0
  %5488 = vmatprep.subr.bf16.mxu0 0
  %5489 = vmatpush1.bf16.xpose.msra.mxu0 0
  %5490 = vmatprep.subr.bf16.mxu0 0
  %5491 = vmatpush1.bf16.xpose.msra.mxu0 0
  %5492 = vmatprep.subr.bf16.mxu0 0
  %5493 = vmatpush1.bf16.xpose.msra.mxu0 0
  %5494 = vmatprep.subr.bf16.mxu0 0
  %5495 = vmatpush1.bf16.xpose.msra.mxu0 0
  %5496 = vmatprep.subr.bf16.mxu0 0
  %5497 = vmatpush1.bf16.xpose.msra.mxu0 0
  %5498 = vmatprep.subr.bf16.mxu0 0
  %5499 = vmatpush1.bf16.xpose.msra.mxu0 0
  %5500 = vmatprep.subr.bf16.mxu0 0
  %5501 = vmatpush1.bf16.xpose.msra.mxu0 %v5484
  %5502 = vmatprep.subr.bf16.mxu0 0
  %5503 = vmatpush2.bf16.xpose.msra.mxu0 0
  %5504 = vmatprep.subr.bf16.mxu0 0
  %5505 = vmatpush2.bf16.xpose.msra.mxu0 0
  %5506 = vmatprep.subr.bf16.mxu0 0
  %5507 = vmatpush2.bf16.xpose.msra.mxu0 0
  %5508 = vmatprep.subr.bf16.mxu0 0
  %5509 = vmatpush2.bf16.xpose.msra.mxu0 0
  %5510 = vmatprep.subr.bf16.mxu0 0
  %5511 = vmatpush2.bf16.xpose.msra.mxu0 0
  %5512 = vmatprep.subr.bf16.mxu0 0
  %5513 = vmatpush2.bf16.xpose.msra.mxu0 0
  %5514 = vmatprep.subr.bf16.mxu0 0
  %5515 = vmatpush2.bf16.xpose.msra.mxu0 0
  %5516 = vmatprep.subr.bf16.mxu0 0
  %5517 = vmatpush2.bf16.xpose.msra.mxu0 0
  %5518 = vmatprep.mubr.bf16.mxu0 0
  %5519 = vmatmul.mubr.bf16.gmra.mxu0 %v5481
  %v5520 = vpop.f32.mrf.mxu0
  %v5521 = vadd.f32 0.0, %v5520
  %v5522 = vpop.f32.mrf.mxu0
  %v5523 = vpop.f32.mrf.mxu0
  %v5524 = vpop.f32.mrf.mxu0
  %5525 = vdwg.mxu0
  %v5526 = vmul.f32 %v5475, 0.35355338
  %v5527 = vmul.f32 %v5521, 0.35355338
  %v5528 = vsel %vm62, %v5526, -inf
  %5529 = vmax.xlane.f32.xlu0 %v5528
  %v5530 = vpop.xlane.xlu0 %5529
  %v5531 = vsel %vm62, %v5527, -inf
  %5532 = vmax.xlane.f32.xlu0 %v5531
  %v5533 = vpop.xlane.xlu0 %5532
  %v5534 = vsub.f32 %v5526, %v5530
  %v5535 = vsub.f32 %v5527, %v5533
  %v5536 = vmul.f32 %v5534, 1.442695
  %v5537 = vpow.pop %v5536
  %v5538 = vmul.f32 %v5535, 1.442695
  %v5539 = vpow.pop %v5538
  %v5540 = vsel %vm62, %v5537, 0.0
  %5541 = vadd.xlane.f32.xlu0 %v5540
  %v5542 = vpop.xlane.xlu0 %5541
  %v5543 = vsel %vm62, %v5539, 0.0
  %5544 = vadd.xlane.f32.xlu0 %v5543
  %v5545 = vpop.xlane.xlu0 %5544
  %v5546 = vrcp.pop %v5542
  %v5547 = vrcp.pop %v5545
  %v5548 = vmul.f32 %v5537, %v5546
  %v5549 = vmul.f32 %v5539, %v5547
  %v5550 = vpack.c.bf16 %v5548, %v5548
  %v5551 = vpack.c.bf16 %v5549, %v5549
  %v5553 = vsel %vm62, %v5550, 0
  %v5556 = vsel %vm66, %v5432, 0
  %5558 = vmatprep.subr.bf16.mxu0 0
  %5559 = vmatpush1.bf16.msra.mxu0 0
  %5560 = vmatprep.subr.bf16.mxu0 0
  %5561 = vmatpush1.bf16.msra.mxu0 0
  %5562 = vmatprep.subr.bf16.mxu0 0
  %5563 = vmatpush1.bf16.msra.mxu0 0
  %5564 = vmatprep.subr.bf16.mxu0 0
  %5565 = vmatpush1.bf16.msra.mxu0 0
  %5566 = vmatprep.subr.bf16.mxu0 0
  %5567 = vmatpush1.bf16.msra.mxu0 0
  %5568 = vmatprep.subr.bf16.mxu0 0
  %5569 = vmatpush1.bf16.msra.mxu0 0
  %5570 = vmatprep.subr.bf16.mxu0 0
  %5571 = vmatpush1.bf16.msra.mxu0 0
  %5572 = vmatprep.subr.bf16.mxu0 0
  %5573 = vmatpush1.bf16.msra.mxu0 %v5556
  %5574 = vmatprep.subr.bf16.mxu0 0
  %5575 = vmatpush2.bf16.msra.mxu0 0
  %5576 = vmatprep.subr.bf16.mxu0 0
  %5577 = vmatpush2.bf16.msra.mxu0 0
  %5578 = vmatprep.subr.bf16.mxu0 0
  %5579 = vmatpush2.bf16.msra.mxu0 0
  %5580 = vmatprep.subr.bf16.mxu0 0
  %5581 = vmatpush2.bf16.msra.mxu0 0
  %5582 = vmatprep.subr.bf16.mxu0 0
  %5583 = vmatpush2.bf16.msra.mxu0 0
  %5584 = vmatprep.subr.bf16.mxu0 0
  %5585 = vmatpush2.bf16.msra.mxu0 0
  %5586 = vmatprep.subr.bf16.mxu0 0
  %5587 = vmatpush2.bf16.msra.mxu0 0
  %5588 = vmatprep.subr.bf16.mxu0 0
  %5589 = vmatpush2.bf16.msra.mxu0 0
  %5590 = vmatprep.mubr.bf16.mxu0 0
  %5591 = vmatmul.mubr.bf16.gmra.mxu0 %v5553
  %v5592 = vpop.f32.mrf.mxu0
  %v5593 = vadd.f32 0.0, %v5592
  %v5594 = vpop.f32.mrf.mxu0
  %v5595 = vpop.f32.mrf.mxu0
  %v5596 = vpop.f32.mrf.mxu0
  %5597 = vdwg.mxu0
  %v5599 = vsel %vm62, %v5551, 0
  %v5602 = vsel %vm66, %v5433, 0
  %5604 = vmatprep.subr.bf16.mxu0 0
  %5605 = vmatpush1.bf16.msra.mxu0 0
  %5606 = vmatprep.subr.bf16.mxu0 0
  %5607 = vmatpush1.bf16.msra.mxu0 0
  %5608 = vmatprep.subr.bf16.mxu0 0
  %5609 = vmatpush1.bf16.msra.mxu0 0
  %5610 = vmatprep.subr.bf16.mxu0 0
  %5611 = vmatpush1.bf16.msra.mxu0 0
  %5612 = vmatprep.subr.bf16.mxu0 0
  %5613 = vmatpush1.bf16.msra.mxu0 0
  %5614 = vmatprep.subr.bf16.mxu0 0
  %5615 = vmatpush1.bf16.msra.mxu0 0
  %5616 = vmatprep.subr.bf16.mxu0 0
  %5617 = vmatpush1.bf16.msra.mxu0 0
  %5618 = vmatprep.subr.bf16.mxu0 0
  %5619 = vmatpush1.bf16.msra.mxu0 %v5602
  %5620 = vmatprep.subr.bf16.mxu0 0
  %5621 = vmatpush2.bf16.msra.mxu0 0
  %5622 = vmatprep.subr.bf16.mxu0 0
  %5623 = vmatpush2.bf16.msra.mxu0 0
  %5624 = vmatprep.subr.bf16.mxu0 0
  %5625 = vmatpush2.bf16.msra.mxu0 0
  %5626 = vmatprep.subr.bf16.mxu0 0
  %5627 = vmatpush2.bf16.msra.mxu0 0
  %5628 = vmatprep.subr.bf16.mxu0 0
  %5629 = vmatpush2.bf16.msra.mxu0 0
  %5630 = vmatprep.subr.bf16.mxu0 0
  %5631 = vmatpush2.bf16.msra.mxu0 0
  %5632 = vmatprep.subr.bf16.mxu0 0
  %5633 = vmatpush2.bf16.msra.mxu0 0
  %5634 = vmatprep.subr.bf16.mxu0 0
  %5635 = vmatpush2.bf16.msra.mxu0 0
  %5636 = vmatprep.mubr.bf16.mxu0 0
  %5637 = vmatmul.mubr.bf16.gmra.mxu0 %v5599
  %v5638 = vpop.f32.mrf.mxu0
  %v5639 = vadd.f32 0.0, %v5638
  %v5640 = vpop.f32.mrf.mxu0
  %v5641 = vpop.f32.mrf.mxu0
  %v5642 = vpop.f32.mrf.mxu0
  %5643 = vdwg.mxu0
  %v5644 = vpack.c.bf16 %v5639, %v5593
  %s5645 = scalar_lea.vmem %s7, 40
  %v5646 = vld [vmem:[%s5645] sm:$0xf]
  %v5648 = vsel %vm62, %v5644, 0
  %v5651 = vsel %vm66, %v5646, 0
  %5653 = vmatprep.subr.bf16.mxu0 0
  %5654 = vmatpush1.bf16.msra.mxu0 0
  %5655 = vmatprep.subr.bf16.mxu0 0
  %5656 = vmatpush1.bf16.msra.mxu0 0
  %5657 = vmatprep.subr.bf16.mxu0 0
  %5658 = vmatpush1.bf16.msra.mxu0 0
  %5659 = vmatprep.subr.bf16.mxu0 0
  %5660 = vmatpush1.bf16.msra.mxu0 0
  %5661 = vmatprep.subr.bf16.mxu0 0
  %5662 = vmatpush1.bf16.msra.mxu0 0
  %5663 = vmatprep.subr.bf16.mxu0 0
  %5664 = vmatpush1.bf16.msra.mxu0 0
  %5665 = vmatprep.subr.bf16.mxu0 0
  %5666 = vmatpush1.bf16.msra.mxu0 0
  %5667 = vmatprep.subr.bf16.mxu0 0
  %5668 = vmatpush1.bf16.msra.mxu0 %v5651
  %5669 = vmatprep.subr.bf16.mxu0 0
  %5670 = vmatpush2.bf16.msra.mxu0 0
  %5671 = vmatprep.subr.bf16.mxu0 0
  %5672 = vmatpush2.bf16.msra.mxu0 0
  %5673 = vmatprep.subr.bf16.mxu0 0
  %5674 = vmatpush2.bf16.msra.mxu0 0
  %5675 = vmatprep.subr.bf16.mxu0 0
  %5676 = vmatpush2.bf16.msra.mxu0 0
  %5677 = vmatprep.subr.bf16.mxu0 0
  %5678 = vmatpush2.bf16.msra.mxu0 0
  %5679 = vmatprep.subr.bf16.mxu0 0
  %5680 = vmatpush2.bf16.msra.mxu0 0
  %5681 = vmatprep.subr.bf16.mxu0 0
  %5682 = vmatpush2.bf16.msra.mxu0 0
  %5683 = vmatprep.subr.bf16.mxu0 0
  %5684 = vmatpush2.bf16.msra.mxu0 0
  %5685 = vmatprep.mubr.bf16.mxu0 0
  %5686 = vmatmul.mubr.bf16.gmra.mxu0 %v5648
  %v5687 = vpop.f32.mrf.mxu0
  %v5688 = vadd.f32 0.0, %v5687
  %v5689 = vpop.f32.mrf.mxu0
  %v5690 = vpop.f32.mrf.mxu0
  %v5691 = vadd.f32 0.0, %v5690
  %v5692 = vpop.f32.mrf.mxu0
  %5693 = vdwg.mxu0
  %v5694 = vadd.f32 %v5234, %v5688
  %v5695 = vadd.f32 %v5237, %v5691
  %s5696 = scalar_lea.vmem %s8, 44
  %v5697 = vld [vmem:[%s5696] sm:$0x7]
  %s5698 = scalar_lea.vmem %s4, 176
  %v5699 = vld [vmem:[%s5698] sm:$0xf]
  %v5700 = vld [vmem:[%s5698 + $0x4] sm:$0xf]
  %v5701 = vld [vmem:[%s5698 + $0x8] sm:$0xf]
  %v5702 = vld [vmem:[%s5698 + $0xc] sm:$0xf]
  %v5703 = vlaneseq
  %v5704 = vshrl.u32 %v5703, 7
  %v5705 = vsub.s32 0, %v5704
  %v5706 = vrot.slane %v5697, %v5705
  %v5711 = vunpack.c.l.b16 %v5699
  %v5712 = vunpack.c.l.b16 %v5700
  %v5713 = vunpack.c.l.b16 %v5701
  %v5714 = vunpack.c.l.b16 %v5702
  %v5715 = vpack.c.b16 %v5712, %v5711
  %v5716 = vpack.c.b16 %v5714, %v5713
  %5719 = vmatprep.subr.bf16.mxu0 0
  %5720 = vmatpush1.bf16.msra.mxu0 0
  %5721 = vmatprep.subr.bf16.mxu0 0
  %5722 = vmatpush1.bf16.msra.mxu0 0
  %5723 = vmatprep.subr.bf16.mxu0 0
  %5724 = vmatpush1.bf16.msra.mxu0 0
  %5725 = vmatprep.subr.bf16.mxu0 0
  %5726 = vmatpush1.bf16.msra.mxu0 0
  %5727 = vmatprep.subr.bf16.mxu0 0
  %5728 = vmatpush1.bf16.msra.mxu0 0
  %5729 = vmatprep.subr.bf16.mxu0 0
  %5730 = vmatpush1.bf16.msra.mxu0 0
  %5731 = vmatprep.subr.bf16.mxu0 0
  %5732 = vmatpush1.bf16.msra.mxu0 %v5716
  %5733 = vmatprep.subr.bf16.mxu0 0
  %5734 = vmatpush1.bf16.msra.mxu0 %v5715
  %5735 = vmatprep.subr.bf16.mxu0 0
  %5736 = vmatpush2.bf16.msra.mxu0 0
  %5737 = vmatprep.subr.bf16.mxu0 0
  %5738 = vmatpush2.bf16.msra.mxu0 0
  %5739 = vmatprep.subr.bf16.mxu0 0
  %5740 = vmatpush2.bf16.msra.mxu0 0
  %5741 = vmatprep.subr.bf16.mxu0 0
  %5742 = vmatpush2.bf16.msra.mxu0 0
  %5743 = vmatprep.subr.bf16.mxu0 0
  %5744 = vmatpush2.bf16.msra.mxu0 0
  %5745 = vmatprep.subr.bf16.mxu0 0
  %5746 = vmatpush2.bf16.msra.mxu0 0
  %5747 = vmatprep.subr.bf16.mxu0 0
  %5748 = vmatpush2.bf16.msra.mxu0 0
  %5749 = vmatprep.subr.bf16.mxu0 0
  %5750 = vmatpush2.bf16.msra.mxu0 0
  %5751 = vmatprep.mubr.bf16.mxu0 0
  %5752 = vmatmul.mubr.bf16.gmra.mxu0 %v4353
  %v5753 = vpop.f32.mrf.mxu0
  %v5754 = vadd.f32 %v5706, %v5753
  %v5755 = vpop.f32.mrf.mxu0
  %v5756 = vpop.f32.mrf.mxu0
  %v5757 = vadd.f32 %v5706, %v5756
  %v5758 = vpop.f32.mrf.mxu0
  %5759 = vdwg.mxu0
  %s5760 = scalar_lea.vmem %s5, 176
  %v5761 = vld [vmem:[%s5760] sm:$0xf]
  %v5762 = vld [vmem:[%s5760 + $0x4] sm:$0xf]
  %v5763 = vld [vmem:[%s5760 + $0x8] sm:$0xf]
  %v5764 = vld [vmem:[%s5760 + $0xc] sm:$0xf]
  %v5765 = vlaneseq
  %v5766 = vshrl.u32 %v5765, 7
  %v5767 = vsub.s32 1, %v5766
  %v5768 = vrot.slane %v5697, %v5767
  %v5773 = vunpack.c.l.b16 %v5761
  %v5774 = vunpack.c.l.b16 %v5762
  %v5775 = vunpack.c.l.b16 %v5763
  %v5776 = vunpack.c.l.b16 %v5764
  %v5777 = vpack.c.b16 %v5774, %v5773
  %v5778 = vpack.c.b16 %v5776, %v5775
  %5781 = vmatprep.subr.bf16.mxu0 0
  %5782 = vmatpush1.bf16.msra.mxu0 0
  %5783 = vmatprep.subr.bf16.mxu0 0
  %5784 = vmatpush1.bf16.msra.mxu0 0
  %5785 = vmatprep.subr.bf16.mxu0 0
  %5786 = vmatpush1.bf16.msra.mxu0 0
  %5787 = vmatprep.subr.bf16.mxu0 0
  %5788 = vmatpush1.bf16.msra.mxu0 0
  %5789 = vmatprep.subr.bf16.mxu0 0
  %5790 = vmatpush1.bf16.msra.mxu0 0
  %5791 = vmatprep.subr.bf16.mxu0 0
  %5792 = vmatpush1.bf16.msra.mxu0 0
  %5793 = vmatprep.subr.bf16.mxu0 0
  %5794 = vmatpush1.bf16.msra.mxu0 %v5778
  %5795 = vmatprep.subr.bf16.mxu0 0
  %5796 = vmatpush1.bf16.msra.mxu0 %v5777
  %5797 = vmatprep.subr.bf16.mxu0 0
  %5798 = vmatpush2.bf16.msra.mxu0 0
  %5799 = vmatprep.subr.bf16.mxu0 0
  %5800 = vmatpush2.bf16.msra.mxu0 0
  %5801 = vmatprep.subr.bf16.mxu0 0
  %5802 = vmatpush2.bf16.msra.mxu0 0
  %5803 = vmatprep.subr.bf16.mxu0 0
  %5804 = vmatpush2.bf16.msra.mxu0 0
  %5805 = vmatprep.subr.bf16.mxu0 0
  %5806 = vmatpush2.bf16.msra.mxu0 0
  %5807 = vmatprep.subr.bf16.mxu0 0
  %5808 = vmatpush2.bf16.msra.mxu0 0
  %5809 = vmatprep.subr.bf16.mxu0 0
  %5810 = vmatpush2.bf16.msra.mxu0 0
  %5811 = vmatprep.subr.bf16.mxu0 0
  %5812 = vmatpush2.bf16.msra.mxu0 0
  %5813 = vmatprep.mubr.bf16.mxu0 0
  %5814 = vmatmul.mubr.bf16.gmra.mxu0 %v4353
  %v5815 = vpop.f32.mrf.mxu0
  %v5816 = vadd.f32 %v5768, %v5815
  %v5817 = vpop.f32.mrf.mxu0
  %v5818 = vpop.f32.mrf.mxu0
  %v5819 = vadd.f32 %v5768, %v5818
  %v5820 = vpop.f32.mrf.mxu0
  %5821 = vdwg.mxu0
  %s5822 = scalar_lea.vmem %s6, 176
  %v5823 = vld [vmem:[%s5822] sm:$0xf]
  %v5824 = vld [vmem:[%s5822 + $0x4] sm:$0xf]
  %v5825 = vld [vmem:[%s5822 + $0x8] sm:$0xf]
  %v5826 = vld [vmem:[%s5822 + $0xc] sm:$0xf]
  %v5827 = vlaneseq
  %v5828 = vshrl.u32 %v5827, 7
  %v5829 = vsub.s32 2, %v5828
  %v5830 = vrot.slane %v5697, %v5829
  %v5835 = vunpack.c.l.b16 %v5823
  %v5836 = vunpack.c.l.b16 %v5824
  %v5837 = vunpack.c.l.b16 %v5825
  %v5838 = vunpack.c.l.b16 %v5826
  %v5839 = vpack.c.b16 %v5836, %v5835
  %v5840 = vpack.c.b16 %v5838, %v5837
  %5843 = vmatprep.subr.bf16.mxu0 0
  %5844 = vmatpush1.bf16.msra.mxu0 0
  %5845 = vmatprep.subr.bf16.mxu0 0
  %5846 = vmatpush1.bf16.msra.mxu0 0
  %5847 = vmatprep.subr.bf16.mxu0 0
  %5848 = vmatpush1.bf16.msra.mxu0 0
  %5849 = vmatprep.subr.bf16.mxu0 0
  %5850 = vmatpush1.bf16.msra.mxu0 0
  %5851 = vmatprep.subr.bf16.mxu0 0
  %5852 = vmatpush1.bf16.msra.mxu0 0
  %5853 = vmatprep.subr.bf16.mxu0 0
  %5854 = vmatpush1.bf16.msra.mxu0 0
  %5855 = vmatprep.subr.bf16.mxu0 0
  %5856 = vmatpush1.bf16.msra.mxu0 %v5840
  %5857 = vmatprep.subr.bf16.mxu0 0
  %5858 = vmatpush1.bf16.msra.mxu0 %v5839
  %5859 = vmatprep.subr.bf16.mxu0 0
  %5860 = vmatpush2.bf16.msra.mxu0 0
  %5861 = vmatprep.subr.bf16.mxu0 0
  %5862 = vmatpush2.bf16.msra.mxu0 0
  %5863 = vmatprep.subr.bf16.mxu0 0
  %5864 = vmatpush2.bf16.msra.mxu0 0
  %5865 = vmatprep.subr.bf16.mxu0 0
  %5866 = vmatpush2.bf16.msra.mxu0 0
  %5867 = vmatprep.subr.bf16.mxu0 0
  %5868 = vmatpush2.bf16.msra.mxu0 0
  %5869 = vmatprep.subr.bf16.mxu0 0
  %5870 = vmatpush2.bf16.msra.mxu0 0
  %5871 = vmatprep.subr.bf16.mxu0 0
  %5872 = vmatpush2.bf16.msra.mxu0 0
  %5873 = vmatprep.subr.bf16.mxu0 0
  %5874 = vmatpush2.bf16.msra.mxu0 0
  %5875 = vmatprep.mubr.bf16.mxu0 0
  %5876 = vmatmul.mubr.bf16.gmra.mxu0 %v4353
  %v5877 = vpop.f32.mrf.mxu0
  %v5878 = vadd.f32 %v5830, %v5877
  %v5879 = vpop.f32.mrf.mxu0
  %v5880 = vpop.f32.mrf.mxu0
  %v5881 = vadd.f32 %v5830, %v5880
  %v5882 = vpop.f32.mrf.mxu0
  %5883 = vdwg.mxu0
  %v5884 = vpack.c.bf16 %v5754, %v5754
  %v5885 = vpack.c.bf16 %v5757, %v5757
  %v5886 = vpack.c.bf16 %v5816, %v5816
  %v5887 = vpack.c.bf16 %v5819, %v5819
  %v5888 = vpack.c.bf16 %v5878, %v5878
  %v5889 = vpack.c.bf16 %v5881, %v5881
  %v5891 = vsel %vm62, %v5884, 0
  %v5894 = vsel %vm62, %v5886, 0
  %5896 = vmatprep.subr.bf16.mxu0 0
  %5897 = vmatpush1.bf16.xpose.msra.mxu0 0
  %5898 = vmatprep.subr.bf16.mxu0 0
  %5899 = vmatpush1.bf16.xpose.msra.mxu0 0
  %5900 = vmatprep.subr.bf16.mxu0 0
  %5901 = vmatpush1.bf16.xpose.msra.mxu0 0
  %5902 = vmatprep.subr.bf16.mxu0 0
  %5903 = vmatpush1.bf16.xpose.msra.mxu0 0
  %5904 = vmatprep.subr.bf16.mxu0 0
  %5905 = vmatpush1.bf16.xpose.msra.mxu0 0
  %5906 = vmatprep.subr.bf16.mxu0 0
  %5907 = vmatpush1.bf16.xpose.msra.mxu0 0
  %5908 = vmatprep.subr.bf16.mxu0 0
  %5909 = vmatpush1.bf16.xpose.msra.mxu0 0
  %5910 = vmatprep.subr.bf16.mxu0 0
  %5911 = vmatpush1.bf16.xpose.msra.mxu0 %v5894
  %5912 = vmatprep.subr.bf16.mxu0 0
  %5913 = vmatpush2.bf16.xpose.msra.mxu0 0
  %5914 = vmatprep.subr.bf16.mxu0 0
  %5915 = vmatpush2.bf16.xpose.msra.mxu0 0
  %5916 = vmatprep.subr.bf16.mxu0 0
  %5917 = vmatpush2.bf16.xpose.msra.mxu0 0
  %5918 = vmatprep.subr.bf16.mxu0 0
  %5919 = vmatpush2.bf16.xpose.msra.mxu0 0
  %5920 = vmatprep.subr.bf16.mxu0 0
  %5921 = vmatpush2.bf16.xpose.msra.mxu0 0
  %5922 = vmatprep.subr.bf16.mxu0 0
  %5923 = vmatpush2.bf16.xpose.msra.mxu0 0
  %5924 = vmatprep.subr.bf16.mxu0 0
  %5925 = vmatpush2.bf16.xpose.msra.mxu0 0
  %5926 = vmatprep.subr.bf16.mxu0 0
  %5927 = vmatpush2.bf16.xpose.msra.mxu0 0
  %5928 = vmatprep.mubr.bf16.mxu0 0
  %5929 = vmatmul.mubr.bf16.gmra.mxu0 %v5891
  %v5930 = vpop.f32.mrf.mxu0
  %v5931 = vadd.f32 0.0, %v5930
  %v5932 = vpop.f32.mrf.mxu0
  %v5933 = vpop.f32.mrf.mxu0
  %v5934 = vpop.f32.mrf.mxu0
  %5935 = vdwg.mxu0
  %v5937 = vsel %vm62, %v5885, 0
  %v5940 = vsel %vm62, %v5887, 0
  %5942 = vmatprep.subr.bf16.mxu0 0
  %5943 = vmatpush1.bf16.xpose.msra.mxu0 0
  %5944 = vmatprep.subr.bf16.mxu0 0
  %5945 = vmatpush1.bf16.xpose.msra.mxu0 0
  %5946 = vmatprep.subr.bf16.mxu0 0
  %5947 = vmatpush1.bf16.xpose.msra.mxu0 0
  %5948 = vmatprep.subr.bf16.mxu0 0
  %5949 = vmatpush1.bf16.xpose.msra.mxu0 0
  %5950 = vmatprep.subr.bf16.mxu0 0
  %5951 = vmatpush1.bf16.xpose.msra.mxu0 0
  %5952 = vmatprep.subr.bf16.mxu0 0
  %5953 = vmatpush1.bf16.xpose.msra.mxu0 0
  %5954 = vmatprep.subr.bf16.mxu0 0
  %5955 = vmatpush1.bf16.xpose.msra.mxu0 0
  %5956 = vmatprep.subr.bf16.mxu0 0
  %5957 = vmatpush1.bf16.xpose.msra.mxu0 %v5940
  %5958 = vmatprep.subr.bf16.mxu0 0
  %5959 = vmatpush2.bf16.xpose.msra.mxu0 0
  %5960 = vmatprep.subr.bf16.mxu0 0
  %5961 = vmatpush2.bf16.xpose.msra.mxu0 0
  %5962 = vmatprep.subr.bf16.mxu0 0
  %5963 = vmatpush2.bf16.xpose.msra.mxu0 0
  %5964 = vmatprep.subr.bf16.mxu0 0
  %5965 = vmatpush2.bf16.xpose.msra.mxu0 0
  %5966 = vmatprep.subr.bf16.mxu0 0
  %5967 = vmatpush2.bf16.xpose.msra.mxu0 0
  %5968 = vmatprep.subr.bf16.mxu0 0
  %5969 = vmatpush2.bf16.xpose.msra.mxu0 0
  %5970 = vmatprep.subr.bf16.mxu0 0
  %5971 = vmatpush2.bf16.xpose.msra.mxu0 0
  %5972 = vmatprep.subr.bf16.mxu0 0
  %5973 = vmatpush2.bf16.xpose.msra.mxu0 0
  %5974 = vmatprep.mubr.bf16.mxu0 0
  %5975 = vmatmul.mubr.bf16.gmra.mxu0 %v5937
  %v5976 = vpop.f32.mrf.mxu0
  %v5977 = vadd.f32 0.0, %v5976
  %v5978 = vpop.f32.mrf.mxu0
  %v5979 = vpop.f32.mrf.mxu0
  %v5980 = vpop.f32.mrf.mxu0
  %5981 = vdwg.mxu0
  %v5982 = vmul.f32 %v5931, 0.35355338
  %v5983 = vmul.f32 %v5977, 0.35355338
  %v5984 = vsel %vm62, %v5982, -inf
  %5985 = vmax.xlane.f32.xlu0 %v5984
  %v5986 = vpop.xlane.xlu0 %5985
  %v5987 = vsel %vm62, %v5983, -inf
  %5988 = vmax.xlane.f32.xlu0 %v5987
  %v5989 = vpop.xlane.xlu0 %5988
  %v5990 = vsub.f32 %v5982, %v5986
  %v5991 = vsub.f32 %v5983, %v5989
  %v5992 = vmul.f32 %v5990, 1.442695
  %v5993 = vpow.pop %v5992
  %v5994 = vmul.f32 %v5991, 1.442695
  %v5995 = vpow.pop %v5994
  %v5996 = vsel %vm62, %v5993, 0.0
  %5997 = vadd.xlane.f32.xlu0 %v5996
  %v5998 = vpop.xlane.xlu0 %5997
  %v5999 = vsel %vm62, %v5995, 0.0
  %6000 = vadd.xlane.f32.xlu0 %v5999
  %v6001 = vpop.xlane.xlu0 %6000
  %v6002 = vrcp.pop %v5998
  %v6003 = vrcp.pop %v6001
  %v6004 = vmul.f32 %v5993, %v6002
  %v6005 = vmul.f32 %v5995, %v6003
  %v6006 = vpack.c.bf16 %v6004, %v6004
  %v6007 = vpack.c.bf16 %v6005, %v6005
  %v6009 = vsel %vm62, %v6006, 0
  %v6012 = vsel %vm66, %v5888, 0
  %6014 = vmatprep.subr.bf16.mxu0 0
  %6015 = vmatpush1.bf16.msra.mxu0 0
  %6016 = vmatprep.subr.bf16.mxu0 0
  %6017 = vmatpush1.bf16.msra.mxu0 0
  %6018 = vmatprep.subr.bf16.mxu0 0
  %6019 = vmatpush1.bf16.msra.mxu0 0
  %6020 = vmatprep.subr.bf16.mxu0 0
  %6021 = vmatpush1.bf16.msra.mxu0 0
  %6022 = vmatprep.subr.bf16.mxu0 0
  %6023 = vmatpush1.bf16.msra.mxu0 0
  %6024 = vmatprep.subr.bf16.mxu0 0
  %6025 = vmatpush1.bf16.msra.mxu0 0
  %6026 = vmatprep.subr.bf16.mxu0 0
  %6027 = vmatpush1.bf16.msra.mxu0 0
  %6028 = vmatprep.subr.bf16.mxu0 0
  %6029 = vmatpush1.bf16.msra.mxu0 %v6012
  %6030 = vmatprep.subr.bf16.mxu0 0
  %6031 = vmatpush2.bf16.msra.mxu0 0
  %6032 = vmatprep.subr.bf16.mxu0 0
  %6033 = vmatpush2.bf16.msra.mxu0 0
  %6034 = vmatprep.subr.bf16.mxu0 0
  %6035 = vmatpush2.bf16.msra.mxu0 0
  %6036 = vmatprep.subr.bf16.mxu0 0
  %6037 = vmatpush2.bf16.msra.mxu0 0
  %6038 = vmatprep.subr.bf16.mxu0 0
  %6039 = vmatpush2.bf16.msra.mxu0 0
  %6040 = vmatprep.subr.bf16.mxu0 0
  %6041 = vmatpush2.bf16.msra.mxu0 0
  %6042 = vmatprep.subr.bf16.mxu0 0
  %6043 = vmatpush2.bf16.msra.mxu0 0
  %6044 = vmatprep.subr.bf16.mxu0 0
  %6045 = vmatpush2.bf16.msra.mxu0 0
  %6046 = vmatprep.mubr.bf16.mxu0 0
  %6047 = vmatmul.mubr.bf16.gmra.mxu0 %v6009
  %v6048 = vpop.f32.mrf.mxu0
  %v6049 = vadd.f32 0.0, %v6048
  %v6050 = vpop.f32.mrf.mxu0
  %v6051 = vpop.f32.mrf.mxu0
  %v6052 = vpop.f32.mrf.mxu0
  %6053 = vdwg.mxu0
  %v6055 = vsel %vm62, %v6007, 0
  %v6058 = vsel %vm66, %v5889, 0
  %6060 = vmatprep.subr.bf16.mxu0 0
  %6061 = vmatpush1.bf16.msra.mxu0 0
  %6062 = vmatprep.subr.bf16.mxu0 0
  %6063 = vmatpush1.bf16.msra.mxu0 0
  %6064 = vmatprep.subr.bf16.mxu0 0
  %6065 = vmatpush1.bf16.msra.mxu0 0
  %6066 = vmatprep.subr.bf16.mxu0 0
  %6067 = vmatpush1.bf16.msra.mxu0 0
  %6068 = vmatprep.subr.bf16.mxu0 0
  %6069 = vmatpush1.bf16.msra.mxu0 0
  %6070 = vmatprep.subr.bf16.mxu0 0
  %6071 = vmatpush1.bf16.msra.mxu0 0
  %6072 = vmatprep.subr.bf16.mxu0 0
  %6073 = vmatpush1.bf16.msra.mxu0 0
  %6074 = vmatprep.subr.bf16.mxu0 0
  %6075 = vmatpush1.bf16.msra.mxu0 %v6058
  %6076 = vmatprep.subr.bf16.mxu0 0
  %6077 = vmatpush2.bf16.msra.mxu0 0
  %6078 = vmatprep.subr.bf16.mxu0 0
  %6079 = vmatpush2.bf16.msra.mxu0 0
  %6080 = vmatprep.subr.bf16.mxu0 0
  %6081 = vmatpush2.bf16.msra.mxu0 0
  %6082 = vmatprep.subr.bf16.mxu0 0
  %6083 = vmatpush2.bf16.msra.mxu0 0
  %6084 = vmatprep.subr.bf16.mxu0 0
  %6085 = vmatpush2.bf16.msra.mxu0 0
  %6086 = vmatprep.subr.bf16.mxu0 0
  %6087 = vmatpush2.bf16.msra.mxu0 0
  %6088 = vmatprep.subr.bf16.mxu0 0
  %6089 = vmatpush2.bf16.msra.mxu0 0
  %6090 = vmatprep.subr.bf16.mxu0 0
  %6091 = vmatpush2.bf16.msra.mxu0 0
  %6092 = vmatprep.mubr.bf16.mxu0 0
  %6093 = vmatmul.mubr.bf16.gmra.mxu0 %v6055
  %v6094 = vpop.f32.mrf.mxu0
  %v6095 = vadd.f32 0.0, %v6094
  %v6096 = vpop.f32.mrf.mxu0
  %v6097 = vpop.f32.mrf.mxu0
  %v6098 = vpop.f32.mrf.mxu0
  %6099 = vdwg.mxu0
  %v6100 = vpack.c.bf16 %v6095, %v6049
  %s6101 = scalar_lea.vmem %s7, 44
  %v6102 = vld [vmem:[%s6101] sm:$0xf]
  %v6104 = vsel %vm62, %v6100, 0
  %v6107 = vsel %vm66, %v6102, 0
  %6109 = vmatprep.subr.bf16.mxu0 0
  %6110 = vmatpush1.bf16.msra.mxu0 0
  %6111 = vmatprep.subr.bf16.mxu0 0
  %6112 = vmatpush1.bf16.msra.mxu0 0
  %6113 = vmatprep.subr.bf16.mxu0 0
  %6114 = vmatpush1.bf16.msra.mxu0 0
  %6115 = vmatprep.subr.bf16.mxu0 0
  %6116 = vmatpush1.bf16.msra.mxu0 0
  %6117 = vmatprep.subr.bf16.mxu0 0
  %6118 = vmatpush1.bf16.msra.mxu0 0
  %6119 = vmatprep.subr.bf16.mxu0 0
  %6120 = vmatpush1.bf16.msra.mxu0 0
  %6121 = vmatprep.subr.bf16.mxu0 0
  %6122 = vmatpush1.bf16.msra.mxu0 0
  %6123 = vmatprep.subr.bf16.mxu0 0
  %6124 = vmatpush1.bf16.msra.mxu0 %v6107
  %6125 = vmatprep.subr.bf16.mxu0 0
  %6126 = vmatpush2.bf16.msra.mxu0 0
  %6127 = vmatprep.subr.bf16.mxu0 0
  %6128 = vmatpush2.bf16.msra.mxu0 0
  %6129 = vmatprep.subr.bf16.mxu0 0
  %6130 = vmatpush2.bf16.msra.mxu0 0
  %6131 = vmatprep.subr.bf16.mxu0 0
  %6132 = vmatpush2.bf16.msra.mxu0 0
  %6133 = vmatprep.subr.bf16.mxu0 0
  %6134 = vmatpush2.bf16.msra.mxu0 0
  %6135 = vmatprep.subr.bf16.mxu0 0
  %6136 = vmatpush2.bf16.msra.mxu0 0
  %6137 = vmatprep.subr.bf16.mxu0 0
  %6138 = vmatpush2.bf16.msra.mxu0 0
  %6139 = vmatprep.subr.bf16.mxu0 0
  %6140 = vmatpush2.bf16.msra.mxu0 0
  %6141 = vmatprep.mubr.bf16.mxu0 0
  %6142 = vmatmul.mubr.bf16.gmra.mxu0 %v6104
  %v6143 = vpop.f32.mrf.mxu0
  %v6144 = vadd.f32 0.0, %v6143
  %v6145 = vpop.f32.mrf.mxu0
  %v6146 = vpop.f32.mrf.mxu0
  %v6147 = vadd.f32 0.0, %v6146
  %v6148 = vpop.f32.mrf.mxu0
  %6149 = vdwg.mxu0
  %v6150 = vadd.f32 %v5694, %v6144
  %v6151 = vadd.f32 %v5695, %v6147
  %v6152 = vlaneseq
  %v6153 = vshrl.u32 %v6152, 7
  %v6154 = vsub.s32 0, %v6153
  %v6155 = vrot.slane %v4328, %v6154
  %v6156 = vadd.f32 %v6150, %v6155
  %v6157 = vadd.f32 %v6151, %v6155
  %v6158 = vadd.f32 %v4324, %v6156
  %v6159 = vadd.f32 %v4325, %v6157
  %v6160 = vsel %vm115, %v6158, 0.0
  %6161 = vadd.xlane.f32.xlu0 %v6160
  %v6162 = vpop.xlane.xlu0 %6161
  %v6163 = vsel %vm115, %v6159, 0.0
  %6164 = vadd.xlane.f32.xlu0 %v6163
  %v6165 = vpop.xlane.xlu0 %6164
  %v6166 = vmul.f32 %v6162, %v1954
  %v6167 = vmul.f32 %v6165, %v1954
  %v6168 = vsub.f32 %v6158, %v6166
  %v6169 = vsub.f32 %v6159, %v6167
  %v6170 = vmul.f32 %v6168, %v6168
  %v6171 = vmul.f32 %v6169, %v6169
  %v6172 = vsel %vm115, %v6170, 0.0
  %6173 = vadd.xlane.f32.xlu0 %v6172
  %v6174 = vpop.xlane.xlu0 %6173
  %v6175 = vsel %vm115, %v6171, 0.0
  %6176 = vadd.xlane.f32.xlu0 %v6175
  %v6177 = vpop.xlane.xlu0 %6176
  %v6178 = vmul.f32 %v6174, %v1954
  %v6179 = vmul.f32 %v6177, %v1954
  %v6180 = vadd.f32 %v6178, 1e-05
  %v6181 = vadd.f32 %v6179, 1e-05
  %v6182 = vrsqrt.pop %v6180
  %v6183 = vrsqrt.pop %v6181
  %v6184 = vmul.f32 %v6168, %v6182
  %v6185 = vmul.f32 %v6169, %v6183
  %v6186 = vlaneseq
  %v6187 = vshrl.u32 %v6186, 7
  %v6188 = vsub.s32 1, %v6187
  %v6189 = vrot.slane %v4328, %v6188
  %v6190 = vmul.f32 %v6184, %v6189
  %v6191 = vmul.f32 %v6185, %v6189
  %v6192 = vlaneseq
  %v6193 = vshrl.u32 %v6192, 7
  %v6194 = vsub.s32 2, %v6193
  %v6195 = vrot.slane %v4328, %v6194
  %v6196 = vadd.f32 %v6190, %v6195
  %v6197 = vadd.f32 %v6191, %v6195
  %v6198 = vpack.c.bf16 %v6197, %v6196
  %s6199 = scalar_lea.vmem %s9, 32
  %v6200 = vld [vmem:[%s6199] sm:$0xf]
  %v6201 = vld [vmem:[%s6199 + $0x4] sm:$0xf]
  %v6202 = vld [vmem:[%s6199 + $0x8] sm:$0xf]
  %v6203 = vld [vmem:[%s6199 + $0xc] sm:$0xf]
  %s6204 = scalar_lea.vmem %s10, 2
  %v6205 = vld [vmem:[%s6204] sm:$0x1]
  %v6207 = vlaneseq
  %v6208 = vshrl.u32 %v6207, 7
  %v6209 = vsub.s32 0, %v6208
  %v6210 = vrot.slane %v6205, %v6209
  %v6216 = vunpack.c.l.b16 %v6200
  %v6217 = vunpack.c.l.b16 %v6201
  %v6218 = vunpack.c.l.b16 %v6202
  %v6219 = vunpack.c.l.b16 %v6203
  %v6220 = vpack.c.b16 %v6217, %v6216
  %v6221 = vpack.c.b16 %v6219, %v6218
  %v6225 = vsel %vm115, %v6198, 0
  %6227 = vmatprep.subr.bf16.mxu0 0
  %6228 = vmatpush1.bf16.msra.mxu0 0
  %6229 = vmatprep.subr.bf16.mxu0 0
  %6230 = vmatpush1.bf16.msra.mxu0 0
  %6231 = vmatprep.subr.bf16.mxu0 0
  %6232 = vmatpush1.bf16.msra.mxu0 0
  %6233 = vmatprep.subr.bf16.mxu0 0
  %6234 = vmatpush1.bf16.msra.mxu0 0
  %6235 = vmatprep.subr.bf16.mxu0 0
  %6236 = vmatpush1.bf16.msra.mxu0 0
  %6237 = vmatprep.subr.bf16.mxu0 0
  %6238 = vmatpush1.bf16.msra.mxu0 0
  %6239 = vmatprep.subr.bf16.mxu0 0
  %6240 = vmatpush1.bf16.msra.mxu0 %v6221
  %6241 = vmatprep.subr.bf16.mxu0 0
  %6242 = vmatpush1.bf16.msra.mxu0 %v6220
  %6243 = vmatprep.subr.bf16.mxu0 0
  %6244 = vmatpush2.bf16.msra.mxu0 0
  %6245 = vmatprep.subr.bf16.mxu0 0
  %6246 = vmatpush2.bf16.msra.mxu0 0
  %6247 = vmatprep.subr.bf16.mxu0 0
  %6248 = vmatpush2.bf16.msra.mxu0 0
  %6249 = vmatprep.subr.bf16.mxu0 0
  %6250 = vmatpush2.bf16.msra.mxu0 0
  %6251 = vmatprep.subr.bf16.mxu0 0
  %6252 = vmatpush2.bf16.msra.mxu0 0
  %6253 = vmatprep.subr.bf16.mxu0 0
  %6254 = vmatpush2.bf16.msra.mxu0 0
  %6255 = vmatprep.subr.bf16.mxu0 0
  %6256 = vmatpush2.bf16.msra.mxu0 0
  %6257 = vmatprep.subr.bf16.mxu0 0
  %6258 = vmatpush2.bf16.msra.mxu0 0
  %6259 = vmatprep.mubr.bf16.mxu0 0
  %6260 = vmatmul.mubr.bf16.gmra.mxu0 %v6225
  %v6261 = vpop.f32.mrf.mxu0
  %v6262 = vadd.f32 %v6210, %v6261
  %v6263 = vpop.f32.mrf.mxu0
  %v6264 = vpop.f32.mrf.mxu0
  %v6265 = vadd.f32 %v6210, %v6264
  %v6266 = vpop.f32.mrf.mxu0
  %6267 = vdwg.mxu0
  %v6268 = vmul.f32 %v6262, 0.5
  %v6269 = vmul.f32 %v6265, 0.5
  %v6270 = vmul.f32 %v6262, 0.70710677
  %v6271 = vmul.f32 %v6265, 0.70710677
  %v6272 = verf.f32.pop %v6270
  %v6273 = verf.f32.pop %v6271
  %v6274 = vadd.f32 %v6272, 1.0
  %v6275 = vadd.f32 %v6273, 1.0
  %v6276 = vmul.f32 %v6268, %v6274
  %v6277 = vmul.f32 %v6269, %v6275
  %v6278 = vpack.c.bf16 %v6277, %v6276
  %s6279 = scalar_lea.vmem %s11, 128
  %v6280 = vld [vmem:[%s6279] sm:$0xf]
  %v6281 = vld [vmem:[%s6279 + $0x4] sm:$0xf]
  %v6282 = vld [vmem:[%s6279 + $0x8] sm:$0xf]
  %v6283 = vld [vmem:[%s6279 + $0xc] sm:$0xf]
  %v6284 = vld [vmem:[%s6279 + $0x10] sm:$0xf]
  %v6285 = vld [vmem:[%s6279 + $0x14] sm:$0xf]
  %v6286 = vld [vmem:[%s6279 + $0x18] sm:$0xf]
  %v6287 = vld [vmem:[%s6279 + $0x1c] sm:$0xf]
  %v6288 = vld [vmem:[%s6279 + $0x20] sm:$0xf]
  %v6289 = vld [vmem:[%s6279 + $0x24] sm:$0xf]
  %v6290 = vld [vmem:[%s6279 + $0x28] sm:$0xf]
  %v6291 = vld [vmem:[%s6279 + $0x2c] sm:$0xf]
  %v6292 = vld [vmem:[%s6279 + $0x30] sm:$0xf]
  %v6293 = vld [vmem:[%s6279 + $0x34] sm:$0xf]
  %v6294 = vld [vmem:[%s6279 + $0x38] sm:$0xf]
  %v6295 = vld [vmem:[%s6279 + $0x3c] sm:$0xf]
  %v6296 = vlaneseq
  %v6297 = vshrl.u32 %v6296, 7
  %v6298 = vsub.s32 3, %v6297
  %v6299 = vrot.slane %v4328, %v6298
  %v6316 = vunpack.c.l.b16 %v6280
  %v6317 = vunpack.c.l.b16 %v6281
  %v6318 = vunpack.c.l.b16 %v6282
  %v6319 = vunpack.c.l.b16 %v6283
  %v6320 = vunpack.c.l.b16 %v6284
  %v6321 = vunpack.c.l.b16 %v6285
  %v6322 = vunpack.c.l.b16 %v6286
  %v6323 = vunpack.c.l.b16 %v6287
  %v6324 = vunpack.c.l.b16 %v6288
  %v6325 = vunpack.c.l.b16 %v6289
  %v6326 = vunpack.c.l.b16 %v6290
  %v6327 = vunpack.c.l.b16 %v6291
  %v6328 = vunpack.c.l.b16 %v6292
  %v6329 = vunpack.c.l.b16 %v6293
  %v6330 = vunpack.c.l.b16 %v6294
  %v6331 = vunpack.c.l.b16 %v6295
  %v6332 = vpack.c.b16 %v6317, %v6316
  %v6333 = vpack.c.b16 %v6319, %v6318
  %v6334 = vpack.c.b16 %v6321, %v6320
  %v6335 = vpack.c.b16 %v6323, %v6322
  %v6336 = vpack.c.b16 %v6325, %v6324
  %v6337 = vpack.c.b16 %v6327, %v6326
  %v6338 = vpack.c.b16 %v6329, %v6328
  %v6339 = vpack.c.b16 %v6331, %v6330
  %6348 = vmatprep.subr.bf16.mxu0 0
  %6349 = vmatpush1.bf16.msra.mxu0 %v6339
  %6350 = vmatprep.subr.bf16.mxu0 0
  %6351 = vmatpush1.bf16.msra.mxu0 %v6338
  %6352 = vmatprep.subr.bf16.mxu0 0
  %6353 = vmatpush1.bf16.msra.mxu0 %v6337
  %6354 = vmatprep.subr.bf16.mxu0 0
  %6355 = vmatpush1.bf16.msra.mxu0 %v6336
  %6356 = vmatprep.subr.bf16.mxu0 0
  %6357 = vmatpush1.bf16.msra.mxu0 %v6335
  %6358 = vmatprep.subr.bf16.mxu0 0
  %6359 = vmatpush1.bf16.msra.mxu0 %v6334
  %6360 = vmatprep.subr.bf16.mxu0 0
  %6361 = vmatpush1.bf16.msra.mxu0 %v6333
  %6362 = vmatprep.subr.bf16.mxu0 0
  %6363 = vmatpush1.bf16.msra.mxu0 %v6332
  %6364 = vmatprep.subr.bf16.mxu0 0
  %6365 = vmatpush2.bf16.msra.mxu0 0
  %6366 = vmatprep.subr.bf16.mxu0 0
  %6367 = vmatpush2.bf16.msra.mxu0 0
  %6368 = vmatprep.subr.bf16.mxu0 0
  %6369 = vmatpush2.bf16.msra.mxu0 0
  %6370 = vmatprep.subr.bf16.mxu0 0
  %6371 = vmatpush2.bf16.msra.mxu0 0
  %6372 = vmatprep.subr.bf16.mxu0 0
  %6373 = vmatpush2.bf16.msra.mxu0 0
  %6374 = vmatprep.subr.bf16.mxu0 0
  %6375 = vmatpush2.bf16.msra.mxu0 0
  %6376 = vmatprep.subr.bf16.mxu0 0
  %6377 = vmatpush2.bf16.msra.mxu0 0
  %6378 = vmatprep.subr.bf16.mxu0 0
  %6379 = vmatpush2.bf16.msra.mxu0 0
  %6380 = vmatprep.mubr.bf16.mxu0 0
  %6381 = vmatmul.mubr.bf16.gmra.mxu0 %v6278
  %v6382 = vpop.f32.mrf.mxu0
  %v6383 = vadd.f32 %v6299, %v6382
  %v6384 = vpop.f32.mrf.mxu0
  %v6385 = vpop.f32.mrf.mxu0
  %v6386 = vadd.f32 %v6299, %v6385
  %v6387 = vpop.f32.mrf.mxu0
  %6388 = vdwg.mxu0
  %v6389 = vadd.f32 %v6196, %v6383
  %v6390 = vadd.f32 %v6197, %v6386
  %v6391 = vsel %vm115, %v6389, 0.0
  %6392 = vadd.xlane.f32.xlu0 %v6391
  %v6393 = vpop.xlane.xlu0 %6392
  %v6394 = vsel %vm115, %v6390, 0.0
  %6395 = vadd.xlane.f32.xlu0 %v6394
  %v6396 = vpop.xlane.xlu0 %6395
  %v6397 = vmul.f32 %v6393, %v1954
  %v6398 = vmul.f32 %v6396, %v1954
  %v6399 = vsub.f32 %v6389, %v6397
  %v6400 = vsub.f32 %v6390, %v6398
  %v6401 = vmul.f32 %v6399, %v6399
  %v6402 = vmul.f32 %v6400, %v6400
  %v6403 = vsel %vm115, %v6401, 0.0
  %6404 = vadd.xlane.f32.xlu0 %v6403
  %v6405 = vpop.xlane.xlu0 %6404
  %v6406 = vsel %vm115, %v6402, 0.0
  %6407 = vadd.xlane.f32.xlu0 %v6406
  %v6408 = vpop.xlane.xlu0 %6407
  %v6409 = vmul.f32 %v6405, %v1954
  %v6410 = vmul.f32 %v6408, %v1954
  %v6411 = vadd.f32 %v6409, 1e-05
  %v6412 = vadd.f32 %v6410, 1e-05
  %v6413 = vrsqrt.pop %v6411
  %v6414 = vrsqrt.pop %v6412
  %v6415 = vmul.f32 %v6399, %v6413
  %v6416 = vmul.f32 %v6400, %v6414
  %v6417 = vlaneseq
  %v6418 = vshrl.u32 %v6417, 7
  %v6419 = vsub.s32 4, %v6418
  %v6420 = vrot.slane %v4328, %v6419
  %v6421 = vmul.f32 %v6415, %v6420
  %v6422 = vmul.f32 %v6416, %v6420
  %v6423 = vlaneseq
  %v6424 = vshrl.u32 %v6423, 7
  %v6425 = vsub.s32 5, %v6424
  %v6426 = vrot.slane %v4328, %v6425
  %v6427 = vadd.f32 %v6421, %v6426
  %v6428 = vadd.f32 %v6422, %v6426
  %6429 = vst.msk [vmem:[#allocation2] sm:$0xff] %vm115, %v6427
  %6430 = vst.msk [vmem:[#allocation2 + $0x8] sm:$0xff] %vm115, %v6428
  %v6431 = vld [vmem:[#allocation2] sm:$0xff]
  %v6432 = vld [vmem:[#allocation2 + $0x8] sm:$0xff]
  %v6433 = vpack.c.bf16 %v6432, %v6431
  %s6434 = scalar_lea.vmem %s12, 24
  %v6435 = vld [vmem:[%s6434] sm:$0x3f]
  %s6436 = scalar_lea.vmem %s8, 48
  %v6437 = vld [vmem:[%s6436] sm:$0x7]
  %s6438 = scalar_lea.vmem %s4, 192
  %v6439 = vld [vmem:[%s6438] sm:$0xf]
  %v6440 = vld [vmem:[%s6438 + $0x4] sm:$0xf]
  %v6441 = vld [vmem:[%s6438 + $0x8] sm:$0xf]
  %v6442 = vld [vmem:[%s6438 + $0xc] sm:$0xf]
  %v6443 = vlaneseq
  %v6444 = vshrl.u32 %v6443, 7
  %v6445 = vsub.s32 0, %v6444
  %v6446 = vrot.slane %v6437, %v6445
  %v6451 = vunpack.c.l.b16 %v6439
  %v6452 = vunpack.c.l.b16 %v6440
  %v6453 = vunpack.c.l.b16 %v6441
  %v6454 = vunpack.c.l.b16 %v6442
  %v6455 = vpack.c.b16 %v6452, %v6451
  %v6456 = vpack.c.b16 %v6454, %v6453
  %v6460 = vsel %vm115, %v6433, 0
  %6462 = vmatprep.subr.bf16.mxu0 0
  %6463 = vmatpush1.bf16.msra.mxu0 0
  %6464 = vmatprep.subr.bf16.mxu0 0
  %6465 = vmatpush1.bf16.msra.mxu0 0
  %6466 = vmatprep.subr.bf16.mxu0 0
  %6467 = vmatpush1.bf16.msra.mxu0 0
  %6468 = vmatprep.subr.bf16.mxu0 0
  %6469 = vmatpush1.bf16.msra.mxu0 0
  %6470 = vmatprep.subr.bf16.mxu0 0
  %6471 = vmatpush1.bf16.msra.mxu0 0
  %6472 = vmatprep.subr.bf16.mxu0 0
  %6473 = vmatpush1.bf16.msra.mxu0 0
  %6474 = vmatprep.subr.bf16.mxu0 0
  %6475 = vmatpush1.bf16.msra.mxu0 %v6456
  %6476 = vmatprep.subr.bf16.mxu0 0
  %6477 = vmatpush1.bf16.msra.mxu0 %v6455
  %6478 = vmatprep.subr.bf16.mxu0 0
  %6479 = vmatpush2.bf16.msra.mxu0 0
  %6480 = vmatprep.subr.bf16.mxu0 0
  %6481 = vmatpush2.bf16.msra.mxu0 0
  %6482 = vmatprep.subr.bf16.mxu0 0
  %6483 = vmatpush2.bf16.msra.mxu0 0
  %6484 = vmatprep.subr.bf16.mxu0 0
  %6485 = vmatpush2.bf16.msra.mxu0 0
  %6486 = vmatprep.subr.bf16.mxu0 0
  %6487 = vmatpush2.bf16.msra.mxu0 0
  %6488 = vmatprep.subr.bf16.mxu0 0
  %6489 = vmatpush2.bf16.msra.mxu0 0
  %6490 = vmatprep.subr.bf16.mxu0 0
  %6491 = vmatpush2.bf16.msra.mxu0 0
  %6492 = vmatprep.subr.bf16.mxu0 0
  %6493 = vmatpush2.bf16.msra.mxu0 0
  %6494 = vmatprep.mubr.bf16.mxu0 0
  %6495 = vmatmul.mubr.bf16.gmra.mxu0 %v6460
  %v6496 = vpop.f32.mrf.mxu0
  %v6497 = vadd.f32 %v6446, %v6496
  %v6498 = vpop.f32.mrf.mxu0
  %v6499 = vpop.f32.mrf.mxu0
  %v6500 = vadd.f32 %v6446, %v6499
  %v6501 = vpop.f32.mrf.mxu0
  %6502 = vdwg.mxu0
  %s6503 = scalar_lea.vmem %s5, 192
  %v6504 = vld [vmem:[%s6503] sm:$0xf]
  %v6505 = vld [vmem:[%s6503 + $0x4] sm:$0xf]
  %v6506 = vld [vmem:[%s6503 + $0x8] sm:$0xf]
  %v6507 = vld [vmem:[%s6503 + $0xc] sm:$0xf]
  %v6508 = vlaneseq
  %v6509 = vshrl.u32 %v6508, 7
  %v6510 = vsub.s32 1, %v6509
  %v6511 = vrot.slane %v6437, %v6510
  %v6516 = vunpack.c.l.b16 %v6504
  %v6517 = vunpack.c.l.b16 %v6505
  %v6518 = vunpack.c.l.b16 %v6506
  %v6519 = vunpack.c.l.b16 %v6507
  %v6520 = vpack.c.b16 %v6517, %v6516
  %v6521 = vpack.c.b16 %v6519, %v6518
  %6524 = vmatprep.subr.bf16.mxu0 0
  %6525 = vmatpush1.bf16.msra.mxu0 0
  %6526 = vmatprep.subr.bf16.mxu0 0
  %6527 = vmatpush1.bf16.msra.mxu0 0
  %6528 = vmatprep.subr.bf16.mxu0 0
  %6529 = vmatpush1.bf16.msra.mxu0 0
  %6530 = vmatprep.subr.bf16.mxu0 0
  %6531 = vmatpush1.bf16.msra.mxu0 0
  %6532 = vmatprep.subr.bf16.mxu0 0
  %6533 = vmatpush1.bf16.msra.mxu0 0
  %6534 = vmatprep.subr.bf16.mxu0 0
  %6535 = vmatpush1.bf16.msra.mxu0 0
  %6536 = vmatprep.subr.bf16.mxu0 0
  %6537 = vmatpush1.bf16.msra.mxu0 %v6521
  %6538 = vmatprep.subr.bf16.mxu0 0
  %6539 = vmatpush1.bf16.msra.mxu0 %v6520
  %6540 = vmatprep.subr.bf16.mxu0 0
  %6541 = vmatpush2.bf16.msra.mxu0 0
  %6542 = vmatprep.subr.bf16.mxu0 0
  %6543 = vmatpush2.bf16.msra.mxu0 0
  %6544 = vmatprep.subr.bf16.mxu0 0
  %6545 = vmatpush2.bf16.msra.mxu0 0
  %6546 = vmatprep.subr.bf16.mxu0 0
  %6547 = vmatpush2.bf16.msra.mxu0 0
  %6548 = vmatprep.subr.bf16.mxu0 0
  %6549 = vmatpush2.bf16.msra.mxu0 0
  %6550 = vmatprep.subr.bf16.mxu0 0
  %6551 = vmatpush2.bf16.msra.mxu0 0
  %6552 = vmatprep.subr.bf16.mxu0 0
  %6553 = vmatpush2.bf16.msra.mxu0 0
  %6554 = vmatprep.subr.bf16.mxu0 0
  %6555 = vmatpush2.bf16.msra.mxu0 0
  %6556 = vmatprep.mubr.bf16.mxu0 0
  %6557 = vmatmul.mubr.bf16.gmra.mxu0 %v6460
  %v6558 = vpop.f32.mrf.mxu0
  %v6559 = vadd.f32 %v6511, %v6558
  %v6560 = vpop.f32.mrf.mxu0
  %v6561 = vpop.f32.mrf.mxu0
  %v6562 = vadd.f32 %v6511, %v6561
  %v6563 = vpop.f32.mrf.mxu0
  %6564 = vdwg.mxu0
  %s6565 = scalar_lea.vmem %s6, 192
  %v6566 = vld [vmem:[%s6565] sm:$0xf]
  %v6567 = vld [vmem:[%s6565 + $0x4] sm:$0xf]
  %v6568 = vld [vmem:[%s6565 + $0x8] sm:$0xf]
  %v6569 = vld [vmem:[%s6565 + $0xc] sm:$0xf]
  %v6570 = vlaneseq
  %v6571 = vshrl.u32 %v6570, 7
  %v6572 = vsub.s32 2, %v6571
  %v6573 = vrot.slane %v6437, %v6572
  %v6578 = vunpack.c.l.b16 %v6566
  %v6579 = vunpack.c.l.b16 %v6567
  %v6580 = vunpack.c.l.b16 %v6568
  %v6581 = vunpack.c.l.b16 %v6569
  %v6582 = vpack.c.b16 %v6579, %v6578
  %v6583 = vpack.c.b16 %v6581, %v6580
  %6586 = vmatprep.subr.bf16.mxu0 0
  %6587 = vmatpush1.bf16.msra.mxu0 0
  %6588 = vmatprep.subr.bf16.mxu0 0
  %6589 = vmatpush1.bf16.msra.mxu0 0
  %6590 = vmatprep.subr.bf16.mxu0 0
  %6591 = vmatpush1.bf16.msra.mxu0 0
  %6592 = vmatprep.subr.bf16.mxu0 0
  %6593 = vmatpush1.bf16.msra.mxu0 0
  %6594 = vmatprep.subr.bf16.mxu0 0
  %6595 = vmatpush1.bf16.msra.mxu0 0
  %6596 = vmatprep.subr.bf16.mxu0 0
  %6597 = vmatpush1.bf16.msra.mxu0 0
  %6598 = vmatprep.subr.bf16.mxu0 0
  %6599 = vmatpush1.bf16.msra.mxu0 %v6583
  %6600 = vmatprep.subr.bf16.mxu0 0
  %6601 = vmatpush1.bf16.msra.mxu0 %v6582
  %6602 = vmatprep.subr.bf16.mxu0 0
  %6603 = vmatpush2.bf16.msra.mxu0 0
  %6604 = vmatprep.subr.bf16.mxu0 0
  %6605 = vmatpush2.bf16.msra.mxu0 0
  %6606 = vmatprep.subr.bf16.mxu0 0
  %6607 = vmatpush2.bf16.msra.mxu0 0
  %6608 = vmatprep.subr.bf16.mxu0 0
  %6609 = vmatpush2.bf16.msra.mxu0 0
  %6610 = vmatprep.subr.bf16.mxu0 0
  %6611 = vmatpush2.bf16.msra.mxu0 0
  %6612 = vmatprep.subr.bf16.mxu0 0
  %6613 = vmatpush2.bf16.msra.mxu0 0
  %6614 = vmatprep.subr.bf16.mxu0 0
  %6615 = vmatpush2.bf16.msra.mxu0 0
  %6616 = vmatprep.subr.bf16.mxu0 0
  %6617 = vmatpush2.bf16.msra.mxu0 0
  %6618 = vmatprep.mubr.bf16.mxu0 0
  %6619 = vmatmul.mubr.bf16.gmra.mxu0 %v6460
  %v6620 = vpop.f32.mrf.mxu0
  %v6621 = vadd.f32 %v6573, %v6620
  %v6622 = vpop.f32.mrf.mxu0
  %v6623 = vpop.f32.mrf.mxu0
  %v6624 = vadd.f32 %v6573, %v6623
  %v6625 = vpop.f32.mrf.mxu0
  %6626 = vdwg.mxu0
  %v6627 = vpack.c.bf16 %v6497, %v6497
  %v6628 = vpack.c.bf16 %v6500, %v6500
  %v6629 = vpack.c.bf16 %v6559, %v6559
  %v6630 = vpack.c.bf16 %v6562, %v6562
  %v6631 = vpack.c.bf16 %v6621, %v6621
  %v6632 = vpack.c.bf16 %v6624, %v6624
  %v6634 = vsel %vm62, %v6627, 0
  %v6637 = vsel %vm62, %v6629, 0
  %6639 = vmatprep.subr.bf16.mxu0 0
  %6640 = vmatpush1.bf16.xpose.msra.mxu0 0
  %6641 = vmatprep.subr.bf16.mxu0 0
  %6642 = vmatpush1.bf16.xpose.msra.mxu0 0
  %6643 = vmatprep.subr.bf16.mxu0 0
  %6644 = vmatpush1.bf16.xpose.msra.mxu0 0
  %6645 = vmatprep.subr.bf16.mxu0 0
  %6646 = vmatpush1.bf16.xpose.msra.mxu0 0
  %6647 = vmatprep.subr.bf16.mxu0 0
  %6648 = vmatpush1.bf16.xpose.msra.mxu0 0
  %6649 = vmatprep.subr.bf16.mxu0 0
  %6650 = vmatpush1.bf16.xpose.msra.mxu0 0
  %6651 = vmatprep.subr.bf16.mxu0 0
  %6652 = vmatpush1.bf16.xpose.msra.mxu0 0
  %6653 = vmatprep.subr.bf16.mxu0 0
  %6654 = vmatpush1.bf16.xpose.msra.mxu0 %v6637
  %6655 = vmatprep.subr.bf16.mxu0 0
  %6656 = vmatpush2.bf16.xpose.msra.mxu0 0
  %6657 = vmatprep.subr.bf16.mxu0 0
  %6658 = vmatpush2.bf16.xpose.msra.mxu0 0
  %6659 = vmatprep.subr.bf16.mxu0 0
  %6660 = vmatpush2.bf16.xpose.msra.mxu0 0
  %6661 = vmatprep.subr.bf16.mxu0 0
  %6662 = vmatpush2.bf16.xpose.msra.mxu0 0
  %6663 = vmatprep.subr.bf16.mxu0 0
  %6664 = vmatpush2.bf16.xpose.msra.mxu0 0
  %6665 = vmatprep.subr.bf16.mxu0 0
  %6666 = vmatpush2.bf16.xpose.msra.mxu0 0
  %6667 = vmatprep.subr.bf16.mxu0 0
  %6668 = vmatpush2.bf16.xpose.msra.mxu0 0
  %6669 = vmatprep.subr.bf16.mxu0 0
  %6670 = vmatpush2.bf16.xpose.msra.mxu0 0
  %6671 = vmatprep.mubr.bf16.mxu0 0
  %6672 = vmatmul.mubr.bf16.gmra.mxu0 %v6634
  %v6673 = vpop.f32.mrf.mxu0
  %v6674 = vadd.f32 0.0, %v6673
  %v6675 = vpop.f32.mrf.mxu0
  %v6676 = vpop.f32.mrf.mxu0
  %v6677 = vpop.f32.mrf.mxu0
  %6678 = vdwg.mxu0
  %v6680 = vsel %vm62, %v6628, 0
  %v6683 = vsel %vm62, %v6630, 0
  %6685 = vmatprep.subr.bf16.mxu0 0
  %6686 = vmatpush1.bf16.xpose.msra.mxu0 0
  %6687 = vmatprep.subr.bf16.mxu0 0
  %6688 = vmatpush1.bf16.xpose.msra.mxu0 0
  %6689 = vmatprep.subr.bf16.mxu0 0
  %6690 = vmatpush1.bf16.xpose.msra.mxu0 0
  %6691 = vmatprep.subr.bf16.mxu0 0
  %6692 = vmatpush1.bf16.xpose.msra.mxu0 0
  %6693 = vmatprep.subr.bf16.mxu0 0
  %6694 = vmatpush1.bf16.xpose.msra.mxu0 0
  %6695 = vmatprep.subr.bf16.mxu0 0
  %6696 = vmatpush1.bf16.xpose.msra.mxu0 0
  %6697 = vmatprep.subr.bf16.mxu0 0
  %6698 = vmatpush1.bf16.xpose.msra.mxu0 0
  %6699 = vmatprep.subr.bf16.mxu0 0
  %6700 = vmatpush1.bf16.xpose.msra.mxu0 %v6683
  %6701 = vmatprep.subr.bf16.mxu0 0
  %6702 = vmatpush2.bf16.xpose.msra.mxu0 0
  %6703 = vmatprep.subr.bf16.mxu0 0
  %6704 = vmatpush2.bf16.xpose.msra.mxu0 0
  %6705 = vmatprep.subr.bf16.mxu0 0
  %6706 = vmatpush2.bf16.xpose.msra.mxu0 0
  %6707 = vmatprep.subr.bf16.mxu0 0
  %6708 = vmatpush2.bf16.xpose.msra.mxu0 0
  %6709 = vmatprep.subr.bf16.mxu0 0
  %6710 = vmatpush2.bf16.xpose.msra.mxu0 0
  %6711 = vmatprep.subr.bf16.mxu0 0
  %6712 = vmatpush2.bf16.xpose.msra.mxu0 0
  %6713 = vmatprep.subr.bf16.mxu0 0
  %6714 = vmatpush2.bf16.xpose.msra.mxu0 0
  %6715 = vmatprep.subr.bf16.mxu0 0
  %6716 = vmatpush2.bf16.xpose.msra.mxu0 0
  %6717 = vmatprep.mubr.bf16.mxu0 0
  %6718 = vmatmul.mubr.bf16.gmra.mxu0 %v6680
  %v6719 = vpop.f32.mrf.mxu0
  %v6720 = vadd.f32 0.0, %v6719
  %v6721 = vpop.f32.mrf.mxu0
  %v6722 = vpop.f32.mrf.mxu0
  %v6723 = vpop.f32.mrf.mxu0
  %6724 = vdwg.mxu0
  %v6725 = vmul.f32 %v6674, 0.35355338
  %v6726 = vmul.f32 %v6720, 0.35355338
  %v6727 = vsel %vm62, %v6725, -inf
  %6728 = vmax.xlane.f32.xlu0 %v6727
  %v6729 = vpop.xlane.xlu0 %6728
  %v6730 = vsel %vm62, %v6726, -inf
  %6731 = vmax.xlane.f32.xlu0 %v6730
  %v6732 = vpop.xlane.xlu0 %6731
  %v6733 = vsub.f32 %v6725, %v6729
  %v6734 = vsub.f32 %v6726, %v6732
  %v6735 = vmul.f32 %v6733, 1.442695
  %v6736 = vpow.pop %v6735
  %v6737 = vmul.f32 %v6734, 1.442695
  %v6738 = vpow.pop %v6737
  %v6739 = vsel %vm62, %v6736, 0.0
  %6740 = vadd.xlane.f32.xlu0 %v6739
  %v6741 = vpop.xlane.xlu0 %6740
  %v6742 = vsel %vm62, %v6738, 0.0
  %6743 = vadd.xlane.f32.xlu0 %v6742
  %v6744 = vpop.xlane.xlu0 %6743
  %v6745 = vrcp.pop %v6741
  %v6746 = vrcp.pop %v6744
  %v6747 = vmul.f32 %v6736, %v6745
  %v6748 = vmul.f32 %v6738, %v6746
  %v6749 = vpack.c.bf16 %v6747, %v6747
  %v6750 = vpack.c.bf16 %v6748, %v6748
  %v6752 = vsel %vm62, %v6749, 0
  %v6755 = vsel %vm66, %v6631, 0
  %6757 = vmatprep.subr.bf16.mxu0 0
  %6758 = vmatpush1.bf16.msra.mxu0 0
  %6759 = vmatprep.subr.bf16.mxu0 0
  %6760 = vmatpush1.bf16.msra.mxu0 0
  %6761 = vmatprep.subr.bf16.mxu0 0
  %6762 = vmatpush1.bf16.msra.mxu0 0
  %6763 = vmatprep.subr.bf16.mxu0 0
  %6764 = vmatpush1.bf16.msra.mxu0 0
  %6765 = vmatprep.subr.bf16.mxu0 0
  %6766 = vmatpush1.bf16.msra.mxu0 0
  %6767 = vmatprep.subr.bf16.mxu0 0
  %6768 = vmatpush1.bf16.msra.mxu0 0
  %6769 = vmatprep.subr.bf16.mxu0 0
  %6770 = vmatpush1.bf16.msra.mxu0 0
  %6771 = vmatprep.subr.bf16.mxu0 0
  %6772 = vmatpush1.bf16.msra.mxu0 %v6755
  %6773 = vmatprep.subr.bf16.mxu0 0
  %6774 = vmatpush2.bf16.msra.mxu0 0
  %6775 = vmatprep.subr.bf16.mxu0 0
  %6776 = vmatpush2.bf16.msra.mxu0 0
  %6777 = vmatprep.subr.bf16.mxu0 0
  %6778 = vmatpush2.bf16.msra.mxu0 0
  %6779 = vmatprep.subr.bf16.mxu0 0
  %6780 = vmatpush2.bf16.msra.mxu0 0
  %6781 = vmatprep.subr.bf16.mxu0 0
  %6782 = vmatpush2.bf16.msra.mxu0 0
  %6783 = vmatprep.subr.bf16.mxu0 0
  %6784 = vmatpush2.bf16.msra.mxu0 0
  %6785 = vmatprep.subr.bf16.mxu0 0
  %6786 = vmatpush2.bf16.msra.mxu0 0
  %6787 = vmatprep.subr.bf16.mxu0 0
  %6788 = vmatpush2.bf16.msra.mxu0 0
  %6789 = vmatprep.mubr.bf16.mxu0 0
  %6790 = vmatmul.mubr.bf16.gmra.mxu0 %v6752
  %v6791 = vpop.f32.mrf.mxu0
  %v6792 = vadd.f32 0.0, %v6791
  %v6793 = vpop.f32.mrf.mxu0
  %v6794 = vpop.f32.mrf.mxu0
  %v6795 = vpop.f32.mrf.mxu0
  %6796 = vdwg.mxu0
  %v6798 = vsel %vm62, %v6750, 0
  %v6801 = vsel %vm66, %v6632, 0
  %6803 = vmatprep.subr.bf16.mxu0 0
  %6804 = vmatpush1.bf16.msra.mxu0 0
  %6805 = vmatprep.subr.bf16.mxu0 0
  %6806 = vmatpush1.bf16.msra.mxu0 0
  %6807 = vmatprep.subr.bf16.mxu0 0
  %6808 = vmatpush1.bf16.msra.mxu0 0
  %6809 = vmatprep.subr.bf16.mxu0 0
  %6810 = vmatpush1.bf16.msra.mxu0 0
  %6811 = vmatprep.subr.bf16.mxu0 0
  %6812 = vmatpush1.bf16.msra.mxu0 0
  %6813 = vmatprep.subr.bf16.mxu0 0
  %6814 = vmatpush1.bf16.msra.mxu0 0
  %6815 = vmatprep.subr.bf16.mxu0 0
  %6816 = vmatpush1.bf16.msra.mxu0 0
  %6817 = vmatprep.subr.bf16.mxu0 0
  %6818 = vmatpush1.bf16.msra.mxu0 %v6801
  %6819 = vmatprep.subr.bf16.mxu0 0
  %6820 = vmatpush2.bf16.msra.mxu0 0
  %6821 = vmatprep.subr.bf16.mxu0 0
  %6822 = vmatpush2.bf16.msra.mxu0 0
  %6823 = vmatprep.subr.bf16.mxu0 0
  %6824 = vmatpush2.bf16.msra.mxu0 0
  %6825 = vmatprep.subr.bf16.mxu0 0
  %6826 = vmatpush2.bf16.msra.mxu0 0
  %6827 = vmatprep.subr.bf16.mxu0 0
  %6828 = vmatpush2.bf16.msra.mxu0 0
  %6829 = vmatprep.subr.bf16.mxu0 0
  %6830 = vmatpush2.bf16.msra.mxu0 0
  %6831 = vmatprep.subr.bf16.mxu0 0
  %6832 = vmatpush2.bf16.msra.mxu0 0
  %6833 = vmatprep.subr.bf16.mxu0 0
  %6834 = vmatpush2.bf16.msra.mxu0 0
  %6835 = vmatprep.mubr.bf16.mxu0 0
  %6836 = vmatmul.mubr.bf16.gmra.mxu0 %v6798
  %v6837 = vpop.f32.mrf.mxu0
  %v6838 = vadd.f32 0.0, %v6837
  %v6839 = vpop.f32.mrf.mxu0
  %v6840 = vpop.f32.mrf.mxu0
  %v6841 = vpop.f32.mrf.mxu0
  %6842 = vdwg.mxu0
  %v6843 = vpack.c.bf16 %v6838, %v6792
  %s6844 = scalar_lea.vmem %s7, 48
  %v6845 = vld [vmem:[%s6844] sm:$0xf]
  %s6846 = scalar_lea.vmem %s8, 52
  %v6847 = vld [vmem:[%s6846] sm:$0x7]
  %s6848 = scalar_lea.vmem %s4, 208
  %v6849 = vld [vmem:[%s6848] sm:$0xf]
  %v6850 = vld [vmem:[%s6848 + $0x4] sm:$0xf]
  %v6851 = vld [vmem:[%s6848 + $0x8] sm:$0xf]
  %v6852 = vld [vmem:[%s6848 + $0xc] sm:$0xf]
  %v6853 = vlaneseq
  %v6854 = vshrl.u32 %v6853, 7
  %v6855 = vsub.s32 0, %v6854
  %v6856 = vrot.slane %v6847, %v6855
  %v6861 = vunpack.c.l.b16 %v6849
  %v6862 = vunpack.c.l.b16 %v6850
  %v6863 = vunpack.c.l.b16 %v6851
  %v6864 = vunpack.c.l.b16 %v6852
  %v6865 = vpack.c.b16 %v6862, %v6861
  %v6866 = vpack.c.b16 %v6864, %v6863
  %6869 = vmatprep.subr.bf16.mxu0 0
  %6870 = vmatpush1.bf16.msra.mxu0 0
  %6871 = vmatprep.subr.bf16.mxu0 0
  %6872 = vmatpush1.bf16.msra.mxu0 0
  %6873 = vmatprep.subr.bf16.mxu0 0
  %6874 = vmatpush1.bf16.msra.mxu0 0
  %6875 = vmatprep.subr.bf16.mxu0 0
  %6876 = vmatpush1.bf16.msra.mxu0 0
  %6877 = vmatprep.subr.bf16.mxu0 0
  %6878 = vmatpush1.bf16.msra.mxu0 0
  %6879 = vmatprep.subr.bf16.mxu0 0
  %6880 = vmatpush1.bf16.msra.mxu0 0
  %6881 = vmatprep.subr.bf16.mxu0 0
  %6882 = vmatpush1.bf16.msra.mxu0 %v6866
  %6883 = vmatprep.subr.bf16.mxu0 0
  %6884 = vmatpush1.bf16.msra.mxu0 %v6865
  %6885 = vmatprep.subr.bf16.mxu0 0
  %6886 = vmatpush2.bf16.msra.mxu0 0
  %6887 = vmatprep.subr.bf16.mxu0 0
  %6888 = vmatpush2.bf16.msra.mxu0 0
  %6889 = vmatprep.subr.bf16.mxu0 0
  %6890 = vmatpush2.bf16.msra.mxu0 0
  %6891 = vmatprep.subr.bf16.mxu0 0
  %6892 = vmatpush2.bf16.msra.mxu0 0
  %6893 = vmatprep.subr.bf16.mxu0 0
  %6894 = vmatpush2.bf16.msra.mxu0 0
  %6895 = vmatprep.subr.bf16.mxu0 0
  %6896 = vmatpush2.bf16.msra.mxu0 0
  %6897 = vmatprep.subr.bf16.mxu0 0
  %6898 = vmatpush2.bf16.msra.mxu0 0
  %6899 = vmatprep.subr.bf16.mxu0 0
  %6900 = vmatpush2.bf16.msra.mxu0 0
  %6901 = vmatprep.mubr.bf16.mxu0 0
  %6902 = vmatmul.mubr.bf16.gmra.mxu0 %v6460
  %v6903 = vpop.f32.mrf.mxu0
  %v6904 = vadd.f32 %v6856, %v6903
  %v6905 = vpop.f32.mrf.mxu0
  %v6906 = vpop.f32.mrf.mxu0
  %v6907 = vadd.f32 %v6856, %v6906
  %v6908 = vpop.f32.mrf.mxu0
  %6909 = vdwg.mxu0
  %s6910 = scalar_lea.vmem %s5, 208
  %v6911 = vld [vmem:[%s6910] sm:$0xf]
  %v6912 = vld [vmem:[%s6910 + $0x4] sm:$0xf]
  %v6913 = vld [vmem:[%s6910 + $0x8] sm:$0xf]
  %v6914 = vld [vmem:[%s6910 + $0xc] sm:$0xf]
  %v6915 = vlaneseq
  %v6916 = vshrl.u32 %v6915, 7
  %v6917 = vsub.s32 1, %v6916
  %v6918 = vrot.slane %v6847, %v6917
  %v6923 = vunpack.c.l.b16 %v6911
  %v6924 = vunpack.c.l.b16 %v6912
  %v6925 = vunpack.c.l.b16 %v6913
  %v6926 = vunpack.c.l.b16 %v6914
  %v6927 = vpack.c.b16 %v6924, %v6923
  %v6928 = vpack.c.b16 %v6926, %v6925
  %6931 = vmatprep.subr.bf16.mxu0 0
  %6932 = vmatpush1.bf16.msra.mxu0 0
  %6933 = vmatprep.subr.bf16.mxu0 0
  %6934 = vmatpush1.bf16.msra.mxu0 0
  %6935 = vmatprep.subr.bf16.mxu0 0
  %6936 = vmatpush1.bf16.msra.mxu0 0
  %6937 = vmatprep.subr.bf16.mxu0 0
  %6938 = vmatpush1.bf16.msra.mxu0 0
  %6939 = vmatprep.subr.bf16.mxu0 0
  %6940 = vmatpush1.bf16.msra.mxu0 0
  %6941 = vmatprep.subr.bf16.mxu0 0
  %6942 = vmatpush1.bf16.msra.mxu0 0
  %6943 = vmatprep.subr.bf16.mxu0 0
  %6944 = vmatpush1.bf16.msra.mxu0 %v6928
  %6945 = vmatprep.subr.bf16.mxu0 0
  %6946 = vmatpush1.bf16.msra.mxu0 %v6927
  %6947 = vmatprep.subr.bf16.mxu0 0
  %6948 = vmatpush2.bf16.msra.mxu0 0
  %6949 = vmatprep.subr.bf16.mxu0 0
  %6950 = vmatpush2.bf16.msra.mxu0 0
  %6951 = vmatprep.subr.bf16.mxu0 0
  %6952 = vmatpush2.bf16.msra.mxu0 0
  %6953 = vmatprep.subr.bf16.mxu0 0
  %6954 = vmatpush2.bf16.msra.mxu0 0
  %6955 = vmatprep.subr.bf16.mxu0 0
  %6956 = vmatpush2.bf16.msra.mxu0 0
  %6957 = vmatprep.subr.bf16.mxu0 0
  %6958 = vmatpush2.bf16.msra.mxu0 0
  %6959 = vmatprep.subr.bf16.mxu0 0
  %6960 = vmatpush2.bf16.msra.mxu0 0
  %6961 = vmatprep.subr.bf16.mxu0 0
  %6962 = vmatpush2.bf16.msra.mxu0 0
  %6963 = vmatprep.mubr.bf16.mxu0 0
  %6964 = vmatmul.mubr.bf16.gmra.mxu0 %v6460
  %v6965 = vpop.f32.mrf.mxu0
  %v6966 = vadd.f32 %v6918, %v6965
  %v6967 = vpop.f32.mrf.mxu0
  %v6968 = vpop.f32.mrf.mxu0
  %v6969 = vadd.f32 %v6918, %v6968
  %v6970 = vpop.f32.mrf.mxu0
  %6971 = vdwg.mxu0
  %s6972 = scalar_lea.vmem %s6, 208
  %v6973 = vld [vmem:[%s6972] sm:$0xf]
  %v6974 = vld [vmem:[%s6972 + $0x4] sm:$0xf]
  %v6975 = vld [vmem:[%s6972 + $0x8] sm:$0xf]
  %v6976 = vld [vmem:[%s6972 + $0xc] sm:$0xf]
  %v6977 = vlaneseq
  %v6978 = vshrl.u32 %v6977, 7
  %v6979 = vsub.s32 2, %v6978
  %v6980 = vrot.slane %v6847, %v6979
  %v6985 = vunpack.c.l.b16 %v6973
  %v6986 = vunpack.c.l.b16 %v6974
  %v6987 = vunpack.c.l.b16 %v6975
  %v6988 = vunpack.c.l.b16 %v6976
  %v6989 = vpack.c.b16 %v6986, %v6985
  %v6990 = vpack.c.b16 %v6988, %v6987
  %6993 = vmatprep.subr.bf16.mxu0 0
  %6994 = vmatpush1.bf16.msra.mxu0 0
  %6995 = vmatprep.subr.bf16.mxu0 0
  %6996 = vmatpush1.bf16.msra.mxu0 0
  %6997 = vmatprep.subr.bf16.mxu0 0
  %6998 = vmatpush1.bf16.msra.mxu0 0
  %6999 = vmatprep.subr.bf16.mxu0 0
  %7000 = vmatpush1.bf16.msra.mxu0 0
  %7001 = vmatprep.subr.bf16.mxu0 0
  %7002 = vmatpush1.bf16.msra.mxu0 0
  %7003 = vmatprep.subr.bf16.mxu0 0
  %7004 = vmatpush1.bf16.msra.mxu0 0
  %7005 = vmatprep.subr.bf16.mxu0 0
  %7006 = vmatpush1.bf16.msra.mxu0 %v6990
  %7007 = vmatprep.subr.bf16.mxu0 0
  %7008 = vmatpush1.bf16.msra.mxu0 %v6989
  %7009 = vmatprep.subr.bf16.mxu0 0
  %7010 = vmatpush2.bf16.msra.mxu0 0
  %7011 = vmatprep.subr.bf16.mxu0 0
  %7012 = vmatpush2.bf16.msra.mxu0 0
  %7013 = vmatprep.subr.bf16.mxu0 0
  %7014 = vmatpush2.bf16.msra.mxu0 0
  %7015 = vmatprep.subr.bf16.mxu0 0
  %7016 = vmatpush2.bf16.msra.mxu0 0
  %7017 = vmatprep.subr.bf16.mxu0 0
  %7018 = vmatpush2.bf16.msra.mxu0 0
  %7019 = vmatprep.subr.bf16.mxu0 0
  %7020 = vmatpush2.bf16.msra.mxu0 0
  %7021 = vmatprep.subr.bf16.mxu0 0
  %7022 = vmatpush2.bf16.msra.mxu0 0
  %7023 = vmatprep.subr.bf16.mxu0 0
  %7024 = vmatpush2.bf16.msra.mxu0 0
  %7025 = vmatprep.mubr.bf16.mxu0 0
  %7026 = vmatmul.mubr.bf16.gmra.mxu0 %v6460
  %v7027 = vpop.f32.mrf.mxu0
  %v7028 = vadd.f32 %v6980, %v7027
  %v7029 = vpop.f32.mrf.mxu0
  %v7030 = vpop.f32.mrf.mxu0
  %v7031 = vadd.f32 %v6980, %v7030
  %v7032 = vpop.f32.mrf.mxu0
  %7033 = vdwg.mxu0
  %v7034 = vpack.c.bf16 %v6904, %v6904
  %v7035 = vpack.c.bf16 %v6907, %v6907
  %v7036 = vpack.c.bf16 %v6966, %v6966
  %v7037 = vpack.c.bf16 %v6969, %v6969
  %v7038 = vpack.c.bf16 %v7028, %v7028
  %v7039 = vpack.c.bf16 %v7031, %v7031
  %v7041 = vsel %vm62, %v7034, 0
  %v7044 = vsel %vm62, %v7036, 0
  %7046 = vmatprep.subr.bf16.mxu0 0
  %7047 = vmatpush1.bf16.xpose.msra.mxu0 0
  %7048 = vmatprep.subr.bf16.mxu0 0
  %7049 = vmatpush1.bf16.xpose.msra.mxu0 0
  %7050 = vmatprep.subr.bf16.mxu0 0
  %7051 = vmatpush1.bf16.xpose.msra.mxu0 0
  %7052 = vmatprep.subr.bf16.mxu0 0
  %7053 = vmatpush1.bf16.xpose.msra.mxu0 0
  %7054 = vmatprep.subr.bf16.mxu0 0
  %7055 = vmatpush1.bf16.xpose.msra.mxu0 0
  %7056 = vmatprep.subr.bf16.mxu0 0
  %7057 = vmatpush1.bf16.xpose.msra.mxu0 0
  %7058 = vmatprep.subr.bf16.mxu0 0
  %7059 = vmatpush1.bf16.xpose.msra.mxu0 0
  %7060 = vmatprep.subr.bf16.mxu0 0
  %7061 = vmatpush1.bf16.xpose.msra.mxu0 %v7044
  %7062 = vmatprep.subr.bf16.mxu0 0
  %7063 = vmatpush2.bf16.xpose.msra.mxu0 0
  %7064 = vmatprep.subr.bf16.mxu0 0
  %7065 = vmatpush2.bf16.xpose.msra.mxu0 0
  %7066 = vmatprep.subr.bf16.mxu0 0
  %7067 = vmatpush2.bf16.xpose.msra.mxu0 0
  %7068 = vmatprep.subr.bf16.mxu0 0
  %7069 = vmatpush2.bf16.xpose.msra.mxu0 0
  %7070 = vmatprep.subr.bf16.mxu0 0
  %7071 = vmatpush2.bf16.xpose.msra.mxu0 0
  %7072 = vmatprep.subr.bf16.mxu0 0
  %7073 = vmatpush2.bf16.xpose.msra.mxu0 0
  %7074 = vmatprep.subr.bf16.mxu0 0
  %7075 = vmatpush2.bf16.xpose.msra.mxu0 0
  %7076 = vmatprep.subr.bf16.mxu0 0
  %7077 = vmatpush2.bf16.xpose.msra.mxu0 0
  %7078 = vmatprep.mubr.bf16.mxu0 0
  %7079 = vmatmul.mubr.bf16.gmra.mxu0 %v7041
  %v7080 = vpop.f32.mrf.mxu0
  %v7081 = vadd.f32 0.0, %v7080
  %v7082 = vpop.f32.mrf.mxu0
  %v7083 = vpop.f32.mrf.mxu0
  %v7084 = vpop.f32.mrf.mxu0
  %7085 = vdwg.mxu0
  %v7087 = vsel %vm62, %v7035, 0
  %v7090 = vsel %vm62, %v7037, 0
  %7092 = vmatprep.subr.bf16.mxu0 0
  %7093 = vmatpush1.bf16.xpose.msra.mxu0 0
  %7094 = vmatprep.subr.bf16.mxu0 0
  %7095 = vmatpush1.bf16.xpose.msra.mxu0 0
  %7096 = vmatprep.subr.bf16.mxu0 0
  %7097 = vmatpush1.bf16.xpose.msra.mxu0 0
  %7098 = vmatprep.subr.bf16.mxu0 0
  %7099 = vmatpush1.bf16.xpose.msra.mxu0 0
  %7100 = vmatprep.subr.bf16.mxu0 0
  %7101 = vmatpush1.bf16.xpose.msra.mxu0 0
  %7102 = vmatprep.subr.bf16.mxu0 0
  %7103 = vmatpush1.bf16.xpose.msra.mxu0 0
  %7104 = vmatprep.subr.bf16.mxu0 0
  %7105 = vmatpush1.bf16.xpose.msra.mxu0 0
  %7106 = vmatprep.subr.bf16.mxu0 0
  %7107 = vmatpush1.bf16.xpose.msra.mxu0 %v7090
  %7108 = vmatprep.subr.bf16.mxu0 0
  %7109 = vmatpush2.bf16.xpose.msra.mxu0 0
  %7110 = vmatprep.subr.bf16.mxu0 0
  %7111 = vmatpush2.bf16.xpose.msra.mxu0 0
  %7112 = vmatprep.subr.bf16.mxu0 0
  %7113 = vmatpush2.bf16.xpose.msra.mxu0 0
  %7114 = vmatprep.subr.bf16.mxu0 0
  %7115 = vmatpush2.bf16.xpose.msra.mxu0 0
  %7116 = vmatprep.subr.bf16.mxu0 0
  %7117 = vmatpush2.bf16.xpose.msra.mxu0 0
  %7118 = vmatprep.subr.bf16.mxu0 0
  %7119 = vmatpush2.bf16.xpose.msra.mxu0 0
  %7120 = vmatprep.subr.bf16.mxu0 0
  %7121 = vmatpush2.bf16.xpose.msra.mxu0 0
  %7122 = vmatprep.subr.bf16.mxu0 0
  %7123 = vmatpush2.bf16.xpose.msra.mxu0 0
  %7124 = vmatprep.mubr.bf16.mxu0 0
  %7125 = vmatmul.mubr.bf16.gmra.mxu0 %v7087
  %v7126 = vpop.f32.mrf.mxu0
  %v7127 = vadd.f32 0.0, %v7126
  %v7128 = vpop.f32.mrf.mxu0
  %v7129 = vpop.f32.mrf.mxu0
  %v7130 = vpop.f32.mrf.mxu0
  %7131 = vdwg.mxu0
  %v7132 = vmul.f32 %v7081, 0.35355338
  %v7133 = vmul.f32 %v7127, 0.35355338
  %v7134 = vsel %vm62, %v7132, -inf
  %7135 = vmax.xlane.f32.xlu0 %v7134
  %v7136 = vpop.xlane.xlu0 %7135
  %v7137 = vsel %vm62, %v7133, -inf
  %7138 = vmax.xlane.f32.xlu0 %v7137
  %v7139 = vpop.xlane.xlu0 %7138
  %v7140 = vsub.f32 %v7132, %v7136
  %v7141 = vsub.f32 %v7133, %v7139
  %v7142 = vmul.f32 %v7140, 1.442695
  %v7143 = vpow.pop %v7142
  %v7144 = vmul.f32 %v7141, 1.442695
  %v7145 = vpow.pop %v7144
  %v7146 = vsel %vm62, %v7143, 0.0
  %7147 = vadd.xlane.f32.xlu0 %v7146
  %v7148 = vpop.xlane.xlu0 %7147
  %v7149 = vsel %vm62, %v7145, 0.0
  %7150 = vadd.xlane.f32.xlu0 %v7149
  %v7151 = vpop.xlane.xlu0 %7150
  %v7152 = vrcp.pop %v7148
  %v7153 = vrcp.pop %v7151
  %v7154 = vmul.f32 %v7143, %v7152
  %v7155 = vmul.f32 %v7145, %v7153
  %v7156 = vpack.c.bf16 %v7154, %v7154
  %v7157 = vpack.c.bf16 %v7155, %v7155
  %v7159 = vsel %vm62, %v7156, 0
  %v7162 = vsel %vm66, %v7038, 0
  %7164 = vmatprep.subr.bf16.mxu0 0
  %7165 = vmatpush1.bf16.msra.mxu0 0
  %7166 = vmatprep.subr.bf16.mxu0 0
  %7167 = vmatpush1.bf16.msra.mxu0 0
  %7168 = vmatprep.subr.bf16.mxu0 0
  %7169 = vmatpush1.bf16.msra.mxu0 0
  %7170 = vmatprep.subr.bf16.mxu0 0
  %7171 = vmatpush1.bf16.msra.mxu0 0
  %7172 = vmatprep.subr.bf16.mxu0 0
  %7173 = vmatpush1.bf16.msra.mxu0 0
  %7174 = vmatprep.subr.bf16.mxu0 0
  %7175 = vmatpush1.bf16.msra.mxu0 0
  %7176 = vmatprep.subr.bf16.mxu0 0
  %7177 = vmatpush1.bf16.msra.mxu0 0
  %7178 = vmatprep.subr.bf16.mxu0 0
  %7179 = vmatpush1.bf16.msra.mxu0 %v7162
  %7180 = vmatprep.subr.bf16.mxu0 0
  %7181 = vmatpush2.bf16.msra.mxu0 0
  %7182 = vmatprep.subr.bf16.mxu0 0
  %7183 = vmatpush2.bf16.msra.mxu0 0
  %7184 = vmatprep.subr.bf16.mxu0 0
  %7185 = vmatpush2.bf16.msra.mxu0 0
  %7186 = vmatprep.subr.bf16.mxu0 0
  %7187 = vmatpush2.bf16.msra.mxu0 0
  %7188 = vmatprep.subr.bf16.mxu0 0
  %7189 = vmatpush2.bf16.msra.mxu0 0
  %7190 = vmatprep.subr.bf16.mxu0 0
  %7191 = vmatpush2.bf16.msra.mxu0 0
  %7192 = vmatprep.subr.bf16.mxu0 0
  %7193 = vmatpush2.bf16.msra.mxu0 0
  %7194 = vmatprep.subr.bf16.mxu0 0
  %7195 = vmatpush2.bf16.msra.mxu0 0
  %7196 = vmatprep.mubr.bf16.mxu0 0
  %7197 = vmatmul.mubr.bf16.gmra.mxu0 %v7159
  %v7198 = vpop.f32.mrf.mxu0
  %v7199 = vadd.f32 0.0, %v7198
  %v7200 = vpop.f32.mrf.mxu0
  %v7201 = vpop.f32.mrf.mxu0
  %v7202 = vpop.f32.mrf.mxu0
  %7203 = vdwg.mxu0
  %v7205 = vsel %vm62, %v7157, 0
  %v7208 = vsel %vm66, %v7039, 0
  %7210 = vmatprep.subr.bf16.mxu0 0
  %7211 = vmatpush1.bf16.msra.mxu0 0
  %7212 = vmatprep.subr.bf16.mxu0 0
  %7213 = vmatpush1.bf16.msra.mxu0 0
  %7214 = vmatprep.subr.bf16.mxu0 0
  %7215 = vmatpush1.bf16.msra.mxu0 0
  %7216 = vmatprep.subr.bf16.mxu0 0
  %7217 = vmatpush1.bf16.msra.mxu0 0
  %7218 = vmatprep.subr.bf16.mxu0 0
  %7219 = vmatpush1.bf16.msra.mxu0 0
  %7220 = vmatprep.subr.bf16.mxu0 0
  %7221 = vmatpush1.bf16.msra.mxu0 0
  %7222 = vmatprep.subr.bf16.mxu0 0
  %7223 = vmatpush1.bf16.msra.mxu0 0
  %7224 = vmatprep.subr.bf16.mxu0 0
  %7225 = vmatpush1.bf16.msra.mxu0 %v7208
  %7226 = vmatprep.subr.bf16.mxu0 0
  %7227 = vmatpush2.bf16.msra.mxu0 0
  %7228 = vmatprep.subr.bf16.mxu0 0
  %7229 = vmatpush2.bf16.msra.mxu0 0
  %7230 = vmatprep.subr.bf16.mxu0 0
  %7231 = vmatpush2.bf16.msra.mxu0 0
  %7232 = vmatprep.subr.bf16.mxu0 0
  %7233 = vmatpush2.bf16.msra.mxu0 0
  %7234 = vmatprep.subr.bf16.mxu0 0
  %7235 = vmatpush2.bf16.msra.mxu0 0
  %7236 = vmatprep.subr.bf16.mxu0 0
  %7237 = vmatpush2.bf16.msra.mxu0 0
  %7238 = vmatprep.subr.bf16.mxu0 0
  %7239 = vmatpush2.bf16.msra.mxu0 0
  %7240 = vmatprep.subr.bf16.mxu0 0
  %7241 = vmatpush2.bf16.msra.mxu0 0
  %7242 = vmatprep.mubr.bf16.mxu0 0
  %7243 = vmatmul.mubr.bf16.gmra.mxu0 %v7205
  %v7244 = vpop.f32.mrf.mxu0
  %v7245 = vadd.f32 0.0, %v7244
  %v7246 = vpop.f32.mrf.mxu0
  %v7247 = vpop.f32.mrf.mxu0
  %v7248 = vpop.f32.mrf.mxu0
  %7249 = vdwg.mxu0
  %v7250 = vpack.c.bf16 %v7245, %v7199
  %s7251 = scalar_lea.vmem %s7, 52
  %v7252 = vld [vmem:[%s7251] sm:$0xf]
  %v7254 = vsel %vm62, %v7250, 0
  %v7257 = vsel %vm66, %v7252, 0
  %7259 = vmatprep.subr.bf16.mxu0 0
  %7260 = vmatpush1.bf16.msra.mxu0 0
  %7261 = vmatprep.subr.bf16.mxu0 0
  %7262 = vmatpush1.bf16.msra.mxu0 0
  %7263 = vmatprep.subr.bf16.mxu0 0
  %7264 = vmatpush1.bf16.msra.mxu0 0
  %7265 = vmatprep.subr.bf16.mxu0 0
  %7266 = vmatpush1.bf16.msra.mxu0 0
  %7267 = vmatprep.subr.bf16.mxu0 0
  %7268 = vmatpush1.bf16.msra.mxu0 0
  %7269 = vmatprep.subr.bf16.mxu0 0
  %7270 = vmatpush1.bf16.msra.mxu0 0
  %7271 = vmatprep.subr.bf16.mxu0 0
  %7272 = vmatpush1.bf16.msra.mxu0 0
  %7273 = vmatprep.subr.bf16.mxu0 0
  %7274 = vmatpush1.bf16.msra.mxu0 %v7257
  %7275 = vmatprep.subr.bf16.mxu0 0
  %7276 = vmatpush2.bf16.msra.mxu0 0
  %7277 = vmatprep.subr.bf16.mxu0 0
  %7278 = vmatpush2.bf16.msra.mxu0 0
  %7279 = vmatprep.subr.bf16.mxu0 0
  %7280 = vmatpush2.bf16.msra.mxu0 0
  %7281 = vmatprep.subr.bf16.mxu0 0
  %7282 = vmatpush2.bf16.msra.mxu0 0
  %7283 = vmatprep.subr.bf16.mxu0 0
  %7284 = vmatpush2.bf16.msra.mxu0 0
  %7285 = vmatprep.subr.bf16.mxu0 0
  %7286 = vmatpush2.bf16.msra.mxu0 0
  %7287 = vmatprep.subr.bf16.mxu0 0
  %7288 = vmatpush2.bf16.msra.mxu0 0
  %7289 = vmatprep.subr.bf16.mxu0 0
  %7290 = vmatpush2.bf16.msra.mxu0 0
  %7291 = vmatprep.mubr.bf16.mxu0 0
  %7292 = vmatmul.mubr.bf16.gmra.mxu0 %v7254
  %v7293 = vpop.f32.mrf.mxu0
  %v7294 = vadd.f32 0.0, %v7293
  %v7295 = vpop.f32.mrf.mxu0
  %v7296 = vpop.f32.mrf.mxu0
  %v7297 = vadd.f32 0.0, %v7296
  %v7298 = vpop.f32.mrf.mxu0
  %7299 = vdwg.mxu0
  %v7301 = vsel %vm62, %v6843, 0
  %v7304 = vsel %vm66, %v6845, 0
  %7306 = vmatprep.subr.bf16.mxu0 0
  %7307 = vmatpush1.bf16.msra.mxu0 0
  %7308 = vmatprep.subr.bf16.mxu0 0
  %7309 = vmatpush1.bf16.msra.mxu0 0
  %7310 = vmatprep.subr.bf16.mxu0 0
  %7311 = vmatpush1.bf16.msra.mxu0 0
  %7312 = vmatprep.subr.bf16.mxu0 0
  %7313 = vmatpush1.bf16.msra.mxu0 0
  %7314 = vmatprep.subr.bf16.mxu0 0
  %7315 = vmatpush1.bf16.msra.mxu0 0
  %7316 = vmatprep.subr.bf16.mxu0 0
  %7317 = vmatpush1.bf16.msra.mxu0 0
  %7318 = vmatprep.subr.bf16.mxu0 0
  %7319 = vmatpush1.bf16.msra.mxu0 0
  %7320 = vmatprep.subr.bf16.mxu0 0
  %7321 = vmatpush1.bf16.msra.mxu0 %v7304
  %7322 = vmatprep.subr.bf16.mxu0 0
  %7323 = vmatpush2.bf16.msra.mxu0 0
  %7324 = vmatprep.subr.bf16.mxu0 0
  %7325 = vmatpush2.bf16.msra.mxu0 0
  %7326 = vmatprep.subr.bf16.mxu0 0
  %7327 = vmatpush2.bf16.msra.mxu0 0
  %7328 = vmatprep.subr.bf16.mxu0 0
  %7329 = vmatpush2.bf16.msra.mxu0 0
  %7330 = vmatprep.subr.bf16.mxu0 0
  %7331 = vmatpush2.bf16.msra.mxu0 0
  %7332 = vmatprep.subr.bf16.mxu0 0
  %7333 = vmatpush2.bf16.msra.mxu0 0
  %7334 = vmatprep.subr.bf16.mxu0 0
  %7335 = vmatpush2.bf16.msra.mxu0 0
  %7336 = vmatprep.subr.bf16.mxu0 0
  %7337 = vmatpush2.bf16.msra.mxu0 0
  %7338 = vmatprep.mubr.bf16.mxu0 0
  %7339 = vmatmul.mubr.bf16.gmra.mxu0 %v7301
  %v7340 = vpop.f32.mrf.mxu0
  %v7341 = vadd.f32 %v7294, %v7340
  %v7342 = vpop.f32.mrf.mxu0
  %v7343 = vpop.f32.mrf.mxu0
  %v7344 = vadd.f32 %v7297, %v7343
  %v7345 = vpop.f32.mrf.mxu0
  %7346 = vdwg.mxu0
  %s7347 = scalar_lea.vmem %s8, 56
  %v7348 = vld [vmem:[%s7347] sm:$0x7]
  %s7349 = scalar_lea.vmem %s4, 224
  %v7350 = vld [vmem:[%s7349] sm:$0xf]
  %v7351 = vld [vmem:[%s7349 + $0x4] sm:$0xf]
  %v7352 = vld [vmem:[%s7349 + $0x8] sm:$0xf]
  %v7353 = vld [vmem:[%s7349 + $0xc] sm:$0xf]
  %v7354 = vlaneseq
  %v7355 = vshrl.u32 %v7354, 7
  %v7356 = vsub.s32 0, %v7355
  %v7357 = vrot.slane %v7348, %v7356
  %v7362 = vunpack.c.l.b16 %v7350
  %v7363 = vunpack.c.l.b16 %v7351
  %v7364 = vunpack.c.l.b16 %v7352
  %v7365 = vunpack.c.l.b16 %v7353
  %v7366 = vpack.c.b16 %v7363, %v7362
  %v7367 = vpack.c.b16 %v7365, %v7364
  %7370 = vmatprep.subr.bf16.mxu0 0
  %7371 = vmatpush1.bf16.msra.mxu0 0
  %7372 = vmatprep.subr.bf16.mxu0 0
  %7373 = vmatpush1.bf16.msra.mxu0 0
  %7374 = vmatprep.subr.bf16.mxu0 0
  %7375 = vmatpush1.bf16.msra.mxu0 0
  %7376 = vmatprep.subr.bf16.mxu0 0
  %7377 = vmatpush1.bf16.msra.mxu0 0
  %7378 = vmatprep.subr.bf16.mxu0 0
  %7379 = vmatpush1.bf16.msra.mxu0 0
  %7380 = vmatprep.subr.bf16.mxu0 0
  %7381 = vmatpush1.bf16.msra.mxu0 0
  %7382 = vmatprep.subr.bf16.mxu0 0
  %7383 = vmatpush1.bf16.msra.mxu0 %v7367
  %7384 = vmatprep.subr.bf16.mxu0 0
  %7385 = vmatpush1.bf16.msra.mxu0 %v7366
  %7386 = vmatprep.subr.bf16.mxu0 0
  %7387 = vmatpush2.bf16.msra.mxu0 0
  %7388 = vmatprep.subr.bf16.mxu0 0
  %7389 = vmatpush2.bf16.msra.mxu0 0
  %7390 = vmatprep.subr.bf16.mxu0 0
  %7391 = vmatpush2.bf16.msra.mxu0 0
  %7392 = vmatprep.subr.bf16.mxu0 0
  %7393 = vmatpush2.bf16.msra.mxu0 0
  %7394 = vmatprep.subr.bf16.mxu0 0
  %7395 = vmatpush2.bf16.msra.mxu0 0
  %7396 = vmatprep.subr.bf16.mxu0 0
  %7397 = vmatpush2.bf16.msra.mxu0 0
  %7398 = vmatprep.subr.bf16.mxu0 0
  %7399 = vmatpush2.bf16.msra.mxu0 0
  %7400 = vmatprep.subr.bf16.mxu0 0
  %7401 = vmatpush2.bf16.msra.mxu0 0
  %7402 = vmatprep.mubr.bf16.mxu0 0
  %7403 = vmatmul.mubr.bf16.gmra.mxu0 %v6460
  %v7404 = vpop.f32.mrf.mxu0
  %v7405 = vadd.f32 %v7357, %v7404
  %v7406 = vpop.f32.mrf.mxu0
  %v7407 = vpop.f32.mrf.mxu0
  %v7408 = vadd.f32 %v7357, %v7407
  %v7409 = vpop.f32.mrf.mxu0
  %7410 = vdwg.mxu0
  %s7411 = scalar_lea.vmem %s5, 224
  %v7412 = vld [vmem:[%s7411] sm:$0xf]
  %v7413 = vld [vmem:[%s7411 + $0x4] sm:$0xf]
  %v7414 = vld [vmem:[%s7411 + $0x8] sm:$0xf]
  %v7415 = vld [vmem:[%s7411 + $0xc] sm:$0xf]
  %v7416 = vlaneseq
  %v7417 = vshrl.u32 %v7416, 7
  %v7418 = vsub.s32 1, %v7417
  %v7419 = vrot.slane %v7348, %v7418
  %v7424 = vunpack.c.l.b16 %v7412
  %v7425 = vunpack.c.l.b16 %v7413
  %v7426 = vunpack.c.l.b16 %v7414
  %v7427 = vunpack.c.l.b16 %v7415
  %v7428 = vpack.c.b16 %v7425, %v7424
  %v7429 = vpack.c.b16 %v7427, %v7426
  %7432 = vmatprep.subr.bf16.mxu0 0
  %7433 = vmatpush1.bf16.msra.mxu0 0
  %7434 = vmatprep.subr.bf16.mxu0 0
  %7435 = vmatpush1.bf16.msra.mxu0 0
  %7436 = vmatprep.subr.bf16.mxu0 0
  %7437 = vmatpush1.bf16.msra.mxu0 0
  %7438 = vmatprep.subr.bf16.mxu0 0
  %7439 = vmatpush1.bf16.msra.mxu0 0
  %7440 = vmatprep.subr.bf16.mxu0 0
  %7441 = vmatpush1.bf16.msra.mxu0 0
  %7442 = vmatprep.subr.bf16.mxu0 0
  %7443 = vmatpush1.bf16.msra.mxu0 0
  %7444 = vmatprep.subr.bf16.mxu0 0
  %7445 = vmatpush1.bf16.msra.mxu0 %v7429
  %7446 = vmatprep.subr.bf16.mxu0 0
  %7447 = vmatpush1.bf16.msra.mxu0 %v7428
  %7448 = vmatprep.subr.bf16.mxu0 0
  %7449 = vmatpush2.bf16.msra.mxu0 0
  %7450 = vmatprep.subr.bf16.mxu0 0
  %7451 = vmatpush2.bf16.msra.mxu0 0
  %7452 = vmatprep.subr.bf16.mxu0 0
  %7453 = vmatpush2.bf16.msra.mxu0 0
  %7454 = vmatprep.subr.bf16.mxu0 0
  %7455 = vmatpush2.bf16.msra.mxu0 0
  %7456 = vmatprep.subr.bf16.mxu0 0
  %7457 = vmatpush2.bf16.msra.mxu0 0
  %7458 = vmatprep.subr.bf16.mxu0 0
  %7459 = vmatpush2.bf16.msra.mxu0 0
  %7460 = vmatprep.subr.bf16.mxu0 0
  %7461 = vmatpush2.bf16.msra.mxu0 0
  %7462 = vmatprep.subr.bf16.mxu0 0
  %7463 = vmatpush2.bf16.msra.mxu0 0
  %7464 = vmatprep.mubr.bf16.mxu0 0
  %7465 = vmatmul.mubr.bf16.gmra.mxu0 %v6460
  %v7466 = vpop.f32.mrf.mxu0
  %v7467 = vadd.f32 %v7419, %v7466
  %v7468 = vpop.f32.mrf.mxu0
  %v7469 = vpop.f32.mrf.mxu0
  %v7470 = vadd.f32 %v7419, %v7469
  %v7471 = vpop.f32.mrf.mxu0
  %7472 = vdwg.mxu0
  %s7473 = scalar_lea.vmem %s6, 224
  %v7474 = vld [vmem:[%s7473] sm:$0xf]
  %v7475 = vld [vmem:[%s7473 + $0x4] sm:$0xf]
  %v7476 = vld [vmem:[%s7473 + $0x8] sm:$0xf]
  %v7477 = vld [vmem:[%s7473 + $0xc] sm:$0xf]
  %v7478 = vlaneseq
  %v7479 = vshrl.u32 %v7478, 7
  %v7480 = vsub.s32 2, %v7479
  %v7481 = vrot.slane %v7348, %v7480
  %v7486 = vunpack.c.l.b16 %v7474
  %v7487 = vunpack.c.l.b16 %v7475
  %v7488 = vunpack.c.l.b16 %v7476
  %v7489 = vunpack.c.l.b16 %v7477
  %v7490 = vpack.c.b16 %v7487, %v7486
  %v7491 = vpack.c.b16 %v7489, %v7488
  %7494 = vmatprep.subr.bf16.mxu0 0
  %7495 = vmatpush1.bf16.msra.mxu0 0
  %7496 = vmatprep.subr.bf16.mxu0 0
  %7497 = vmatpush1.bf16.msra.mxu0 0
  %7498 = vmatprep.subr.bf16.mxu0 0
  %7499 = vmatpush1.bf16.msra.mxu0 0
  %7500 = vmatprep.subr.bf16.mxu0 0
  %7501 = vmatpush1.bf16.msra.mxu0 0
  %7502 = vmatprep.subr.bf16.mxu0 0
  %7503 = vmatpush1.bf16.msra.mxu0 0
  %7504 = vmatprep.subr.bf16.mxu0 0
  %7505 = vmatpush1.bf16.msra.mxu0 0
  %7506 = vmatprep.subr.bf16.mxu0 0
  %7507 = vmatpush1.bf16.msra.mxu0 %v7491
  %7508 = vmatprep.subr.bf16.mxu0 0
  %7509 = vmatpush1.bf16.msra.mxu0 %v7490
  %7510 = vmatprep.subr.bf16.mxu0 0
  %7511 = vmatpush2.bf16.msra.mxu0 0
  %7512 = vmatprep.subr.bf16.mxu0 0
  %7513 = vmatpush2.bf16.msra.mxu0 0
  %7514 = vmatprep.subr.bf16.mxu0 0
  %7515 = vmatpush2.bf16.msra.mxu0 0
  %7516 = vmatprep.subr.bf16.mxu0 0
  %7517 = vmatpush2.bf16.msra.mxu0 0
  %7518 = vmatprep.subr.bf16.mxu0 0
  %7519 = vmatpush2.bf16.msra.mxu0 0
  %7520 = vmatprep.subr.bf16.mxu0 0
  %7521 = vmatpush2.bf16.msra.mxu0 0
  %7522 = vmatprep.subr.bf16.mxu0 0
  %7523 = vmatpush2.bf16.msra.mxu0 0
  %7524 = vmatprep.subr.bf16.mxu0 0
  %7525 = vmatpush2.bf16.msra.mxu0 0
  %7526 = vmatprep.mubr.bf16.mxu0 0
  %7527 = vmatmul.mubr.bf16.gmra.mxu0 %v6460
  %v7528 = vpop.f32.mrf.mxu0
  %v7529 = vadd.f32 %v7481, %v7528
  %v7530 = vpop.f32.mrf.mxu0
  %v7531 = vpop.f32.mrf.mxu0
  %v7532 = vadd.f32 %v7481, %v7531
  %v7533 = vpop.f32.mrf.mxu0
  %7534 = vdwg.mxu0
  %v7535 = vpack.c.bf16 %v7405, %v7405
  %v7536 = vpack.c.bf16 %v7408, %v7408
  %v7537 = vpack.c.bf16 %v7467, %v7467
  %v7538 = vpack.c.bf16 %v7470, %v7470
  %v7539 = vpack.c.bf16 %v7529, %v7529
  %v7540 = vpack.c.bf16 %v7532, %v7532
  %v7542 = vsel %vm62, %v7535, 0
  %v7545 = vsel %vm62, %v7537, 0
  %7547 = vmatprep.subr.bf16.mxu0 0
  %7548 = vmatpush1.bf16.xpose.msra.mxu0 0
  %7549 = vmatprep.subr.bf16.mxu0 0
  %7550 = vmatpush1.bf16.xpose.msra.mxu0 0
  %7551 = vmatprep.subr.bf16.mxu0 0
  %7552 = vmatpush1.bf16.xpose.msra.mxu0 0
  %7553 = vmatprep.subr.bf16.mxu0 0
  %7554 = vmatpush1.bf16.xpose.msra.mxu0 0
  %7555 = vmatprep.subr.bf16.mxu0 0
  %7556 = vmatpush1.bf16.xpose.msra.mxu0 0
  %7557 = vmatprep.subr.bf16.mxu0 0
  %7558 = vmatpush1.bf16.xpose.msra.mxu0 0
  %7559 = vmatprep.subr.bf16.mxu0 0
  %7560 = vmatpush1.bf16.xpose.msra.mxu0 0
  %7561 = vmatprep.subr.bf16.mxu0 0
  %7562 = vmatpush1.bf16.xpose.msra.mxu0 %v7545
  %7563 = vmatprep.subr.bf16.mxu0 0
  %7564 = vmatpush2.bf16.xpose.msra.mxu0 0
  %7565 = vmatprep.subr.bf16.mxu0 0
  %7566 = vmatpush2.bf16.xpose.msra.mxu0 0
  %7567 = vmatprep.subr.bf16.mxu0 0
  %7568 = vmatpush2.bf16.xpose.msra.mxu0 0
  %7569 = vmatprep.subr.bf16.mxu0 0
  %7570 = vmatpush2.bf16.xpose.msra.mxu0 0
  %7571 = vmatprep.subr.bf16.mxu0 0
  %7572 = vmatpush2.bf16.xpose.msra.mxu0 0
  %7573 = vmatprep.subr.bf16.mxu0 0
  %7574 = vmatpush2.bf16.xpose.msra.mxu0 0
  %7575 = vmatprep.subr.bf16.mxu0 0
  %7576 = vmatpush2.bf16.xpose.msra.mxu0 0
  %7577 = vmatprep.subr.bf16.mxu0 0
  %7578 = vmatpush2.bf16.xpose.msra.mxu0 0
  %7579 = vmatprep.mubr.bf16.mxu0 0
  %7580 = vmatmul.mubr.bf16.gmra.mxu0 %v7542
  %v7581 = vpop.f32.mrf.mxu0
  %v7582 = vadd.f32 0.0, %v7581
  %v7583 = vpop.f32.mrf.mxu0
  %v7584 = vpop.f32.mrf.mxu0
  %v7585 = vpop.f32.mrf.mxu0
  %7586 = vdwg.mxu0
  %v7588 = vsel %vm62, %v7536, 0
  %v7591 = vsel %vm62, %v7538, 0
  %7593 = vmatprep.subr.bf16.mxu0 0
  %7594 = vmatpush1.bf16.xpose.msra.mxu0 0
  %7595 = vmatprep.subr.bf16.mxu0 0
  %7596 = vmatpush1.bf16.xpose.msra.mxu0 0
  %7597 = vmatprep.subr.bf16.mxu0 0
  %7598 = vmatpush1.bf16.xpose.msra.mxu0 0
  %7599 = vmatprep.subr.bf16.mxu0 0
  %7600 = vmatpush1.bf16.xpose.msra.mxu0 0
  %7601 = vmatprep.subr.bf16.mxu0 0
  %7602 = vmatpush1.bf16.xpose.msra.mxu0 0
  %7603 = vmatprep.subr.bf16.mxu0 0
  %7604 = vmatpush1.bf16.xpose.msra.mxu0 0
  %7605 = vmatprep.subr.bf16.mxu0 0
  %7606 = vmatpush1.bf16.xpose.msra.mxu0 0
  %7607 = vmatprep.subr.bf16.mxu0 0
  %7608 = vmatpush1.bf16.xpose.msra.mxu0 %v7591
  %7609 = vmatprep.subr.bf16.mxu0 0
  %7610 = vmatpush2.bf16.xpose.msra.mxu0 0
  %7611 = vmatprep.subr.bf16.mxu0 0
  %7612 = vmatpush2.bf16.xpose.msra.mxu0 0
  %7613 = vmatprep.subr.bf16.mxu0 0
  %7614 = vmatpush2.bf16.xpose.msra.mxu0 0
  %7615 = vmatprep.subr.bf16.mxu0 0
  %7616 = vmatpush2.bf16.xpose.msra.mxu0 0
  %7617 = vmatprep.subr.bf16.mxu0 0
  %7618 = vmatpush2.bf16.xpose.msra.mxu0 0
  %7619 = vmatprep.subr.bf16.mxu0 0
  %7620 = vmatpush2.bf16.xpose.msra.mxu0 0
  %7621 = vmatprep.subr.bf16.mxu0 0
  %7622 = vmatpush2.bf16.xpose.msra.mxu0 0
  %7623 = vmatprep.subr.bf16.mxu0 0
  %7624 = vmatpush2.bf16.xpose.msra.mxu0 0
  %7625 = vmatprep.mubr.bf16.mxu0 0
  %7626 = vmatmul.mubr.bf16.gmra.mxu0 %v7588
  %v7627 = vpop.f32.mrf.mxu0
  %v7628 = vadd.f32 0.0, %v7627
  %v7629 = vpop.f32.mrf.mxu0
  %v7630 = vpop.f32.mrf.mxu0
  %v7631 = vpop.f32.mrf.mxu0
  %7632 = vdwg.mxu0
  %v7633 = vmul.f32 %v7582, 0.35355338
  %v7634 = vmul.f32 %v7628, 0.35355338
  %v7635 = vsel %vm62, %v7633, -inf
  %7636 = vmax.xlane.f32.xlu0 %v7635
  %v7637 = vpop.xlane.xlu0 %7636
  %v7638 = vsel %vm62, %v7634, -inf
  %7639 = vmax.xlane.f32.xlu0 %v7638
  %v7640 = vpop.xlane.xlu0 %7639
  %v7641 = vsub.f32 %v7633, %v7637
  %v7642 = vsub.f32 %v7634, %v7640
  %v7643 = vmul.f32 %v7641, 1.442695
  %v7644 = vpow.pop %v7643
  %v7645 = vmul.f32 %v7642, 1.442695
  %v7646 = vpow.pop %v7645
  %v7647 = vsel %vm62, %v7644, 0.0
  %7648 = vadd.xlane.f32.xlu0 %v7647
  %v7649 = vpop.xlane.xlu0 %7648
  %v7650 = vsel %vm62, %v7646, 0.0
  %7651 = vadd.xlane.f32.xlu0 %v7650
  %v7652 = vpop.xlane.xlu0 %7651
  %v7653 = vrcp.pop %v7649
  %v7654 = vrcp.pop %v7652
  %v7655 = vmul.f32 %v7644, %v7653
  %v7656 = vmul.f32 %v7646, %v7654
  %v7657 = vpack.c.bf16 %v7655, %v7655
  %v7658 = vpack.c.bf16 %v7656, %v7656
  %v7660 = vsel %vm62, %v7657, 0
  %v7663 = vsel %vm66, %v7539, 0
  %7665 = vmatprep.subr.bf16.mxu0 0
  %7666 = vmatpush1.bf16.msra.mxu0 0
  %7667 = vmatprep.subr.bf16.mxu0 0
  %7668 = vmatpush1.bf16.msra.mxu0 0
  %7669 = vmatprep.subr.bf16.mxu0 0
  %7670 = vmatpush1.bf16.msra.mxu0 0
  %7671 = vmatprep.subr.bf16.mxu0 0
  %7672 = vmatpush1.bf16.msra.mxu0 0
  %7673 = vmatprep.subr.bf16.mxu0 0
  %7674 = vmatpush1.bf16.msra.mxu0 0
  %7675 = vmatprep.subr.bf16.mxu0 0
  %7676 = vmatpush1.bf16.msra.mxu0 0
  %7677 = vmatprep.subr.bf16.mxu0 0
  %7678 = vmatpush1.bf16.msra.mxu0 0
  %7679 = vmatprep.subr.bf16.mxu0 0
  %7680 = vmatpush1.bf16.msra.mxu0 %v7663
  %7681 = vmatprep.subr.bf16.mxu0 0
  %7682 = vmatpush2.bf16.msra.mxu0 0
  %7683 = vmatprep.subr.bf16.mxu0 0
  %7684 = vmatpush2.bf16.msra.mxu0 0
  %7685 = vmatprep.subr.bf16.mxu0 0
  %7686 = vmatpush2.bf16.msra.mxu0 0
  %7687 = vmatprep.subr.bf16.mxu0 0
  %7688 = vmatpush2.bf16.msra.mxu0 0
  %7689 = vmatprep.subr.bf16.mxu0 0
  %7690 = vmatpush2.bf16.msra.mxu0 0
  %7691 = vmatprep.subr.bf16.mxu0 0
  %7692 = vmatpush2.bf16.msra.mxu0 0
  %7693 = vmatprep.subr.bf16.mxu0 0
  %7694 = vmatpush2.bf16.msra.mxu0 0
  %7695 = vmatprep.subr.bf16.mxu0 0
  %7696 = vmatpush2.bf16.msra.mxu0 0
  %7697 = vmatprep.mubr.bf16.mxu0 0
  %7698 = vmatmul.mubr.bf16.gmra.mxu0 %v7660
  %v7699 = vpop.f32.mrf.mxu0
  %v7700 = vadd.f32 0.0, %v7699
  %v7701 = vpop.f32.mrf.mxu0
  %v7702 = vpop.f32.mrf.mxu0
  %v7703 = vpop.f32.mrf.mxu0
  %7704 = vdwg.mxu0
  %v7706 = vsel %vm62, %v7658, 0
  %v7709 = vsel %vm66, %v7540, 0
  %7711 = vmatprep.subr.bf16.mxu0 0
  %7712 = vmatpush1.bf16.msra.mxu0 0
  %7713 = vmatprep.subr.bf16.mxu0 0
  %7714 = vmatpush1.bf16.msra.mxu0 0
  %7715 = vmatprep.subr.bf16.mxu0 0
  %7716 = vmatpush1.bf16.msra.mxu0 0
  %7717 = vmatprep.subr.bf16.mxu0 0
  %7718 = vmatpush1.bf16.msra.mxu0 0
  %7719 = vmatprep.subr.bf16.mxu0 0
  %7720 = vmatpush1.bf16.msra.mxu0 0
  %7721 = vmatprep.subr.bf16.mxu0 0
  %7722 = vmatpush1.bf16.msra.mxu0 0
  %7723 = vmatprep.subr.bf16.mxu0 0
  %7724 = vmatpush1.bf16.msra.mxu0 0
  %7725 = vmatprep.subr.bf16.mxu0 0
  %7726 = vmatpush1.bf16.msra.mxu0 %v7709
  %7727 = vmatprep.subr.bf16.mxu0 0
  %7728 = vmatpush2.bf16.msra.mxu0 0
  %7729 = vmatprep.subr.bf16.mxu0 0
  %7730 = vmatpush2.bf16.msra.mxu0 0
  %7731 = vmatprep.subr.bf16.mxu0 0
  %7732 = vmatpush2.bf16.msra.mxu0 0
  %7733 = vmatprep.subr.bf16.mxu0 0
  %7734 = vmatpush2.bf16.msra.mxu0 0
  %7735 = vmatprep.subr.bf16.mxu0 0
  %7736 = vmatpush2.bf16.msra.mxu0 0
  %7737 = vmatprep.subr.bf16.mxu0 0
  %7738 = vmatpush2.bf16.msra.mxu0 0
  %7739 = vmatprep.subr.bf16.mxu0 0
  %7740 = vmatpush2.bf16.msra.mxu0 0
  %7741 = vmatprep.subr.bf16.mxu0 0
  %7742 = vmatpush2.bf16.msra.mxu0 0
  %7743 = vmatprep.mubr.bf16.mxu0 0
  %7744 = vmatmul.mubr.bf16.gmra.mxu0 %v7706
  %v7745 = vpop.f32.mrf.mxu0
  %v7746 = vadd.f32 0.0, %v7745
  %v7747 = vpop.f32.mrf.mxu0
  %v7748 = vpop.f32.mrf.mxu0
  %v7749 = vpop.f32.mrf.mxu0
  %7750 = vdwg.mxu0
  %v7751 = vpack.c.bf16 %v7746, %v7700
  %s7752 = scalar_lea.vmem %s7, 56
  %v7753 = vld [vmem:[%s7752] sm:$0xf]
  %v7755 = vsel %vm62, %v7751, 0
  %v7758 = vsel %vm66, %v7753, 0
  %7760 = vmatprep.subr.bf16.mxu0 0
  %7761 = vmatpush1.bf16.msra.mxu0 0
  %7762 = vmatprep.subr.bf16.mxu0 0
  %7763 = vmatpush1.bf16.msra.mxu0 0
  %7764 = vmatprep.subr.bf16.mxu0 0
  %7765 = vmatpush1.bf16.msra.mxu0 0
  %7766 = vmatprep.subr.bf16.mxu0 0
  %7767 = vmatpush1.bf16.msra.mxu0 0
  %7768 = vmatprep.subr.bf16.mxu0 0
  %7769 = vmatpush1.bf16.msra.mxu0 0
  %7770 = vmatprep.subr.bf16.mxu0 0
  %7771 = vmatpush1.bf16.msra.mxu0 0
  %7772 = vmatprep.subr.bf16.mxu0 0
  %7773 = vmatpush1.bf16.msra.mxu0 0
  %7774 = vmatprep.subr.bf16.mxu0 0
  %7775 = vmatpush1.bf16.msra.mxu0 %v7758
  %7776 = vmatprep.subr.bf16.mxu0 0
  %7777 = vmatpush2.bf16.msra.mxu0 0
  %7778 = vmatprep.subr.bf16.mxu0 0
  %7779 = vmatpush2.bf16.msra.mxu0 0
  %7780 = vmatprep.subr.bf16.mxu0 0
  %7781 = vmatpush2.bf16.msra.mxu0 0
  %7782 = vmatprep.subr.bf16.mxu0 0
  %7783 = vmatpush2.bf16.msra.mxu0 0
  %7784 = vmatprep.subr.bf16.mxu0 0
  %7785 = vmatpush2.bf16.msra.mxu0 0
  %7786 = vmatprep.subr.bf16.mxu0 0
  %7787 = vmatpush2.bf16.msra.mxu0 0
  %7788 = vmatprep.subr.bf16.mxu0 0
  %7789 = vmatpush2.bf16.msra.mxu0 0
  %7790 = vmatprep.subr.bf16.mxu0 0
  %7791 = vmatpush2.bf16.msra.mxu0 0
  %7792 = vmatprep.mubr.bf16.mxu0 0
  %7793 = vmatmul.mubr.bf16.gmra.mxu0 %v7755
  %v7794 = vpop.f32.mrf.mxu0
  %v7795 = vadd.f32 0.0, %v7794
  %v7796 = vpop.f32.mrf.mxu0
  %v7797 = vpop.f32.mrf.mxu0
  %v7798 = vadd.f32 0.0, %v7797
  %v7799 = vpop.f32.mrf.mxu0
  %7800 = vdwg.mxu0
  %v7801 = vadd.f32 %v7341, %v7795
  %v7802 = vadd.f32 %v7344, %v7798
  %s7803 = scalar_lea.vmem %s8, 60
  %v7804 = vld [vmem:[%s7803] sm:$0x7]
  %s7805 = scalar_lea.vmem %s4, 240
  %v7806 = vld [vmem:[%s7805] sm:$0xf]
  %v7807 = vld [vmem:[%s7805 + $0x4] sm:$0xf]
  %v7808 = vld [vmem:[%s7805 + $0x8] sm:$0xf]
  %v7809 = vld [vmem:[%s7805 + $0xc] sm:$0xf]
  %v7810 = vlaneseq
  %v7811 = vshrl.u32 %v7810, 7
  %v7812 = vsub.s32 0, %v7811
  %v7813 = vrot.slane %v7804, %v7812
  %v7818 = vunpack.c.l.b16 %v7806
  %v7819 = vunpack.c.l.b16 %v7807
  %v7820 = vunpack.c.l.b16 %v7808
  %v7821 = vunpack.c.l.b16 %v7809
  %v7822 = vpack.c.b16 %v7819, %v7818
  %v7823 = vpack.c.b16 %v7821, %v7820
  %7826 = vmatprep.subr.bf16.mxu0 0
  %7827 = vmatpush1.bf16.msra.mxu0 0
  %7828 = vmatprep.subr.bf16.mxu0 0
  %7829 = vmatpush1.bf16.msra.mxu0 0
  %7830 = vmatprep.subr.bf16.mxu0 0
  %7831 = vmatpush1.bf16.msra.mxu0 0
  %7832 = vmatprep.subr.bf16.mxu0 0
  %7833 = vmatpush1.bf16.msra.mxu0 0
  %7834 = vmatprep.subr.bf16.mxu0 0
  %7835 = vmatpush1.bf16.msra.mxu0 0
  %7836 = vmatprep.subr.bf16.mxu0 0
  %7837 = vmatpush1.bf16.msra.mxu0 0
  %7838 = vmatprep.subr.bf16.mxu0 0
  %7839 = vmatpush1.bf16.msra.mxu0 %v7823
  %7840 = vmatprep.subr.bf16.mxu0 0
  %7841 = vmatpush1.bf16.msra.mxu0 %v7822
  %7842 = vmatprep.subr.bf16.mxu0 0
  %7843 = vmatpush2.bf16.msra.mxu0 0
  %7844 = vmatprep.subr.bf16.mxu0 0
  %7845 = vmatpush2.bf16.msra.mxu0 0
  %7846 = vmatprep.subr.bf16.mxu0 0
  %7847 = vmatpush2.bf16.msra.mxu0 0
  %7848 = vmatprep.subr.bf16.mxu0 0
  %7849 = vmatpush2.bf16.msra.mxu0 0
  %7850 = vmatprep.subr.bf16.mxu0 0
  %7851 = vmatpush2.bf16.msra.mxu0 0
  %7852 = vmatprep.subr.bf16.mxu0 0
  %7853 = vmatpush2.bf16.msra.mxu0 0
  %7854 = vmatprep.subr.bf16.mxu0 0
  %7855 = vmatpush2.bf16.msra.mxu0 0
  %7856 = vmatprep.subr.bf16.mxu0 0
  %7857 = vmatpush2.bf16.msra.mxu0 0
  %7858 = vmatprep.mubr.bf16.mxu0 0
  %7859 = vmatmul.mubr.bf16.gmra.mxu0 %v6460
  %v7860 = vpop.f32.mrf.mxu0
  %v7861 = vadd.f32 %v7813, %v7860
  %v7862 = vpop.f32.mrf.mxu0
  %v7863 = vpop.f32.mrf.mxu0
  %v7864 = vadd.f32 %v7813, %v7863
  %v7865 = vpop.f32.mrf.mxu0
  %7866 = vdwg.mxu0
  %s7867 = scalar_lea.vmem %s5, 240
  %v7868 = vld [vmem:[%s7867] sm:$0xf]
  %v7869 = vld [vmem:[%s7867 + $0x4] sm:$0xf]
  %v7870 = vld [vmem:[%s7867 + $0x8] sm:$0xf]
  %v7871 = vld [vmem:[%s7867 + $0xc] sm:$0xf]
  %v7872 = vlaneseq
  %v7873 = vshrl.u32 %v7872, 7
  %v7874 = vsub.s32 1, %v7873
  %v7875 = vrot.slane %v7804, %v7874
  %v7880 = vunpack.c.l.b16 %v7868
  %v7881 = vunpack.c.l.b16 %v7869
  %v7882 = vunpack.c.l.b16 %v7870
  %v7883 = vunpack.c.l.b16 %v7871
  %v7884 = vpack.c.b16 %v7881, %v7880
  %v7885 = vpack.c.b16 %v7883, %v7882
  %7888 = vmatprep.subr.bf16.mxu0 0
  %7889 = vmatpush1.bf16.msra.mxu0 0
  %7890 = vmatprep.subr.bf16.mxu0 0
  %7891 = vmatpush1.bf16.msra.mxu0 0
  %7892 = vmatprep.subr.bf16.mxu0 0
  %7893 = vmatpush1.bf16.msra.mxu0 0
  %7894 = vmatprep.subr.bf16.mxu0 0
  %7895 = vmatpush1.bf16.msra.mxu0 0
  %7896 = vmatprep.subr.bf16.mxu0 0
  %7897 = vmatpush1.bf16.msra.mxu0 0
  %7898 = vmatprep.subr.bf16.mxu0 0
  %7899 = vmatpush1.bf16.msra.mxu0 0
  %7900 = vmatprep.subr.bf16.mxu0 0
  %7901 = vmatpush1.bf16.msra.mxu0 %v7885
  %7902 = vmatprep.subr.bf16.mxu0 0
  %7903 = vmatpush1.bf16.msra.mxu0 %v7884
  %7904 = vmatprep.subr.bf16.mxu0 0
  %7905 = vmatpush2.bf16.msra.mxu0 0
  %7906 = vmatprep.subr.bf16.mxu0 0
  %7907 = vmatpush2.bf16.msra.mxu0 0
  %7908 = vmatprep.subr.bf16.mxu0 0
  %7909 = vmatpush2.bf16.msra.mxu0 0
  %7910 = vmatprep.subr.bf16.mxu0 0
  %7911 = vmatpush2.bf16.msra.mxu0 0
  %7912 = vmatprep.subr.bf16.mxu0 0
  %7913 = vmatpush2.bf16.msra.mxu0 0
  %7914 = vmatprep.subr.bf16.mxu0 0
  %7915 = vmatpush2.bf16.msra.mxu0 0
  %7916 = vmatprep.subr.bf16.mxu0 0
  %7917 = vmatpush2.bf16.msra.mxu0 0
  %7918 = vmatprep.subr.bf16.mxu0 0
  %7919 = vmatpush2.bf16.msra.mxu0 0
  %7920 = vmatprep.mubr.bf16.mxu0 0
  %7921 = vmatmul.mubr.bf16.gmra.mxu0 %v6460
  %v7922 = vpop.f32.mrf.mxu0
  %v7923 = vadd.f32 %v7875, %v7922
  %v7924 = vpop.f32.mrf.mxu0
  %v7925 = vpop.f32.mrf.mxu0
  %v7926 = vadd.f32 %v7875, %v7925
  %v7927 = vpop.f32.mrf.mxu0
  %7928 = vdwg.mxu0
  %s7929 = scalar_lea.vmem %s6, 240
  %v7930 = vld [vmem:[%s7929] sm:$0xf]
  %v7931 = vld [vmem:[%s7929 + $0x4] sm:$0xf]
  %v7932 = vld [vmem:[%s7929 + $0x8] sm:$0xf]
  %v7933 = vld [vmem:[%s7929 + $0xc] sm:$0xf]
  %v7934 = vlaneseq
  %v7935 = vshrl.u32 %v7934, 7
  %v7936 = vsub.s32 2, %v7935
  %v7937 = vrot.slane %v7804, %v7936
  %v7942 = vunpack.c.l.b16 %v7930
  %v7943 = vunpack.c.l.b16 %v7931
  %v7944 = vunpack.c.l.b16 %v7932
  %v7945 = vunpack.c.l.b16 %v7933
  %v7946 = vpack.c.b16 %v7943, %v7942
  %v7947 = vpack.c.b16 %v7945, %v7944
  %7950 = vmatprep.subr.bf16.mxu0 0
  %7951 = vmatpush1.bf16.msra.mxu0 0
  %7952 = vmatprep.subr.bf16.mxu0 0
  %7953 = vmatpush1.bf16.msra.mxu0 0
  %7954 = vmatprep.subr.bf16.mxu0 0
  %7955 = vmatpush1.bf16.msra.mxu0 0
  %7956 = vmatprep.subr.bf16.mxu0 0
  %7957 = vmatpush1.bf16.msra.mxu0 0
  %7958 = vmatprep.subr.bf16.mxu0 0
  %7959 = vmatpush1.bf16.msra.mxu0 0
  %7960 = vmatprep.subr.bf16.mxu0 0
  %7961 = vmatpush1.bf16.msra.mxu0 0
  %7962 = vmatprep.subr.bf16.mxu0 0
  %7963 = vmatpush1.bf16.msra.mxu0 %v7947
  %7964 = vmatprep.subr.bf16.mxu0 0
  %7965 = vmatpush1.bf16.msra.mxu0 %v7946
  %7966 = vmatprep.subr.bf16.mxu0 0
  %7967 = vmatpush2.bf16.msra.mxu0 0
  %7968 = vmatprep.subr.bf16.mxu0 0
  %7969 = vmatpush2.bf16.msra.mxu0 0
  %7970 = vmatprep.subr.bf16.mxu0 0
  %7971 = vmatpush2.bf16.msra.mxu0 0
  %7972 = vmatprep.subr.bf16.mxu0 0
  %7973 = vmatpush2.bf16.msra.mxu0 0
  %7974 = vmatprep.subr.bf16.mxu0 0
  %7975 = vmatpush2.bf16.msra.mxu0 0
  %7976 = vmatprep.subr.bf16.mxu0 0
  %7977 = vmatpush2.bf16.msra.mxu0 0
  %7978 = vmatprep.subr.bf16.mxu0 0
  %7979 = vmatpush2.bf16.msra.mxu0 0
  %7980 = vmatprep.subr.bf16.mxu0 0
  %7981 = vmatpush2.bf16.msra.mxu0 0
  %7982 = vmatprep.mubr.bf16.mxu0 0
  %7983 = vmatmul.mubr.bf16.gmra.mxu0 %v6460
  %v7984 = vpop.f32.mrf.mxu0
  %v7985 = vadd.f32 %v7937, %v7984
  %v7986 = vpop.f32.mrf.mxu0
  %v7987 = vpop.f32.mrf.mxu0
  %v7988 = vadd.f32 %v7937, %v7987
  %v7989 = vpop.f32.mrf.mxu0
  %7990 = vdwg.mxu0
  %v7991 = vpack.c.bf16 %v7861, %v7861
  %v7992 = vpack.c.bf16 %v7864, %v7864
  %v7993 = vpack.c.bf16 %v7923, %v7923
  %v7994 = vpack.c.bf16 %v7926, %v7926
  %v7995 = vpack.c.bf16 %v7985, %v7985
  %v7996 = vpack.c.bf16 %v7988, %v7988
  %v7998 = vsel %vm62, %v7991, 0
  %v8001 = vsel %vm62, %v7993, 0
  %8003 = vmatprep.subr.bf16.mxu0 0
  %8004 = vmatpush1.bf16.xpose.msra.mxu0 0
  %8005 = vmatprep.subr.bf16.mxu0 0
  %8006 = vmatpush1.bf16.xpose.msra.mxu0 0
  %8007 = vmatprep.subr.bf16.mxu0 0
  %8008 = vmatpush1.bf16.xpose.msra.mxu0 0
  %8009 = vmatprep.subr.bf16.mxu0 0
  %8010 = vmatpush1.bf16.xpose.msra.mxu0 0
  %8011 = vmatprep.subr.bf16.mxu0 0
  %8012 = vmatpush1.bf16.xpose.msra.mxu0 0
  %8013 = vmatprep.subr.bf16.mxu0 0
  %8014 = vmatpush1.bf16.xpose.msra.mxu0 0
  %8015 = vmatprep.subr.bf16.mxu0 0
  %8016 = vmatpush1.bf16.xpose.msra.mxu0 0
  %8017 = vmatprep.subr.bf16.mxu0 0
  %8018 = vmatpush1.bf16.xpose.msra.mxu0 %v8001
  %8019 = vmatprep.subr.bf16.mxu0 0
  %8020 = vmatpush2.bf16.xpose.msra.mxu0 0
  %8021 = vmatprep.subr.bf16.mxu0 0
  %8022 = vmatpush2.bf16.xpose.msra.mxu0 0
  %8023 = vmatprep.subr.bf16.mxu0 0
  %8024 = vmatpush2.bf16.xpose.msra.mxu0 0
  %8025 = vmatprep.subr.bf16.mxu0 0
  %8026 = vmatpush2.bf16.xpose.msra.mxu0 0
  %8027 = vmatprep.subr.bf16.mxu0 0
  %8028 = vmatpush2.bf16.xpose.msra.mxu0 0
  %8029 = vmatprep.subr.bf16.mxu0 0
  %8030 = vmatpush2.bf16.xpose.msra.mxu0 0
  %8031 = vmatprep.subr.bf16.mxu0 0
  %8032 = vmatpush2.bf16.xpose.msra.mxu0 0
  %8033 = vmatprep.subr.bf16.mxu0 0
  %8034 = vmatpush2.bf16.xpose.msra.mxu0 0
  %8035 = vmatprep.mubr.bf16.mxu0 0
  %8036 = vmatmul.mubr.bf16.gmra.mxu0 %v7998
  %v8037 = vpop.f32.mrf.mxu0
  %v8038 = vadd.f32 0.0, %v8037
  %v8039 = vpop.f32.mrf.mxu0
  %v8040 = vpop.f32.mrf.mxu0
  %v8041 = vpop.f32.mrf.mxu0
  %8042 = vdwg.mxu0
  %v8044 = vsel %vm62, %v7992, 0
  %v8047 = vsel %vm62, %v7994, 0
  %8049 = vmatprep.subr.bf16.mxu0 0
  %8050 = vmatpush1.bf16.xpose.msra.mxu0 0
  %8051 = vmatprep.subr.bf16.mxu0 0
  %8052 = vmatpush1.bf16.xpose.msra.mxu0 0
  %8053 = vmatprep.subr.bf16.mxu0 0
  %8054 = vmatpush1.bf16.xpose.msra.mxu0 0
  %8055 = vmatprep.subr.bf16.mxu0 0
  %8056 = vmatpush1.bf16.xpose.msra.mxu0 0
  %8057 = vmatprep.subr.bf16.mxu0 0
  %8058 = vmatpush1.bf16.xpose.msra.mxu0 0
  %8059 = vmatprep.subr.bf16.mxu0 0
  %8060 = vmatpush1.bf16.xpose.msra.mxu0 0
  %8061 = vmatprep.subr.bf16.mxu0 0
  %8062 = vmatpush1.bf16.xpose.msra.mxu0 0
  %8063 = vmatprep.subr.bf16.mxu0 0
  %8064 = vmatpush1.bf16.xpose.msra.mxu0 %v8047
  %8065 = vmatprep.subr.bf16.mxu0 0
  %8066 = vmatpush2.bf16.xpose.msra.mxu0 0
  %8067 = vmatprep.subr.bf16.mxu0 0
  %8068 = vmatpush2.bf16.xpose.msra.mxu0 0
  %8069 = vmatprep.subr.bf16.mxu0 0
  %8070 = vmatpush2.bf16.xpose.msra.mxu0 0
  %8071 = vmatprep.subr.bf16.mxu0 0
  %8072 = vmatpush2.bf16.xpose.msra.mxu0 0
  %8073 = vmatprep.subr.bf16.mxu0 0
  %8074 = vmatpush2.bf16.xpose.msra.mxu0 0
  %8075 = vmatprep.subr.bf16.mxu0 0
  %8076 = vmatpush2.bf16.xpose.msra.mxu0 0
  %8077 = vmatprep.subr.bf16.mxu0 0
  %8078 = vmatpush2.bf16.xpose.msra.mxu0 0
  %8079 = vmatprep.subr.bf16.mxu0 0
  %8080 = vmatpush2.bf16.xpose.msra.mxu0 0
  %8081 = vmatprep.mubr.bf16.mxu0 0
  %8082 = vmatmul.mubr.bf16.gmra.mxu0 %v8044
  %v8083 = vpop.f32.mrf.mxu0
  %v8084 = vadd.f32 0.0, %v8083
  %v8085 = vpop.f32.mrf.mxu0
  %v8086 = vpop.f32.mrf.mxu0
  %v8087 = vpop.f32.mrf.mxu0
  %8088 = vdwg.mxu0
  %v8089 = vmul.f32 %v8038, 0.35355338
  %v8090 = vmul.f32 %v8084, 0.35355338
  %v8091 = vsel %vm62, %v8089, -inf
  %8092 = vmax.xlane.f32.xlu0 %v8091
  %v8093 = vpop.xlane.xlu0 %8092
  %v8094 = vsel %vm62, %v8090, -inf
  %8095 = vmax.xlane.f32.xlu0 %v8094
  %v8096 = vpop.xlane.xlu0 %8095
  %v8097 = vsub.f32 %v8089, %v8093
  %v8098 = vsub.f32 %v8090, %v8096
  %v8099 = vmul.f32 %v8097, 1.442695
  %v8100 = vpow.pop %v8099
  %v8101 = vmul.f32 %v8098, 1.442695
  %v8102 = vpow.pop %v8101
  %v8103 = vsel %vm62, %v8100, 0.0
  %8104 = vadd.xlane.f32.xlu0 %v8103
  %v8105 = vpop.xlane.xlu0 %8104
  %v8106 = vsel %vm62, %v8102, 0.0
  %8107 = vadd.xlane.f32.xlu0 %v8106
  %v8108 = vpop.xlane.xlu0 %8107
  %v8109 = vrcp.pop %v8105
  %v8110 = vrcp.pop %v8108
  %v8111 = vmul.f32 %v8100, %v8109
  %v8112 = vmul.f32 %v8102, %v8110
  %v8113 = vpack.c.bf16 %v8111, %v8111
  %v8114 = vpack.c.bf16 %v8112, %v8112
  %v8116 = vsel %vm62, %v8113, 0
  %v8119 = vsel %vm66, %v7995, 0
  %8121 = vmatprep.subr.bf16.mxu0 0
  %8122 = vmatpush1.bf16.msra.mxu0 0
  %8123 = vmatprep.subr.bf16.mxu0 0
  %8124 = vmatpush1.bf16.msra.mxu0 0
  %8125 = vmatprep.subr.bf16.mxu0 0
  %8126 = vmatpush1.bf16.msra.mxu0 0
  %8127 = vmatprep.subr.bf16.mxu0 0
  %8128 = vmatpush1.bf16.msra.mxu0 0
  %8129 = vmatprep.subr.bf16.mxu0 0
  %8130 = vmatpush1.bf16.msra.mxu0 0
  %8131 = vmatprep.subr.bf16.mxu0 0
  %8132 = vmatpush1.bf16.msra.mxu0 0
  %8133 = vmatprep.subr.bf16.mxu0 0
  %8134 = vmatpush1.bf16.msra.mxu0 0
  %8135 = vmatprep.subr.bf16.mxu0 0
  %8136 = vmatpush1.bf16.msra.mxu0 %v8119
  %8137 = vmatprep.subr.bf16.mxu0 0
  %8138 = vmatpush2.bf16.msra.mxu0 0
  %8139 = vmatprep.subr.bf16.mxu0 0
  %8140 = vmatpush2.bf16.msra.mxu0 0
  %8141 = vmatprep.subr.bf16.mxu0 0
  %8142 = vmatpush2.bf16.msra.mxu0 0
  %8143 = vmatprep.subr.bf16.mxu0 0
  %8144 = vmatpush2.bf16.msra.mxu0 0
  %8145 = vmatprep.subr.bf16.mxu0 0
  %8146 = vmatpush2.bf16.msra.mxu0 0
  %8147 = vmatprep.subr.bf16.mxu0 0
  %8148 = vmatpush2.bf16.msra.mxu0 0
  %8149 = vmatprep.subr.bf16.mxu0 0
  %8150 = vmatpush2.bf16.msra.mxu0 0
  %8151 = vmatprep.subr.bf16.mxu0 0
  %8152 = vmatpush2.bf16.msra.mxu0 0
  %8153 = vmatprep.mubr.bf16.mxu0 0
  %8154 = vmatmul.mubr.bf16.gmra.mxu0 %v8116
  %v8155 = vpop.f32.mrf.mxu0
  %v8156 = vadd.f32 0.0, %v8155
  %v8157 = vpop.f32.mrf.mxu0
  %v8158 = vpop.f32.mrf.mxu0
  %v8159 = vpop.f32.mrf.mxu0
  %8160 = vdwg.mxu0
  %v8162 = vsel %vm62, %v8114, 0
  %v8165 = vsel %vm66, %v7996, 0
  %8167 = vmatprep.subr.bf16.mxu0 0
  %8168 = vmatpush1.bf16.msra.mxu0 0
  %8169 = vmatprep.subr.bf16.mxu0 0
  %8170 = vmatpush1.bf16.msra.mxu0 0
  %8171 = vmatprep.subr.bf16.mxu0 0
  %8172 = vmatpush1.bf16.msra.mxu0 0
  %8173 = vmatprep.subr.bf16.mxu0 0
  %8174 = vmatpush1.bf16.msra.mxu0 0
  %8175 = vmatprep.subr.bf16.mxu0 0
  %8176 = vmatpush1.bf16.msra.mxu0 0
  %8177 = vmatprep.subr.bf16.mxu0 0
  %8178 = vmatpush1.bf16.msra.mxu0 0
  %8179 = vmatprep.subr.bf16.mxu0 0
  %8180 = vmatpush1.bf16.msra.mxu0 0
  %8181 = vmatprep.subr.bf16.mxu0 0
  %8182 = vmatpush1.bf16.msra.mxu0 %v8165
  %8183 = vmatprep.subr.bf16.mxu0 0
  %8184 = vmatpush2.bf16.msra.mxu0 0
  %8185 = vmatprep.subr.bf16.mxu0 0
  %8186 = vmatpush2.bf16.msra.mxu0 0
  %8187 = vmatprep.subr.bf16.mxu0 0
  %8188 = vmatpush2.bf16.msra.mxu0 0
  %8189 = vmatprep.subr.bf16.mxu0 0
  %8190 = vmatpush2.bf16.msra.mxu0 0
  %8191 = vmatprep.subr.bf16.mxu0 0
  %8192 = vmatpush2.bf16.msra.mxu0 0
  %8193 = vmatprep.subr.bf16.mxu0 0
  %8194 = vmatpush2.bf16.msra.mxu0 0
  %8195 = vmatprep.subr.bf16.mxu0 0
  %8196 = vmatpush2.bf16.msra.mxu0 0
  %8197 = vmatprep.subr.bf16.mxu0 0
  %8198 = vmatpush2.bf16.msra.mxu0 0
  %8199 = vmatprep.mubr.bf16.mxu0 0
  %8200 = vmatmul.mubr.bf16.gmra.mxu0 %v8162
  %v8201 = vpop.f32.mrf.mxu0
  %v8202 = vadd.f32 0.0, %v8201
  %v8203 = vpop.f32.mrf.mxu0
  %v8204 = vpop.f32.mrf.mxu0
  %v8205 = vpop.f32.mrf.mxu0
  %8206 = vdwg.mxu0
  %v8207 = vpack.c.bf16 %v8202, %v8156
  %s8208 = scalar_lea.vmem %s7, 60
  %v8209 = vld [vmem:[%s8208] sm:$0xf]
  %v8211 = vsel %vm62, %v8207, 0
  %v8214 = vsel %vm66, %v8209, 0
  %8216 = vmatprep.subr.bf16.mxu0 0
  %8217 = vmatpush1.bf16.msra.mxu0 0
  %8218 = vmatprep.subr.bf16.mxu0 0
  %8219 = vmatpush1.bf16.msra.mxu0 0
  %8220 = vmatprep.subr.bf16.mxu0 0
  %8221 = vmatpush1.bf16.msra.mxu0 0
  %8222 = vmatprep.subr.bf16.mxu0 0
  %8223 = vmatpush1.bf16.msra.mxu0 0
  %8224 = vmatprep.subr.bf16.mxu0 0
  %8225 = vmatpush1.bf16.msra.mxu0 0
  %8226 = vmatprep.subr.bf16.mxu0 0
  %8227 = vmatpush1.bf16.msra.mxu0 0
  %8228 = vmatprep.subr.bf16.mxu0 0
  %8229 = vmatpush1.bf16.msra.mxu0 0
  %8230 = vmatprep.subr.bf16.mxu0 0
  %8231 = vmatpush1.bf16.msra.mxu0 %v8214
  %8232 = vmatprep.subr.bf16.mxu0 0
  %8233 = vmatpush2.bf16.msra.mxu0 0
  %8234 = vmatprep.subr.bf16.mxu0 0
  %8235 = vmatpush2.bf16.msra.mxu0 0
  %8236 = vmatprep.subr.bf16.mxu0 0
  %8237 = vmatpush2.bf16.msra.mxu0 0
  %8238 = vmatprep.subr.bf16.mxu0 0
  %8239 = vmatpush2.bf16.msra.mxu0 0
  %8240 = vmatprep.subr.bf16.mxu0 0
  %8241 = vmatpush2.bf16.msra.mxu0 0
  %8242 = vmatprep.subr.bf16.mxu0 0
  %8243 = vmatpush2.bf16.msra.mxu0 0
  %8244 = vmatprep.subr.bf16.mxu0 0
  %8245 = vmatpush2.bf16.msra.mxu0 0
  %8246 = vmatprep.subr.bf16.mxu0 0
  %8247 = vmatpush2.bf16.msra.mxu0 0
  %8248 = vmatprep.mubr.bf16.mxu0 0
  %8249 = vmatmul.mubr.bf16.gmra.mxu0 %v8211
  %v8250 = vpop.f32.mrf.mxu0
  %v8251 = vadd.f32 0.0, %v8250
  %v8252 = vpop.f32.mrf.mxu0
  %v8253 = vpop.f32.mrf.mxu0
  %v8254 = vadd.f32 0.0, %v8253
  %v8255 = vpop.f32.mrf.mxu0
  %8256 = vdwg.mxu0
  %v8257 = vadd.f32 %v7801, %v8251
  %v8258 = vadd.f32 %v7802, %v8254
  %v8259 = vlaneseq
  %v8260 = vshrl.u32 %v8259, 7
  %v8261 = vsub.s32 0, %v8260
  %v8262 = vrot.slane %v6435, %v8261
  %v8263 = vadd.f32 %v8257, %v8262
  %v8264 = vadd.f32 %v8258, %v8262
  %v8265 = vadd.f32 %v6431, %v8263
  %v8266 = vadd.f32 %v6432, %v8264
  %v8267 = vsel %vm115, %v8265, 0.0
  %8268 = vadd.xlane.f32.xlu0 %v8267
  %v8269 = vpop.xlane.xlu0 %8268
  %v8270 = vsel %vm115, %v8266, 0.0
  %8271 = vadd.xlane.f32.xlu0 %v8270
  %v8272 = vpop.xlane.xlu0 %8271
  %v8273 = vmul.f32 %v8269, %v1954
  %v8274 = vmul.f32 %v8272, %v1954
  %v8275 = vsub.f32 %v8265, %v8273
  %v8276 = vsub.f32 %v8266, %v8274
  %v8277 = vmul.f32 %v8275, %v8275
  %v8278 = vmul.f32 %v8276, %v8276
  %v8279 = vsel %vm115, %v8277, 0.0
  %8280 = vadd.xlane.f32.xlu0 %v8279
  %v8281 = vpop.xlane.xlu0 %8280
  %v8282 = vsel %vm115, %v8278, 0.0
  %8283 = vadd.xlane.f32.xlu0 %v8282
  %v8284 = vpop.xlane.xlu0 %8283
  %v8285 = vmul.f32 %v8281, %v1954
  %v8286 = vmul.f32 %v8284, %v1954
  %v8287 = vadd.f32 %v8285, 1e-05
  %v8288 = vadd.f32 %v8286, 1e-05
  %v8289 = vrsqrt.pop %v8287
  %v8290 = vrsqrt.pop %v8288
  %v8291 = vmul.f32 %v8275, %v8289
  %v8292 = vmul.f32 %v8276, %v8290
  %v8293 = vlaneseq
  %v8294 = vshrl.u32 %v8293, 7
  %v8295 = vsub.s32 1, %v8294
  %v8296 = vrot.slane %v6435, %v8295
  %v8297 = vmul.f32 %v8291, %v8296
  %v8298 = vmul.f32 %v8292, %v8296
  %v8299 = vlaneseq
  %v8300 = vshrl.u32 %v8299, 7
  %v8301 = vsub.s32 2, %v8300
  %v8302 = vrot.slane %v6435, %v8301
  %v8303 = vadd.f32 %v8297, %v8302
  %v8304 = vadd.f32 %v8298, %v8302
  %v8305 = vpack.c.bf16 %v8304, %v8303
  %s8306 = scalar_lea.vmem %s9, 48
  %v8307 = vld [vmem:[%s8306] sm:$0xf]
  %v8308 = vld [vmem:[%s8306 + $0x4] sm:$0xf]
  %v8309 = vld [vmem:[%s8306 + $0x8] sm:$0xf]
  %v8310 = vld [vmem:[%s8306 + $0xc] sm:$0xf]
  %s8311 = scalar_lea.vmem %s10, 3
  %v8312 = vld [vmem:[%s8311] sm:$0x1]
  %v8314 = vlaneseq
  %v8315 = vshrl.u32 %v8314, 7
  %v8316 = vsub.s32 0, %v8315
  %v8317 = vrot.slane %v8312, %v8316
  %v8323 = vunpack.c.l.b16 %v8307
  %v8324 = vunpack.c.l.b16 %v8308
  %v8325 = vunpack.c.l.b16 %v8309
  %v8326 = vunpack.c.l.b16 %v8310
  %v8327 = vpack.c.b16 %v8324, %v8323
  %v8328 = vpack.c.b16 %v8326, %v8325
  %v8332 = vsel %vm115, %v8305, 0
  %8334 = vmatprep.subr.bf16.mxu0 0
  %8335 = vmatpush1.bf16.msra.mxu0 0
  %8336 = vmatprep.subr.bf16.mxu0 0
  %8337 = vmatpush1.bf16.msra.mxu0 0
  %8338 = vmatprep.subr.bf16.mxu0 0
  %8339 = vmatpush1.bf16.msra.mxu0 0
  %8340 = vmatprep.subr.bf16.mxu0 0
  %8341 = vmatpush1.bf16.msra.mxu0 0
  %8342 = vmatprep.subr.bf16.mxu0 0
  %8343 = vmatpush1.bf16.msra.mxu0 0
  %8344 = vmatprep.subr.bf16.mxu0 0
  %8345 = vmatpush1.bf16.msra.mxu0 0
  %8346 = vmatprep.subr.bf16.mxu0 0
  %8347 = vmatpush1.bf16.msra.mxu0 %v8328
  %8348 = vmatprep.subr.bf16.mxu0 0
  %8349 = vmatpush1.bf16.msra.mxu0 %v8327
  %8350 = vmatprep.subr.bf16.mxu0 0
  %8351 = vmatpush2.bf16.msra.mxu0 0
  %8352 = vmatprep.subr.bf16.mxu0 0
  %8353 = vmatpush2.bf16.msra.mxu0 0
  %8354 = vmatprep.subr.bf16.mxu0 0
  %8355 = vmatpush2.bf16.msra.mxu0 0
  %8356 = vmatprep.subr.bf16.mxu0 0
  %8357 = vmatpush2.bf16.msra.mxu0 0
  %8358 = vmatprep.subr.bf16.mxu0 0
  %8359 = vmatpush2.bf16.msra.mxu0 0
  %8360 = vmatprep.subr.bf16.mxu0 0
  %8361 = vmatpush2.bf16.msra.mxu0 0
  %8362 = vmatprep.subr.bf16.mxu0 0
  %8363 = vmatpush2.bf16.msra.mxu0 0
  %8364 = vmatprep.subr.bf16.mxu0 0
  %8365 = vmatpush2.bf16.msra.mxu0 0
  %8366 = vmatprep.mubr.bf16.mxu0 0
  %8367 = vmatmul.mubr.bf16.gmra.mxu0 %v8332
  %v8368 = vpop.f32.mrf.mxu0
  %v8369 = vadd.f32 %v8317, %v8368
  %v8370 = vpop.f32.mrf.mxu0
  %v8371 = vpop.f32.mrf.mxu0
  %v8372 = vadd.f32 %v8317, %v8371
  %v8373 = vpop.f32.mrf.mxu0
  %8374 = vdwg.mxu0
  %v8375 = vmul.f32 %v8369, 0.5
  %v8376 = vmul.f32 %v8372, 0.5
  %v8377 = vmul.f32 %v8369, 0.70710677
  %v8378 = vmul.f32 %v8372, 0.70710677
  %v8379 = verf.f32.pop %v8377
  %v8380 = verf.f32.pop %v8378
  %v8381 = vadd.f32 %v8379, 1.0
  %v8382 = vadd.f32 %v8380, 1.0
  %v8383 = vmul.f32 %v8375, %v8381
  %v8384 = vmul.f32 %v8376, %v8382
  %v8385 = vpack.c.bf16 %v8384, %v8383
  %s8386 = scalar_lea.vmem %s11, 192
  %v8387 = vld [vmem:[%s8386] sm:$0xf]
  %v8388 = vld [vmem:[%s8386 + $0x4] sm:$0xf]
  %v8389 = vld [vmem:[%s8386 + $0x8] sm:$0xf]
  %v8390 = vld [vmem:[%s8386 + $0xc] sm:$0xf]
  %v8391 = vld [vmem:[%s8386 + $0x10] sm:$0xf]
  %v8392 = vld [vmem:[%s8386 + $0x14] sm:$0xf]
  %v8393 = vld [vmem:[%s8386 + $0x18] sm:$0xf]
  %v8394 = vld [vmem:[%s8386 + $0x1c] sm:$0xf]
  %v8395 = vld [vmem:[%s8386 + $0x20] sm:$0xf]
  %v8396 = vld [vmem:[%s8386 + $0x24] sm:$0xf]
  %v8397 = vld [vmem:[%s8386 + $0x28] sm:$0xf]
  %v8398 = vld [vmem:[%s8386 + $0x2c] sm:$0xf]
  %v8399 = vld [vmem:[%s8386 + $0x30] sm:$0xf]
  %v8400 = vld [vmem:[%s8386 + $0x34] sm:$0xf]
  %v8401 = vld [vmem:[%s8386 + $0x38] sm:$0xf]
  %v8402 = vld [vmem:[%s8386 + $0x3c] sm:$0xf]
  %v8403 = vlaneseq
  %v8404 = vshrl.u32 %v8403, 7
  %v8405 = vsub.s32 3, %v8404
  %v8406 = vrot.slane %v6435, %v8405
  %v8423 = vunpack.c.l.b16 %v8387
  %v8424 = vunpack.c.l.b16 %v8388
  %v8425 = vunpack.c.l.b16 %v8389
  %v8426 = vunpack.c.l.b16 %v8390
  %v8427 = vunpack.c.l.b16 %v8391
  %v8428 = vunpack.c.l.b16 %v8392
  %v8429 = vunpack.c.l.b16 %v8393
  %v8430 = vunpack.c.l.b16 %v8394
  %v8431 = vunpack.c.l.b16 %v8395
  %v8432 = vunpack.c.l.b16 %v8396
  %v8433 = vunpack.c.l.b16 %v8397
  %v8434 = vunpack.c.l.b16 %v8398
  %v8435 = vunpack.c.l.b16 %v8399
  %v8436 = vunpack.c.l.b16 %v8400
  %v8437 = vunpack.c.l.b16 %v8401
  %v8438 = vunpack.c.l.b16 %v8402
  %v8439 = vpack.c.b16 %v8424, %v8423
  %v8440 = vpack.c.b16 %v8426, %v8425
  %v8441 = vpack.c.b16 %v8428, %v8427
  %v8442 = vpack.c.b16 %v8430, %v8429
  %v8443 = vpack.c.b16 %v8432, %v8431
  %v8444 = vpack.c.b16 %v8434, %v8433
  %v8445 = vpack.c.b16 %v8436, %v8435
  %v8446 = vpack.c.b16 %v8438, %v8437
  %8455 = vmatprep.subr.bf16.mxu0 0
  %8456 = vmatpush1.bf16.msra.mxu0 %v8446
  %8457 = vmatprep.subr.bf16.mxu0 0
  %8458 = vmatpush1.bf16.msra.mxu0 %v8445
  %8459 = vmatprep.subr.bf16.mxu0 0
  %8460 = vmatpush1.bf16.msra.mxu0 %v8444
  %8461 = vmatprep.subr.bf16.mxu0 0
  %8462 = vmatpush1.bf16.msra.mxu0 %v8443
  %8463 = vmatprep.subr.bf16.mxu0 0
  %8464 = vmatpush1.bf16.msra.mxu0 %v8442
  %8465 = vmatprep.subr.bf16.mxu0 0
  %8466 = vmatpush1.bf16.msra.mxu0 %v8441
  %8467 = vmatprep.subr.bf16.mxu0 0
  %8468 = vmatpush1.bf16.msra.mxu0 %v8440
  %8469 = vmatprep.subr.bf16.mxu0 0
  %8470 = vmatpush1.bf16.msra.mxu0 %v8439
  %8471 = vmatprep.subr.bf16.mxu0 0
  %8472 = vmatpush2.bf16.msra.mxu0 0
  %8473 = vmatprep.subr.bf16.mxu0 0
  %8474 = vmatpush2.bf16.msra.mxu0 0
  %8475 = vmatprep.subr.bf16.mxu0 0
  %8476 = vmatpush2.bf16.msra.mxu0 0
  %8477 = vmatprep.subr.bf16.mxu0 0
  %8478 = vmatpush2.bf16.msra.mxu0 0
  %8479 = vmatprep.subr.bf16.mxu0 0
  %8480 = vmatpush2.bf16.msra.mxu0 0
  %8481 = vmatprep.subr.bf16.mxu0 0
  %8482 = vmatpush2.bf16.msra.mxu0 0
  %8483 = vmatprep.subr.bf16.mxu0 0
  %8484 = vmatpush2.bf16.msra.mxu0 0
  %8485 = vmatprep.subr.bf16.mxu0 0
  %8486 = vmatpush2.bf16.msra.mxu0 0
  %8487 = vmatprep.mubr.bf16.mxu0 0
  %8488 = vmatmul.mubr.bf16.gmra.mxu0 %v8385
  %v8489 = vpop.f32.mrf.mxu0
  %v8490 = vadd.f32 %v8406, %v8489
  %v8491 = vpop.f32.mrf.mxu0
  %v8492 = vpop.f32.mrf.mxu0
  %v8493 = vadd.f32 %v8406, %v8492
  %v8494 = vpop.f32.mrf.mxu0
  %8495 = vdwg.mxu0
  %v8496 = vadd.f32 %v8303, %v8490
  %v8497 = vadd.f32 %v8304, %v8493
  %v8498 = vsel %vm115, %v8496, 0.0
  %8499 = vadd.xlane.f32.xlu0 %v8498
  %v8500 = vpop.xlane.xlu0 %8499
  %v8501 = vsel %vm115, %v8497, 0.0
  %8502 = vadd.xlane.f32.xlu0 %v8501
  %v8503 = vpop.xlane.xlu0 %8502
  %v8504 = vmul.f32 %v8500, %v1954
  %v8505 = vmul.f32 %v8503, %v1954
  %v8506 = vsub.f32 %v8496, %v8504
  %v8507 = vsub.f32 %v8497, %v8505
  %v8508 = vmul.f32 %v8506, %v8506
  %v8509 = vmul.f32 %v8507, %v8507
  %v8510 = vsel %vm115, %v8508, 0.0
  %8511 = vadd.xlane.f32.xlu0 %v8510
  %v8512 = vpop.xlane.xlu0 %8511
  %v8513 = vsel %vm115, %v8509, 0.0
  %8514 = vadd.xlane.f32.xlu0 %v8513
  %v8515 = vpop.xlane.xlu0 %8514
  %v8516 = vmul.f32 %v8512, %v1954
  %v8517 = vmul.f32 %v8515, %v1954
  %v8518 = vadd.f32 %v8516, 1e-05
  %v8519 = vadd.f32 %v8517, 1e-05
  %v8520 = vrsqrt.pop %v8518
  %v8521 = vrsqrt.pop %v8519
  %v8522 = vmul.f32 %v8506, %v8520
  %v8523 = vmul.f32 %v8507, %v8521
  %v8524 = vlaneseq
  %v8525 = vshrl.u32 %v8524, 7
  %v8526 = vsub.s32 4, %v8525
  %v8527 = vrot.slane %v6435, %v8526
  %v8528 = vmul.f32 %v8522, %v8527
  %v8529 = vmul.f32 %v8523, %v8527
  %v8530 = vlaneseq
  %v8531 = vshrl.u32 %v8530, 7
  %v8532 = vsub.s32 5, %v8531
  %v8533 = vrot.slane %v6435, %v8532
  %v8534 = vadd.f32 %v8528, %v8533
  %v8535 = vadd.f32 %v8529, %v8533
  %8536 = vst.msk [vmem:[#allocation2] sm:$0xff] %vm115, %v8534
  %8537 = vst.msk [vmem:[#allocation2 + $0x8] sm:$0xff] %vm115, %v8535
  %v8538 = vld [vmem:[#allocation2] sm:$0xff]
  %v8539 = vld [vmem:[#allocation2 + $0x8] sm:$0xff]
  %v8540 = vpack.c.bf16 %v8539, %v8538
  %v8541 = vld [vmem:[%s13] sm:$0xf]
  %v8542 = vld [vmem:[%s13 + $0x4] sm:$0xf]
  %v8543 = vld [vmem:[%s13 + $0x8] sm:$0xf]
  %v8544 = vld [vmem:[%s13 + $0xc] sm:$0xf]
  %v8545 = vld [vmem:[%s14] sm:$0x1]
  %v8547 = vlaneseq
  %v8548 = vshrl.u32 %v8547, 7
  %v8549 = vsub.s32 0, %v8548
  %v8550 = vrot.slane %v8545, %v8549
  %v8556 = vunpack.c.l.b16 %v8541
  %v8557 = vunpack.c.l.b16 %v8542
  %v8558 = vunpack.c.l.b16 %v8543
  %v8559 = vunpack.c.l.b16 %v8544
  %v8560 = vpack.c.b16 %v8557, %v8556
  %v8561 = vpack.c.b16 %v8559, %v8558
  %v8565 = vsel %vm115, %v8540, 0
  %8567 = vmatprep.subr.bf16.mxu0 0
  %8568 = vmatpush1.bf16.msra.mxu0 0
  %8569 = vmatprep.subr.bf16.mxu0 0
  %8570 = vmatpush1.bf16.msra.mxu0 0
  %8571 = vmatprep.subr.bf16.mxu0 0
  %8572 = vmatpush1.bf16.msra.mxu0 0
  %8573 = vmatprep.subr.bf16.mxu0 0
  %8574 = vmatpush1.bf16.msra.mxu0 0
  %8575 = vmatprep.subr.bf16.mxu0 0
  %8576 = vmatpush1.bf16.msra.mxu0 0
  %8577 = vmatprep.subr.bf16.mxu0 0
  %8578 = vmatpush1.bf16.msra.mxu0 0
  %8579 = vmatprep.subr.bf16.mxu0 0
  %8580 = vmatpush1.bf16.msra.mxu0 %v8561
  %8581 = vmatprep.subr.bf16.mxu0 0
  %8582 = vmatpush1.bf16.msra.mxu0 %v8560
  %8583 = vmatprep.subr.bf16.mxu0 0
  %8584 = vmatpush2.bf16.msra.mxu0 0
  %8585 = vmatprep.subr.bf16.mxu0 0
  %8586 = vmatpush2.bf16.msra.mxu0 0
  %8587 = vmatprep.subr.bf16.mxu0 0
  %8588 = vmatpush2.bf16.msra.mxu0 0
  %8589 = vmatprep.subr.bf16.mxu0 0
  %8590 = vmatpush2.bf16.msra.mxu0 0
  %8591 = vmatprep.subr.bf16.mxu0 0
  %8592 = vmatpush2.bf16.msra.mxu0 0
  %8593 = vmatprep.subr.bf16.mxu0 0
  %8594 = vmatpush2.bf16.msra.mxu0 0
  %8595 = vmatprep.subr.bf16.mxu0 0
  %8596 = vmatpush2.bf16.msra.mxu0 0
  %8597 = vmatprep.subr.bf16.mxu0 0
  %8598 = vmatpush2.bf16.msra.mxu0 0
  %8599 = vmatprep.mubr.bf16.mxu0 0
  %8600 = vmatmul.mubr.bf16.gmra.mxu0 %v8565
  %v8601 = vpop.f32.mrf.mxu0
  %v8602 = vadd.f32 %v8550, %v8601
  %v8603 = vpop.f32.mrf.mxu0
  %v8604 = vpop.f32.mrf.mxu0
  %v8605 = vadd.f32 %v8550, %v8604
  %v8606 = vpop.f32.mrf.mxu0
  %8607 = vdwg.mxu0
  %8608 = vst [vmem:[%s15] sm:$0xff] %v8602
  %8609 = vst [vmem:[%s15 + $0x8] sm:$0xff] %v8605
  // Predicated region
  $region62: #{transformer_diffusion_forward.1} parent=0 // pred_check
    _
  $region63: #{transformer_diffusion_forward.1} parent=0 // pred_check_branch
    %8611 = sbr.rel (0) target = $region65
  $region64: #{transformer_diffusion_forward.1} parent=0 // pred_region
    _
  $region65: #{transformer_diffusion_forward.1} parent=0 // pred_fallthru
    _
  // Predicated region
  $region66: #{transformer_diffusion_forward.1} parent=0 // pred_check
    _
  $region67: #{transformer_diffusion_forward.1} parent=0 // pred_check_branch
    %8613 = sbr.rel (0) target = $region69
  $region68: #{transformer_diffusion_forward.1} parent=0 // pred_region
    _
  $region69: #{transformer_diffusion_forward.1} parent=0 // pred_fallthru
    _

</llo_original>
